<compile_context>
chip_gen: v5e
topology: v5e:2x2
jax: 0.10.0
libtpu: 0.0.40
codegen_flags: <defaults>
</compile_context>

<pallas_src>
import functools

import jax
import jax.numpy as jnp
from jax import lax
from jax.experimental import pallas as pl
from jax.experimental.pallas import tpu as pltpu


# ----------------------------------------------------------------------------
# Fused Pallas kernel: all Mixer_Blocks + ts_map on one (L, lane_tile) tile
# ----------------------------------------------------------------------------

def _tsmixer_fused_kernel(x_ref, wt_ref, bt_ref, a_ref, c_ref, w2_ref, b2_ref,
                          wm_ref, bm_ref, o_ref, *, n_blocks, embed_dim, dot_dtype):
    """Whole TSMixer network on one lane tile (batch columns on lanes).

    x_ref  : (L, tn)       activations, compute_dtype (tn multiple of 128)
    wt_ref : (N, L, L)     time-mix Linear weights with BatchNorm2d(L) (eval) folded in
    bt_ref : (N, L, 1)     f32 folded time-mix biases
    a_ref  : (N*E,) SMEM   f32 folded feat up-proj scale  (w1 * bn_scale)
    c_ref  : (N*E,) SMEM   f32 folded feat up-proj shift  (w1 * bn_shift + b1)
    w2_ref : (N*E,) SMEM   f32 feat down-proj weights
    b2_ref : (N,)   SMEM   f32 feat down-proj biases
    wm_ref : (P, L)        ts_map weight
    bm_ref : (P, 1)        f32 ts_map bias
    o_ref  : (P, tn)       f32 output tile
    """
    x = x_ref[...].astype(jnp.float32)                                    # (L, tn)

    for n in range(n_blocks):
        # ---- MLP_Time: BN(L) folded into Linear(L, L); Dropout = identity; residual.
        y = jnp.dot(wt_ref[n], x.astype(dot_dtype),
                    preferred_element_type=jnp.float32)                   # (L, tn)
        x = x + jnp.maximum(y + bt_ref[n], 0.0)

        # ---- MLP_Feat (in_channels == 1): per-element MLP with E hidden units.
        #      x += sum_e w2[e] * relu(a[e] * x + c[e]) + b2
        base = n * embed_dim

        def body(e, acc, x=x, base=base):
            h = jnp.maximum(a_ref[base + e] * x + c_ref[base + e], 0.0)
            return acc + w2_ref[base + e] * h

        feat = lax.fori_loop(0, embed_dim, body, jnp.zeros_like(x), unroll=True)
        x = x + feat + b2_ref[n]

    # ---- ts_map: Linear(context_length, prediction_length) along time.
    out = jnp.dot(wm_ref[...], x.astype(dot_dtype), preferred_element_type=jnp.float32)
    o_ref[...] = (out + bm_ref[...]).astype(o_ref.dtype)


# ----------------------------------------------------------------------------
# Host-side parameter folding (f32, traced under jit)
# ----------------------------------------------------------------------------

def _fold_time_params(wt, bt, bn, eps, compute_dtype):
    """Fold eval-mode BatchNorm2d(L) into Linear(L, L): W' = W*s, b' = W@t + b."""
    wt = wt.astype(jnp.float32)
    bt = bt.astype(jnp.float32)
    if bn is not None:
        g, b, m, v = (p.astype(jnp.float32) for p in bn)
        s = g / jnp.sqrt(v + eps)                    # (L,)
        t = b - m * s                                # (L,)
        bt = jnp.dot(wt, t) + bt                     # fold shift into bias (uses original W)
        wt = wt * s[None, :]                         # fold scale into input dim
    return wt.astype(compute_dtype), bt.reshape(-1, 1)   # bias stays f32


def _fold_feat_params(w1, b1, w2, b2, bn, eps):
    """Fold eval-mode BatchNorm2d(1) into Linear(1, E); returns f32 (E,) vectors."""
    w1 = w1.reshape(-1).astype(jnp.float32)          # Linear(1, E).weight[:, 0]
    b1 = b1.astype(jnp.float32)
    w2 = w2.reshape(-1).astype(jnp.float32)          # Linear(E, 1).weight[0, :]
    b2 = b2.reshape(-1).astype(jnp.float32)          # (1,)
    if bn is not None:
        g, b, m, v = (p.reshape(()).astype(jnp.float32) for p in bn)
        s = g / jnp.sqrt(v + eps)
        t = b - m * s
        a = w1 * s
        c = w1 * t + b1
    else:
        a, c = w1, b1
    return a, c, w2, b2


# ----------------------------------------------------------------------------
# pallas_call wrapper (jitted)
# ----------------------------------------------------------------------------

_SMEM_SPEC = pl.BlockSpec(memory_space=pltpu.MemorySpace.SMEM)
_VMEM_LIMIT = 32 * 1024 * 1024   # explicit budget; safe on v5e/v6e (128 MiB) and v7x (64 MiB)


@functools.partial(jax.jit, static_argnames=("eps", "lane_tile", "compute_dtype"))
def _tsmixer_forward_impl(past_target, params, *, eps, lane_tile, compute_dtype):
    B, L = past_target.shape
    P = params["ts_map_w"].shape[0]
    blocks = params["blocks"]
    N = len(blocks)
    E = blocks[0]["feat_w1"].shape[0]

    # NOPScaler(keepdim=True): past_target_scaled = past_target, loc = 0, scale = 1.
    loc = jnp.zeros((B, 1), jnp.float32)
    scale = jnp.ones((B, 1), jnp.float32)
    x_scaled = past_target.astype(jnp.float32)

    # Fold eval-mode BatchNorms into the Linears (f32, fused by XLA under jit).
    wt_l, bt_l, a_l, c_l, w2_l, b2_l = [], [], [], [], [], []
    for blk in blocks:
        wt_f, bt_f = _fold_time_params(blk["time_w"], blk["time_b"],
                                       blk.get("time_bn"), eps, compute_dtype)
        a, c, w2, b2 = _fold_feat_params(blk["feat_w1"], blk["feat_b1"],
                                         blk["feat_w2"], blk["feat_b2"],
                                         blk.get("feat_bn"), eps)
        wt_l.append(wt_f); bt_l.append(bt_f)
        a_l.append(a); c_l.append(c); w2_l.append(w2); b2_l.append(b2)
    wt_all = jnp.stack(wt_l)                                   # (N, L, L) compute_dtype
    bt_all = jnp.stack(bt_l)                                   # (N, L, 1) f32
    a_all = jnp.concatenate(a_l)                               # (N*E,)    f32  SMEM
    c_all = jnp.concatenate(c_l)                               # (N*E,)    f32  SMEM
    w2_all = jnp.concatenate(w2_l)                             # (N*E,)    f32  SMEM
    b2_all = jnp.concatenate(b2_l)                             # (N,)      f32  SMEM
    wm = params["ts_map_w"].astype(compute_dtype)              # (P, L)
    bm = params["ts_map_b"].reshape(P, 1).astype(jnp.float32)  # (P, 1)

    # Time-major, lane-dense internal layout: (L, Mp) with batch on lanes, padded to a
    # multiple of the 128-wide lane tile.  Exactly one transpose in and one out; all
    # per-block transposes and the two transposes around ts_map are eliminated.
    Mp = ((B + lane_tile - 1) // lane_tile) * lane_tile
    x_t = jnp.zeros((L, Mp), jnp.float32).at[:, :B].set(x_scaled.T)
    x_t = x_t.astype(compute_dtype)

    itemsize = jnp.dtype(compute_dtype).itemsize
    cost = pl.CostEstimate(
        flops=int(Mp * (N * (2 * L * L + 5 * E * L + 2 * L) + 2 * P * L + P)),
        transcendentals=0,
        bytes_accessed=int(L * Mp * itemsize + P * Mp * 4
                           + N * L * L * itemsize + N * L * 4
                           + 4 * (3 * N * E + N) + P * L * itemsize + 4 * P),
    )
    kernel = functools.partial(_tsmixer_fused_kernel, n_blocks=N, embed_dim=E,
                               dot_dtype=compute_dtype)

    nn_t = pl.pallas_call(
        kernel,
        out_shape=jax.ShapeDtypeStruct((P, Mp), jnp.float32),
        grid=(Mp // lane_tile,),
        in_specs=[
            pl.BlockSpec((L, lane_tile), lambda i: (0, i)),    # activations (lane-dense)
            pl.BlockSpec((N, L, L), lambda i: (0, 0, 0)),      # folded time weights (resident)
            pl.BlockSpec((N, L, 1), lambda i: (0, 0, 0)),      # folded time biases (f32)
            _SMEM_SPEC, _SMEM_SPEC, _SMEM_SPEC, _SMEM_SPEC,    # feat-MLP scalars in SMEM
            pl.BlockSpec((P, L), lambda i: (0, 0)),            # ts_map weight (resident)
            pl.BlockSpec((P, 1), lambda i: (0, 0)),            # ts_map bias (f32)
        ],
        out_specs=pl.BlockSpec((P, lane_tile), lambda i: (0, i)),
        compiler_params=pltpu.CompilerParams(
            dimension_semantics=("parallel",),
            vmem_limit_bytes=_VMEM_LIMIT,
        ),
        cost_estimate=cost,
    )(x_t, wt_all, bt_all, a_all, c_all, w2_all, b2_all, wm, bm)

    nn_out = nn_t[:, :B].T[:, :, None]                          # (B, P, 1)
    return nn_out, loc, scale


def tsmixer_forward(past_target, past_observed_values, params, *,
                    eps=1e-5, lane_tile=128, compute_dtype=jnp.float32):
    """TSMixerModel.forward for scaling='none', input_size=1, eval mode.

    past_target:          (B, context_length) float32
    past_observed_values: (B, context_length) float32 (unused by the NOP scaler)
    Returns (nn_out (B, prediction_length, 1), loc (B, 1), scale (B, 1)).
    """
    del past_observed_values  # only consumed by the mean/std scalers (not implemented)
    return _tsmixer_forward_impl(past_target, params, eps=eps,
                                 lane_tile=lane_tile, compute_dtype=compute_dtype)


# ----------------------------------------------------------------------------
# Pure-JAX reference (eval-mode PyTorch semantics, no folding)
# ----------------------------------------------------------------------------

def ref_tsmixer_forward(past_target, params, eps=1e-5):
    B, L = past_target.shape
    x = past_target[:, :, None].astype(jnp.float32)                   # (B, L, 1)
    for blk in params["blocks"]:
        # MLP_Time: BatchNorm2d(ts_length) eval + Linear(L, L) + ReLU + residual
        g, b, m, v = blk["time_bn"]
        xn = (x[:, :, 0] - m[None, :]) / jnp.sqrt(v[None, :] + eps) * g[None, :] + b[None, :]
        y = xn @ blk["time_w"].T + blk["time_b"]
        x = x + jnp.maximum(y, 0.0)[:, :, None]
        # MLP_Feat (C=1): BatchNorm2d(1) eval + Linear(1,E)+ReLU + Linear(E,1) + residual
        g0, b0, m0, v0 = blk["feat_bn"]
        xn = (x - m0) / jnp.sqrt(v0 + eps) * g0 + b0                   # (B, L, 1)
        h = jnp.maximum(xn @ blk["feat_w1"].T + blk["feat_b1"], 0.0)   # (B, L, E)
        x = x + h @ blk["feat_w2"].T + blk["feat_b2"]                  # (B, L, 1)
    # ts_map: Linear(context_length, prediction_length) along time
    nn = jnp.einsum("blc,pl->bpc", x, params["ts_map_w"]) + params["ts_map_b"][None, :, None]
    return nn                                                          # (B, P, 1)


# ----------------------------------------------------------------------------
# Demo / self-check
# ----------------------------------------------------------------------------

if __name__ == "__main__":
    B = 256            # batch  (lane axis: multiple of 128 -> unmasked stores, 2 grid steps)
    L = 64             # context_length
    P = 32             # prediction_length
    E = 64             # hidden_size (embed_dim of MLP_Feat)
    N_BLOCKS = 2
    EPS = 1e-5

    key = jax.random.PRNGKey(0)
    keys = iter(jax.random.split(key, 64))

    def nrm(shape, s=0.1):
        return s * jax.random.normal(next(keys), shape, dtype=jnp.float32)

    def uni(shape):
        return jax.random.uniform(next(keys), shape, minval=0.5, maxval=1.5)

    blocks = []
    for _ in range(N_BLOCKS):
        blocks.append(dict(
            time_w=nrm((L, L)), time_b=nrm((L,)),
            time_bn=(1.0 + nrm((L,)), nrm((L,)), nrm((L,)), uni((L,))),   # gamma,beta,mean,var
            feat_w1=nrm((E, 1)), feat_b1=nrm((E,)),
            feat_w2=nrm((1, E)), feat_b2=nrm((1,)),
            feat_bn=(1.0 + nrm((1,)), nrm((1,)), nrm((1,)), uni((1,))),
        ))
    params = dict(blocks=blocks, ts_map_w=nrm((P, L)), ts_map_b=nrm((P,)))

    past_target = jax.random.normal(next(keys), (B, L), dtype=jnp.float32)
    past_observed = jnp.ones((B, L), jnp.float32)

    # f32 path: tight check against eval-mode PyTorch semantics.
    nn_out, loc, scale = tsmixer_forward(past_target, past_observed, params,
                                         eps=EPS, compute_dtype=jnp.float32)
    nn_out = jax.block_until_ready(nn_out)
    ref = ref_tsmixer_forward(past_target, params, eps=EPS)
    assert nn_out.shape == (B, P, 1) and loc.shape == (B, 1) and scale.shape == (B, 1)
    max_err = float(jnp.max(jnp.abs(nn_out - ref)))
    assert max_err < 1e-4, f"f32 Pallas output mismatch vs reference (max abs err {max_err})"

    # bf16 matmul path (performance configuration; MXU accumulates in f32, residuals f32).
    nn_bf16, _, _ = tsmixer_forward(past_target, past_observed, params,
                                    eps=EPS, compute_dtype=jnp.bfloat16)
    nn_bf16 = jax.block_until_ready(nn_bf16)
    mean_err = float(jnp.mean(jnp.abs(nn_bf16.astype(jnp.float32) - ref)))
    assert mean_err < 5e-2, f"bf16 Pallas output drifted too far from reference ({mean_err})"

    print("KERNEL_OK")
</pallas_src>

<mosaic_0001>
module attributes {stable_mosaic.version = 11 : i64} {
  func.func @_tsmixer_fused_kernel(%arg0: i32, %arg1: memref<64x128xf32, #tpu.memory_space<vmem>>, %arg2: memref<2x64x64xf32, #tpu.memory_space<vmem>>, %arg3: memref<2x64x1xf32, #tpu.memory_space<vmem>>, %arg4: memref<128xf32, #tpu.memory_space<smem>>, %arg5: memref<128xf32, #tpu.memory_space<smem>>, %arg6: memref<128xf32, #tpu.memory_space<smem>>, %arg7: memref<2xf32, #tpu.memory_space<smem>>, %arg8: memref<32x64xf32, #tpu.memory_space<vmem>>, %arg9: memref<32x1xf32, #tpu.memory_space<vmem>>, %arg10: memref<32x128xf32, #tpu.memory_space<vmem>>) attributes {dimension_semantics = [#tpu.dimension_semantics<parallel>], iteration_bounds = array<i64: 2>, scalar_prefetch = 0 : i64, scratch_operands = 0 : i64, tpu.core_type = #tpu.core_type<tc>, window_params = [{transform_indices = @transform_0, window_bounds = array<i64: 64, 128>}, {pipeline_mode = #tpu.pipeline_mode<synchronous>, transform_indices = @transform_1, window_bounds = array<i64: 2, 64, 64>}, {pipeline_mode = #tpu.pipeline_mode<synchronous>, transform_indices = @transform_2, window_bounds = array<i64: 2, 64, 1>}, {transform_indices = @transform_3, window_bounds = array<i64: 128>}, {transform_indices = @transform_4, window_bounds = array<i64: 128>}, {transform_indices = @transform_5, window_bounds = array<i64: 128>}, {transform_indices = @transform_6, window_bounds = array<i64: 2>}, {pipeline_mode = #tpu.pipeline_mode<synchronous>, transform_indices = @transform_7, window_bounds = array<i64: 32, 64>}, {pipeline_mode = #tpu.pipeline_mode<synchronous>, transform_indices = @transform_8, window_bounds = array<i64: 32, 1>}, {transform_indices = @transform_9, window_bounds = array<i64: 32, 128>}]} {
    %c0 = arith.constant 0 : index
    %c0_0 = arith.constant 0 : index
    %0 = vector.load %arg1[%c0, %c0_0] : memref<64x128xf32, #tpu.memory_space<vmem>>, vector<64x128xf32>
    %c0_1 = arith.constant 0 : index
    %c0_2 = arith.constant 0 : index
    %c0_3 = arith.constant 0 : index
    %1 = vector.load %arg2[%c0_1, %c0_2, %c0_3] : memref<2x64x64xf32, #tpu.memory_space<vmem>>, vector<1x64x64xf32>
    %2 = vector.shape_cast %1 : vector<1x64x64xf32> to vector<64x64xf32>
    %cst = arith.constant dense<0.000000e+00> : vector<64x128xf32>
    %3 = tpu.matmul %2, %0, %cst {dimension_numbers = #tpu.dot_dimension_numbers<[1], [0], [0], [1], [0, 0, 1, 1], [], []>} : vector<64x64xf32>, vector<64x128xf32>, vector<64x128xf32> -> vector<64x128xf32>
    %c0_4 = arith.constant 0 : index
    %c0_5 = arith.constant 0 : index
    %c0_6 = arith.constant 0 : index
    %4 = vector.load %arg3[%c0_4, %c0_5, %c0_6] : memref<2x64x1xf32, #tpu.memory_space<vmem>>, vector<1x64x1xf32>
    %5 = vector.shape_cast %4 : vector<1x64x1xf32> to vector<64x1xf32>
    %6 = vector.broadcast %5 : vector<64x1xf32> to vector<64x128xf32>
    %7 = arith.addf %3, %6 : vector<64x128xf32>
    %cst_7 = arith.constant 0.000000e+00 : f32
    %8 = vector.broadcast %cst_7 : f32 to vector<64x128xf32>
    %9 = arith.maximumf %7, %8 : vector<64x128xf32>
    %10 = arith.addf %0, %9 : vector<64x128xf32>
    %cst_8 = arith.constant 0.000000e+00 : f32
    %11 = vector.broadcast %cst_8 : f32 to vector<64x128xf32>
    %c0_i32 = arith.constant 0 : i32
    %c0_i32_9 = arith.constant 0 : i32
    %12 = arith.addi %c0_i32_9, %c0_i32 : i32
    %13 = arith.index_cast %12 : i32 to index
    %14 = memref.load %arg4[%13] : memref<128xf32, #tpu.memory_space<smem>>
    %15 = vector.broadcast %14 : f32 to vector<64x128xf32>
    %16 = arith.mulf %15, %10 : vector<64x128xf32>
    %c0_i32_10 = arith.constant 0 : i32
    %17 = arith.addi %c0_i32_10, %c0_i32 : i32
    %18 = arith.index_cast %17 : i32 to index
    %19 = memref.load %arg5[%18] : memref<128xf32, #tpu.memory_space<smem>>
    %20 = vector.broadcast %19 : f32 to vector<64x128xf32>
    %21 = arith.addf %16, %20 : vector<64x128xf32>
    %cst_11 = arith.constant 0.000000e+00 : f32
    %22 = vector.broadcast %cst_11 : f32 to vector<64x128xf32>
    %23 = arith.maximumf %21, %22 : vector<64x128xf32>
    %c0_i32_12 = arith.constant 0 : i32
    %24 = arith.addi %c0_i32_12, %c0_i32 : i32
    %25 = arith.index_cast %24 : i32 to index
    %26 = memref.load %arg6[%25] : memref<128xf32, #tpu.memory_space<smem>>
    %27 = vector.broadcast %26 : f32 to vector<64x128xf32>
    %28 = arith.mulf %27, %23 : vector<64x128xf32>
    %29 = arith.addf %11, %28 : vector<64x128xf32>
    %c1_i32 = arith.constant 1 : i32
    %c0_i32_13 = arith.constant 0 : i32
    %30 = arith.addi %c0_i32_13, %c1_i32 : i32
    %31 = arith.index_cast %30 : i32 to index
    %32 = memref.load %arg4[%31] : memref<128xf32, #tpu.memory_space<smem>>
    %33 = vector.broadcast %32 : f32 to vector<64x128xf32>
    %34 = arith.mulf %33, %10 : vector<64x128xf32>
    %c0_i32_14 = arith.constant 0 : i32
    %35 = arith.addi %c0_i32_14, %c1_i32 : i32
    %36 = arith.index_cast %35 : i32 to index
    %37 = memref.load %arg5[%36] : memref<128xf32, #tpu.memory_space<smem>>
    %38 = vector.broadcast %37 : f32 to vector<64x128xf32>
    %39 = arith.addf %34, %38 : vector<64x128xf32>
    %cst_15 = arith.constant 0.000000e+00 : f32
    %40 = vector.broadcast %cst_15 : f32 to vector<64x128xf32>
    %41 = arith.maximumf %39, %40 : vector<64x128xf32>
    %c0_i32_16 = arith.constant 0 : i32
    %42 = arith.addi %c0_i32_16, %c1_i32 : i32
    %43 = arith.index_cast %42 : i32 to index
    %44 = memref.load %arg6[%43] : memref<128xf32, #tpu.memory_space<smem>>
    %45 = vector.broadcast %44 : f32 to vector<64x128xf32>
    %46 = arith.mulf %45, %41 : vector<64x128xf32>
    %47 = arith.addf %29, %46 : vector<64x128xf32>
    %c2_i32 = arith.constant 2 : i32
    %c0_i32_17 = arith.constant 0 : i32
    %48 = arith.addi %c0_i32_17, %c2_i32 : i32
    %49 = arith.index_cast %48 : i32 to index
    %50 = memref.load %arg4[%49] : memref<128xf32, #tpu.memory_space<smem>>
    %51 = vector.broadcast %50 : f32 to vector<64x128xf32>
    %52 = arith.mulf %51, %10 : vector<64x128xf32>
    %c0_i32_18 = arith.constant 0 : i32
    %53 = arith.addi %c0_i32_18, %c2_i32 : i32
    %54 = arith.index_cast %53 : i32 to index
    %55 = memref.load %arg5[%54] : memref<128xf32, #tpu.memory_space<smem>>
    %56 = vector.broadcast %55 : f32 to vector<64x128xf32>
    %57 = arith.addf %52, %56 : vector<64x128xf32>
    %cst_19 = arith.constant 0.000000e+00 : f32
    %58 = vector.broadcast %cst_19 : f32 to vector<64x128xf32>
    %59 = arith.maximumf %57, %58 : vector<64x128xf32>
    %c0_i32_20 = arith.constant 0 : i32
    %60 = arith.addi %c0_i32_20, %c2_i32 : i32
    %61 = arith.index_cast %60 : i32 to index
    %62 = memref.load %arg6[%61] : memref<128xf32, #tpu.memory_space<smem>>
    %63 = vector.broadcast %62 : f32 to vector<64x128xf32>
    %64 = arith.mulf %63, %59 : vector<64x128xf32>
    %65 = arith.addf %47, %64 : vector<64x128xf32>
    %c3_i32 = arith.constant 3 : i32
    %c0_i32_21 = arith.constant 0 : i32
    %66 = arith.addi %c0_i32_21, %c3_i32 : i32
    %67 = arith.index_cast %66 : i32 to index
    %68 = memref.load %arg4[%67] : memref<128xf32, #tpu.memory_space<smem>>
    %69 = vector.broadcast %68 : f32 to vector<64x128xf32>
    %70 = arith.mulf %69, %10 : vector<64x128xf32>
    %c0_i32_22 = arith.constant 0 : i32
    %71 = arith.addi %c0_i32_22, %c3_i32 : i32
    %72 = arith.index_cast %71 : i32 to index
    %73 = memref.load %arg5[%72] : memref<128xf32, #tpu.memory_space<smem>>
    %74 = vector.broadcast %73 : f32 to vector<64x128xf32>
    %75 = arith.addf %70, %74 : vector<64x128xf32>
    %cst_23 = arith.constant 0.000000e+00 : f32
    %76 = vector.broadcast %cst_23 : f32 to vector<64x128xf32>
    %77 = arith.maximumf %75, %76 : vector<64x128xf32>
    %c0_i32_24 = arith.constant 0 : i32
    %78 = arith.addi %c0_i32_24, %c3_i32 : i32
    %79 = arith.index_cast %78 : i32 to index
    %80 = memref.load %arg6[%79] : memref<128xf32, #tpu.memory_space<smem>>
    %81 = vector.broadcast %80 : f32 to vector<64x128xf32>
    %82 = arith.mulf %81, %77 : vector<64x128xf32>
    %83 = arith.addf %65, %82 : vector<64x128xf32>
    %c4_i32 = arith.constant 4 : i32
    %c0_i32_25 = arith.constant 0 : i32
    %84 = arith.addi %c0_i32_25, %c4_i32 : i32
    %85 = arith.index_cast %84 : i32 to index
    %86 = memref.load %arg4[%85] : memref<128xf32, #tpu.memory_space<smem>>
    %87 = vector.broadcast %86 : f32 to vector<64x128xf32>
    %88 = arith.mulf %87, %10 : vector<64x128xf32>
    %c0_i32_26 = arith.constant 0 : i32
    %89 = arith.addi %c0_i32_26, %c4_i32 : i32
    %90 = arith.index_cast %89 : i32 to index
    %91 = memref.load %arg5[%90] : memref<128xf32, #tpu.memory_space<smem>>
    %92 = vector.broadcast %91 : f32 to vector<64x128xf32>
    %93 = arith.addf %88, %92 : vector<64x128xf32>
    %cst_27 = arith.constant 0.000000e+00 : f32
    %94 = vector.broadcast %cst_27 : f32 to vector<64x128xf32>
    %95 = arith.maximumf %93, %94 : vector<64x128xf32>
    %c0_i32_28 = arith.constant 0 : i32
    %96 = arith.addi %c0_i32_28, %c4_i32 : i32
    %97 = arith.index_cast %96 : i32 to index
    %98 = memref.load %arg6[%97] : memref<128xf32, #tpu.memory_space<smem>>
    %99 = vector.broadcast %98 : f32 to vector<64x128xf32>
    %100 = arith.mulf %99, %95 : vector<64x128xf32>
    %101 = arith.addf %83, %100 : vector<64x128xf32>
    %c5_i32 = arith.constant 5 : i32
    %c0_i32_29 = arith.constant 0 : i32
    %102 = arith.addi %c0_i32_29, %c5_i32 : i32
    %103 = arith.index_cast %102 : i32 to index
    %104 = memref.load %arg4[%103] : memref<128xf32, #tpu.memory_space<smem>>
    %105 = vector.broadcast %104 : f32 to vector<64x128xf32>
    %106 = arith.mulf %105, %10 : vector<64x128xf32>
    %c0_i32_30 = arith.constant 0 : i32
    %107 = arith.addi %c0_i32_30, %c5_i32 : i32
    %108 = arith.index_cast %107 : i32 to index
    %109 = memref.load %arg5[%108] : memref<128xf32, #tpu.memory_space<smem>>
    %110 = vector.broadcast %109 : f32 to vector<64x128xf32>
    %111 = arith.addf %106, %110 : vector<64x128xf32>
    %cst_31 = arith.constant 0.000000e+00 : f32
    %112 = vector.broadcast %cst_31 : f32 to vector<64x128xf32>
    %113 = arith.maximumf %111, %112 : vector<64x128xf32>
    %c0_i32_32 = arith.constant 0 : i32
    %114 = arith.addi %c0_i32_32, %c5_i32 : i32
    %115 = arith.index_cast %114 : i32 to index
    %116 = memref.load %arg6[%115] : memref<128xf32, #tpu.memory_space<smem>>
    %117 = vector.broadcast %116 : f32 to vector<64x128xf32>
    %118 = arith.mulf %117, %113 : vector<64x128xf32>
    %119 = arith.addf %101, %118 : vector<64x128xf32>
    %c6_i32 = arith.constant 6 : i32
    %c0_i32_33 = arith.constant 0 : i32
    %120 = arith.addi %c0_i32_33, %c6_i32 : i32
    %121 = arith.index_cast %120 : i32 to index
    %122 = memref.load %arg4[%121] : memref<128xf32, #tpu.memory_space<smem>>
    %123 = vector.broadcast %122 : f32 to vector<64x128xf32>
    %124 = arith.mulf %123, %10 : vector<64x128xf32>
    %c0_i32_34 = arith.constant 0 : i32
    %125 = arith.addi %c0_i32_34, %c6_i32 : i32
    %126 = arith.index_cast %125 : i32 to index
    %127 = memref.load %arg5[%126] : memref<128xf32, #tpu.memory_space<smem>>
    %128 = vector.broadcast %127 : f32 to vector<64x128xf32>
    %129 = arith.addf %124, %128 : vector<64x128xf32>
    %cst_35 = arith.constant 0.000000e+00 : f32
    %130 = vector.broadcast %cst_35 : f32 to vector<64x128xf32>
    %131 = arith.maximumf %129, %130 : vector<64x128xf32>
    %c0_i32_36 = arith.constant 0 : i32
    %132 = arith.addi %c0_i32_36, %c6_i32 : i32
    %133 = arith.index_cast %132 : i32 to index
    %134 = memref.load %arg6[%133] : memref<128xf32, #tpu.memory_space<smem>>
    %135 = vector.broadcast %134 : f32 to vector<64x128xf32>
    %136 = arith.mulf %135, %131 : vector<64x128xf32>
    %137 = arith.addf %119, %136 : vector<64x128xf32>
    %c7_i32 = arith.constant 7 : i32
    %c0_i32_37 = arith.constant 0 : i32
    %138 = arith.addi %c0_i32_37, %c7_i32 : i32
    %139 = arith.index_cast %138 : i32 to index
    %140 = memref.load %arg4[%139] : memref<128xf32, #tpu.memory_space<smem>>
    %141 = vector.broadcast %140 : f32 to vector<64x128xf32>
    %142 = arith.mulf %141, %10 : vector<64x128xf32>
    %c0_i32_38 = arith.constant 0 : i32
    %143 = arith.addi %c0_i32_38, %c7_i32 : i32
    %144 = arith.index_cast %143 : i32 to index
    %145 = memref.load %arg5[%144] : memref<128xf32, #tpu.memory_space<smem>>
    %146 = vector.broadcast %145 : f32 to vector<64x128xf32>
    %147 = arith.addf %142, %146 : vector<64x128xf32>
    %cst_39 = arith.constant 0.000000e+00 : f32
    %148 = vector.broadcast %cst_39 : f32 to vector<64x128xf32>
    %149 = arith.maximumf %147, %148 : vector<64x128xf32>
    %c0_i32_40 = arith.constant 0 : i32
    %150 = arith.addi %c0_i32_40, %c7_i32 : i32
    %151 = arith.index_cast %150 : i32 to index
    %152 = memref.load %arg6[%151] : memref<128xf32, #tpu.memory_space<smem>>
    %153 = vector.broadcast %152 : f32 to vector<64x128xf32>
    %154 = arith.mulf %153, %149 : vector<64x128xf32>
    %155 = arith.addf %137, %154 : vector<64x128xf32>
    %c8_i32 = arith.constant 8 : i32
    %c0_i32_41 = arith.constant 0 : i32
    %156 = arith.addi %c0_i32_41, %c8_i32 : i32
    %157 = arith.index_cast %156 : i32 to index
    %158 = memref.load %arg4[%157] : memref<128xf32, #tpu.memory_space<smem>>
    %159 = vector.broadcast %158 : f32 to vector<64x128xf32>
    %160 = arith.mulf %159, %10 : vector<64x128xf32>
    %c0_i32_42 = arith.constant 0 : i32
    %161 = arith.addi %c0_i32_42, %c8_i32 : i32
    %162 = arith.index_cast %161 : i32 to index
    %163 = memref.load %arg5[%162] : memref<128xf32, #tpu.memory_space<smem>>
    %164 = vector.broadcast %163 : f32 to vector<64x128xf32>
    %165 = arith.addf %160, %164 : vector<64x128xf32>
    %cst_43 = arith.constant 0.000000e+00 : f32
    %166 = vector.broadcast %cst_43 : f32 to vector<64x128xf32>
    %167 = arith.maximumf %165, %166 : vector<64x128xf32>
    %c0_i32_44 = arith.constant 0 : i32
    %168 = arith.addi %c0_i32_44, %c8_i32 : i32
    %169 = arith.index_cast %168 : i32 to index
    %170 = memref.load %arg6[%169] : memref<128xf32, #tpu.memory_space<smem>>
    %171 = vector.broadcast %170 : f32 to vector<64x128xf32>
    %172 = arith.mulf %171, %167 : vector<64x128xf32>
    %173 = arith.addf %155, %172 : vector<64x128xf32>
    %c9_i32 = arith.constant 9 : i32
    %c0_i32_45 = arith.constant 0 : i32
    %174 = arith.addi %c0_i32_45, %c9_i32 : i32
    %175 = arith.index_cast %174 : i32 to index
    %176 = memref.load %arg4[%175] : memref<128xf32, #tpu.memory_space<smem>>
    %177 = vector.broadcast %176 : f32 to vector<64x128xf32>
    %178 = arith.mulf %177, %10 : vector<64x128xf32>
    %c0_i32_46 = arith.constant 0 : i32
    %179 = arith.addi %c0_i32_46, %c9_i32 : i32
    %180 = arith.index_cast %179 : i32 to index
    %181 = memref.load %arg5[%180] : memref<128xf32, #tpu.memory_space<smem>>
    %182 = vector.broadcast %181 : f32 to vector<64x128xf32>
    %183 = arith.addf %178, %182 : vector<64x128xf32>
    %cst_47 = arith.constant 0.000000e+00 : f32
    %184 = vector.broadcast %cst_47 : f32 to vector<64x128xf32>
    %185 = arith.maximumf %183, %184 : vector<64x128xf32>
    %c0_i32_48 = arith.constant 0 : i32
    %186 = arith.addi %c0_i32_48, %c9_i32 : i32
    %187 = arith.index_cast %186 : i32 to index
    %188 = memref.load %arg6[%187] : memref<128xf32, #tpu.memory_space<smem>>
    %189 = vector.broadcast %188 : f32 to vector<64x128xf32>
    %190 = arith.mulf %189, %185 : vector<64x128xf32>
    %191 = arith.addf %173, %190 : vector<64x128xf32>
    %c10_i32 = arith.constant 10 : i32
    %c0_i32_49 = arith.constant 0 : i32
    %192 = arith.addi %c0_i32_49, %c10_i32 : i32
    %193 = arith.index_cast %192 : i32 to index
    %194 = memref.load %arg4[%193] : memref<128xf32, #tpu.memory_space<smem>>
    %195 = vector.broadcast %194 : f32 to vector<64x128xf32>
    %196 = arith.mulf %195, %10 : vector<64x128xf32>
    %c0_i32_50 = arith.constant 0 : i32
    %197 = arith.addi %c0_i32_50, %c10_i32 : i32
    %198 = arith.index_cast %197 : i32 to index
    %199 = memref.load %arg5[%198] : memref<128xf32, #tpu.memory_space<smem>>
    %200 = vector.broadcast %199 : f32 to vector<64x128xf32>
    %201 = arith.addf %196, %200 : vector<64x128xf32>
    %cst_51 = arith.constant 0.000000e+00 : f32
    %202 = vector.broadcast %cst_51 : f32 to vector<64x128xf32>
    %203 = arith.maximumf %201, %202 : vector<64x128xf32>
    %c0_i32_52 = arith.constant 0 : i32
    %204 = arith.addi %c0_i32_52, %c10_i32 : i32
    %205 = arith.index_cast %204 : i32 to index
    %206 = memref.load %arg6[%205] : memref<128xf32, #tpu.memory_space<smem>>
    %207 = vector.broadcast %206 : f32 to vector<64x128xf32>
    %208 = arith.mulf %207, %203 : vector<64x128xf32>
    %209 = arith.addf %191, %208 : vector<64x128xf32>
    %c11_i32 = arith.constant 11 : i32
    %c0_i32_53 = arith.constant 0 : i32
    %210 = arith.addi %c0_i32_53, %c11_i32 : i32
    %211 = arith.index_cast %210 : i32 to index
    %212 = memref.load %arg4[%211] : memref<128xf32, #tpu.memory_space<smem>>
    %213 = vector.broadcast %212 : f32 to vector<64x128xf32>
    %214 = arith.mulf %213, %10 : vector<64x128xf32>
    %c0_i32_54 = arith.constant 0 : i32
    %215 = arith.addi %c0_i32_54, %c11_i32 : i32
    %216 = arith.index_cast %215 : i32 to index
    %217 = memref.load %arg5[%216] : memref<128xf32, #tpu.memory_space<smem>>
    %218 = vector.broadcast %217 : f32 to vector<64x128xf32>
    %219 = arith.addf %214, %218 : vector<64x128xf32>
    %cst_55 = arith.constant 0.000000e+00 : f32
    %220 = vector.broadcast %cst_55 : f32 to vector<64x128xf32>
    %221 = arith.maximumf %219, %220 : vector<64x128xf32>
    %c0_i32_56 = arith.constant 0 : i32
    %222 = arith.addi %c0_i32_56, %c11_i32 : i32
    %223 = arith.index_cast %222 : i32 to index
    %224 = memref.load %arg6[%223] : memref<128xf32, #tpu.memory_space<smem>>
    %225 = vector.broadcast %224 : f32 to vector<64x128xf32>
    %226 = arith.mulf %225, %221 : vector<64x128xf32>
    %227 = arith.addf %209, %226 : vector<64x128xf32>
    %c12_i32 = arith.constant 12 : i32
    %c0_i32_57 = arith.constant 0 : i32
    %228 = arith.addi %c0_i32_57, %c12_i32 : i32
    %229 = arith.index_cast %228 : i32 to index
    %230 = memref.load %arg4[%229] : memref<128xf32, #tpu.memory_space<smem>>
    %231 = vector.broadcast %230 : f32 to vector<64x128xf32>
    %232 = arith.mulf %231, %10 : vector<64x128xf32>
    %c0_i32_58 = arith.constant 0 : i32
    %233 = arith.addi %c0_i32_58, %c12_i32 : i32
    %234 = arith.index_cast %233 : i32 to index
    %235 = memref.load %arg5[%234] : memref<128xf32, #tpu.memory_space<smem>>
    %236 = vector.broadcast %235 : f32 to vector<64x128xf32>
    %237 = arith.addf %232, %236 : vector<64x128xf32>
    %cst_59 = arith.constant 0.000000e+00 : f32
    %238 = vector.broadcast %cst_59 : f32 to vector<64x128xf32>
    %239 = arith.maximumf %237, %238 : vector<64x128xf32>
    %c0_i32_60 = arith.constant 0 : i32
    %240 = arith.addi %c0_i32_60, %c12_i32 : i32
    %241 = arith.index_cast %240 : i32 to index
    %242 = memref.load %arg6[%241] : memref<128xf32, #tpu.memory_space<smem>>
    %243 = vector.broadcast %242 : f32 to vector<64x128xf32>
    %244 = arith.mulf %243, %239 : vector<64x128xf32>
    %245 = arith.addf %227, %244 : vector<64x128xf32>
    %c13_i32 = arith.constant 13 : i32
    %c0_i32_61 = arith.constant 0 : i32
    %246 = arith.addi %c0_i32_61, %c13_i32 : i32
    %247 = arith.index_cast %246 : i32 to index
    %248 = memref.load %arg4[%247] : memref<128xf32, #tpu.memory_space<smem>>
    %249 = vector.broadcast %248 : f32 to vector<64x128xf32>
    %250 = arith.mulf %249, %10 : vector<64x128xf32>
    %c0_i32_62 = arith.constant 0 : i32
    %251 = arith.addi %c0_i32_62, %c13_i32 : i32
    %252 = arith.index_cast %251 : i32 to index
    %253 = memref.load %arg5[%252] : memref<128xf32, #tpu.memory_space<smem>>
    %254 = vector.broadcast %253 : f32 to vector<64x128xf32>
    %255 = arith.addf %250, %254 : vector<64x128xf32>
    %cst_63 = arith.constant 0.000000e+00 : f32
    %256 = vector.broadcast %cst_63 : f32 to vector<64x128xf32>
    %257 = arith.maximumf %255, %256 : vector<64x128xf32>
    %c0_i32_64 = arith.constant 0 : i32
    %258 = arith.addi %c0_i32_64, %c13_i32 : i32
    %259 = arith.index_cast %258 : i32 to index
    %260 = memref.load %arg6[%259] : memref<128xf32, #tpu.memory_space<smem>>
    %261 = vector.broadcast %260 : f32 to vector<64x128xf32>
    %262 = arith.mulf %261, %257 : vector<64x128xf32>
    %263 = arith.addf %245, %262 : vector<64x128xf32>
    %c14_i32 = arith.constant 14 : i32
    %c0_i32_65 = arith.constant 0 : i32
    %264 = arith.addi %c0_i32_65, %c14_i32 : i32
    %265 = arith.index_cast %264 : i32 to index
    %266 = memref.load %arg4[%265] : memref<128xf32, #tpu.memory_space<smem>>
    %267 = vector.broadcast %266 : f32 to vector<64x128xf32>
    %268 = arith.mulf %267, %10 : vector<64x128xf32>
    %c0_i32_66 = arith.constant 0 : i32
    %269 = arith.addi %c0_i32_66, %c14_i32 : i32
    %270 = arith.index_cast %269 : i32 to index
    %271 = memref.load %arg5[%270] : memref<128xf32, #tpu.memory_space<smem>>
    %272 = vector.broadcast %271 : f32 to vector<64x128xf32>
    %273 = arith.addf %268, %272 : vector<64x128xf32>
    %cst_67 = arith.constant 0.000000e+00 : f32
    %274 = vector.broadcast %cst_67 : f32 to vector<64x128xf32>
    %275 = arith.maximumf %273, %274 : vector<64x128xf32>
    %c0_i32_68 = arith.constant 0 : i32
    %276 = arith.addi %c0_i32_68, %c14_i32 : i32
    %277 = arith.index_cast %276 : i32 to index
    %278 = memref.load %arg6[%277] : memref<128xf32, #tpu.memory_space<smem>>
    %279 = vector.broadcast %278 : f32 to vector<64x128xf32>
    %280 = arith.mulf %279, %275 : vector<64x128xf32>
    %281 = arith.addf %263, %280 : vector<64x128xf32>
    %c15_i32 = arith.constant 15 : i32
    %c0_i32_69 = arith.constant 0 : i32
    %282 = arith.addi %c0_i32_69, %c15_i32 : i32
    %283 = arith.index_cast %282 : i32 to index
    %284 = memref.load %arg4[%283] : memref<128xf32, #tpu.memory_space<smem>>
    %285 = vector.broadcast %284 : f32 to vector<64x128xf32>
    %286 = arith.mulf %285, %10 : vector<64x128xf32>
    %c0_i32_70 = arith.constant 0 : i32
    %287 = arith.addi %c0_i32_70, %c15_i32 : i32
    %288 = arith.index_cast %287 : i32 to index
    %289 = memref.load %arg5[%288] : memref<128xf32, #tpu.memory_space<smem>>
    %290 = vector.broadcast %289 : f32 to vector<64x128xf32>
    %291 = arith.addf %286, %290 : vector<64x128xf32>
    %cst_71 = arith.constant 0.000000e+00 : f32
    %292 = vector.broadcast %cst_71 : f32 to vector<64x128xf32>
    %293 = arith.maximumf %291, %292 : vector<64x128xf32>
    %c0_i32_72 = arith.constant 0 : i32
    %294 = arith.addi %c0_i32_72, %c15_i32 : i32
    %295 = arith.index_cast %294 : i32 to index
    %296 = memref.load %arg6[%295] : memref<128xf32, #tpu.memory_space<smem>>
    %297 = vector.broadcast %296 : f32 to vector<64x128xf32>
    %298 = arith.mulf %297, %293 : vector<64x128xf32>
    %299 = arith.addf %281, %298 : vector<64x128xf32>
    %c16_i32 = arith.constant 16 : i32
    %c0_i32_73 = arith.constant 0 : i32
    %300 = arith.addi %c0_i32_73, %c16_i32 : i32
    %301 = arith.index_cast %300 : i32 to index
    %302 = memref.load %arg4[%301] : memref<128xf32, #tpu.memory_space<smem>>
    %303 = vector.broadcast %302 : f32 to vector<64x128xf32>
    %304 = arith.mulf %303, %10 : vector<64x128xf32>
    %c0_i32_74 = arith.constant 0 : i32
    %305 = arith.addi %c0_i32_74, %c16_i32 : i32
    %306 = arith.index_cast %305 : i32 to index
    %307 = memref.load %arg5[%306] : memref<128xf32, #tpu.memory_space<smem>>
    %308 = vector.broadcast %307 : f32 to vector<64x128xf32>
    %309 = arith.addf %304, %308 : vector<64x128xf32>
    %cst_75 = arith.constant 0.000000e+00 : f32
    %310 = vector.broadcast %cst_75 : f32 to vector<64x128xf32>
    %311 = arith.maximumf %309, %310 : vector<64x128xf32>
    %c0_i32_76 = arith.constant 0 : i32
    %312 = arith.addi %c0_i32_76, %c16_i32 : i32
    %313 = arith.index_cast %312 : i32 to index
    %314 = memref.load %arg6[%313] : memref<128xf32, #tpu.memory_space<smem>>
    %315 = vector.broadcast %314 : f32 to vector<64x128xf32>
    %316 = arith.mulf %315, %311 : vector<64x128xf32>
    %317 = arith.addf %299, %316 : vector<64x128xf32>
    %c17_i32 = arith.constant 17 : i32
    %c0_i32_77 = arith.constant 0 : i32
    %318 = arith.addi %c0_i32_77, %c17_i32 : i32
    %319 = arith.index_cast %318 : i32 to index
    %320 = memref.load %arg4[%319] : memref<128xf32, #tpu.memory_space<smem>>
    %321 = vector.broadcast %320 : f32 to vector<64x128xf32>
    %322 = arith.mulf %321, %10 : vector<64x128xf32>
    %c0_i32_78 = arith.constant 0 : i32
    %323 = arith.addi %c0_i32_78, %c17_i32 : i32
    %324 = arith.index_cast %323 : i32 to index
    %325 = memref.load %arg5[%324] : memref<128xf32, #tpu.memory_space<smem>>
    %326 = vector.broadcast %325 : f32 to vector<64x128xf32>
    %327 = arith.addf %322, %326 : vector<64x128xf32>
    %cst_79 = arith.constant 0.000000e+00 : f32
    %328 = vector.broadcast %cst_79 : f32 to vector<64x128xf32>
    %329 = arith.maximumf %327, %328 : vector<64x128xf32>
    %c0_i32_80 = arith.constant 0 : i32
    %330 = arith.addi %c0_i32_80, %c17_i32 : i32
    %331 = arith.index_cast %330 : i32 to index
    %332 = memref.load %arg6[%331] : memref<128xf32, #tpu.memory_space<smem>>
    %333 = vector.broadcast %332 : f32 to vector<64x128xf32>
    %334 = arith.mulf %333, %329 : vector<64x128xf32>
    %335 = arith.addf %317, %334 : vector<64x128xf32>
    %c18_i32 = arith.constant 18 : i32
    %c0_i32_81 = arith.constant 0 : i32
    %336 = arith.addi %c0_i32_81, %c18_i32 : i32
    %337 = arith.index_cast %336 : i32 to index
    %338 = memref.load %arg4[%337] : memref<128xf32, #tpu.memory_space<smem>>
    %339 = vector.broadcast %338 : f32 to vector<64x128xf32>
    %340 = arith.mulf %339, %10 : vector<64x128xf32>
    %c0_i32_82 = arith.constant 0 : i32
    %341 = arith.addi %c0_i32_82, %c18_i32 : i32
    %342 = arith.index_cast %341 : i32 to index
    %343 = memref.load %arg5[%342] : memref<128xf32, #tpu.memory_space<smem>>
    %344 = vector.broadcast %343 : f32 to vector<64x128xf32>
    %345 = arith.addf %340, %344 : vector<64x128xf32>
    %cst_83 = arith.constant 0.000000e+00 : f32
    %346 = vector.broadcast %cst_83 : f32 to vector<64x128xf32>
    %347 = arith.maximumf %345, %346 : vector<64x128xf32>
    %c0_i32_84 = arith.constant 0 : i32
    %348 = arith.addi %c0_i32_84, %c18_i32 : i32
    %349 = arith.index_cast %348 : i32 to index
    %350 = memref.load %arg6[%349] : memref<128xf32, #tpu.memory_space<smem>>
    %351 = vector.broadcast %350 : f32 to vector<64x128xf32>
    %352 = arith.mulf %351, %347 : vector<64x128xf32>
    %353 = arith.addf %335, %352 : vector<64x128xf32>
    %c19_i32 = arith.constant 19 : i32
    %c0_i32_85 = arith.constant 0 : i32
    %354 = arith.addi %c0_i32_85, %c19_i32 : i32
    %355 = arith.index_cast %354 : i32 to index
    %356 = memref.load %arg4[%355] : memref<128xf32, #tpu.memory_space<smem>>
    %357 = vector.broadcast %356 : f32 to vector<64x128xf32>
    %358 = arith.mulf %357, %10 : vector<64x128xf32>
    %c0_i32_86 = arith.constant 0 : i32
    %359 = arith.addi %c0_i32_86, %c19_i32 : i32
    %360 = arith.index_cast %359 : i32 to index
    %361 = memref.load %arg5[%360] : memref<128xf32, #tpu.memory_space<smem>>
    %362 = vector.broadcast %361 : f32 to vector<64x128xf32>
    %363 = arith.addf %358, %362 : vector<64x128xf32>
    %cst_87 = arith.constant 0.000000e+00 : f32
    %364 = vector.broadcast %cst_87 : f32 to vector<64x128xf32>
    %365 = arith.maximumf %363, %364 : vector<64x128xf32>
    %c0_i32_88 = arith.constant 0 : i32
    %366 = arith.addi %c0_i32_88, %c19_i32 : i32
    %367 = arith.index_cast %366 : i32 to index
    %368 = memref.load %arg6[%367] : memref<128xf32, #tpu.memory_space<smem>>
    %369 = vector.broadcast %368 : f32 to vector<64x128xf32>
    %370 = arith.mulf %369, %365 : vector<64x128xf32>
    %371 = arith.addf %353, %370 : vector<64x128xf32>
    %c20_i32 = arith.constant 20 : i32
    %c0_i32_89 = arith.constant 0 : i32
    %372 = arith.addi %c0_i32_89, %c20_i32 : i32
    %373 = arith.index_cast %372 : i32 to index
    %374 = memref.load %arg4[%373] : memref<128xf32, #tpu.memory_space<smem>>
    %375 = vector.broadcast %374 : f32 to vector<64x128xf32>
    %376 = arith.mulf %375, %10 : vector<64x128xf32>
    %c0_i32_90 = arith.constant 0 : i32
    %377 = arith.addi %c0_i32_90, %c20_i32 : i32
    %378 = arith.index_cast %377 : i32 to index
    %379 = memref.load %arg5[%378] : memref<128xf32, #tpu.memory_space<smem>>
    %380 = vector.broadcast %379 : f32 to vector<64x128xf32>
    %381 = arith.addf %376, %380 : vector<64x128xf32>
    %cst_91 = arith.constant 0.000000e+00 : f32
    %382 = vector.broadcast %cst_91 : f32 to vector<64x128xf32>
    %383 = arith.maximumf %381, %382 : vector<64x128xf32>
    %c0_i32_92 = arith.constant 0 : i32
    %384 = arith.addi %c0_i32_92, %c20_i32 : i32
    %385 = arith.index_cast %384 : i32 to index
    %386 = memref.load %arg6[%385] : memref<128xf32, #tpu.memory_space<smem>>
    %387 = vector.broadcast %386 : f32 to vector<64x128xf32>
    %388 = arith.mulf %387, %383 : vector<64x128xf32>
    %389 = arith.addf %371, %388 : vector<64x128xf32>
    %c21_i32 = arith.constant 21 : i32
    %c0_i32_93 = arith.constant 0 : i32
    %390 = arith.addi %c0_i32_93, %c21_i32 : i32
    %391 = arith.index_cast %390 : i32 to index
    %392 = memref.load %arg4[%391] : memref<128xf32, #tpu.memory_space<smem>>
    %393 = vector.broadcast %392 : f32 to vector<64x128xf32>
    %394 = arith.mulf %393, %10 : vector<64x128xf32>
    %c0_i32_94 = arith.constant 0 : i32
    %395 = arith.addi %c0_i32_94, %c21_i32 : i32
    %396 = arith.index_cast %395 : i32 to index
    %397 = memref.load %arg5[%396] : memref<128xf32, #tpu.memory_space<smem>>
    %398 = vector.broadcast %397 : f32 to vector<64x128xf32>
    %399 = arith.addf %394, %398 : vector<64x128xf32>
    %cst_95 = arith.constant 0.000000e+00 : f32
    %400 = vector.broadcast %cst_95 : f32 to vector<64x128xf32>
    %401 = arith.maximumf %399, %400 : vector<64x128xf32>
    %c0_i32_96 = arith.constant 0 : i32
    %402 = arith.addi %c0_i32_96, %c21_i32 : i32
    %403 = arith.index_cast %402 : i32 to index
    %404 = memref.load %arg6[%403] : memref<128xf32, #tpu.memory_space<smem>>
    %405 = vector.broadcast %404 : f32 to vector<64x128xf32>
    %406 = arith.mulf %405, %401 : vector<64x128xf32>
    %407 = arith.addf %389, %406 : vector<64x128xf32>
    %c22_i32 = arith.constant 22 : i32
    %c0_i32_97 = arith.constant 0 : i32
    %408 = arith.addi %c0_i32_97, %c22_i32 : i32
    %409 = arith.index_cast %408 : i32 to index
    %410 = memref.load %arg4[%409] : memref<128xf32, #tpu.memory_space<smem>>
    %411 = vector.broadcast %410 : f32 to vector<64x128xf32>
    %412 = arith.mulf %411, %10 : vector<64x128xf32>
    %c0_i32_98 = arith.constant 0 : i32
    %413 = arith.addi %c0_i32_98, %c22_i32 : i32
    %414 = arith.index_cast %413 : i32 to index
    %415 = memref.load %arg5[%414] : memref<128xf32, #tpu.memory_space<smem>>
    %416 = vector.broadcast %415 : f32 to vector<64x128xf32>
    %417 = arith.addf %412, %416 : vector<64x128xf32>
    %cst_99 = arith.constant 0.000000e+00 : f32
    %418 = vector.broadcast %cst_99 : f32 to vector<64x128xf32>
    %419 = arith.maximumf %417, %418 : vector<64x128xf32>
    %c0_i32_100 = arith.constant 0 : i32
    %420 = arith.addi %c0_i32_100, %c22_i32 : i32
    %421 = arith.index_cast %420 : i32 to index
    %422 = memref.load %arg6[%421] : memref<128xf32, #tpu.memory_space<smem>>
    %423 = vector.broadcast %422 : f32 to vector<64x128xf32>
    %424 = arith.mulf %423, %419 : vector<64x128xf32>
    %425 = arith.addf %407, %424 : vector<64x128xf32>
    %c23_i32 = arith.constant 23 : i32
    %c0_i32_101 = arith.constant 0 : i32
    %426 = arith.addi %c0_i32_101, %c23_i32 : i32
    %427 = arith.index_cast %426 : i32 to index
    %428 = memref.load %arg4[%427] : memref<128xf32, #tpu.memory_space<smem>>
    %429 = vector.broadcast %428 : f32 to vector<64x128xf32>
    %430 = arith.mulf %429, %10 : vector<64x128xf32>
    %c0_i32_102 = arith.constant 0 : i32
    %431 = arith.addi %c0_i32_102, %c23_i32 : i32
    %432 = arith.index_cast %431 : i32 to index
    %433 = memref.load %arg5[%432] : memref<128xf32, #tpu.memory_space<smem>>
    %434 = vector.broadcast %433 : f32 to vector<64x128xf32>
    %435 = arith.addf %430, %434 : vector<64x128xf32>
    %cst_103 = arith.constant 0.000000e+00 : f32
    %436 = vector.broadcast %cst_103 : f32 to vector<64x128xf32>
    %437 = arith.maximumf %435, %436 : vector<64x128xf32>
    %c0_i32_104 = arith.constant 0 : i32
    %438 = arith.addi %c0_i32_104, %c23_i32 : i32
    %439 = arith.index_cast %438 : i32 to index
    %440 = memref.load %arg6[%439] : memref<128xf32, #tpu.memory_space<smem>>
    %441 = vector.broadcast %440 : f32 to vector<64x128xf32>
    %442 = arith.mulf %441, %437 : vector<64x128xf32>
    %443 = arith.addf %425, %442 : vector<64x128xf32>
    %c24_i32 = arith.constant 24 : i32
    %c0_i32_105 = arith.constant 0 : i32
    %444 = arith.addi %c0_i32_105, %c24_i32 : i32
    %445 = arith.index_cast %444 : i32 to index
    %446 = memref.load %arg4[%445] : memref<128xf32, #tpu.memory_space<smem>>
    %447 = vector.broadcast %446 : f32 to vector<64x128xf32>
    %448 = arith.mulf %447, %10 : vector<64x128xf32>
    %c0_i32_106 = arith.constant 0 : i32
    %449 = arith.addi %c0_i32_106, %c24_i32 : i32
    %450 = arith.index_cast %449 : i32 to index
    %451 = memref.load %arg5[%450] : memref<128xf32, #tpu.memory_space<smem>>
    %452 = vector.broadcast %451 : f32 to vector<64x128xf32>
    %453 = arith.addf %448, %452 : vector<64x128xf32>
    %cst_107 = arith.constant 0.000000e+00 : f32
    %454 = vector.broadcast %cst_107 : f32 to vector<64x128xf32>
    %455 = arith.maximumf %453, %454 : vector<64x128xf32>
    %c0_i32_108 = arith.constant 0 : i32
    %456 = arith.addi %c0_i32_108, %c24_i32 : i32
    %457 = arith.index_cast %456 : i32 to index
    %458 = memref.load %arg6[%457] : memref<128xf32, #tpu.memory_space<smem>>
    %459 = vector.broadcast %458 : f32 to vector<64x128xf32>
    %460 = arith.mulf %459, %455 : vector<64x128xf32>
    %461 = arith.addf %443, %460 : vector<64x128xf32>
    %c25_i32 = arith.constant 25 : i32
    %c0_i32_109 = arith.constant 0 : i32
    %462 = arith.addi %c0_i32_109, %c25_i32 : i32
    %463 = arith.index_cast %462 : i32 to index
    %464 = memref.load %arg4[%463] : memref<128xf32, #tpu.memory_space<smem>>
    %465 = vector.broadcast %464 : f32 to vector<64x128xf32>
    %466 = arith.mulf %465, %10 : vector<64x128xf32>
    %c0_i32_110 = arith.constant 0 : i32
    %467 = arith.addi %c0_i32_110, %c25_i32 : i32
    %468 = arith.index_cast %467 : i32 to index
    %469 = memref.load %arg5[%468] : memref<128xf32, #tpu.memory_space<smem>>
    %470 = vector.broadcast %469 : f32 to vector<64x128xf32>
    %471 = arith.addf %466, %470 : vector<64x128xf32>
    %cst_111 = arith.constant 0.000000e+00 : f32
    %472 = vector.broadcast %cst_111 : f32 to vector<64x128xf32>
    %473 = arith.maximumf %471, %472 : vector<64x128xf32>
    %c0_i32_112 = arith.constant 0 : i32
    %474 = arith.addi %c0_i32_112, %c25_i32 : i32
    %475 = arith.index_cast %474 : i32 to index
    %476 = memref.load %arg6[%475] : memref<128xf32, #tpu.memory_space<smem>>
    %477 = vector.broadcast %476 : f32 to vector<64x128xf32>
    %478 = arith.mulf %477, %473 : vector<64x128xf32>
    %479 = arith.addf %461, %478 : vector<64x128xf32>
    %c26_i32 = arith.constant 26 : i32
    %c0_i32_113 = arith.constant 0 : i32
    %480 = arith.addi %c0_i32_113, %c26_i32 : i32
    %481 = arith.index_cast %480 : i32 to index
    %482 = memref.load %arg4[%481] : memref<128xf32, #tpu.memory_space<smem>>
    %483 = vector.broadcast %482 : f32 to vector<64x128xf32>
    %484 = arith.mulf %483, %10 : vector<64x128xf32>
    %c0_i32_114 = arith.constant 0 : i32
    %485 = arith.addi %c0_i32_114, %c26_i32 : i32
    %486 = arith.index_cast %485 : i32 to index
    %487 = memref.load %arg5[%486] : memref<128xf32, #tpu.memory_space<smem>>
    %488 = vector.broadcast %487 : f32 to vector<64x128xf32>
    %489 = arith.addf %484, %488 : vector<64x128xf32>
    %cst_115 = arith.constant 0.000000e+00 : f32
    %490 = vector.broadcast %cst_115 : f32 to vector<64x128xf32>
    %491 = arith.maximumf %489, %490 : vector<64x128xf32>
    %c0_i32_116 = arith.constant 0 : i32
    %492 = arith.addi %c0_i32_116, %c26_i32 : i32
    %493 = arith.index_cast %492 : i32 to index
    %494 = memref.load %arg6[%493] : memref<128xf32, #tpu.memory_space<smem>>
    %495 = vector.broadcast %494 : f32 to vector<64x128xf32>
    %496 = arith.mulf %495, %491 : vector<64x128xf32>
    %497 = arith.addf %479, %496 : vector<64x128xf32>
    %c27_i32 = arith.constant 27 : i32
    %c0_i32_117 = arith.constant 0 : i32
    %498 = arith.addi %c0_i32_117, %c27_i32 : i32
    %499 = arith.index_cast %498 : i32 to index
    %500 = memref.load %arg4[%499] : memref<128xf32, #tpu.memory_space<smem>>
    %501 = vector.broadcast %500 : f32 to vector<64x128xf32>
    %502 = arith.mulf %501, %10 : vector<64x128xf32>
    %c0_i32_118 = arith.constant 0 : i32
    %503 = arith.addi %c0_i32_118, %c27_i32 : i32
    %504 = arith.index_cast %503 : i32 to index
    %505 = memref.load %arg5[%504] : memref<128xf32, #tpu.memory_space<smem>>
    %506 = vector.broadcast %505 : f32 to vector<64x128xf32>
    %507 = arith.addf %502, %506 : vector<64x128xf32>
    %cst_119 = arith.constant 0.000000e+00 : f32
    %508 = vector.broadcast %cst_119 : f32 to vector<64x128xf32>
    %509 = arith.maximumf %507, %508 : vector<64x128xf32>
    %c0_i32_120 = arith.constant 0 : i32
    %510 = arith.addi %c0_i32_120, %c27_i32 : i32
    %511 = arith.index_cast %510 : i32 to index
    %512 = memref.load %arg6[%511] : memref<128xf32, #tpu.memory_space<smem>>
    %513 = vector.broadcast %512 : f32 to vector<64x128xf32>
    %514 = arith.mulf %513, %509 : vector<64x128xf32>
    %515 = arith.addf %497, %514 : vector<64x128xf32>
    %c28_i32 = arith.constant 28 : i32
    %c0_i32_121 = arith.constant 0 : i32
    %516 = arith.addi %c0_i32_121, %c28_i32 : i32
    %517 = arith.index_cast %516 : i32 to index
    %518 = memref.load %arg4[%517] : memref<128xf32, #tpu.memory_space<smem>>
    %519 = vector.broadcast %518 : f32 to vector<64x128xf32>
    %520 = arith.mulf %519, %10 : vector<64x128xf32>
    %c0_i32_122 = arith.constant 0 : i32
    %521 = arith.addi %c0_i32_122, %c28_i32 : i32
    %522 = arith.index_cast %521 : i32 to index
    %523 = memref.load %arg5[%522] : memref<128xf32, #tpu.memory_space<smem>>
    %524 = vector.broadcast %523 : f32 to vector<64x128xf32>
    %525 = arith.addf %520, %524 : vector<64x128xf32>
    %cst_123 = arith.constant 0.000000e+00 : f32
    %526 = vector.broadcast %cst_123 : f32 to vector<64x128xf32>
    %527 = arith.maximumf %525, %526 : vector<64x128xf32>
    %c0_i32_124 = arith.constant 0 : i32
    %528 = arith.addi %c0_i32_124, %c28_i32 : i32
    %529 = arith.index_cast %528 : i32 to index
    %530 = memref.load %arg6[%529] : memref<128xf32, #tpu.memory_space<smem>>
    %531 = vector.broadcast %530 : f32 to vector<64x128xf32>
    %532 = arith.mulf %531, %527 : vector<64x128xf32>
    %533 = arith.addf %515, %532 : vector<64x128xf32>
    %c29_i32 = arith.constant 29 : i32
    %c0_i32_125 = arith.constant 0 : i32
    %534 = arith.addi %c0_i32_125, %c29_i32 : i32
    %535 = arith.index_cast %534 : i32 to index
    %536 = memref.load %arg4[%535] : memref<128xf32, #tpu.memory_space<smem>>
    %537 = vector.broadcast %536 : f32 to vector<64x128xf32>
    %538 = arith.mulf %537, %10 : vector<64x128xf32>
    %c0_i32_126 = arith.constant 0 : i32
    %539 = arith.addi %c0_i32_126, %c29_i32 : i32
    %540 = arith.index_cast %539 : i32 to index
    %541 = memref.load %arg5[%540] : memref<128xf32, #tpu.memory_space<smem>>
    %542 = vector.broadcast %541 : f32 to vector<64x128xf32>
    %543 = arith.addf %538, %542 : vector<64x128xf32>
    %cst_127 = arith.constant 0.000000e+00 : f32
    %544 = vector.broadcast %cst_127 : f32 to vector<64x128xf32>
    %545 = arith.maximumf %543, %544 : vector<64x128xf32>
    %c0_i32_128 = arith.constant 0 : i32
    %546 = arith.addi %c0_i32_128, %c29_i32 : i32
    %547 = arith.index_cast %546 : i32 to index
    %548 = memref.load %arg6[%547] : memref<128xf32, #tpu.memory_space<smem>>
    %549 = vector.broadcast %548 : f32 to vector<64x128xf32>
    %550 = arith.mulf %549, %545 : vector<64x128xf32>
    %551 = arith.addf %533, %550 : vector<64x128xf32>
    %c30_i32 = arith.constant 30 : i32
    %c0_i32_129 = arith.constant 0 : i32
    %552 = arith.addi %c0_i32_129, %c30_i32 : i32
    %553 = arith.index_cast %552 : i32 to index
    %554 = memref.load %arg4[%553] : memref<128xf32, #tpu.memory_space<smem>>
    %555 = vector.broadcast %554 : f32 to vector<64x128xf32>
    %556 = arith.mulf %555, %10 : vector<64x128xf32>
    %c0_i32_130 = arith.constant 0 : i32
    %557 = arith.addi %c0_i32_130, %c30_i32 : i32
    %558 = arith.index_cast %557 : i32 to index
    %559 = memref.load %arg5[%558] : memref<128xf32, #tpu.memory_space<smem>>
    %560 = vector.broadcast %559 : f32 to vector<64x128xf32>
    %561 = arith.addf %556, %560 : vector<64x128xf32>
    %cst_131 = arith.constant 0.000000e+00 : f32
    %562 = vector.broadcast %cst_131 : f32 to vector<64x128xf32>
    %563 = arith.maximumf %561, %562 : vector<64x128xf32>
    %c0_i32_132 = arith.constant 0 : i32
    %564 = arith.addi %c0_i32_132, %c30_i32 : i32
    %565 = arith.index_cast %564 : i32 to index
    %566 = memref.load %arg6[%565] : memref<128xf32, #tpu.memory_space<smem>>
    %567 = vector.broadcast %566 : f32 to vector<64x128xf32>
    %568 = arith.mulf %567, %563 : vector<64x128xf32>
    %569 = arith.addf %551, %568 : vector<64x128xf32>
    %c31_i32 = arith.constant 31 : i32
    %c0_i32_133 = arith.constant 0 : i32
    %570 = arith.addi %c0_i32_133, %c31_i32 : i32
    %571 = arith.index_cast %570 : i32 to index
    %572 = memref.load %arg4[%571] : memref<128xf32, #tpu.memory_space<smem>>
    %573 = vector.broadcast %572 : f32 to vector<64x128xf32>
    %574 = arith.mulf %573, %10 : vector<64x128xf32>
    %c0_i32_134 = arith.constant 0 : i32
    %575 = arith.addi %c0_i32_134, %c31_i32 : i32
    %576 = arith.index_cast %575 : i32 to index
    %577 = memref.load %arg5[%576] : memref<128xf32, #tpu.memory_space<smem>>
    %578 = vector.broadcast %577 : f32 to vector<64x128xf32>
    %579 = arith.addf %574, %578 : vector<64x128xf32>
    %cst_135 = arith.constant 0.000000e+00 : f32
    %580 = vector.broadcast %cst_135 : f32 to vector<64x128xf32>
    %581 = arith.maximumf %579, %580 : vector<64x128xf32>
    %c0_i32_136 = arith.constant 0 : i32
    %582 = arith.addi %c0_i32_136, %c31_i32 : i32
    %583 = arith.index_cast %582 : i32 to index
    %584 = memref.load %arg6[%583] : memref<128xf32, #tpu.memory_space<smem>>
    %585 = vector.broadcast %584 : f32 to vector<64x128xf32>
    %586 = arith.mulf %585, %581 : vector<64x128xf32>
    %587 = arith.addf %569, %586 : vector<64x128xf32>
    %c32_i32 = arith.constant 32 : i32
    %c0_i32_137 = arith.constant 0 : i32
    %588 = arith.addi %c0_i32_137, %c32_i32 : i32
    %589 = arith.index_cast %588 : i32 to index
    %590 = memref.load %arg4[%589] : memref<128xf32, #tpu.memory_space<smem>>
    %591 = vector.broadcast %590 : f32 to vector<64x128xf32>
    %592 = arith.mulf %591, %10 : vector<64x128xf32>
    %c0_i32_138 = arith.constant 0 : i32
    %593 = arith.addi %c0_i32_138, %c32_i32 : i32
    %594 = arith.index_cast %593 : i32 to index
    %595 = memref.load %arg5[%594] : memref<128xf32, #tpu.memory_space<smem>>
    %596 = vector.broadcast %595 : f32 to vector<64x128xf32>
    %597 = arith.addf %592, %596 : vector<64x128xf32>
    %cst_139 = arith.constant 0.000000e+00 : f32
    %598 = vector.broadcast %cst_139 : f32 to vector<64x128xf32>
    %599 = arith.maximumf %597, %598 : vector<64x128xf32>
    %c0_i32_140 = arith.constant 0 : i32
    %600 = arith.addi %c0_i32_140, %c32_i32 : i32
    %601 = arith.index_cast %600 : i32 to index
    %602 = memref.load %arg6[%601] : memref<128xf32, #tpu.memory_space<smem>>
    %603 = vector.broadcast %602 : f32 to vector<64x128xf32>
    %604 = arith.mulf %603, %599 : vector<64x128xf32>
    %605 = arith.addf %587, %604 : vector<64x128xf32>
    %c33_i32 = arith.constant 33 : i32
    %c0_i32_141 = arith.constant 0 : i32
    %606 = arith.addi %c0_i32_141, %c33_i32 : i32
    %607 = arith.index_cast %606 : i32 to index
    %608 = memref.load %arg4[%607] : memref<128xf32, #tpu.memory_space<smem>>
    %609 = vector.broadcast %608 : f32 to vector<64x128xf32>
    %610 = arith.mulf %609, %10 : vector<64x128xf32>
    %c0_i32_142 = arith.constant 0 : i32
    %611 = arith.addi %c0_i32_142, %c33_i32 : i32
    %612 = arith.index_cast %611 : i32 to index
    %613 = memref.load %arg5[%612] : memref<128xf32, #tpu.memory_space<smem>>
    %614 = vector.broadcast %613 : f32 to vector<64x128xf32>
    %615 = arith.addf %610, %614 : vector<64x128xf32>
    %cst_143 = arith.constant 0.000000e+00 : f32
    %616 = vector.broadcast %cst_143 : f32 to vector<64x128xf32>
    %617 = arith.maximumf %615, %616 : vector<64x128xf32>
    %c0_i32_144 = arith.constant 0 : i32
    %618 = arith.addi %c0_i32_144, %c33_i32 : i32
    %619 = arith.index_cast %618 : i32 to index
    %620 = memref.load %arg6[%619] : memref<128xf32, #tpu.memory_space<smem>>
    %621 = vector.broadcast %620 : f32 to vector<64x128xf32>
    %622 = arith.mulf %621, %617 : vector<64x128xf32>
    %623 = arith.addf %605, %622 : vector<64x128xf32>
    %c34_i32 = arith.constant 34 : i32
    %c0_i32_145 = arith.constant 0 : i32
    %624 = arith.addi %c0_i32_145, %c34_i32 : i32
    %625 = arith.index_cast %624 : i32 to index
    %626 = memref.load %arg4[%625] : memref<128xf32, #tpu.memory_space<smem>>
    %627 = vector.broadcast %626 : f32 to vector<64x128xf32>
    %628 = arith.mulf %627, %10 : vector<64x128xf32>
    %c0_i32_146 = arith.constant 0 : i32
    %629 = arith.addi %c0_i32_146, %c34_i32 : i32
    %630 = arith.index_cast %629 : i32 to index
    %631 = memref.load %arg5[%630] : memref<128xf32, #tpu.memory_space<smem>>
    %632 = vector.broadcast %631 : f32 to vector<64x128xf32>
    %633 = arith.addf %628, %632 : vector<64x128xf32>
    %cst_147 = arith.constant 0.000000e+00 : f32
    %634 = vector.broadcast %cst_147 : f32 to vector<64x128xf32>
    %635 = arith.maximumf %633, %634 : vector<64x128xf32>
    %c0_i32_148 = arith.constant 0 : i32
    %636 = arith.addi %c0_i32_148, %c34_i32 : i32
    %637 = arith.index_cast %636 : i32 to index
    %638 = memref.load %arg6[%637] : memref<128xf32, #tpu.memory_space<smem>>
    %639 = vector.broadcast %638 : f32 to vector<64x128xf32>
    %640 = arith.mulf %639, %635 : vector<64x128xf32>
    %641 = arith.addf %623, %640 : vector<64x128xf32>
    %c35_i32 = arith.constant 35 : i32
    %c0_i32_149 = arith.constant 0 : i32
    %642 = arith.addi %c0_i32_149, %c35_i32 : i32
    %643 = arith.index_cast %642 : i32 to index
    %644 = memref.load %arg4[%643] : memref<128xf32, #tpu.memory_space<smem>>
    %645 = vector.broadcast %644 : f32 to vector<64x128xf32>
    %646 = arith.mulf %645, %10 : vector<64x128xf32>
    %c0_i32_150 = arith.constant 0 : i32
    %647 = arith.addi %c0_i32_150, %c35_i32 : i32
    %648 = arith.index_cast %647 : i32 to index
    %649 = memref.load %arg5[%648] : memref<128xf32, #tpu.memory_space<smem>>
    %650 = vector.broadcast %649 : f32 to vector<64x128xf32>
    %651 = arith.addf %646, %650 : vector<64x128xf32>
    %cst_151 = arith.constant 0.000000e+00 : f32
    %652 = vector.broadcast %cst_151 : f32 to vector<64x128xf32>
    %653 = arith.maximumf %651, %652 : vector<64x128xf32>
    %c0_i32_152 = arith.constant 0 : i32
    %654 = arith.addi %c0_i32_152, %c35_i32 : i32
    %655 = arith.index_cast %654 : i32 to index
    %656 = memref.load %arg6[%655] : memref<128xf32, #tpu.memory_space<smem>>
    %657 = vector.broadcast %656 : f32 to vector<64x128xf32>
    %658 = arith.mulf %657, %653 : vector<64x128xf32>
    %659 = arith.addf %641, %658 : vector<64x128xf32>
    %c36_i32 = arith.constant 36 : i32
    %c0_i32_153 = arith.constant 0 : i32
    %660 = arith.addi %c0_i32_153, %c36_i32 : i32
    %661 = arith.index_cast %660 : i32 to index
    %662 = memref.load %arg4[%661] : memref<128xf32, #tpu.memory_space<smem>>
    %663 = vector.broadcast %662 : f32 to vector<64x128xf32>
    %664 = arith.mulf %663, %10 : vector<64x128xf32>
    %c0_i32_154 = arith.constant 0 : i32
    %665 = arith.addi %c0_i32_154, %c36_i32 : i32
    %666 = arith.index_cast %665 : i32 to index
    %667 = memref.load %arg5[%666] : memref<128xf32, #tpu.memory_space<smem>>
    %668 = vector.broadcast %667 : f32 to vector<64x128xf32>
    %669 = arith.addf %664, %668 : vector<64x128xf32>
    %cst_155 = arith.constant 0.000000e+00 : f32
    %670 = vector.broadcast %cst_155 : f32 to vector<64x128xf32>
    %671 = arith.maximumf %669, %670 : vector<64x128xf32>
    %c0_i32_156 = arith.constant 0 : i32
    %672 = arith.addi %c0_i32_156, %c36_i32 : i32
    %673 = arith.index_cast %672 : i32 to index
    %674 = memref.load %arg6[%673] : memref<128xf32, #tpu.memory_space<smem>>
    %675 = vector.broadcast %674 : f32 to vector<64x128xf32>
    %676 = arith.mulf %675, %671 : vector<64x128xf32>
    %677 = arith.addf %659, %676 : vector<64x128xf32>
    %c37_i32 = arith.constant 37 : i32
    %c0_i32_157 = arith.constant 0 : i32
    %678 = arith.addi %c0_i32_157, %c37_i32 : i32
    %679 = arith.index_cast %678 : i32 to index
    %680 = memref.load %arg4[%679] : memref<128xf32, #tpu.memory_space<smem>>
    %681 = vector.broadcast %680 : f32 to vector<64x128xf32>
    %682 = arith.mulf %681, %10 : vector<64x128xf32>
    %c0_i32_158 = arith.constant 0 : i32
    %683 = arith.addi %c0_i32_158, %c37_i32 : i32
    %684 = arith.index_cast %683 : i32 to index
    %685 = memref.load %arg5[%684] : memref<128xf32, #tpu.memory_space<smem>>
    %686 = vector.broadcast %685 : f32 to vector<64x128xf32>
    %687 = arith.addf %682, %686 : vector<64x128xf32>
    %cst_159 = arith.constant 0.000000e+00 : f32
    %688 = vector.broadcast %cst_159 : f32 to vector<64x128xf32>
    %689 = arith.maximumf %687, %688 : vector<64x128xf32>
    %c0_i32_160 = arith.constant 0 : i32
    %690 = arith.addi %c0_i32_160, %c37_i32 : i32
    %691 = arith.index_cast %690 : i32 to index
    %692 = memref.load %arg6[%691] : memref<128xf32, #tpu.memory_space<smem>>
    %693 = vector.broadcast %692 : f32 to vector<64x128xf32>
    %694 = arith.mulf %693, %689 : vector<64x128xf32>
    %695 = arith.addf %677, %694 : vector<64x128xf32>
    %c38_i32 = arith.constant 38 : i32
    %c0_i32_161 = arith.constant 0 : i32
    %696 = arith.addi %c0_i32_161, %c38_i32 : i32
    %697 = arith.index_cast %696 : i32 to index
    %698 = memref.load %arg4[%697] : memref<128xf32, #tpu.memory_space<smem>>
    %699 = vector.broadcast %698 : f32 to vector<64x128xf32>
    %700 = arith.mulf %699, %10 : vector<64x128xf32>
    %c0_i32_162 = arith.constant 0 : i32
    %701 = arith.addi %c0_i32_162, %c38_i32 : i32
    %702 = arith.index_cast %701 : i32 to index
    %703 = memref.load %arg5[%702] : memref<128xf32, #tpu.memory_space<smem>>
    %704 = vector.broadcast %703 : f32 to vector<64x128xf32>
    %705 = arith.addf %700, %704 : vector<64x128xf32>
    %cst_163 = arith.constant 0.000000e+00 : f32
    %706 = vector.broadcast %cst_163 : f32 to vector<64x128xf32>
    %707 = arith.maximumf %705, %706 : vector<64x128xf32>
    %c0_i32_164 = arith.constant 0 : i32
    %708 = arith.addi %c0_i32_164, %c38_i32 : i32
    %709 = arith.index_cast %708 : i32 to index
    %710 = memref.load %arg6[%709] : memref<128xf32, #tpu.memory_space<smem>>
    %711 = vector.broadcast %710 : f32 to vector<64x128xf32>
    %712 = arith.mulf %711, %707 : vector<64x128xf32>
    %713 = arith.addf %695, %712 : vector<64x128xf32>
    %c39_i32 = arith.constant 39 : i32
    %c0_i32_165 = arith.constant 0 : i32
    %714 = arith.addi %c0_i32_165, %c39_i32 : i32
    %715 = arith.index_cast %714 : i32 to index
    %716 = memref.load %arg4[%715] : memref<128xf32, #tpu.memory_space<smem>>
    %717 = vector.broadcast %716 : f32 to vector<64x128xf32>
    %718 = arith.mulf %717, %10 : vector<64x128xf32>
    %c0_i32_166 = arith.constant 0 : i32
    %719 = arith.addi %c0_i32_166, %c39_i32 : i32
    %720 = arith.index_cast %719 : i32 to index
    %721 = memref.load %arg5[%720] : memref<128xf32, #tpu.memory_space<smem>>
    %722 = vector.broadcast %721 : f32 to vector<64x128xf32>
    %723 = arith.addf %718, %722 : vector<64x128xf32>
    %cst_167 = arith.constant 0.000000e+00 : f32
    %724 = vector.broadcast %cst_167 : f32 to vector<64x128xf32>
    %725 = arith.maximumf %723, %724 : vector<64x128xf32>
    %c0_i32_168 = arith.constant 0 : i32
    %726 = arith.addi %c0_i32_168, %c39_i32 : i32
    %727 = arith.index_cast %726 : i32 to index
    %728 = memref.load %arg6[%727] : memref<128xf32, #tpu.memory_space<smem>>
    %729 = vector.broadcast %728 : f32 to vector<64x128xf32>
    %730 = arith.mulf %729, %725 : vector<64x128xf32>
    %731 = arith.addf %713, %730 : vector<64x128xf32>
    %c40_i32 = arith.constant 40 : i32
    %c0_i32_169 = arith.constant 0 : i32
    %732 = arith.addi %c0_i32_169, %c40_i32 : i32
    %733 = arith.index_cast %732 : i32 to index
    %734 = memref.load %arg4[%733] : memref<128xf32, #tpu.memory_space<smem>>
    %735 = vector.broadcast %734 : f32 to vector<64x128xf32>
    %736 = arith.mulf %735, %10 : vector<64x128xf32>
    %c0_i32_170 = arith.constant 0 : i32
    %737 = arith.addi %c0_i32_170, %c40_i32 : i32
    %738 = arith.index_cast %737 : i32 to index
    %739 = memref.load %arg5[%738] : memref<128xf32, #tpu.memory_space<smem>>
    %740 = vector.broadcast %739 : f32 to vector<64x128xf32>
    %741 = arith.addf %736, %740 : vector<64x128xf32>
    %cst_171 = arith.constant 0.000000e+00 : f32
    %742 = vector.broadcast %cst_171 : f32 to vector<64x128xf32>
    %743 = arith.maximumf %741, %742 : vector<64x128xf32>
    %c0_i32_172 = arith.constant 0 : i32
    %744 = arith.addi %c0_i32_172, %c40_i32 : i32
    %745 = arith.index_cast %744 : i32 to index
    %746 = memref.load %arg6[%745] : memref<128xf32, #tpu.memory_space<smem>>
    %747 = vector.broadcast %746 : f32 to vector<64x128xf32>
    %748 = arith.mulf %747, %743 : vector<64x128xf32>
    %749 = arith.addf %731, %748 : vector<64x128xf32>
    %c41_i32 = arith.constant 41 : i32
    %c0_i32_173 = arith.constant 0 : i32
    %750 = arith.addi %c0_i32_173, %c41_i32 : i32
    %751 = arith.index_cast %750 : i32 to index
    %752 = memref.load %arg4[%751] : memref<128xf32, #tpu.memory_space<smem>>
    %753 = vector.broadcast %752 : f32 to vector<64x128xf32>
    %754 = arith.mulf %753, %10 : vector<64x128xf32>
    %c0_i32_174 = arith.constant 0 : i32
    %755 = arith.addi %c0_i32_174, %c41_i32 : i32
    %756 = arith.index_cast %755 : i32 to index
    %757 = memref.load %arg5[%756] : memref<128xf32, #tpu.memory_space<smem>>
    %758 = vector.broadcast %757 : f32 to vector<64x128xf32>
    %759 = arith.addf %754, %758 : vector<64x128xf32>
    %cst_175 = arith.constant 0.000000e+00 : f32
    %760 = vector.broadcast %cst_175 : f32 to vector<64x128xf32>
    %761 = arith.maximumf %759, %760 : vector<64x128xf32>
    %c0_i32_176 = arith.constant 0 : i32
    %762 = arith.addi %c0_i32_176, %c41_i32 : i32
    %763 = arith.index_cast %762 : i32 to index
    %764 = memref.load %arg6[%763] : memref<128xf32, #tpu.memory_space<smem>>
    %765 = vector.broadcast %764 : f32 to vector<64x128xf32>
    %766 = arith.mulf %765, %761 : vector<64x128xf32>
    %767 = arith.addf %749, %766 : vector<64x128xf32>
    %c42_i32 = arith.constant 42 : i32
    %c0_i32_177 = arith.constant 0 : i32
    %768 = arith.addi %c0_i32_177, %c42_i32 : i32
    %769 = arith.index_cast %768 : i32 to index
    %770 = memref.load %arg4[%769] : memref<128xf32, #tpu.memory_space<smem>>
    %771 = vector.broadcast %770 : f32 to vector<64x128xf32>
    %772 = arith.mulf %771, %10 : vector<64x128xf32>
    %c0_i32_178 = arith.constant 0 : i32
    %773 = arith.addi %c0_i32_178, %c42_i32 : i32
    %774 = arith.index_cast %773 : i32 to index
    %775 = memref.load %arg5[%774] : memref<128xf32, #tpu.memory_space<smem>>
    %776 = vector.broadcast %775 : f32 to vector<64x128xf32>
    %777 = arith.addf %772, %776 : vector<64x128xf32>
    %cst_179 = arith.constant 0.000000e+00 : f32
    %778 = vector.broadcast %cst_179 : f32 to vector<64x128xf32>
    %779 = arith.maximumf %777, %778 : vector<64x128xf32>
    %c0_i32_180 = arith.constant 0 : i32
    %780 = arith.addi %c0_i32_180, %c42_i32 : i32
    %781 = arith.index_cast %780 : i32 to index
    %782 = memref.load %arg6[%781] : memref<128xf32, #tpu.memory_space<smem>>
    %783 = vector.broadcast %782 : f32 to vector<64x128xf32>
    %784 = arith.mulf %783, %779 : vector<64x128xf32>
    %785 = arith.addf %767, %784 : vector<64x128xf32>
    %c43_i32 = arith.constant 43 : i32
    %c0_i32_181 = arith.constant 0 : i32
    %786 = arith.addi %c0_i32_181, %c43_i32 : i32
    %787 = arith.index_cast %786 : i32 to index
    %788 = memref.load %arg4[%787] : memref<128xf32, #tpu.memory_space<smem>>
    %789 = vector.broadcast %788 : f32 to vector<64x128xf32>
    %790 = arith.mulf %789, %10 : vector<64x128xf32>
    %c0_i32_182 = arith.constant 0 : i32
    %791 = arith.addi %c0_i32_182, %c43_i32 : i32
    %792 = arith.index_cast %791 : i32 to index
    %793 = memref.load %arg5[%792] : memref<128xf32, #tpu.memory_space<smem>>
    %794 = vector.broadcast %793 : f32 to vector<64x128xf32>
    %795 = arith.addf %790, %794 : vector<64x128xf32>
    %cst_183 = arith.constant 0.000000e+00 : f32
    %796 = vector.broadcast %cst_183 : f32 to vector<64x128xf32>
    %797 = arith.maximumf %795, %796 : vector<64x128xf32>
    %c0_i32_184 = arith.constant 0 : i32
    %798 = arith.addi %c0_i32_184, %c43_i32 : i32
    %799 = arith.index_cast %798 : i32 to index
    %800 = memref.load %arg6[%799] : memref<128xf32, #tpu.memory_space<smem>>
    %801 = vector.broadcast %800 : f32 to vector<64x128xf32>
    %802 = arith.mulf %801, %797 : vector<64x128xf32>
    %803 = arith.addf %785, %802 : vector<64x128xf32>
    %c44_i32 = arith.constant 44 : i32
    %c0_i32_185 = arith.constant 0 : i32
    %804 = arith.addi %c0_i32_185, %c44_i32 : i32
    %805 = arith.index_cast %804 : i32 to index
    %806 = memref.load %arg4[%805] : memref<128xf32, #tpu.memory_space<smem>>
    %807 = vector.broadcast %806 : f32 to vector<64x128xf32>
    %808 = arith.mulf %807, %10 : vector<64x128xf32>
    %c0_i32_186 = arith.constant 0 : i32
    %809 = arith.addi %c0_i32_186, %c44_i32 : i32
    %810 = arith.index_cast %809 : i32 to index
    %811 = memref.load %arg5[%810] : memref<128xf32, #tpu.memory_space<smem>>
    %812 = vector.broadcast %811 : f32 to vector<64x128xf32>
    %813 = arith.addf %808, %812 : vector<64x128xf32>
    %cst_187 = arith.constant 0.000000e+00 : f32
    %814 = vector.broadcast %cst_187 : f32 to vector<64x128xf32>
    %815 = arith.maximumf %813, %814 : vector<64x128xf32>
    %c0_i32_188 = arith.constant 0 : i32
    %816 = arith.addi %c0_i32_188, %c44_i32 : i32
    %817 = arith.index_cast %816 : i32 to index
    %818 = memref.load %arg6[%817] : memref<128xf32, #tpu.memory_space<smem>>
    %819 = vector.broadcast %818 : f32 to vector<64x128xf32>
    %820 = arith.mulf %819, %815 : vector<64x128xf32>
    %821 = arith.addf %803, %820 : vector<64x128xf32>
    %c45_i32 = arith.constant 45 : i32
    %c0_i32_189 = arith.constant 0 : i32
    %822 = arith.addi %c0_i32_189, %c45_i32 : i32
    %823 = arith.index_cast %822 : i32 to index
    %824 = memref.load %arg4[%823] : memref<128xf32, #tpu.memory_space<smem>>
    %825 = vector.broadcast %824 : f32 to vector<64x128xf32>
    %826 = arith.mulf %825, %10 : vector<64x128xf32>
    %c0_i32_190 = arith.constant 0 : i32
    %827 = arith.addi %c0_i32_190, %c45_i32 : i32
    %828 = arith.index_cast %827 : i32 to index
    %829 = memref.load %arg5[%828] : memref<128xf32, #tpu.memory_space<smem>>
    %830 = vector.broadcast %829 : f32 to vector<64x128xf32>
    %831 = arith.addf %826, %830 : vector<64x128xf32>
    %cst_191 = arith.constant 0.000000e+00 : f32
    %832 = vector.broadcast %cst_191 : f32 to vector<64x128xf32>
    %833 = arith.maximumf %831, %832 : vector<64x128xf32>
    %c0_i32_192 = arith.constant 0 : i32
    %834 = arith.addi %c0_i32_192, %c45_i32 : i32
    %835 = arith.index_cast %834 : i32 to index
    %836 = memref.load %arg6[%835] : memref<128xf32, #tpu.memory_space<smem>>
    %837 = vector.broadcast %836 : f32 to vector<64x128xf32>
    %838 = arith.mulf %837, %833 : vector<64x128xf32>
    %839 = arith.addf %821, %838 : vector<64x128xf32>
    %c46_i32 = arith.constant 46 : i32
    %c0_i32_193 = arith.constant 0 : i32
    %840 = arith.addi %c0_i32_193, %c46_i32 : i32
    %841 = arith.index_cast %840 : i32 to index
    %842 = memref.load %arg4[%841] : memref<128xf32, #tpu.memory_space<smem>>
    %843 = vector.broadcast %842 : f32 to vector<64x128xf32>
    %844 = arith.mulf %843, %10 : vector<64x128xf32>
    %c0_i32_194 = arith.constant 0 : i32
    %845 = arith.addi %c0_i32_194, %c46_i32 : i32
    %846 = arith.index_cast %845 : i32 to index
    %847 = memref.load %arg5[%846] : memref<128xf32, #tpu.memory_space<smem>>
    %848 = vector.broadcast %847 : f32 to vector<64x128xf32>
    %849 = arith.addf %844, %848 : vector<64x128xf32>
    %cst_195 = arith.constant 0.000000e+00 : f32
    %850 = vector.broadcast %cst_195 : f32 to vector<64x128xf32>
    %851 = arith.maximumf %849, %850 : vector<64x128xf32>
    %c0_i32_196 = arith.constant 0 : i32
    %852 = arith.addi %c0_i32_196, %c46_i32 : i32
    %853 = arith.index_cast %852 : i32 to index
    %854 = memref.load %arg6[%853] : memref<128xf32, #tpu.memory_space<smem>>
    %855 = vector.broadcast %854 : f32 to vector<64x128xf32>
    %856 = arith.mulf %855, %851 : vector<64x128xf32>
    %857 = arith.addf %839, %856 : vector<64x128xf32>
    %c47_i32 = arith.constant 47 : i32
    %c0_i32_197 = arith.constant 0 : i32
    %858 = arith.addi %c0_i32_197, %c47_i32 : i32
    %859 = arith.index_cast %858 : i32 to index
    %860 = memref.load %arg4[%859] : memref<128xf32, #tpu.memory_space<smem>>
    %861 = vector.broadcast %860 : f32 to vector<64x128xf32>
    %862 = arith.mulf %861, %10 : vector<64x128xf32>
    %c0_i32_198 = arith.constant 0 : i32
    %863 = arith.addi %c0_i32_198, %c47_i32 : i32
    %864 = arith.index_cast %863 : i32 to index
    %865 = memref.load %arg5[%864] : memref<128xf32, #tpu.memory_space<smem>>
    %866 = vector.broadcast %865 : f32 to vector<64x128xf32>
    %867 = arith.addf %862, %866 : vector<64x128xf32>
    %cst_199 = arith.constant 0.000000e+00 : f32
    %868 = vector.broadcast %cst_199 : f32 to vector<64x128xf32>
    %869 = arith.maximumf %867, %868 : vector<64x128xf32>
    %c0_i32_200 = arith.constant 0 : i32
    %870 = arith.addi %c0_i32_200, %c47_i32 : i32
    %871 = arith.index_cast %870 : i32 to index
    %872 = memref.load %arg6[%871] : memref<128xf32, #tpu.memory_space<smem>>
    %873 = vector.broadcast %872 : f32 to vector<64x128xf32>
    %874 = arith.mulf %873, %869 : vector<64x128xf32>
    %875 = arith.addf %857, %874 : vector<64x128xf32>
    %c48_i32 = arith.constant 48 : i32
    %c0_i32_201 = arith.constant 0 : i32
    %876 = arith.addi %c0_i32_201, %c48_i32 : i32
    %877 = arith.index_cast %876 : i32 to index
    %878 = memref.load %arg4[%877] : memref<128xf32, #tpu.memory_space<smem>>
    %879 = vector.broadcast %878 : f32 to vector<64x128xf32>
    %880 = arith.mulf %879, %10 : vector<64x128xf32>
    %c0_i32_202 = arith.constant 0 : i32
    %881 = arith.addi %c0_i32_202, %c48_i32 : i32
    %882 = arith.index_cast %881 : i32 to index
    %883 = memref.load %arg5[%882] : memref<128xf32, #tpu.memory_space<smem>>
    %884 = vector.broadcast %883 : f32 to vector<64x128xf32>
    %885 = arith.addf %880, %884 : vector<64x128xf32>
    %cst_203 = arith.constant 0.000000e+00 : f32
    %886 = vector.broadcast %cst_203 : f32 to vector<64x128xf32>
    %887 = arith.maximumf %885, %886 : vector<64x128xf32>
    %c0_i32_204 = arith.constant 0 : i32
    %888 = arith.addi %c0_i32_204, %c48_i32 : i32
    %889 = arith.index_cast %888 : i32 to index
    %890 = memref.load %arg6[%889] : memref<128xf32, #tpu.memory_space<smem>>
    %891 = vector.broadcast %890 : f32 to vector<64x128xf32>
    %892 = arith.mulf %891, %887 : vector<64x128xf32>
    %893 = arith.addf %875, %892 : vector<64x128xf32>
    %c49_i32 = arith.constant 49 : i32
    %c0_i32_205 = arith.constant 0 : i32
    %894 = arith.addi %c0_i32_205, %c49_i32 : i32
    %895 = arith.index_cast %894 : i32 to index
    %896 = memref.load %arg4[%895] : memref<128xf32, #tpu.memory_space<smem>>
    %897 = vector.broadcast %896 : f32 to vector<64x128xf32>
    %898 = arith.mulf %897, %10 : vector<64x128xf32>
    %c0_i32_206 = arith.constant 0 : i32
    %899 = arith.addi %c0_i32_206, %c49_i32 : i32
    %900 = arith.index_cast %899 : i32 to index
    %901 = memref.load %arg5[%900] : memref<128xf32, #tpu.memory_space<smem>>
    %902 = vector.broadcast %901 : f32 to vector<64x128xf32>
    %903 = arith.addf %898, %902 : vector<64x128xf32>
    %cst_207 = arith.constant 0.000000e+00 : f32
    %904 = vector.broadcast %cst_207 : f32 to vector<64x128xf32>
    %905 = arith.maximumf %903, %904 : vector<64x128xf32>
    %c0_i32_208 = arith.constant 0 : i32
    %906 = arith.addi %c0_i32_208, %c49_i32 : i32
    %907 = arith.index_cast %906 : i32 to index
    %908 = memref.load %arg6[%907] : memref<128xf32, #tpu.memory_space<smem>>
    %909 = vector.broadcast %908 : f32 to vector<64x128xf32>
    %910 = arith.mulf %909, %905 : vector<64x128xf32>
    %911 = arith.addf %893, %910 : vector<64x128xf32>
    %c50_i32 = arith.constant 50 : i32
    %c0_i32_209 = arith.constant 0 : i32
    %912 = arith.addi %c0_i32_209, %c50_i32 : i32
    %913 = arith.index_cast %912 : i32 to index
    %914 = memref.load %arg4[%913] : memref<128xf32, #tpu.memory_space<smem>>
    %915 = vector.broadcast %914 : f32 to vector<64x128xf32>
    %916 = arith.mulf %915, %10 : vector<64x128xf32>
    %c0_i32_210 = arith.constant 0 : i32
    %917 = arith.addi %c0_i32_210, %c50_i32 : i32
    %918 = arith.index_cast %917 : i32 to index
    %919 = memref.load %arg5[%918] : memref<128xf32, #tpu.memory_space<smem>>
    %920 = vector.broadcast %919 : f32 to vector<64x128xf32>
    %921 = arith.addf %916, %920 : vector<64x128xf32>
    %cst_211 = arith.constant 0.000000e+00 : f32
    %922 = vector.broadcast %cst_211 : f32 to vector<64x128xf32>
    %923 = arith.maximumf %921, %922 : vector<64x128xf32>
    %c0_i32_212 = arith.constant 0 : i32
    %924 = arith.addi %c0_i32_212, %c50_i32 : i32
    %925 = arith.index_cast %924 : i32 to index
    %926 = memref.load %arg6[%925] : memref<128xf32, #tpu.memory_space<smem>>
    %927 = vector.broadcast %926 : f32 to vector<64x128xf32>
    %928 = arith.mulf %927, %923 : vector<64x128xf32>
    %929 = arith.addf %911, %928 : vector<64x128xf32>
    %c51_i32 = arith.constant 51 : i32
    %c0_i32_213 = arith.constant 0 : i32
    %930 = arith.addi %c0_i32_213, %c51_i32 : i32
    %931 = arith.index_cast %930 : i32 to index
    %932 = memref.load %arg4[%931] : memref<128xf32, #tpu.memory_space<smem>>
    %933 = vector.broadcast %932 : f32 to vector<64x128xf32>
    %934 = arith.mulf %933, %10 : vector<64x128xf32>
    %c0_i32_214 = arith.constant 0 : i32
    %935 = arith.addi %c0_i32_214, %c51_i32 : i32
    %936 = arith.index_cast %935 : i32 to index
    %937 = memref.load %arg5[%936] : memref<128xf32, #tpu.memory_space<smem>>
    %938 = vector.broadcast %937 : f32 to vector<64x128xf32>
    %939 = arith.addf %934, %938 : vector<64x128xf32>
    %cst_215 = arith.constant 0.000000e+00 : f32
    %940 = vector.broadcast %cst_215 : f32 to vector<64x128xf32>
    %941 = arith.maximumf %939, %940 : vector<64x128xf32>
    %c0_i32_216 = arith.constant 0 : i32
    %942 = arith.addi %c0_i32_216, %c51_i32 : i32
    %943 = arith.index_cast %942 : i32 to index
    %944 = memref.load %arg6[%943] : memref<128xf32, #tpu.memory_space<smem>>
    %945 = vector.broadcast %944 : f32 to vector<64x128xf32>
    %946 = arith.mulf %945, %941 : vector<64x128xf32>
    %947 = arith.addf %929, %946 : vector<64x128xf32>
    %c52_i32 = arith.constant 52 : i32
    %c0_i32_217 = arith.constant 0 : i32
    %948 = arith.addi %c0_i32_217, %c52_i32 : i32
    %949 = arith.index_cast %948 : i32 to index
    %950 = memref.load %arg4[%949] : memref<128xf32, #tpu.memory_space<smem>>
    %951 = vector.broadcast %950 : f32 to vector<64x128xf32>
    %952 = arith.mulf %951, %10 : vector<64x128xf32>
    %c0_i32_218 = arith.constant 0 : i32
    %953 = arith.addi %c0_i32_218, %c52_i32 : i32
    %954 = arith.index_cast %953 : i32 to index
    %955 = memref.load %arg5[%954] : memref<128xf32, #tpu.memory_space<smem>>
    %956 = vector.broadcast %955 : f32 to vector<64x128xf32>
    %957 = arith.addf %952, %956 : vector<64x128xf32>
    %cst_219 = arith.constant 0.000000e+00 : f32
    %958 = vector.broadcast %cst_219 : f32 to vector<64x128xf32>
    %959 = arith.maximumf %957, %958 : vector<64x128xf32>
    %c0_i32_220 = arith.constant 0 : i32
    %960 = arith.addi %c0_i32_220, %c52_i32 : i32
    %961 = arith.index_cast %960 : i32 to index
    %962 = memref.load %arg6[%961] : memref<128xf32, #tpu.memory_space<smem>>
    %963 = vector.broadcast %962 : f32 to vector<64x128xf32>
    %964 = arith.mulf %963, %959 : vector<64x128xf32>
    %965 = arith.addf %947, %964 : vector<64x128xf32>
    %c53_i32 = arith.constant 53 : i32
    %c0_i32_221 = arith.constant 0 : i32
    %966 = arith.addi %c0_i32_221, %c53_i32 : i32
    %967 = arith.index_cast %966 : i32 to index
    %968 = memref.load %arg4[%967] : memref<128xf32, #tpu.memory_space<smem>>
    %969 = vector.broadcast %968 : f32 to vector<64x128xf32>
    %970 = arith.mulf %969, %10 : vector<64x128xf32>
    %c0_i32_222 = arith.constant 0 : i32
    %971 = arith.addi %c0_i32_222, %c53_i32 : i32
    %972 = arith.index_cast %971 : i32 to index
    %973 = memref.load %arg5[%972] : memref<128xf32, #tpu.memory_space<smem>>
    %974 = vector.broadcast %973 : f32 to vector<64x128xf32>
    %975 = arith.addf %970, %974 : vector<64x128xf32>
    %cst_223 = arith.constant 0.000000e+00 : f32
    %976 = vector.broadcast %cst_223 : f32 to vector<64x128xf32>
    %977 = arith.maximumf %975, %976 : vector<64x128xf32>
    %c0_i32_224 = arith.constant 0 : i32
    %978 = arith.addi %c0_i32_224, %c53_i32 : i32
    %979 = arith.index_cast %978 : i32 to index
    %980 = memref.load %arg6[%979] : memref<128xf32, #tpu.memory_space<smem>>
    %981 = vector.broadcast %980 : f32 to vector<64x128xf32>
    %982 = arith.mulf %981, %977 : vector<64x128xf32>
    %983 = arith.addf %965, %982 : vector<64x128xf32>
    %c54_i32 = arith.constant 54 : i32
    %c0_i32_225 = arith.constant 0 : i32
    %984 = arith.addi %c0_i32_225, %c54_i32 : i32
    %985 = arith.index_cast %984 : i32 to index
    %986 = memref.load %arg4[%985] : memref<128xf32, #tpu.memory_space<smem>>
    %987 = vector.broadcast %986 : f32 to vector<64x128xf32>
    %988 = arith.mulf %987, %10 : vector<64x128xf32>
    %c0_i32_226 = arith.constant 0 : i32
    %989 = arith.addi %c0_i32_226, %c54_i32 : i32
    %990 = arith.index_cast %989 : i32 to index
    %991 = memref.load %arg5[%990] : memref<128xf32, #tpu.memory_space<smem>>
    %992 = vector.broadcast %991 : f32 to vector<64x128xf32>
    %993 = arith.addf %988, %992 : vector<64x128xf32>
    %cst_227 = arith.constant 0.000000e+00 : f32
    %994 = vector.broadcast %cst_227 : f32 to vector<64x128xf32>
    %995 = arith.maximumf %993, %994 : vector<64x128xf32>
    %c0_i32_228 = arith.constant 0 : i32
    %996 = arith.addi %c0_i32_228, %c54_i32 : i32
    %997 = arith.index_cast %996 : i32 to index
    %998 = memref.load %arg6[%997] : memref<128xf32, #tpu.memory_space<smem>>
    %999 = vector.broadcast %998 : f32 to vector<64x128xf32>
    %1000 = arith.mulf %999, %995 : vector<64x128xf32>
    %1001 = arith.addf %983, %1000 : vector<64x128xf32>
    %c55_i32 = arith.constant 55 : i32
    %c0_i32_229 = arith.constant 0 : i32
    %1002 = arith.addi %c0_i32_229, %c55_i32 : i32
    %1003 = arith.index_cast %1002 : i32 to index
    %1004 = memref.load %arg4[%1003] : memref<128xf32, #tpu.memory_space<smem>>
    %1005 = vector.broadcast %1004 : f32 to vector<64x128xf32>
    %1006 = arith.mulf %1005, %10 : vector<64x128xf32>
    %c0_i32_230 = arith.constant 0 : i32
    %1007 = arith.addi %c0_i32_230, %c55_i32 : i32
    %1008 = arith.index_cast %1007 : i32 to index
    %1009 = memref.load %arg5[%1008] : memref<128xf32, #tpu.memory_space<smem>>
    %1010 = vector.broadcast %1009 : f32 to vector<64x128xf32>
    %1011 = arith.addf %1006, %1010 : vector<64x128xf32>
    %cst_231 = arith.constant 0.000000e+00 : f32
    %1012 = vector.broadcast %cst_231 : f32 to vector<64x128xf32>
    %1013 = arith.maximumf %1011, %1012 : vector<64x128xf32>
    %c0_i32_232 = arith.constant 0 : i32
    %1014 = arith.addi %c0_i32_232, %c55_i32 : i32
    %1015 = arith.index_cast %1014 : i32 to index
    %1016 = memref.load %arg6[%1015] : memref<128xf32, #tpu.memory_space<smem>>
    %1017 = vector.broadcast %1016 : f32 to vector<64x128xf32>
    %1018 = arith.mulf %1017, %1013 : vector<64x128xf32>
    %1019 = arith.addf %1001, %1018 : vector<64x128xf32>
    %c56_i32 = arith.constant 56 : i32
    %c0_i32_233 = arith.constant 0 : i32
    %1020 = arith.addi %c0_i32_233, %c56_i32 : i32
    %1021 = arith.index_cast %1020 : i32 to index
    %1022 = memref.load %arg4[%1021] : memref<128xf32, #tpu.memory_space<smem>>
    %1023 = vector.broadcast %1022 : f32 to vector<64x128xf32>
    %1024 = arith.mulf %1023, %10 : vector<64x128xf32>
    %c0_i32_234 = arith.constant 0 : i32
    %1025 = arith.addi %c0_i32_234, %c56_i32 : i32
    %1026 = arith.index_cast %1025 : i32 to index
    %1027 = memref.load %arg5[%1026] : memref<128xf32, #tpu.memory_space<smem>>
    %1028 = vector.broadcast %1027 : f32 to vector<64x128xf32>
    %1029 = arith.addf %1024, %1028 : vector<64x128xf32>
    %cst_235 = arith.constant 0.000000e+00 : f32
    %1030 = vector.broadcast %cst_235 : f32 to vector<64x128xf32>
    %1031 = arith.maximumf %1029, %1030 : vector<64x128xf32>
    %c0_i32_236 = arith.constant 0 : i32
    %1032 = arith.addi %c0_i32_236, %c56_i32 : i32
    %1033 = arith.index_cast %1032 : i32 to index
    %1034 = memref.load %arg6[%1033] : memref<128xf32, #tpu.memory_space<smem>>
    %1035 = vector.broadcast %1034 : f32 to vector<64x128xf32>
    %1036 = arith.mulf %1035, %1031 : vector<64x128xf32>
    %1037 = arith.addf %1019, %1036 : vector<64x128xf32>
    %c57_i32 = arith.constant 57 : i32
    %c0_i32_237 = arith.constant 0 : i32
    %1038 = arith.addi %c0_i32_237, %c57_i32 : i32
    %1039 = arith.index_cast %1038 : i32 to index
    %1040 = memref.load %arg4[%1039] : memref<128xf32, #tpu.memory_space<smem>>
    %1041 = vector.broadcast %1040 : f32 to vector<64x128xf32>
    %1042 = arith.mulf %1041, %10 : vector<64x128xf32>
    %c0_i32_238 = arith.constant 0 : i32
    %1043 = arith.addi %c0_i32_238, %c57_i32 : i32
    %1044 = arith.index_cast %1043 : i32 to index
    %1045 = memref.load %arg5[%1044] : memref<128xf32, #tpu.memory_space<smem>>
    %1046 = vector.broadcast %1045 : f32 to vector<64x128xf32>
    %1047 = arith.addf %1042, %1046 : vector<64x128xf32>
    %cst_239 = arith.constant 0.000000e+00 : f32
    %1048 = vector.broadcast %cst_239 : f32 to vector<64x128xf32>
    %1049 = arith.maximumf %1047, %1048 : vector<64x128xf32>
    %c0_i32_240 = arith.constant 0 : i32
    %1050 = arith.addi %c0_i32_240, %c57_i32 : i32
    %1051 = arith.index_cast %1050 : i32 to index
    %1052 = memref.load %arg6[%1051] : memref<128xf32, #tpu.memory_space<smem>>
    %1053 = vector.broadcast %1052 : f32 to vector<64x128xf32>
    %1054 = arith.mulf %1053, %1049 : vector<64x128xf32>
    %1055 = arith.addf %1037, %1054 : vector<64x128xf32>
    %c58_i32 = arith.constant 58 : i32
    %c0_i32_241 = arith.constant 0 : i32
    %1056 = arith.addi %c0_i32_241, %c58_i32 : i32
    %1057 = arith.index_cast %1056 : i32 to index
    %1058 = memref.load %arg4[%1057] : memref<128xf32, #tpu.memory_space<smem>>
    %1059 = vector.broadcast %1058 : f32 to vector<64x128xf32>
    %1060 = arith.mulf %1059, %10 : vector<64x128xf32>
    %c0_i32_242 = arith.constant 0 : i32
    %1061 = arith.addi %c0_i32_242, %c58_i32 : i32
    %1062 = arith.index_cast %1061 : i32 to index
    %1063 = memref.load %arg5[%1062] : memref<128xf32, #tpu.memory_space<smem>>
    %1064 = vector.broadcast %1063 : f32 to vector<64x128xf32>
    %1065 = arith.addf %1060, %1064 : vector<64x128xf32>
    %cst_243 = arith.constant 0.000000e+00 : f32
    %1066 = vector.broadcast %cst_243 : f32 to vector<64x128xf32>
    %1067 = arith.maximumf %1065, %1066 : vector<64x128xf32>
    %c0_i32_244 = arith.constant 0 : i32
    %1068 = arith.addi %c0_i32_244, %c58_i32 : i32
    %1069 = arith.index_cast %1068 : i32 to index
    %1070 = memref.load %arg6[%1069] : memref<128xf32, #tpu.memory_space<smem>>
    %1071 = vector.broadcast %1070 : f32 to vector<64x128xf32>
    %1072 = arith.mulf %1071, %1067 : vector<64x128xf32>
    %1073 = arith.addf %1055, %1072 : vector<64x128xf32>
    %c59_i32 = arith.constant 59 : i32
    %c0_i32_245 = arith.constant 0 : i32
    %1074 = arith.addi %c0_i32_245, %c59_i32 : i32
    %1075 = arith.index_cast %1074 : i32 to index
    %1076 = memref.load %arg4[%1075] : memref<128xf32, #tpu.memory_space<smem>>
    %1077 = vector.broadcast %1076 : f32 to vector<64x128xf32>
    %1078 = arith.mulf %1077, %10 : vector<64x128xf32>
    %c0_i32_246 = arith.constant 0 : i32
    %1079 = arith.addi %c0_i32_246, %c59_i32 : i32
    %1080 = arith.index_cast %1079 : i32 to index
    %1081 = memref.load %arg5[%1080] : memref<128xf32, #tpu.memory_space<smem>>
    %1082 = vector.broadcast %1081 : f32 to vector<64x128xf32>
    %1083 = arith.addf %1078, %1082 : vector<64x128xf32>
    %cst_247 = arith.constant 0.000000e+00 : f32
    %1084 = vector.broadcast %cst_247 : f32 to vector<64x128xf32>
    %1085 = arith.maximumf %1083, %1084 : vector<64x128xf32>
    %c0_i32_248 = arith.constant 0 : i32
    %1086 = arith.addi %c0_i32_248, %c59_i32 : i32
    %1087 = arith.index_cast %1086 : i32 to index
    %1088 = memref.load %arg6[%1087] : memref<128xf32, #tpu.memory_space<smem>>
    %1089 = vector.broadcast %1088 : f32 to vector<64x128xf32>
    %1090 = arith.mulf %1089, %1085 : vector<64x128xf32>
    %1091 = arith.addf %1073, %1090 : vector<64x128xf32>
    %c60_i32 = arith.constant 60 : i32
    %c0_i32_249 = arith.constant 0 : i32
    %1092 = arith.addi %c0_i32_249, %c60_i32 : i32
    %1093 = arith.index_cast %1092 : i32 to index
    %1094 = memref.load %arg4[%1093] : memref<128xf32, #tpu.memory_space<smem>>
    %1095 = vector.broadcast %1094 : f32 to vector<64x128xf32>
    %1096 = arith.mulf %1095, %10 : vector<64x128xf32>
    %c0_i32_250 = arith.constant 0 : i32
    %1097 = arith.addi %c0_i32_250, %c60_i32 : i32
    %1098 = arith.index_cast %1097 : i32 to index
    %1099 = memref.load %arg5[%1098] : memref<128xf32, #tpu.memory_space<smem>>
    %1100 = vector.broadcast %1099 : f32 to vector<64x128xf32>
    %1101 = arith.addf %1096, %1100 : vector<64x128xf32>
    %cst_251 = arith.constant 0.000000e+00 : f32
    %1102 = vector.broadcast %cst_251 : f32 to vector<64x128xf32>
    %1103 = arith.maximumf %1101, %1102 : vector<64x128xf32>
    %c0_i32_252 = arith.constant 0 : i32
    %1104 = arith.addi %c0_i32_252, %c60_i32 : i32
    %1105 = arith.index_cast %1104 : i32 to index
    %1106 = memref.load %arg6[%1105] : memref<128xf32, #tpu.memory_space<smem>>
    %1107 = vector.broadcast %1106 : f32 to vector<64x128xf32>
    %1108 = arith.mulf %1107, %1103 : vector<64x128xf32>
    %1109 = arith.addf %1091, %1108 : vector<64x128xf32>
    %c61_i32 = arith.constant 61 : i32
    %c0_i32_253 = arith.constant 0 : i32
    %1110 = arith.addi %c0_i32_253, %c61_i32 : i32
    %1111 = arith.index_cast %1110 : i32 to index
    %1112 = memref.load %arg4[%1111] : memref<128xf32, #tpu.memory_space<smem>>
    %1113 = vector.broadcast %1112 : f32 to vector<64x128xf32>
    %1114 = arith.mulf %1113, %10 : vector<64x128xf32>
    %c0_i32_254 = arith.constant 0 : i32
    %1115 = arith.addi %c0_i32_254, %c61_i32 : i32
    %1116 = arith.index_cast %1115 : i32 to index
    %1117 = memref.load %arg5[%1116] : memref<128xf32, #tpu.memory_space<smem>>
    %1118 = vector.broadcast %1117 : f32 to vector<64x128xf32>
    %1119 = arith.addf %1114, %1118 : vector<64x128xf32>
    %cst_255 = arith.constant 0.000000e+00 : f32
    %1120 = vector.broadcast %cst_255 : f32 to vector<64x128xf32>
    %1121 = arith.maximumf %1119, %1120 : vector<64x128xf32>
    %c0_i32_256 = arith.constant 0 : i32
    %1122 = arith.addi %c0_i32_256, %c61_i32 : i32
    %1123 = arith.index_cast %1122 : i32 to index
    %1124 = memref.load %arg6[%1123] : memref<128xf32, #tpu.memory_space<smem>>
    %1125 = vector.broadcast %1124 : f32 to vector<64x128xf32>
    %1126 = arith.mulf %1125, %1121 : vector<64x128xf32>
    %1127 = arith.addf %1109, %1126 : vector<64x128xf32>
    %c62_i32 = arith.constant 62 : i32
    %c0_i32_257 = arith.constant 0 : i32
    %1128 = arith.addi %c0_i32_257, %c62_i32 : i32
    %1129 = arith.index_cast %1128 : i32 to index
    %1130 = memref.load %arg4[%1129] : memref<128xf32, #tpu.memory_space<smem>>
    %1131 = vector.broadcast %1130 : f32 to vector<64x128xf32>
    %1132 = arith.mulf %1131, %10 : vector<64x128xf32>
    %c0_i32_258 = arith.constant 0 : i32
    %1133 = arith.addi %c0_i32_258, %c62_i32 : i32
    %1134 = arith.index_cast %1133 : i32 to index
    %1135 = memref.load %arg5[%1134] : memref<128xf32, #tpu.memory_space<smem>>
    %1136 = vector.broadcast %1135 : f32 to vector<64x128xf32>
    %1137 = arith.addf %1132, %1136 : vector<64x128xf32>
    %cst_259 = arith.constant 0.000000e+00 : f32
    %1138 = vector.broadcast %cst_259 : f32 to vector<64x128xf32>
    %1139 = arith.maximumf %1137, %1138 : vector<64x128xf32>
    %c0_i32_260 = arith.constant 0 : i32
    %1140 = arith.addi %c0_i32_260, %c62_i32 : i32
    %1141 = arith.index_cast %1140 : i32 to index
    %1142 = memref.load %arg6[%1141] : memref<128xf32, #tpu.memory_space<smem>>
    %1143 = vector.broadcast %1142 : f32 to vector<64x128xf32>
    %1144 = arith.mulf %1143, %1139 : vector<64x128xf32>
    %1145 = arith.addf %1127, %1144 : vector<64x128xf32>
    %c63_i32 = arith.constant 63 : i32
    %c0_i32_261 = arith.constant 0 : i32
    %1146 = arith.addi %c0_i32_261, %c63_i32 : i32
    %1147 = arith.index_cast %1146 : i32 to index
    %1148 = memref.load %arg4[%1147] : memref<128xf32, #tpu.memory_space<smem>>
    %1149 = vector.broadcast %1148 : f32 to vector<64x128xf32>
    %1150 = arith.mulf %1149, %10 : vector<64x128xf32>
    %c0_i32_262 = arith.constant 0 : i32
    %1151 = arith.addi %c0_i32_262, %c63_i32 : i32
    %1152 = arith.index_cast %1151 : i32 to index
    %1153 = memref.load %arg5[%1152] : memref<128xf32, #tpu.memory_space<smem>>
    %1154 = vector.broadcast %1153 : f32 to vector<64x128xf32>
    %1155 = arith.addf %1150, %1154 : vector<64x128xf32>
    %cst_263 = arith.constant 0.000000e+00 : f32
    %1156 = vector.broadcast %cst_263 : f32 to vector<64x128xf32>
    %1157 = arith.maximumf %1155, %1156 : vector<64x128xf32>
    %c0_i32_264 = arith.constant 0 : i32
    %1158 = arith.addi %c0_i32_264, %c63_i32 : i32
    %1159 = arith.index_cast %1158 : i32 to index
    %1160 = memref.load %arg6[%1159] : memref<128xf32, #tpu.memory_space<smem>>
    %1161 = vector.broadcast %1160 : f32 to vector<64x128xf32>
    %1162 = arith.mulf %1161, %1157 : vector<64x128xf32>
    %1163 = arith.addf %1145, %1162 : vector<64x128xf32>
    %c64_i32 = arith.constant 64 : i32
    %1164 = arith.addf %10, %1163 : vector<64x128xf32>
    %c0_265 = arith.constant 0 : index
    %1165 = memref.load %arg7[%c0_265] : memref<2xf32, #tpu.memory_space<smem>>
    %1166 = vector.broadcast %1165 : f32 to vector<64x128xf32>
    %1167 = arith.addf %1164, %1166 : vector<64x128xf32>
    %c1 = arith.constant 1 : index
    %c0_266 = arith.constant 0 : index
    %c0_267 = arith.constant 0 : index
    %1168 = vector.load %arg2[%c1, %c0_266, %c0_267] : memref<2x64x64xf32, #tpu.memory_space<vmem>>, vector<1x64x64xf32>
    %1169 = vector.shape_cast %1168 : vector<1x64x64xf32> to vector<64x64xf32>
    %cst_268 = arith.constant dense<0.000000e+00> : vector<64x128xf32>
    %1170 = tpu.matmul %1169, %1167, %cst_268 {dimension_numbers = #tpu.dot_dimension_numbers<[1], [0], [0], [1], [0, 0, 1, 1], [], []>} : vector<64x64xf32>, vector<64x128xf32>, vector<64x128xf32> -> vector<64x128xf32>
    %c1_269 = arith.constant 1 : index
    %c0_270 = arith.constant 0 : index
    %c0_271 = arith.constant 0 : index
    %1171 = vector.load %arg3[%c1_269, %c0_270, %c0_271] : memref<2x64x1xf32, #tpu.memory_space<vmem>>, vector<1x64x1xf32>
    %1172 = vector.shape_cast %1171 : vector<1x64x1xf32> to vector<64x1xf32>
    %1173 = vector.broadcast %1172 : vector<64x1xf32> to vector<64x128xf32>
    %1174 = arith.addf %1170, %1173 : vector<64x128xf32>
    %cst_272 = arith.constant 0.000000e+00 : f32
    %1175 = vector.broadcast %cst_272 : f32 to vector<64x128xf32>
    %1176 = arith.maximumf %1174, %1175 : vector<64x128xf32>
    %1177 = arith.addf %1167, %1176 : vector<64x128xf32>
    %cst_273 = arith.constant 0.000000e+00 : f32
    %1178 = vector.broadcast %cst_273 : f32 to vector<64x128xf32>
    %c0_i32_274 = arith.constant 0 : i32
    %c64_i32_275 = arith.constant 64 : i32
    %1179 = arith.addi %c64_i32_275, %c0_i32_274 : i32
    %1180 = arith.index_cast %1179 : i32 to index
    %1181 = memref.load %arg4[%1180] : memref<128xf32, #tpu.memory_space<smem>>
    %1182 = vector.broadcast %1181 : f32 to vector<64x128xf32>
    %1183 = arith.mulf %1182, %1177 : vector<64x128xf32>
    %c64_i32_276 = arith.constant 64 : i32
    %1184 = arith.addi %c64_i32_276, %c0_i32_274 : i32
    %1185 = arith.index_cast %1184 : i32 to index
    %1186 = memref.load %arg5[%1185] : memref<128xf32, #tpu.memory_space<smem>>
    %1187 = vector.broadcast %1186 : f32 to vector<64x128xf32>
    %1188 = arith.addf %1183, %1187 : vector<64x128xf32>
    %cst_277 = arith.constant 0.000000e+00 : f32
    %1189 = vector.broadcast %cst_277 : f32 to vector<64x128xf32>
    %1190 = arith.maximumf %1188, %1189 : vector<64x128xf32>
    %c64_i32_278 = arith.constant 64 : i32
    %1191 = arith.addi %c64_i32_278, %c0_i32_274 : i32
    %1192 = arith.index_cast %1191 : i32 to index
    %1193 = memref.load %arg6[%1192] : memref<128xf32, #tpu.memory_space<smem>>
    %1194 = vector.broadcast %1193 : f32 to vector<64x128xf32>
    %1195 = arith.mulf %1194, %1190 : vector<64x128xf32>
    %1196 = arith.addf %1178, %1195 : vector<64x128xf32>
    %c1_i32_279 = arith.constant 1 : i32
    %c64_i32_280 = arith.constant 64 : i32
    %1197 = arith.addi %c64_i32_280, %c1_i32_279 : i32
    %1198 = arith.index_cast %1197 : i32 to index
    %1199 = memref.load %arg4[%1198] : memref<128xf32, #tpu.memory_space<smem>>
    %1200 = vector.broadcast %1199 : f32 to vector<64x128xf32>
    %1201 = arith.mulf %1200, %1177 : vector<64x128xf32>
    %c64_i32_281 = arith.constant 64 : i32
    %1202 = arith.addi %c64_i32_281, %c1_i32_279 : i32
    %1203 = arith.index_cast %1202 : i32 to index
    %1204 = memref.load %arg5[%1203] : memref<128xf32, #tpu.memory_space<smem>>
    %1205 = vector.broadcast %1204 : f32 to vector<64x128xf32>
    %1206 = arith.addf %1201, %1205 : vector<64x128xf32>
    %cst_282 = arith.constant 0.000000e+00 : f32
    %1207 = vector.broadcast %cst_282 : f32 to vector<64x128xf32>
    %1208 = arith.maximumf %1206, %1207 : vector<64x128xf32>
    %c64_i32_283 = arith.constant 64 : i32
    %1209 = arith.addi %c64_i32_283, %c1_i32_279 : i32
    %1210 = arith.index_cast %1209 : i32 to index
    %1211 = memref.load %arg6[%1210] : memref<128xf32, #tpu.memory_space<smem>>
    %1212 = vector.broadcast %1211 : f32 to vector<64x128xf32>
    %1213 = arith.mulf %1212, %1208 : vector<64x128xf32>
    %1214 = arith.addf %1196, %1213 : vector<64x128xf32>
    %c2_i32_284 = arith.constant 2 : i32
    %c64_i32_285 = arith.constant 64 : i32
    %1215 = arith.addi %c64_i32_285, %c2_i32_284 : i32
    %1216 = arith.index_cast %1215 : i32 to index
    %1217 = memref.load %arg4[%1216] : memref<128xf32, #tpu.memory_space<smem>>
    %1218 = vector.broadcast %1217 : f32 to vector<64x128xf32>
    %1219 = arith.mulf %1218, %1177 : vector<64x128xf32>
    %c64_i32_286 = arith.constant 64 : i32
    %1220 = arith.addi %c64_i32_286, %c2_i32_284 : i32
    %1221 = arith.index_cast %1220 : i32 to index
    %1222 = memref.load %arg5[%1221] : memref<128xf32, #tpu.memory_space<smem>>
    %1223 = vector.broadcast %1222 : f32 to vector<64x128xf32>
    %1224 = arith.addf %1219, %1223 : vector<64x128xf32>
    %cst_287 = arith.constant 0.000000e+00 : f32
    %1225 = vector.broadcast %cst_287 : f32 to vector<64x128xf32>
    %1226 = arith.maximumf %1224, %1225 : vector<64x128xf32>
    %c64_i32_288 = arith.constant 64 : i32
    %1227 = arith.addi %c64_i32_288, %c2_i32_284 : i32
    %1228 = arith.index_cast %1227 : i32 to index
    %1229 = memref.load %arg6[%1228] : memref<128xf32, #tpu.memory_space<smem>>
    %1230 = vector.broadcast %1229 : f32 to vector<64x128xf32>
    %1231 = arith.mulf %1230, %1226 : vector<64x128xf32>
    %1232 = arith.addf %1214, %1231 : vector<64x128xf32>
    %c3_i32_289 = arith.constant 3 : i32
    %c64_i32_290 = arith.constant 64 : i32
    %1233 = arith.addi %c64_i32_290, %c3_i32_289 : i32
    %1234 = arith.index_cast %1233 : i32 to index
    %1235 = memref.load %arg4[%1234] : memref<128xf32, #tpu.memory_space<smem>>
    %1236 = vector.broadcast %1235 : f32 to vector<64x128xf32>
    %1237 = arith.mulf %1236, %1177 : vector<64x128xf32>
    %c64_i32_291 = arith.constant 64 : i32
    %1238 = arith.addi %c64_i32_291, %c3_i32_289 : i32
    %1239 = arith.index_cast %1238 : i32 to index
    %1240 = memref.load %arg5[%1239] : memref<128xf32, #tpu.memory_space<smem>>
    %1241 = vector.broadcast %1240 : f32 to vector<64x128xf32>
    %1242 = arith.addf %1237, %1241 : vector<64x128xf32>
    %cst_292 = arith.constant 0.000000e+00 : f32
    %1243 = vector.broadcast %cst_292 : f32 to vector<64x128xf32>
    %1244 = arith.maximumf %1242, %1243 : vector<64x128xf32>
    %c64_i32_293 = arith.constant 64 : i32
    %1245 = arith.addi %c64_i32_293, %c3_i32_289 : i32
    %1246 = arith.index_cast %1245 : i32 to index
    %1247 = memref.load %arg6[%1246] : memref<128xf32, #tpu.memory_space<smem>>
    %1248 = vector.broadcast %1247 : f32 to vector<64x128xf32>
    %1249 = arith.mulf %1248, %1244 : vector<64x128xf32>
    %1250 = arith.addf %1232, %1249 : vector<64x128xf32>
    %c4_i32_294 = arith.constant 4 : i32
    %c64_i32_295 = arith.constant 64 : i32
    %1251 = arith.addi %c64_i32_295, %c4_i32_294 : i32
    %1252 = arith.index_cast %1251 : i32 to index
    %1253 = memref.load %arg4[%1252] : memref<128xf32, #tpu.memory_space<smem>>
    %1254 = vector.broadcast %1253 : f32 to vector<64x128xf32>
    %1255 = arith.mulf %1254, %1177 : vector<64x128xf32>
    %c64_i32_296 = arith.constant 64 : i32
    %1256 = arith.addi %c64_i32_296, %c4_i32_294 : i32
    %1257 = arith.index_cast %1256 : i32 to index
    %1258 = memref.load %arg5[%1257] : memref<128xf32, #tpu.memory_space<smem>>
    %1259 = vector.broadcast %1258 : f32 to vector<64x128xf32>
    %1260 = arith.addf %1255, %1259 : vector<64x128xf32>
    %cst_297 = arith.constant 0.000000e+00 : f32
    %1261 = vector.broadcast %cst_297 : f32 to vector<64x128xf32>
    %1262 = arith.maximumf %1260, %1261 : vector<64x128xf32>
    %c64_i32_298 = arith.constant 64 : i32
    %1263 = arith.addi %c64_i32_298, %c4_i32_294 : i32
    %1264 = arith.index_cast %1263 : i32 to index
    %1265 = memref.load %arg6[%1264] : memref<128xf32, #tpu.memory_space<smem>>
    %1266 = vector.broadcast %1265 : f32 to vector<64x128xf32>
    %1267 = arith.mulf %1266, %1262 : vector<64x128xf32>
    %1268 = arith.addf %1250, %1267 : vector<64x128xf32>
    %c5_i32_299 = arith.constant 5 : i32
    %c64_i32_300 = arith.constant 64 : i32
    %1269 = arith.addi %c64_i32_300, %c5_i32_299 : i32
    %1270 = arith.index_cast %1269 : i32 to index
    %1271 = memref.load %arg4[%1270] : memref<128xf32, #tpu.memory_space<smem>>
    %1272 = vector.broadcast %1271 : f32 to vector<64x128xf32>
    %1273 = arith.mulf %1272, %1177 : vector<64x128xf32>
    %c64_i32_301 = arith.constant 64 : i32
    %1274 = arith.addi %c64_i32_301, %c5_i32_299 : i32
    %1275 = arith.index_cast %1274 : i32 to index
    %1276 = memref.load %arg5[%1275] : memref<128xf32, #tpu.memory_space<smem>>
    %1277 = vector.broadcast %1276 : f32 to vector<64x128xf32>
    %1278 = arith.addf %1273, %1277 : vector<64x128xf32>
    %cst_302 = arith.constant 0.000000e+00 : f32
    %1279 = vector.broadcast %cst_302 : f32 to vector<64x128xf32>
    %1280 = arith.maximumf %1278, %1279 : vector<64x128xf32>
    %c64_i32_303 = arith.constant 64 : i32
    %1281 = arith.addi %c64_i32_303, %c5_i32_299 : i32
    %1282 = arith.index_cast %1281 : i32 to index
    %1283 = memref.load %arg6[%1282] : memref<128xf32, #tpu.memory_space<smem>>
    %1284 = vector.broadcast %1283 : f32 to vector<64x128xf32>
    %1285 = arith.mulf %1284, %1280 : vector<64x128xf32>
    %1286 = arith.addf %1268, %1285 : vector<64x128xf32>
    %c6_i32_304 = arith.constant 6 : i32
    %c64_i32_305 = arith.constant 64 : i32
    %1287 = arith.addi %c64_i32_305, %c6_i32_304 : i32
    %1288 = arith.index_cast %1287 : i32 to index
    %1289 = memref.load %arg4[%1288] : memref<128xf32, #tpu.memory_space<smem>>
    %1290 = vector.broadcast %1289 : f32 to vector<64x128xf32>
    %1291 = arith.mulf %1290, %1177 : vector<64x128xf32>
    %c64_i32_306 = arith.constant 64 : i32
    %1292 = arith.addi %c64_i32_306, %c6_i32_304 : i32
    %1293 = arith.index_cast %1292 : i32 to index
    %1294 = memref.load %arg5[%1293] : memref<128xf32, #tpu.memory_space<smem>>
    %1295 = vector.broadcast %1294 : f32 to vector<64x128xf32>
    %1296 = arith.addf %1291, %1295 : vector<64x128xf32>
    %cst_307 = arith.constant 0.000000e+00 : f32
    %1297 = vector.broadcast %cst_307 : f32 to vector<64x128xf32>
    %1298 = arith.maximumf %1296, %1297 : vector<64x128xf32>
    %c64_i32_308 = arith.constant 64 : i32
    %1299 = arith.addi %c64_i32_308, %c6_i32_304 : i32
    %1300 = arith.index_cast %1299 : i32 to index
    %1301 = memref.load %arg6[%1300] : memref<128xf32, #tpu.memory_space<smem>>
    %1302 = vector.broadcast %1301 : f32 to vector<64x128xf32>
    %1303 = arith.mulf %1302, %1298 : vector<64x128xf32>
    %1304 = arith.addf %1286, %1303 : vector<64x128xf32>
    %c7_i32_309 = arith.constant 7 : i32
    %c64_i32_310 = arith.constant 64 : i32
    %1305 = arith.addi %c64_i32_310, %c7_i32_309 : i32
    %1306 = arith.index_cast %1305 : i32 to index
    %1307 = memref.load %arg4[%1306] : memref<128xf32, #tpu.memory_space<smem>>
    %1308 = vector.broadcast %1307 : f32 to vector<64x128xf32>
    %1309 = arith.mulf %1308, %1177 : vector<64x128xf32>
    %c64_i32_311 = arith.constant 64 : i32
    %1310 = arith.addi %c64_i32_311, %c7_i32_309 : i32
    %1311 = arith.index_cast %1310 : i32 to index
    %1312 = memref.load %arg5[%1311] : memref<128xf32, #tpu.memory_space<smem>>
    %1313 = vector.broadcast %1312 : f32 to vector<64x128xf32>
    %1314 = arith.addf %1309, %1313 : vector<64x128xf32>
    %cst_312 = arith.constant 0.000000e+00 : f32
    %1315 = vector.broadcast %cst_312 : f32 to vector<64x128xf32>
    %1316 = arith.maximumf %1314, %1315 : vector<64x128xf32>
    %c64_i32_313 = arith.constant 64 : i32
    %1317 = arith.addi %c64_i32_313, %c7_i32_309 : i32
    %1318 = arith.index_cast %1317 : i32 to index
    %1319 = memref.load %arg6[%1318] : memref<128xf32, #tpu.memory_space<smem>>
    %1320 = vector.broadcast %1319 : f32 to vector<64x128xf32>
    %1321 = arith.mulf %1320, %1316 : vector<64x128xf32>
    %1322 = arith.addf %1304, %1321 : vector<64x128xf32>
    %c8_i32_314 = arith.constant 8 : i32
    %c64_i32_315 = arith.constant 64 : i32
    %1323 = arith.addi %c64_i32_315, %c8_i32_314 : i32
    %1324 = arith.index_cast %1323 : i32 to index
    %1325 = memref.load %arg4[%1324] : memref<128xf32, #tpu.memory_space<smem>>
    %1326 = vector.broadcast %1325 : f32 to vector<64x128xf32>
    %1327 = arith.mulf %1326, %1177 : vector<64x128xf32>
    %c64_i32_316 = arith.constant 64 : i32
    %1328 = arith.addi %c64_i32_316, %c8_i32_314 : i32
    %1329 = arith.index_cast %1328 : i32 to index
    %1330 = memref.load %arg5[%1329] : memref<128xf32, #tpu.memory_space<smem>>
    %1331 = vector.broadcast %1330 : f32 to vector<64x128xf32>
    %1332 = arith.addf %1327, %1331 : vector<64x128xf32>
    %cst_317 = arith.constant 0.000000e+00 : f32
    %1333 = vector.broadcast %cst_317 : f32 to vector<64x128xf32>
    %1334 = arith.maximumf %1332, %1333 : vector<64x128xf32>
    %c64_i32_318 = arith.constant 64 : i32
    %1335 = arith.addi %c64_i32_318, %c8_i32_314 : i32
    %1336 = arith.index_cast %1335 : i32 to index
    %1337 = memref.load %arg6[%1336] : memref<128xf32, #tpu.memory_space<smem>>
    %1338 = vector.broadcast %1337 : f32 to vector<64x128xf32>
    %1339 = arith.mulf %1338, %1334 : vector<64x128xf32>
    %1340 = arith.addf %1322, %1339 : vector<64x128xf32>
    %c9_i32_319 = arith.constant 9 : i32
    %c64_i32_320 = arith.constant 64 : i32
    %1341 = arith.addi %c64_i32_320, %c9_i32_319 : i32
    %1342 = arith.index_cast %1341 : i32 to index
    %1343 = memref.load %arg4[%1342] : memref<128xf32, #tpu.memory_space<smem>>
    %1344 = vector.broadcast %1343 : f32 to vector<64x128xf32>
    %1345 = arith.mulf %1344, %1177 : vector<64x128xf32>
    %c64_i32_321 = arith.constant 64 : i32
    %1346 = arith.addi %c64_i32_321, %c9_i32_319 : i32
    %1347 = arith.index_cast %1346 : i32 to index
    %1348 = memref.load %arg5[%1347] : memref<128xf32, #tpu.memory_space<smem>>
    %1349 = vector.broadcast %1348 : f32 to vector<64x128xf32>
    %1350 = arith.addf %1345, %1349 : vector<64x128xf32>
    %cst_322 = arith.constant 0.000000e+00 : f32
    %1351 = vector.broadcast %cst_322 : f32 to vector<64x128xf32>
    %1352 = arith.maximumf %1350, %1351 : vector<64x128xf32>
    %c64_i32_323 = arith.constant 64 : i32
    %1353 = arith.addi %c64_i32_323, %c9_i32_319 : i32
    %1354 = arith.index_cast %1353 : i32 to index
    %1355 = memref.load %arg6[%1354] : memref<128xf32, #tpu.memory_space<smem>>
    %1356 = vector.broadcast %1355 : f32 to vector<64x128xf32>
    %1357 = arith.mulf %1356, %1352 : vector<64x128xf32>
    %1358 = arith.addf %1340, %1357 : vector<64x128xf32>
    %c10_i32_324 = arith.constant 10 : i32
    %c64_i32_325 = arith.constant 64 : i32
    %1359 = arith.addi %c64_i32_325, %c10_i32_324 : i32
    %1360 = arith.index_cast %1359 : i32 to index
    %1361 = memref.load %arg4[%1360] : memref<128xf32, #tpu.memory_space<smem>>
    %1362 = vector.broadcast %1361 : f32 to vector<64x128xf32>
    %1363 = arith.mulf %1362, %1177 : vector<64x128xf32>
    %c64_i32_326 = arith.constant 64 : i32
    %1364 = arith.addi %c64_i32_326, %c10_i32_324 : i32
    %1365 = arith.index_cast %1364 : i32 to index
    %1366 = memref.load %arg5[%1365] : memref<128xf32, #tpu.memory_space<smem>>
    %1367 = vector.broadcast %1366 : f32 to vector<64x128xf32>
    %1368 = arith.addf %1363, %1367 : vector<64x128xf32>
    %cst_327 = arith.constant 0.000000e+00 : f32
    %1369 = vector.broadcast %cst_327 : f32 to vector<64x128xf32>
    %1370 = arith.maximumf %1368, %1369 : vector<64x128xf32>
    %c64_i32_328 = arith.constant 64 : i32
    %1371 = arith.addi %c64_i32_328, %c10_i32_324 : i32
    %1372 = arith.index_cast %1371 : i32 to index
    %1373 = memref.load %arg6[%1372] : memref<128xf32, #tpu.memory_space<smem>>
    %1374 = vector.broadcast %1373 : f32 to vector<64x128xf32>
    %1375 = arith.mulf %1374, %1370 : vector<64x128xf32>
    %1376 = arith.addf %1358, %1375 : vector<64x128xf32>
    %c11_i32_329 = arith.constant 11 : i32
    %c64_i32_330 = arith.constant 64 : i32
    %1377 = arith.addi %c64_i32_330, %c11_i32_329 : i32
    %1378 = arith.index_cast %1377 : i32 to index
    %1379 = memref.load %arg4[%1378] : memref<128xf32, #tpu.memory_space<smem>>
    %1380 = vector.broadcast %1379 : f32 to vector<64x128xf32>
    %1381 = arith.mulf %1380, %1177 : vector<64x128xf32>
    %c64_i32_331 = arith.constant 64 : i32
    %1382 = arith.addi %c64_i32_331, %c11_i32_329 : i32
    %1383 = arith.index_cast %1382 : i32 to index
    %1384 = memref.load %arg5[%1383] : memref<128xf32, #tpu.memory_space<smem>>
    %1385 = vector.broadcast %1384 : f32 to vector<64x128xf32>
    %1386 = arith.addf %1381, %1385 : vector<64x128xf32>
    %cst_332 = arith.constant 0.000000e+00 : f32
    %1387 = vector.broadcast %cst_332 : f32 to vector<64x128xf32>
    %1388 = arith.maximumf %1386, %1387 : vector<64x128xf32>
    %c64_i32_333 = arith.constant 64 : i32
    %1389 = arith.addi %c64_i32_333, %c11_i32_329 : i32
    %1390 = arith.index_cast %1389 : i32 to index
    %1391 = memref.load %arg6[%1390] : memref<128xf32, #tpu.memory_space<smem>>
    %1392 = vector.broadcast %1391 : f32 to vector<64x128xf32>
    %1393 = arith.mulf %1392, %1388 : vector<64x128xf32>
    %1394 = arith.addf %1376, %1393 : vector<64x128xf32>
    %c12_i32_334 = arith.constant 12 : i32
    %c64_i32_335 = arith.constant 64 : i32
    %1395 = arith.addi %c64_i32_335, %c12_i32_334 : i32
    %1396 = arith.index_cast %1395 : i32 to index
    %1397 = memref.load %arg4[%1396] : memref<128xf32, #tpu.memory_space<smem>>
    %1398 = vector.broadcast %1397 : f32 to vector<64x128xf32>
    %1399 = arith.mulf %1398, %1177 : vector<64x128xf32>
    %c64_i32_336 = arith.constant 64 : i32
    %1400 = arith.addi %c64_i32_336, %c12_i32_334 : i32
    %1401 = arith.index_cast %1400 : i32 to index
    %1402 = memref.load %arg5[%1401] : memref<128xf32, #tpu.memory_space<smem>>
    %1403 = vector.broadcast %1402 : f32 to vector<64x128xf32>
    %1404 = arith.addf %1399, %1403 : vector<64x128xf32>
    %cst_337 = arith.constant 0.000000e+00 : f32
    %1405 = vector.broadcast %cst_337 : f32 to vector<64x128xf32>
    %1406 = arith.maximumf %1404, %1405 : vector<64x128xf32>
    %c64_i32_338 = arith.constant 64 : i32
    %1407 = arith.addi %c64_i32_338, %c12_i32_334 : i32
    %1408 = arith.index_cast %1407 : i32 to index
    %1409 = memref.load %arg6[%1408] : memref<128xf32, #tpu.memory_space<smem>>
    %1410 = vector.broadcast %1409 : f32 to vector<64x128xf32>
    %1411 = arith.mulf %1410, %1406 : vector<64x128xf32>
    %1412 = arith.addf %1394, %1411 : vector<64x128xf32>
    %c13_i32_339 = arith.constant 13 : i32
    %c64_i32_340 = arith.constant 64 : i32
    %1413 = arith.addi %c64_i32_340, %c13_i32_339 : i32
    %1414 = arith.index_cast %1413 : i32 to index
    %1415 = memref.load %arg4[%1414] : memref<128xf32, #tpu.memory_space<smem>>
    %1416 = vector.broadcast %1415 : f32 to vector<64x128xf32>
    %1417 = arith.mulf %1416, %1177 : vector<64x128xf32>
    %c64_i32_341 = arith.constant 64 : i32
    %1418 = arith.addi %c64_i32_341, %c13_i32_339 : i32
    %1419 = arith.index_cast %1418 : i32 to index
    %1420 = memref.load %arg5[%1419] : memref<128xf32, #tpu.memory_space<smem>>
    %1421 = vector.broadcast %1420 : f32 to vector<64x128xf32>
    %1422 = arith.addf %1417, %1421 : vector<64x128xf32>
    %cst_342 = arith.constant 0.000000e+00 : f32
    %1423 = vector.broadcast %cst_342 : f32 to vector<64x128xf32>
    %1424 = arith.maximumf %1422, %1423 : vector<64x128xf32>
    %c64_i32_343 = arith.constant 64 : i32
    %1425 = arith.addi %c64_i32_343, %c13_i32_339 : i32
    %1426 = arith.index_cast %1425 : i32 to index
    %1427 = memref.load %arg6[%1426] : memref<128xf32, #tpu.memory_space<smem>>
    %1428 = vector.broadcast %1427 : f32 to vector<64x128xf32>
    %1429 = arith.mulf %1428, %1424 : vector<64x128xf32>
    %1430 = arith.addf %1412, %1429 : vector<64x128xf32>
    %c14_i32_344 = arith.constant 14 : i32
    %c64_i32_345 = arith.constant 64 : i32
    %1431 = arith.addi %c64_i32_345, %c14_i32_344 : i32
    %1432 = arith.index_cast %1431 : i32 to index
    %1433 = memref.load %arg4[%1432] : memref<128xf32, #tpu.memory_space<smem>>
    %1434 = vector.broadcast %1433 : f32 to vector<64x128xf32>
    %1435 = arith.mulf %1434, %1177 : vector<64x128xf32>
    %c64_i32_346 = arith.constant 64 : i32
    %1436 = arith.addi %c64_i32_346, %c14_i32_344 : i32
    %1437 = arith.index_cast %1436 : i32 to index
    %1438 = memref.load %arg5[%1437] : memref<128xf32, #tpu.memory_space<smem>>
    %1439 = vector.broadcast %1438 : f32 to vector<64x128xf32>
    %1440 = arith.addf %1435, %1439 : vector<64x128xf32>
    %cst_347 = arith.constant 0.000000e+00 : f32
    %1441 = vector.broadcast %cst_347 : f32 to vector<64x128xf32>
    %1442 = arith.maximumf %1440, %1441 : vector<64x128xf32>
    %c64_i32_348 = arith.constant 64 : i32
    %1443 = arith.addi %c64_i32_348, %c14_i32_344 : i32
    %1444 = arith.index_cast %1443 : i32 to index
    %1445 = memref.load %arg6[%1444] : memref<128xf32, #tpu.memory_space<smem>>
    %1446 = vector.broadcast %1445 : f32 to vector<64x128xf32>
    %1447 = arith.mulf %1446, %1442 : vector<64x128xf32>
    %1448 = arith.addf %1430, %1447 : vector<64x128xf32>
    %c15_i32_349 = arith.constant 15 : i32
    %c64_i32_350 = arith.constant 64 : i32
    %1449 = arith.addi %c64_i32_350, %c15_i32_349 : i32
    %1450 = arith.index_cast %1449 : i32 to index
    %1451 = memref.load %arg4[%1450] : memref<128xf32, #tpu.memory_space<smem>>
    %1452 = vector.broadcast %1451 : f32 to vector<64x128xf32>
    %1453 = arith.mulf %1452, %1177 : vector<64x128xf32>
    %c64_i32_351 = arith.constant 64 : i32
    %1454 = arith.addi %c64_i32_351, %c15_i32_349 : i32
    %1455 = arith.index_cast %1454 : i32 to index
    %1456 = memref.load %arg5[%1455] : memref<128xf32, #tpu.memory_space<smem>>
    %1457 = vector.broadcast %1456 : f32 to vector<64x128xf32>
    %1458 = arith.addf %1453, %1457 : vector<64x128xf32>
    %cst_352 = arith.constant 0.000000e+00 : f32
    %1459 = vector.broadcast %cst_352 : f32 to vector<64x128xf32>
    %1460 = arith.maximumf %1458, %1459 : vector<64x128xf32>
    %c64_i32_353 = arith.constant 64 : i32
    %1461 = arith.addi %c64_i32_353, %c15_i32_349 : i32
    %1462 = arith.index_cast %1461 : i32 to index
    %1463 = memref.load %arg6[%1462] : memref<128xf32, #tpu.memory_space<smem>>
    %1464 = vector.broadcast %1463 : f32 to vector<64x128xf32>
    %1465 = arith.mulf %1464, %1460 : vector<64x128xf32>
    %1466 = arith.addf %1448, %1465 : vector<64x128xf32>
    %c16_i32_354 = arith.constant 16 : i32
    %c64_i32_355 = arith.constant 64 : i32
    %1467 = arith.addi %c64_i32_355, %c16_i32_354 : i32
    %1468 = arith.index_cast %1467 : i32 to index
    %1469 = memref.load %arg4[%1468] : memref<128xf32, #tpu.memory_space<smem>>
    %1470 = vector.broadcast %1469 : f32 to vector<64x128xf32>
    %1471 = arith.mulf %1470, %1177 : vector<64x128xf32>
    %c64_i32_356 = arith.constant 64 : i32
    %1472 = arith.addi %c64_i32_356, %c16_i32_354 : i32
    %1473 = arith.index_cast %1472 : i32 to index
    %1474 = memref.load %arg5[%1473] : memref<128xf32, #tpu.memory_space<smem>>
    %1475 = vector.broadcast %1474 : f32 to vector<64x128xf32>
    %1476 = arith.addf %1471, %1475 : vector<64x128xf32>
    %cst_357 = arith.constant 0.000000e+00 : f32
    %1477 = vector.broadcast %cst_357 : f32 to vector<64x128xf32>
    %1478 = arith.maximumf %1476, %1477 : vector<64x128xf32>
    %c64_i32_358 = arith.constant 64 : i32
    %1479 = arith.addi %c64_i32_358, %c16_i32_354 : i32
    %1480 = arith.index_cast %1479 : i32 to index
    %1481 = memref.load %arg6[%1480] : memref<128xf32, #tpu.memory_space<smem>>
    %1482 = vector.broadcast %1481 : f32 to vector<64x128xf32>
    %1483 = arith.mulf %1482, %1478 : vector<64x128xf32>
    %1484 = arith.addf %1466, %1483 : vector<64x128xf32>
    %c17_i32_359 = arith.constant 17 : i32
    %c64_i32_360 = arith.constant 64 : i32
    %1485 = arith.addi %c64_i32_360, %c17_i32_359 : i32
    %1486 = arith.index_cast %1485 : i32 to index
    %1487 = memref.load %arg4[%1486] : memref<128xf32, #tpu.memory_space<smem>>
    %1488 = vector.broadcast %1487 : f32 to vector<64x128xf32>
    %1489 = arith.mulf %1488, %1177 : vector<64x128xf32>
    %c64_i32_361 = arith.constant 64 : i32
    %1490 = arith.addi %c64_i32_361, %c17_i32_359 : i32
    %1491 = arith.index_cast %1490 : i32 to index
    %1492 = memref.load %arg5[%1491] : memref<128xf32, #tpu.memory_space<smem>>
    %1493 = vector.broadcast %1492 : f32 to vector<64x128xf32>
    %1494 = arith.addf %1489, %1493 : vector<64x128xf32>
    %cst_362 = arith.constant 0.000000e+00 : f32
    %1495 = vector.broadcast %cst_362 : f32 to vector<64x128xf32>
    %1496 = arith.maximumf %1494, %1495 : vector<64x128xf32>
    %c64_i32_363 = arith.constant 64 : i32
    %1497 = arith.addi %c64_i32_363, %c17_i32_359 : i32
    %1498 = arith.index_cast %1497 : i32 to index
    %1499 = memref.load %arg6[%1498] : memref<128xf32, #tpu.memory_space<smem>>
    %1500 = vector.broadcast %1499 : f32 to vector<64x128xf32>
    %1501 = arith.mulf %1500, %1496 : vector<64x128xf32>
    %1502 = arith.addf %1484, %1501 : vector<64x128xf32>
    %c18_i32_364 = arith.constant 18 : i32
    %c64_i32_365 = arith.constant 64 : i32
    %1503 = arith.addi %c64_i32_365, %c18_i32_364 : i32
    %1504 = arith.index_cast %1503 : i32 to index
    %1505 = memref.load %arg4[%1504] : memref<128xf32, #tpu.memory_space<smem>>
    %1506 = vector.broadcast %1505 : f32 to vector<64x128xf32>
    %1507 = arith.mulf %1506, %1177 : vector<64x128xf32>
    %c64_i32_366 = arith.constant 64 : i32
    %1508 = arith.addi %c64_i32_366, %c18_i32_364 : i32
    %1509 = arith.index_cast %1508 : i32 to index
    %1510 = memref.load %arg5[%1509] : memref<128xf32, #tpu.memory_space<smem>>
    %1511 = vector.broadcast %1510 : f32 to vector<64x128xf32>
    %1512 = arith.addf %1507, %1511 : vector<64x128xf32>
    %cst_367 = arith.constant 0.000000e+00 : f32
    %1513 = vector.broadcast %cst_367 : f32 to vector<64x128xf32>
    %1514 = arith.maximumf %1512, %1513 : vector<64x128xf32>
    %c64_i32_368 = arith.constant 64 : i32
    %1515 = arith.addi %c64_i32_368, %c18_i32_364 : i32
    %1516 = arith.index_cast %1515 : i32 to index
    %1517 = memref.load %arg6[%1516] : memref<128xf32, #tpu.memory_space<smem>>
    %1518 = vector.broadcast %1517 : f32 to vector<64x128xf32>
    %1519 = arith.mulf %1518, %1514 : vector<64x128xf32>
    %1520 = arith.addf %1502, %1519 : vector<64x128xf32>
    %c19_i32_369 = arith.constant 19 : i32
    %c64_i32_370 = arith.constant 64 : i32
    %1521 = arith.addi %c64_i32_370, %c19_i32_369 : i32
    %1522 = arith.index_cast %1521 : i32 to index
    %1523 = memref.load %arg4[%1522] : memref<128xf32, #tpu.memory_space<smem>>
    %1524 = vector.broadcast %1523 : f32 to vector<64x128xf32>
    %1525 = arith.mulf %1524, %1177 : vector<64x128xf32>
    %c64_i32_371 = arith.constant 64 : i32
    %1526 = arith.addi %c64_i32_371, %c19_i32_369 : i32
    %1527 = arith.index_cast %1526 : i32 to index
    %1528 = memref.load %arg5[%1527] : memref<128xf32, #tpu.memory_space<smem>>
    %1529 = vector.broadcast %1528 : f32 to vector<64x128xf32>
    %1530 = arith.addf %1525, %1529 : vector<64x128xf32>
    %cst_372 = arith.constant 0.000000e+00 : f32
    %1531 = vector.broadcast %cst_372 : f32 to vector<64x128xf32>
    %1532 = arith.maximumf %1530, %1531 : vector<64x128xf32>
    %c64_i32_373 = arith.constant 64 : i32
    %1533 = arith.addi %c64_i32_373, %c19_i32_369 : i32
    %1534 = arith.index_cast %1533 : i32 to index
    %1535 = memref.load %arg6[%1534] : memref<128xf32, #tpu.memory_space<smem>>
    %1536 = vector.broadcast %1535 : f32 to vector<64x128xf32>
    %1537 = arith.mulf %1536, %1532 : vector<64x128xf32>
    %1538 = arith.addf %1520, %1537 : vector<64x128xf32>
    %c20_i32_374 = arith.constant 20 : i32
    %c64_i32_375 = arith.constant 64 : i32
    %1539 = arith.addi %c64_i32_375, %c20_i32_374 : i32
    %1540 = arith.index_cast %1539 : i32 to index
    %1541 = memref.load %arg4[%1540] : memref<128xf32, #tpu.memory_space<smem>>
    %1542 = vector.broadcast %1541 : f32 to vector<64x128xf32>
    %1543 = arith.mulf %1542, %1177 : vector<64x128xf32>
    %c64_i32_376 = arith.constant 64 : i32
    %1544 = arith.addi %c64_i32_376, %c20_i32_374 : i32
    %1545 = arith.index_cast %1544 : i32 to index
    %1546 = memref.load %arg5[%1545] : memref<128xf32, #tpu.memory_space<smem>>
    %1547 = vector.broadcast %1546 : f32 to vector<64x128xf32>
    %1548 = arith.addf %1543, %1547 : vector<64x128xf32>
    %cst_377 = arith.constant 0.000000e+00 : f32
    %1549 = vector.broadcast %cst_377 : f32 to vector<64x128xf32>
    %1550 = arith.maximumf %1548, %1549 : vector<64x128xf32>
    %c64_i32_378 = arith.constant 64 : i32
    %1551 = arith.addi %c64_i32_378, %c20_i32_374 : i32
    %1552 = arith.index_cast %1551 : i32 to index
    %1553 = memref.load %arg6[%1552] : memref<128xf32, #tpu.memory_space<smem>>
    %1554 = vector.broadcast %1553 : f32 to vector<64x128xf32>
    %1555 = arith.mulf %1554, %1550 : vector<64x128xf32>
    %1556 = arith.addf %1538, %1555 : vector<64x128xf32>
    %c21_i32_379 = arith.constant 21 : i32
    %c64_i32_380 = arith.constant 64 : i32
    %1557 = arith.addi %c64_i32_380, %c21_i32_379 : i32
    %1558 = arith.index_cast %1557 : i32 to index
    %1559 = memref.load %arg4[%1558] : memref<128xf32, #tpu.memory_space<smem>>
    %1560 = vector.broadcast %1559 : f32 to vector<64x128xf32>
    %1561 = arith.mulf %1560, %1177 : vector<64x128xf32>
    %c64_i32_381 = arith.constant 64 : i32
    %1562 = arith.addi %c64_i32_381, %c21_i32_379 : i32
    %1563 = arith.index_cast %1562 : i32 to index
    %1564 = memref.load %arg5[%1563] : memref<128xf32, #tpu.memory_space<smem>>
    %1565 = vector.broadcast %1564 : f32 to vector<64x128xf32>
    %1566 = arith.addf %1561, %1565 : vector<64x128xf32>
    %cst_382 = arith.constant 0.000000e+00 : f32
    %1567 = vector.broadcast %cst_382 : f32 to vector<64x128xf32>
    %1568 = arith.maximumf %1566, %1567 : vector<64x128xf32>
    %c64_i32_383 = arith.constant 64 : i32
    %1569 = arith.addi %c64_i32_383, %c21_i32_379 : i32
    %1570 = arith.index_cast %1569 : i32 to index
    %1571 = memref.load %arg6[%1570] : memref<128xf32, #tpu.memory_space<smem>>
    %1572 = vector.broadcast %1571 : f32 to vector<64x128xf32>
    %1573 = arith.mulf %1572, %1568 : vector<64x128xf32>
    %1574 = arith.addf %1556, %1573 : vector<64x128xf32>
    %c22_i32_384 = arith.constant 22 : i32
    %c64_i32_385 = arith.constant 64 : i32
    %1575 = arith.addi %c64_i32_385, %c22_i32_384 : i32
    %1576 = arith.index_cast %1575 : i32 to index
    %1577 = memref.load %arg4[%1576] : memref<128xf32, #tpu.memory_space<smem>>
    %1578 = vector.broadcast %1577 : f32 to vector<64x128xf32>
    %1579 = arith.mulf %1578, %1177 : vector<64x128xf32>
    %c64_i32_386 = arith.constant 64 : i32
    %1580 = arith.addi %c64_i32_386, %c22_i32_384 : i32
    %1581 = arith.index_cast %1580 : i32 to index
    %1582 = memref.load %arg5[%1581] : memref<128xf32, #tpu.memory_space<smem>>
    %1583 = vector.broadcast %1582 : f32 to vector<64x128xf32>
    %1584 = arith.addf %1579, %1583 : vector<64x128xf32>
    %cst_387 = arith.constant 0.000000e+00 : f32
    %1585 = vector.broadcast %cst_387 : f32 to vector<64x128xf32>
    %1586 = arith.maximumf %1584, %1585 : vector<64x128xf32>
    %c64_i32_388 = arith.constant 64 : i32
    %1587 = arith.addi %c64_i32_388, %c22_i32_384 : i32
    %1588 = arith.index_cast %1587 : i32 to index
    %1589 = memref.load %arg6[%1588] : memref<128xf32, #tpu.memory_space<smem>>
    %1590 = vector.broadcast %1589 : f32 to vector<64x128xf32>
    %1591 = arith.mulf %1590, %1586 : vector<64x128xf32>
    %1592 = arith.addf %1574, %1591 : vector<64x128xf32>
    %c23_i32_389 = arith.constant 23 : i32
    %c64_i32_390 = arith.constant 64 : i32
    %1593 = arith.addi %c64_i32_390, %c23_i32_389 : i32
    %1594 = arith.index_cast %1593 : i32 to index
    %1595 = memref.load %arg4[%1594] : memref<128xf32, #tpu.memory_space<smem>>
    %1596 = vector.broadcast %1595 : f32 to vector<64x128xf32>
    %1597 = arith.mulf %1596, %1177 : vector<64x128xf32>
    %c64_i32_391 = arith.constant 64 : i32
    %1598 = arith.addi %c64_i32_391, %c23_i32_389 : i32
    %1599 = arith.index_cast %1598 : i32 to index
    %1600 = memref.load %arg5[%1599] : memref<128xf32, #tpu.memory_space<smem>>
    %1601 = vector.broadcast %1600 : f32 to vector<64x128xf32>
    %1602 = arith.addf %1597, %1601 : vector<64x128xf32>
    %cst_392 = arith.constant 0.000000e+00 : f32
    %1603 = vector.broadcast %cst_392 : f32 to vector<64x128xf32>
    %1604 = arith.maximumf %1602, %1603 : vector<64x128xf32>
    %c64_i32_393 = arith.constant 64 : i32
    %1605 = arith.addi %c64_i32_393, %c23_i32_389 : i32
    %1606 = arith.index_cast %1605 : i32 to index
    %1607 = memref.load %arg6[%1606] : memref<128xf32, #tpu.memory_space<smem>>
    %1608 = vector.broadcast %1607 : f32 to vector<64x128xf32>
    %1609 = arith.mulf %1608, %1604 : vector<64x128xf32>
    %1610 = arith.addf %1592, %1609 : vector<64x128xf32>
    %c24_i32_394 = arith.constant 24 : i32
    %c64_i32_395 = arith.constant 64 : i32
    %1611 = arith.addi %c64_i32_395, %c24_i32_394 : i32
    %1612 = arith.index_cast %1611 : i32 to index
    %1613 = memref.load %arg4[%1612] : memref<128xf32, #tpu.memory_space<smem>>
    %1614 = vector.broadcast %1613 : f32 to vector<64x128xf32>
    %1615 = arith.mulf %1614, %1177 : vector<64x128xf32>
    %c64_i32_396 = arith.constant 64 : i32
    %1616 = arith.addi %c64_i32_396, %c24_i32_394 : i32
    %1617 = arith.index_cast %1616 : i32 to index
    %1618 = memref.load %arg5[%1617] : memref<128xf32, #tpu.memory_space<smem>>
    %1619 = vector.broadcast %1618 : f32 to vector<64x128xf32>
    %1620 = arith.addf %1615, %1619 : vector<64x128xf32>
    %cst_397 = arith.constant 0.000000e+00 : f32
    %1621 = vector.broadcast %cst_397 : f32 to vector<64x128xf32>
    %1622 = arith.maximumf %1620, %1621 : vector<64x128xf32>
    %c64_i32_398 = arith.constant 64 : i32
    %1623 = arith.addi %c64_i32_398, %c24_i32_394 : i32
    %1624 = arith.index_cast %1623 : i32 to index
    %1625 = memref.load %arg6[%1624] : memref<128xf32, #tpu.memory_space<smem>>
    %1626 = vector.broadcast %1625 : f32 to vector<64x128xf32>
    %1627 = arith.mulf %1626, %1622 : vector<64x128xf32>
    %1628 = arith.addf %1610, %1627 : vector<64x128xf32>
    %c25_i32_399 = arith.constant 25 : i32
    %c64_i32_400 = arith.constant 64 : i32
    %1629 = arith.addi %c64_i32_400, %c25_i32_399 : i32
    %1630 = arith.index_cast %1629 : i32 to index
    %1631 = memref.load %arg4[%1630] : memref<128xf32, #tpu.memory_space<smem>>
    %1632 = vector.broadcast %1631 : f32 to vector<64x128xf32>
    %1633 = arith.mulf %1632, %1177 : vector<64x128xf32>
    %c64_i32_401 = arith.constant 64 : i32
    %1634 = arith.addi %c64_i32_401, %c25_i32_399 : i32
    %1635 = arith.index_cast %1634 : i32 to index
    %1636 = memref.load %arg5[%1635] : memref<128xf32, #tpu.memory_space<smem>>
    %1637 = vector.broadcast %1636 : f32 to vector<64x128xf32>
    %1638 = arith.addf %1633, %1637 : vector<64x128xf32>
    %cst_402 = arith.constant 0.000000e+00 : f32
    %1639 = vector.broadcast %cst_402 : f32 to vector<64x128xf32>
    %1640 = arith.maximumf %1638, %1639 : vector<64x128xf32>
    %c64_i32_403 = arith.constant 64 : i32
    %1641 = arith.addi %c64_i32_403, %c25_i32_399 : i32
    %1642 = arith.index_cast %1641 : i32 to index
    %1643 = memref.load %arg6[%1642] : memref<128xf32, #tpu.memory_space<smem>>
    %1644 = vector.broadcast %1643 : f32 to vector<64x128xf32>
    %1645 = arith.mulf %1644, %1640 : vector<64x128xf32>
    %1646 = arith.addf %1628, %1645 : vector<64x128xf32>
    %c26_i32_404 = arith.constant 26 : i32
    %c64_i32_405 = arith.constant 64 : i32
    %1647 = arith.addi %c64_i32_405, %c26_i32_404 : i32
    %1648 = arith.index_cast %1647 : i32 to index
    %1649 = memref.load %arg4[%1648] : memref<128xf32, #tpu.memory_space<smem>>
    %1650 = vector.broadcast %1649 : f32 to vector<64x128xf32>
    %1651 = arith.mulf %1650, %1177 : vector<64x128xf32>
    %c64_i32_406 = arith.constant 64 : i32
    %1652 = arith.addi %c64_i32_406, %c26_i32_404 : i32
    %1653 = arith.index_cast %1652 : i32 to index
    %1654 = memref.load %arg5[%1653] : memref<128xf32, #tpu.memory_space<smem>>
    %1655 = vector.broadcast %1654 : f32 to vector<64x128xf32>
    %1656 = arith.addf %1651, %1655 : vector<64x128xf32>
    %cst_407 = arith.constant 0.000000e+00 : f32
    %1657 = vector.broadcast %cst_407 : f32 to vector<64x128xf32>
    %1658 = arith.maximumf %1656, %1657 : vector<64x128xf32>
    %c64_i32_408 = arith.constant 64 : i32
    %1659 = arith.addi %c64_i32_408, %c26_i32_404 : i32
    %1660 = arith.index_cast %1659 : i32 to index
    %1661 = memref.load %arg6[%1660] : memref<128xf32, #tpu.memory_space<smem>>
    %1662 = vector.broadcast %1661 : f32 to vector<64x128xf32>
    %1663 = arith.mulf %1662, %1658 : vector<64x128xf32>
    %1664 = arith.addf %1646, %1663 : vector<64x128xf32>
    %c27_i32_409 = arith.constant 27 : i32
    %c64_i32_410 = arith.constant 64 : i32
    %1665 = arith.addi %c64_i32_410, %c27_i32_409 : i32
    %1666 = arith.index_cast %1665 : i32 to index
    %1667 = memref.load %arg4[%1666] : memref<128xf32, #tpu.memory_space<smem>>
    %1668 = vector.broadcast %1667 : f32 to vector<64x128xf32>
    %1669 = arith.mulf %1668, %1177 : vector<64x128xf32>
    %c64_i32_411 = arith.constant 64 : i32
    %1670 = arith.addi %c64_i32_411, %c27_i32_409 : i32
    %1671 = arith.index_cast %1670 : i32 to index
    %1672 = memref.load %arg5[%1671] : memref<128xf32, #tpu.memory_space<smem>>
    %1673 = vector.broadcast %1672 : f32 to vector<64x128xf32>
    %1674 = arith.addf %1669, %1673 : vector<64x128xf32>
    %cst_412 = arith.constant 0.000000e+00 : f32
    %1675 = vector.broadcast %cst_412 : f32 to vector<64x128xf32>
    %1676 = arith.maximumf %1674, %1675 : vector<64x128xf32>
    %c64_i32_413 = arith.constant 64 : i32
    %1677 = arith.addi %c64_i32_413, %c27_i32_409 : i32
    %1678 = arith.index_cast %1677 : i32 to index
    %1679 = memref.load %arg6[%1678] : memref<128xf32, #tpu.memory_space<smem>>
    %1680 = vector.broadcast %1679 : f32 to vector<64x128xf32>
    %1681 = arith.mulf %1680, %1676 : vector<64x128xf32>
    %1682 = arith.addf %1664, %1681 : vector<64x128xf32>
    %c28_i32_414 = arith.constant 28 : i32
    %c64_i32_415 = arith.constant 64 : i32
    %1683 = arith.addi %c64_i32_415, %c28_i32_414 : i32
    %1684 = arith.index_cast %1683 : i32 to index
    %1685 = memref.load %arg4[%1684] : memref<128xf32, #tpu.memory_space<smem>>
    %1686 = vector.broadcast %1685 : f32 to vector<64x128xf32>
    %1687 = arith.mulf %1686, %1177 : vector<64x128xf32>
    %c64_i32_416 = arith.constant 64 : i32
    %1688 = arith.addi %c64_i32_416, %c28_i32_414 : i32
    %1689 = arith.index_cast %1688 : i32 to index
    %1690 = memref.load %arg5[%1689] : memref<128xf32, #tpu.memory_space<smem>>
    %1691 = vector.broadcast %1690 : f32 to vector<64x128xf32>
    %1692 = arith.addf %1687, %1691 : vector<64x128xf32>
    %cst_417 = arith.constant 0.000000e+00 : f32
    %1693 = vector.broadcast %cst_417 : f32 to vector<64x128xf32>
    %1694 = arith.maximumf %1692, %1693 : vector<64x128xf32>
    %c64_i32_418 = arith.constant 64 : i32
    %1695 = arith.addi %c64_i32_418, %c28_i32_414 : i32
    %1696 = arith.index_cast %1695 : i32 to index
    %1697 = memref.load %arg6[%1696] : memref<128xf32, #tpu.memory_space<smem>>
    %1698 = vector.broadcast %1697 : f32 to vector<64x128xf32>
    %1699 = arith.mulf %1698, %1694 : vector<64x128xf32>
    %1700 = arith.addf %1682, %1699 : vector<64x128xf32>
    %c29_i32_419 = arith.constant 29 : i32
    %c64_i32_420 = arith.constant 64 : i32
    %1701 = arith.addi %c64_i32_420, %c29_i32_419 : i32
    %1702 = arith.index_cast %1701 : i32 to index
    %1703 = memref.load %arg4[%1702] : memref<128xf32, #tpu.memory_space<smem>>
    %1704 = vector.broadcast %1703 : f32 to vector<64x128xf32>
    %1705 = arith.mulf %1704, %1177 : vector<64x128xf32>
    %c64_i32_421 = arith.constant 64 : i32
    %1706 = arith.addi %c64_i32_421, %c29_i32_419 : i32
    %1707 = arith.index_cast %1706 : i32 to index
    %1708 = memref.load %arg5[%1707] : memref<128xf32, #tpu.memory_space<smem>>
    %1709 = vector.broadcast %1708 : f32 to vector<64x128xf32>
    %1710 = arith.addf %1705, %1709 : vector<64x128xf32>
    %cst_422 = arith.constant 0.000000e+00 : f32
    %1711 = vector.broadcast %cst_422 : f32 to vector<64x128xf32>
    %1712 = arith.maximumf %1710, %1711 : vector<64x128xf32>
    %c64_i32_423 = arith.constant 64 : i32
    %1713 = arith.addi %c64_i32_423, %c29_i32_419 : i32
    %1714 = arith.index_cast %1713 : i32 to index
    %1715 = memref.load %arg6[%1714] : memref<128xf32, #tpu.memory_space<smem>>
    %1716 = vector.broadcast %1715 : f32 to vector<64x128xf32>
    %1717 = arith.mulf %1716, %1712 : vector<64x128xf32>
    %1718 = arith.addf %1700, %1717 : vector<64x128xf32>
    %c30_i32_424 = arith.constant 30 : i32
    %c64_i32_425 = arith.constant 64 : i32
    %1719 = arith.addi %c64_i32_425, %c30_i32_424 : i32
    %1720 = arith.index_cast %1719 : i32 to index
    %1721 = memref.load %arg4[%1720] : memref<128xf32, #tpu.memory_space<smem>>
    %1722 = vector.broadcast %1721 : f32 to vector<64x128xf32>
    %1723 = arith.mulf %1722, %1177 : vector<64x128xf32>
    %c64_i32_426 = arith.constant 64 : i32
    %1724 = arith.addi %c64_i32_426, %c30_i32_424 : i32
    %1725 = arith.index_cast %1724 : i32 to index
    %1726 = memref.load %arg5[%1725] : memref<128xf32, #tpu.memory_space<smem>>
    %1727 = vector.broadcast %1726 : f32 to vector<64x128xf32>
    %1728 = arith.addf %1723, %1727 : vector<64x128xf32>
    %cst_427 = arith.constant 0.000000e+00 : f32
    %1729 = vector.broadcast %cst_427 : f32 to vector<64x128xf32>
    %1730 = arith.maximumf %1728, %1729 : vector<64x128xf32>
    %c64_i32_428 = arith.constant 64 : i32
    %1731 = arith.addi %c64_i32_428, %c30_i32_424 : i32
    %1732 = arith.index_cast %1731 : i32 to index
    %1733 = memref.load %arg6[%1732] : memref<128xf32, #tpu.memory_space<smem>>
    %1734 = vector.broadcast %1733 : f32 to vector<64x128xf32>
    %1735 = arith.mulf %1734, %1730 : vector<64x128xf32>
    %1736 = arith.addf %1718, %1735 : vector<64x128xf32>
    %c31_i32_429 = arith.constant 31 : i32
    %c64_i32_430 = arith.constant 64 : i32
    %1737 = arith.addi %c64_i32_430, %c31_i32_429 : i32
    %1738 = arith.index_cast %1737 : i32 to index
    %1739 = memref.load %arg4[%1738] : memref<128xf32, #tpu.memory_space<smem>>
    %1740 = vector.broadcast %1739 : f32 to vector<64x128xf32>
    %1741 = arith.mulf %1740, %1177 : vector<64x128xf32>
    %c64_i32_431 = arith.constant 64 : i32
    %1742 = arith.addi %c64_i32_431, %c31_i32_429 : i32
    %1743 = arith.index_cast %1742 : i32 to index
    %1744 = memref.load %arg5[%1743] : memref<128xf32, #tpu.memory_space<smem>>
    %1745 = vector.broadcast %1744 : f32 to vector<64x128xf32>
    %1746 = arith.addf %1741, %1745 : vector<64x128xf32>
    %cst_432 = arith.constant 0.000000e+00 : f32
    %1747 = vector.broadcast %cst_432 : f32 to vector<64x128xf32>
    %1748 = arith.maximumf %1746, %1747 : vector<64x128xf32>
    %c64_i32_433 = arith.constant 64 : i32
    %1749 = arith.addi %c64_i32_433, %c31_i32_429 : i32
    %1750 = arith.index_cast %1749 : i32 to index
    %1751 = memref.load %arg6[%1750] : memref<128xf32, #tpu.memory_space<smem>>
    %1752 = vector.broadcast %1751 : f32 to vector<64x128xf32>
    %1753 = arith.mulf %1752, %1748 : vector<64x128xf32>
    %1754 = arith.addf %1736, %1753 : vector<64x128xf32>
    %c32_i32_434 = arith.constant 32 : i32
    %c64_i32_435 = arith.constant 64 : i32
    %1755 = arith.addi %c64_i32_435, %c32_i32_434 : i32
    %1756 = arith.index_cast %1755 : i32 to index
    %1757 = memref.load %arg4[%1756] : memref<128xf32, #tpu.memory_space<smem>>
    %1758 = vector.broadcast %1757 : f32 to vector<64x128xf32>
    %1759 = arith.mulf %1758, %1177 : vector<64x128xf32>
    %c64_i32_436 = arith.constant 64 : i32
    %1760 = arith.addi %c64_i32_436, %c32_i32_434 : i32
    %1761 = arith.index_cast %1760 : i32 to index
    %1762 = memref.load %arg5[%1761] : memref<128xf32, #tpu.memory_space<smem>>
    %1763 = vector.broadcast %1762 : f32 to vector<64x128xf32>
    %1764 = arith.addf %1759, %1763 : vector<64x128xf32>
    %cst_437 = arith.constant 0.000000e+00 : f32
    %1765 = vector.broadcast %cst_437 : f32 to vector<64x128xf32>
    %1766 = arith.maximumf %1764, %1765 : vector<64x128xf32>
    %c64_i32_438 = arith.constant 64 : i32
    %1767 = arith.addi %c64_i32_438, %c32_i32_434 : i32
    %1768 = arith.index_cast %1767 : i32 to index
    %1769 = memref.load %arg6[%1768] : memref<128xf32, #tpu.memory_space<smem>>
    %1770 = vector.broadcast %1769 : f32 to vector<64x128xf32>
    %1771 = arith.mulf %1770, %1766 : vector<64x128xf32>
    %1772 = arith.addf %1754, %1771 : vector<64x128xf32>
    %c33_i32_439 = arith.constant 33 : i32
    %c64_i32_440 = arith.constant 64 : i32
    %1773 = arith.addi %c64_i32_440, %c33_i32_439 : i32
    %1774 = arith.index_cast %1773 : i32 to index
    %1775 = memref.load %arg4[%1774] : memref<128xf32, #tpu.memory_space<smem>>
    %1776 = vector.broadcast %1775 : f32 to vector<64x128xf32>
    %1777 = arith.mulf %1776, %1177 : vector<64x128xf32>
    %c64_i32_441 = arith.constant 64 : i32
    %1778 = arith.addi %c64_i32_441, %c33_i32_439 : i32
    %1779 = arith.index_cast %1778 : i32 to index
    %1780 = memref.load %arg5[%1779] : memref<128xf32, #tpu.memory_space<smem>>
    %1781 = vector.broadcast %1780 : f32 to vector<64x128xf32>
    %1782 = arith.addf %1777, %1781 : vector<64x128xf32>
    %cst_442 = arith.constant 0.000000e+00 : f32
    %1783 = vector.broadcast %cst_442 : f32 to vector<64x128xf32>
    %1784 = arith.maximumf %1782, %1783 : vector<64x128xf32>
    %c64_i32_443 = arith.constant 64 : i32
    %1785 = arith.addi %c64_i32_443, %c33_i32_439 : i32
    %1786 = arith.index_cast %1785 : i32 to index
    %1787 = memref.load %arg6[%1786] : memref<128xf32, #tpu.memory_space<smem>>
    %1788 = vector.broadcast %1787 : f32 to vector<64x128xf32>
    %1789 = arith.mulf %1788, %1784 : vector<64x128xf32>
    %1790 = arith.addf %1772, %1789 : vector<64x128xf32>
    %c34_i32_444 = arith.constant 34 : i32
    %c64_i32_445 = arith.constant 64 : i32
    %1791 = arith.addi %c64_i32_445, %c34_i32_444 : i32
    %1792 = arith.index_cast %1791 : i32 to index
    %1793 = memref.load %arg4[%1792] : memref<128xf32, #tpu.memory_space<smem>>
    %1794 = vector.broadcast %1793 : f32 to vector<64x128xf32>
    %1795 = arith.mulf %1794, %1177 : vector<64x128xf32>
    %c64_i32_446 = arith.constant 64 : i32
    %1796 = arith.addi %c64_i32_446, %c34_i32_444 : i32
    %1797 = arith.index_cast %1796 : i32 to index
    %1798 = memref.load %arg5[%1797] : memref<128xf32, #tpu.memory_space<smem>>
    %1799 = vector.broadcast %1798 : f32 to vector<64x128xf32>
    %1800 = arith.addf %1795, %1799 : vector<64x128xf32>
    %cst_447 = arith.constant 0.000000e+00 : f32
    %1801 = vector.broadcast %cst_447 : f32 to vector<64x128xf32>
    %1802 = arith.maximumf %1800, %1801 : vector<64x128xf32>
    %c64_i32_448 = arith.constant 64 : i32
    %1803 = arith.addi %c64_i32_448, %c34_i32_444 : i32
    %1804 = arith.index_cast %1803 : i32 to index
    %1805 = memref.load %arg6[%1804] : memref<128xf32, #tpu.memory_space<smem>>
    %1806 = vector.broadcast %1805 : f32 to vector<64x128xf32>
    %1807 = arith.mulf %1806, %1802 : vector<64x128xf32>
    %1808 = arith.addf %1790, %1807 : vector<64x128xf32>
    %c35_i32_449 = arith.constant 35 : i32
    %c64_i32_450 = arith.constant 64 : i32
    %1809 = arith.addi %c64_i32_450, %c35_i32_449 : i32
    %1810 = arith.index_cast %1809 : i32 to index
    %1811 = memref.load %arg4[%1810] : memref<128xf32, #tpu.memory_space<smem>>
    %1812 = vector.broadcast %1811 : f32 to vector<64x128xf32>
    %1813 = arith.mulf %1812, %1177 : vector<64x128xf32>
    %c64_i32_451 = arith.constant 64 : i32
    %1814 = arith.addi %c64_i32_451, %c35_i32_449 : i32
    %1815 = arith.index_cast %1814 : i32 to index
    %1816 = memref.load %arg5[%1815] : memref<128xf32, #tpu.memory_space<smem>>
    %1817 = vector.broadcast %1816 : f32 to vector<64x128xf32>
    %1818 = arith.addf %1813, %1817 : vector<64x128xf32>
    %cst_452 = arith.constant 0.000000e+00 : f32
    %1819 = vector.broadcast %cst_452 : f32 to vector<64x128xf32>
    %1820 = arith.maximumf %1818, %1819 : vector<64x128xf32>
    %c64_i32_453 = arith.constant 64 : i32
    %1821 = arith.addi %c64_i32_453, %c35_i32_449 : i32
    %1822 = arith.index_cast %1821 : i32 to index
    %1823 = memref.load %arg6[%1822] : memref<128xf32, #tpu.memory_space<smem>>
    %1824 = vector.broadcast %1823 : f32 to vector<64x128xf32>
    %1825 = arith.mulf %1824, %1820 : vector<64x128xf32>
    %1826 = arith.addf %1808, %1825 : vector<64x128xf32>
    %c36_i32_454 = arith.constant 36 : i32
    %c64_i32_455 = arith.constant 64 : i32
    %1827 = arith.addi %c64_i32_455, %c36_i32_454 : i32
    %1828 = arith.index_cast %1827 : i32 to index
    %1829 = memref.load %arg4[%1828] : memref<128xf32, #tpu.memory_space<smem>>
    %1830 = vector.broadcast %1829 : f32 to vector<64x128xf32>
    %1831 = arith.mulf %1830, %1177 : vector<64x128xf32>
    %c64_i32_456 = arith.constant 64 : i32
    %1832 = arith.addi %c64_i32_456, %c36_i32_454 : i32
    %1833 = arith.index_cast %1832 : i32 to index
    %1834 = memref.load %arg5[%1833] : memref<128xf32, #tpu.memory_space<smem>>
    %1835 = vector.broadcast %1834 : f32 to vector<64x128xf32>
    %1836 = arith.addf %1831, %1835 : vector<64x128xf32>
    %cst_457 = arith.constant 0.000000e+00 : f32
    %1837 = vector.broadcast %cst_457 : f32 to vector<64x128xf32>
    %1838 = arith.maximumf %1836, %1837 : vector<64x128xf32>
    %c64_i32_458 = arith.constant 64 : i32
    %1839 = arith.addi %c64_i32_458, %c36_i32_454 : i32
    %1840 = arith.index_cast %1839 : i32 to index
    %1841 = memref.load %arg6[%1840] : memref<128xf32, #tpu.memory_space<smem>>
    %1842 = vector.broadcast %1841 : f32 to vector<64x128xf32>
    %1843 = arith.mulf %1842, %1838 : vector<64x128xf32>
    %1844 = arith.addf %1826, %1843 : vector<64x128xf32>
    %c37_i32_459 = arith.constant 37 : i32
    %c64_i32_460 = arith.constant 64 : i32
    %1845 = arith.addi %c64_i32_460, %c37_i32_459 : i32
    %1846 = arith.index_cast %1845 : i32 to index
    %1847 = memref.load %arg4[%1846] : memref<128xf32, #tpu.memory_space<smem>>
    %1848 = vector.broadcast %1847 : f32 to vector<64x128xf32>
    %1849 = arith.mulf %1848, %1177 : vector<64x128xf32>
    %c64_i32_461 = arith.constant 64 : i32
    %1850 = arith.addi %c64_i32_461, %c37_i32_459 : i32
    %1851 = arith.index_cast %1850 : i32 to index
    %1852 = memref.load %arg5[%1851] : memref<128xf32, #tpu.memory_space<smem>>
    %1853 = vector.broadcast %1852 : f32 to vector<64x128xf32>
    %1854 = arith.addf %1849, %1853 : vector<64x128xf32>
    %cst_462 = arith.constant 0.000000e+00 : f32
    %1855 = vector.broadcast %cst_462 : f32 to vector<64x128xf32>
    %1856 = arith.maximumf %1854, %1855 : vector<64x128xf32>
    %c64_i32_463 = arith.constant 64 : i32
    %1857 = arith.addi %c64_i32_463, %c37_i32_459 : i32
    %1858 = arith.index_cast %1857 : i32 to index
    %1859 = memref.load %arg6[%1858] : memref<128xf32, #tpu.memory_space<smem>>
    %1860 = vector.broadcast %1859 : f32 to vector<64x128xf32>
    %1861 = arith.mulf %1860, %1856 : vector<64x128xf32>
    %1862 = arith.addf %1844, %1861 : vector<64x128xf32>
    %c38_i32_464 = arith.constant 38 : i32
    %c64_i32_465 = arith.constant 64 : i32
    %1863 = arith.addi %c64_i32_465, %c38_i32_464 : i32
    %1864 = arith.index_cast %1863 : i32 to index
    %1865 = memref.load %arg4[%1864] : memref<128xf32, #tpu.memory_space<smem>>
    %1866 = vector.broadcast %1865 : f32 to vector<64x128xf32>
    %1867 = arith.mulf %1866, %1177 : vector<64x128xf32>
    %c64_i32_466 = arith.constant 64 : i32
    %1868 = arith.addi %c64_i32_466, %c38_i32_464 : i32
    %1869 = arith.index_cast %1868 : i32 to index
    %1870 = memref.load %arg5[%1869] : memref<128xf32, #tpu.memory_space<smem>>
    %1871 = vector.broadcast %1870 : f32 to vector<64x128xf32>
    %1872 = arith.addf %1867, %1871 : vector<64x128xf32>
    %cst_467 = arith.constant 0.000000e+00 : f32
    %1873 = vector.broadcast %cst_467 : f32 to vector<64x128xf32>
    %1874 = arith.maximumf %1872, %1873 : vector<64x128xf32>
    %c64_i32_468 = arith.constant 64 : i32
    %1875 = arith.addi %c64_i32_468, %c38_i32_464 : i32
    %1876 = arith.index_cast %1875 : i32 to index
    %1877 = memref.load %arg6[%1876] : memref<128xf32, #tpu.memory_space<smem>>
    %1878 = vector.broadcast %1877 : f32 to vector<64x128xf32>
    %1879 = arith.mulf %1878, %1874 : vector<64x128xf32>
    %1880 = arith.addf %1862, %1879 : vector<64x128xf32>
    %c39_i32_469 = arith.constant 39 : i32
    %c64_i32_470 = arith.constant 64 : i32
    %1881 = arith.addi %c64_i32_470, %c39_i32_469 : i32
    %1882 = arith.index_cast %1881 : i32 to index
    %1883 = memref.load %arg4[%1882] : memref<128xf32, #tpu.memory_space<smem>>
    %1884 = vector.broadcast %1883 : f32 to vector<64x128xf32>
    %1885 = arith.mulf %1884, %1177 : vector<64x128xf32>
    %c64_i32_471 = arith.constant 64 : i32
    %1886 = arith.addi %c64_i32_471, %c39_i32_469 : i32
    %1887 = arith.index_cast %1886 : i32 to index
    %1888 = memref.load %arg5[%1887] : memref<128xf32, #tpu.memory_space<smem>>
    %1889 = vector.broadcast %1888 : f32 to vector<64x128xf32>
    %1890 = arith.addf %1885, %1889 : vector<64x128xf32>
    %cst_472 = arith.constant 0.000000e+00 : f32
    %1891 = vector.broadcast %cst_472 : f32 to vector<64x128xf32>
    %1892 = arith.maximumf %1890, %1891 : vector<64x128xf32>
    %c64_i32_473 = arith.constant 64 : i32
    %1893 = arith.addi %c64_i32_473, %c39_i32_469 : i32
    %1894 = arith.index_cast %1893 : i32 to index
    %1895 = memref.load %arg6[%1894] : memref<128xf32, #tpu.memory_space<smem>>
    %1896 = vector.broadcast %1895 : f32 to vector<64x128xf32>
    %1897 = arith.mulf %1896, %1892 : vector<64x128xf32>
    %1898 = arith.addf %1880, %1897 : vector<64x128xf32>
    %c40_i32_474 = arith.constant 40 : i32
    %c64_i32_475 = arith.constant 64 : i32
    %1899 = arith.addi %c64_i32_475, %c40_i32_474 : i32
    %1900 = arith.index_cast %1899 : i32 to index
    %1901 = memref.load %arg4[%1900] : memref<128xf32, #tpu.memory_space<smem>>
    %1902 = vector.broadcast %1901 : f32 to vector<64x128xf32>
    %1903 = arith.mulf %1902, %1177 : vector<64x128xf32>
    %c64_i32_476 = arith.constant 64 : i32
    %1904 = arith.addi %c64_i32_476, %c40_i32_474 : i32
    %1905 = arith.index_cast %1904 : i32 to index
    %1906 = memref.load %arg5[%1905] : memref<128xf32, #tpu.memory_space<smem>>
    %1907 = vector.broadcast %1906 : f32 to vector<64x128xf32>
    %1908 = arith.addf %1903, %1907 : vector<64x128xf32>
    %cst_477 = arith.constant 0.000000e+00 : f32
    %1909 = vector.broadcast %cst_477 : f32 to vector<64x128xf32>
    %1910 = arith.maximumf %1908, %1909 : vector<64x128xf32>
    %c64_i32_478 = arith.constant 64 : i32
    %1911 = arith.addi %c64_i32_478, %c40_i32_474 : i32
    %1912 = arith.index_cast %1911 : i32 to index
    %1913 = memref.load %arg6[%1912] : memref<128xf32, #tpu.memory_space<smem>>
    %1914 = vector.broadcast %1913 : f32 to vector<64x128xf32>
    %1915 = arith.mulf %1914, %1910 : vector<64x128xf32>
    %1916 = arith.addf %1898, %1915 : vector<64x128xf32>
    %c41_i32_479 = arith.constant 41 : i32
    %c64_i32_480 = arith.constant 64 : i32
    %1917 = arith.addi %c64_i32_480, %c41_i32_479 : i32
    %1918 = arith.index_cast %1917 : i32 to index
    %1919 = memref.load %arg4[%1918] : memref<128xf32, #tpu.memory_space<smem>>
    %1920 = vector.broadcast %1919 : f32 to vector<64x128xf32>
    %1921 = arith.mulf %1920, %1177 : vector<64x128xf32>
    %c64_i32_481 = arith.constant 64 : i32
    %1922 = arith.addi %c64_i32_481, %c41_i32_479 : i32
    %1923 = arith.index_cast %1922 : i32 to index
    %1924 = memref.load %arg5[%1923] : memref<128xf32, #tpu.memory_space<smem>>
    %1925 = vector.broadcast %1924 : f32 to vector<64x128xf32>
    %1926 = arith.addf %1921, %1925 : vector<64x128xf32>
    %cst_482 = arith.constant 0.000000e+00 : f32
    %1927 = vector.broadcast %cst_482 : f32 to vector<64x128xf32>
    %1928 = arith.maximumf %1926, %1927 : vector<64x128xf32>
    %c64_i32_483 = arith.constant 64 : i32
    %1929 = arith.addi %c64_i32_483, %c41_i32_479 : i32
    %1930 = arith.index_cast %1929 : i32 to index
    %1931 = memref.load %arg6[%1930] : memref<128xf32, #tpu.memory_space<smem>>
    %1932 = vector.broadcast %1931 : f32 to vector<64x128xf32>
    %1933 = arith.mulf %1932, %1928 : vector<64x128xf32>
    %1934 = arith.addf %1916, %1933 : vector<64x128xf32>
    %c42_i32_484 = arith.constant 42 : i32
    %c64_i32_485 = arith.constant 64 : i32
    %1935 = arith.addi %c64_i32_485, %c42_i32_484 : i32
    %1936 = arith.index_cast %1935 : i32 to index
    %1937 = memref.load %arg4[%1936] : memref<128xf32, #tpu.memory_space<smem>>
    %1938 = vector.broadcast %1937 : f32 to vector<64x128xf32>
    %1939 = arith.mulf %1938, %1177 : vector<64x128xf32>
    %c64_i32_486 = arith.constant 64 : i32
    %1940 = arith.addi %c64_i32_486, %c42_i32_484 : i32
    %1941 = arith.index_cast %1940 : i32 to index
    %1942 = memref.load %arg5[%1941] : memref<128xf32, #tpu.memory_space<smem>>
    %1943 = vector.broadcast %1942 : f32 to vector<64x128xf32>
    %1944 = arith.addf %1939, %1943 : vector<64x128xf32>
    %cst_487 = arith.constant 0.000000e+00 : f32
    %1945 = vector.broadcast %cst_487 : f32 to vector<64x128xf32>
    %1946 = arith.maximumf %1944, %1945 : vector<64x128xf32>
    %c64_i32_488 = arith.constant 64 : i32
    %1947 = arith.addi %c64_i32_488, %c42_i32_484 : i32
    %1948 = arith.index_cast %1947 : i32 to index
    %1949 = memref.load %arg6[%1948] : memref<128xf32, #tpu.memory_space<smem>>
    %1950 = vector.broadcast %1949 : f32 to vector<64x128xf32>
    %1951 = arith.mulf %1950, %1946 : vector<64x128xf32>
    %1952 = arith.addf %1934, %1951 : vector<64x128xf32>
    %c43_i32_489 = arith.constant 43 : i32
    %c64_i32_490 = arith.constant 64 : i32
    %1953 = arith.addi %c64_i32_490, %c43_i32_489 : i32
    %1954 = arith.index_cast %1953 : i32 to index
    %1955 = memref.load %arg4[%1954] : memref<128xf32, #tpu.memory_space<smem>>
    %1956 = vector.broadcast %1955 : f32 to vector<64x128xf32>
    %1957 = arith.mulf %1956, %1177 : vector<64x128xf32>
    %c64_i32_491 = arith.constant 64 : i32
    %1958 = arith.addi %c64_i32_491, %c43_i32_489 : i32
    %1959 = arith.index_cast %1958 : i32 to index
    %1960 = memref.load %arg5[%1959] : memref<128xf32, #tpu.memory_space<smem>>
    %1961 = vector.broadcast %1960 : f32 to vector<64x128xf32>
    %1962 = arith.addf %1957, %1961 : vector<64x128xf32>
    %cst_492 = arith.constant 0.000000e+00 : f32
    %1963 = vector.broadcast %cst_492 : f32 to vector<64x128xf32>
    %1964 = arith.maximumf %1962, %1963 : vector<64x128xf32>
    %c64_i32_493 = arith.constant 64 : i32
    %1965 = arith.addi %c64_i32_493, %c43_i32_489 : i32
    %1966 = arith.index_cast %1965 : i32 to index
    %1967 = memref.load %arg6[%1966] : memref<128xf32, #tpu.memory_space<smem>>
    %1968 = vector.broadcast %1967 : f32 to vector<64x128xf32>
    %1969 = arith.mulf %1968, %1964 : vector<64x128xf32>
    %1970 = arith.addf %1952, %1969 : vector<64x128xf32>
    %c44_i32_494 = arith.constant 44 : i32
    %c64_i32_495 = arith.constant 64 : i32
    %1971 = arith.addi %c64_i32_495, %c44_i32_494 : i32
    %1972 = arith.index_cast %1971 : i32 to index
    %1973 = memref.load %arg4[%1972] : memref<128xf32, #tpu.memory_space<smem>>
    %1974 = vector.broadcast %1973 : f32 to vector<64x128xf32>
    %1975 = arith.mulf %1974, %1177 : vector<64x128xf32>
    %c64_i32_496 = arith.constant 64 : i32
    %1976 = arith.addi %c64_i32_496, %c44_i32_494 : i32
    %1977 = arith.index_cast %1976 : i32 to index
    %1978 = memref.load %arg5[%1977] : memref<128xf32, #tpu.memory_space<smem>>
    %1979 = vector.broadcast %1978 : f32 to vector<64x128xf32>
    %1980 = arith.addf %1975, %1979 : vector<64x128xf32>
    %cst_497 = arith.constant 0.000000e+00 : f32
    %1981 = vector.broadcast %cst_497 : f32 to vector<64x128xf32>
    %1982 = arith.maximumf %1980, %1981 : vector<64x128xf32>
    %c64_i32_498 = arith.constant 64 : i32
    %1983 = arith.addi %c64_i32_498, %c44_i32_494 : i32
    %1984 = arith.index_cast %1983 : i32 to index
    %1985 = memref.load %arg6[%1984] : memref<128xf32, #tpu.memory_space<smem>>
    %1986 = vector.broadcast %1985 : f32 to vector<64x128xf32>
    %1987 = arith.mulf %1986, %1982 : vector<64x128xf32>
    %1988 = arith.addf %1970, %1987 : vector<64x128xf32>
    %c45_i32_499 = arith.constant 45 : i32
    %c64_i32_500 = arith.constant 64 : i32
    %1989 = arith.addi %c64_i32_500, %c45_i32_499 : i32
    %1990 = arith.index_cast %1989 : i32 to index
    %1991 = memref.load %arg4[%1990] : memref<128xf32, #tpu.memory_space<smem>>
    %1992 = vector.broadcast %1991 : f32 to vector<64x128xf32>
    %1993 = arith.mulf %1992, %1177 : vector<64x128xf32>
    %c64_i32_501 = arith.constant 64 : i32
    %1994 = arith.addi %c64_i32_501, %c45_i32_499 : i32
    %1995 = arith.index_cast %1994 : i32 to index
    %1996 = memref.load %arg5[%1995] : memref<128xf32, #tpu.memory_space<smem>>
    %1997 = vector.broadcast %1996 : f32 to vector<64x128xf32>
    %1998 = arith.addf %1993, %1997 : vector<64x128xf32>
    %cst_502 = arith.constant 0.000000e+00 : f32
    %1999 = vector.broadcast %cst_502 : f32 to vector<64x128xf32>
    %2000 = arith.maximumf %1998, %1999 : vector<64x128xf32>
    %c64_i32_503 = arith.constant 64 : i32
    %2001 = arith.addi %c64_i32_503, %c45_i32_499 : i32
    %2002 = arith.index_cast %2001 : i32 to index
    %2003 = memref.load %arg6[%2002] : memref<128xf32, #tpu.memory_space<smem>>
    %2004 = vector.broadcast %2003 : f32 to vector<64x128xf32>
    %2005 = arith.mulf %2004, %2000 : vector<64x128xf32>
    %2006 = arith.addf %1988, %2005 : vector<64x128xf32>
    %c46_i32_504 = arith.constant 46 : i32
    %c64_i32_505 = arith.constant 64 : i32
    %2007 = arith.addi %c64_i32_505, %c46_i32_504 : i32
    %2008 = arith.index_cast %2007 : i32 to index
    %2009 = memref.load %arg4[%2008] : memref<128xf32, #tpu.memory_space<smem>>
    %2010 = vector.broadcast %2009 : f32 to vector<64x128xf32>
    %2011 = arith.mulf %2010, %1177 : vector<64x128xf32>
    %c64_i32_506 = arith.constant 64 : i32
    %2012 = arith.addi %c64_i32_506, %c46_i32_504 : i32
    %2013 = arith.index_cast %2012 : i32 to index
    %2014 = memref.load %arg5[%2013] : memref<128xf32, #tpu.memory_space<smem>>
    %2015 = vector.broadcast %2014 : f32 to vector<64x128xf32>
    %2016 = arith.addf %2011, %2015 : vector<64x128xf32>
    %cst_507 = arith.constant 0.000000e+00 : f32
    %2017 = vector.broadcast %cst_507 : f32 to vector<64x128xf32>
    %2018 = arith.maximumf %2016, %2017 : vector<64x128xf32>
    %c64_i32_508 = arith.constant 64 : i32
    %2019 = arith.addi %c64_i32_508, %c46_i32_504 : i32
    %2020 = arith.index_cast %2019 : i32 to index
    %2021 = memref.load %arg6[%2020] : memref<128xf32, #tpu.memory_space<smem>>
    %2022 = vector.broadcast %2021 : f32 to vector<64x128xf32>
    %2023 = arith.mulf %2022, %2018 : vector<64x128xf32>
    %2024 = arith.addf %2006, %2023 : vector<64x128xf32>
    %c47_i32_509 = arith.constant 47 : i32
    %c64_i32_510 = arith.constant 64 : i32
    %2025 = arith.addi %c64_i32_510, %c47_i32_509 : i32
    %2026 = arith.index_cast %2025 : i32 to index
    %2027 = memref.load %arg4[%2026] : memref<128xf32, #tpu.memory_space<smem>>
    %2028 = vector.broadcast %2027 : f32 to vector<64x128xf32>
    %2029 = arith.mulf %2028, %1177 : vector<64x128xf32>
    %c64_i32_511 = arith.constant 64 : i32
    %2030 = arith.addi %c64_i32_511, %c47_i32_509 : i32
    %2031 = arith.index_cast %2030 : i32 to index
    %2032 = memref.load %arg5[%2031] : memref<128xf32, #tpu.memory_space<smem>>
    %2033 = vector.broadcast %2032 : f32 to vector<64x128xf32>
    %2034 = arith.addf %2029, %2033 : vector<64x128xf32>
    %cst_512 = arith.constant 0.000000e+00 : f32
    %2035 = vector.broadcast %cst_512 : f32 to vector<64x128xf32>
    %2036 = arith.maximumf %2034, %2035 : vector<64x128xf32>
    %c64_i32_513 = arith.constant 64 : i32
    %2037 = arith.addi %c64_i32_513, %c47_i32_509 : i32
    %2038 = arith.index_cast %2037 : i32 to index
    %2039 = memref.load %arg6[%2038] : memref<128xf32, #tpu.memory_space<smem>>
    %2040 = vector.broadcast %2039 : f32 to vector<64x128xf32>
    %2041 = arith.mulf %2040, %2036 : vector<64x128xf32>
    %2042 = arith.addf %2024, %2041 : vector<64x128xf32>
    %c48_i32_514 = arith.constant 48 : i32
    %c64_i32_515 = arith.constant 64 : i32
    %2043 = arith.addi %c64_i32_515, %c48_i32_514 : i32
    %2044 = arith.index_cast %2043 : i32 to index
    %2045 = memref.load %arg4[%2044] : memref<128xf32, #tpu.memory_space<smem>>
    %2046 = vector.broadcast %2045 : f32 to vector<64x128xf32>
    %2047 = arith.mulf %2046, %1177 : vector<64x128xf32>
    %c64_i32_516 = arith.constant 64 : i32
    %2048 = arith.addi %c64_i32_516, %c48_i32_514 : i32
    %2049 = arith.index_cast %2048 : i32 to index
    %2050 = memref.load %arg5[%2049] : memref<128xf32, #tpu.memory_space<smem>>
    %2051 = vector.broadcast %2050 : f32 to vector<64x128xf32>
    %2052 = arith.addf %2047, %2051 : vector<64x128xf32>
    %cst_517 = arith.constant 0.000000e+00 : f32
    %2053 = vector.broadcast %cst_517 : f32 to vector<64x128xf32>
    %2054 = arith.maximumf %2052, %2053 : vector<64x128xf32>
    %c64_i32_518 = arith.constant 64 : i32
    %2055 = arith.addi %c64_i32_518, %c48_i32_514 : i32
    %2056 = arith.index_cast %2055 : i32 to index
    %2057 = memref.load %arg6[%2056] : memref<128xf32, #tpu.memory_space<smem>>
    %2058 = vector.broadcast %2057 : f32 to vector<64x128xf32>
    %2059 = arith.mulf %2058, %2054 : vector<64x128xf32>
    %2060 = arith.addf %2042, %2059 : vector<64x128xf32>
    %c49_i32_519 = arith.constant 49 : i32
    %c64_i32_520 = arith.constant 64 : i32
    %2061 = arith.addi %c64_i32_520, %c49_i32_519 : i32
    %2062 = arith.index_cast %2061 : i32 to index
    %2063 = memref.load %arg4[%2062] : memref<128xf32, #tpu.memory_space<smem>>
    %2064 = vector.broadcast %2063 : f32 to vector<64x128xf32>
    %2065 = arith.mulf %2064, %1177 : vector<64x128xf32>
    %c64_i32_521 = arith.constant 64 : i32
    %2066 = arith.addi %c64_i32_521, %c49_i32_519 : i32
    %2067 = arith.index_cast %2066 : i32 to index
    %2068 = memref.load %arg5[%2067] : memref<128xf32, #tpu.memory_space<smem>>
    %2069 = vector.broadcast %2068 : f32 to vector<64x128xf32>
    %2070 = arith.addf %2065, %2069 : vector<64x128xf32>
    %cst_522 = arith.constant 0.000000e+00 : f32
    %2071 = vector.broadcast %cst_522 : f32 to vector<64x128xf32>
    %2072 = arith.maximumf %2070, %2071 : vector<64x128xf32>
    %c64_i32_523 = arith.constant 64 : i32
    %2073 = arith.addi %c64_i32_523, %c49_i32_519 : i32
    %2074 = arith.index_cast %2073 : i32 to index
    %2075 = memref.load %arg6[%2074] : memref<128xf32, #tpu.memory_space<smem>>
    %2076 = vector.broadcast %2075 : f32 to vector<64x128xf32>
    %2077 = arith.mulf %2076, %2072 : vector<64x128xf32>
    %2078 = arith.addf %2060, %2077 : vector<64x128xf32>
    %c50_i32_524 = arith.constant 50 : i32
    %c64_i32_525 = arith.constant 64 : i32
    %2079 = arith.addi %c64_i32_525, %c50_i32_524 : i32
    %2080 = arith.index_cast %2079 : i32 to index
    %2081 = memref.load %arg4[%2080] : memref<128xf32, #tpu.memory_space<smem>>
    %2082 = vector.broadcast %2081 : f32 to vector<64x128xf32>
    %2083 = arith.mulf %2082, %1177 : vector<64x128xf32>
    %c64_i32_526 = arith.constant 64 : i32
    %2084 = arith.addi %c64_i32_526, %c50_i32_524 : i32
    %2085 = arith.index_cast %2084 : i32 to index
    %2086 = memref.load %arg5[%2085] : memref<128xf32, #tpu.memory_space<smem>>
    %2087 = vector.broadcast %2086 : f32 to vector<64x128xf32>
    %2088 = arith.addf %2083, %2087 : vector<64x128xf32>
    %cst_527 = arith.constant 0.000000e+00 : f32
    %2089 = vector.broadcast %cst_527 : f32 to vector<64x128xf32>
    %2090 = arith.maximumf %2088, %2089 : vector<64x128xf32>
    %c64_i32_528 = arith.constant 64 : i32
    %2091 = arith.addi %c64_i32_528, %c50_i32_524 : i32
    %2092 = arith.index_cast %2091 : i32 to index
    %2093 = memref.load %arg6[%2092] : memref<128xf32, #tpu.memory_space<smem>>
    %2094 = vector.broadcast %2093 : f32 to vector<64x128xf32>
    %2095 = arith.mulf %2094, %2090 : vector<64x128xf32>
    %2096 = arith.addf %2078, %2095 : vector<64x128xf32>
    %c51_i32_529 = arith.constant 51 : i32
    %c64_i32_530 = arith.constant 64 : i32
    %2097 = arith.addi %c64_i32_530, %c51_i32_529 : i32
    %2098 = arith.index_cast %2097 : i32 to index
    %2099 = memref.load %arg4[%2098] : memref<128xf32, #tpu.memory_space<smem>>
    %2100 = vector.broadcast %2099 : f32 to vector<64x128xf32>
    %2101 = arith.mulf %2100, %1177 : vector<64x128xf32>
    %c64_i32_531 = arith.constant 64 : i32
    %2102 = arith.addi %c64_i32_531, %c51_i32_529 : i32
    %2103 = arith.index_cast %2102 : i32 to index
    %2104 = memref.load %arg5[%2103] : memref<128xf32, #tpu.memory_space<smem>>
    %2105 = vector.broadcast %2104 : f32 to vector<64x128xf32>
    %2106 = arith.addf %2101, %2105 : vector<64x128xf32>
    %cst_532 = arith.constant 0.000000e+00 : f32
    %2107 = vector.broadcast %cst_532 : f32 to vector<64x128xf32>
    %2108 = arith.maximumf %2106, %2107 : vector<64x128xf32>
    %c64_i32_533 = arith.constant 64 : i32
    %2109 = arith.addi %c64_i32_533, %c51_i32_529 : i32
    %2110 = arith.index_cast %2109 : i32 to index
    %2111 = memref.load %arg6[%2110] : memref<128xf32, #tpu.memory_space<smem>>
    %2112 = vector.broadcast %2111 : f32 to vector<64x128xf32>
    %2113 = arith.mulf %2112, %2108 : vector<64x128xf32>
    %2114 = arith.addf %2096, %2113 : vector<64x128xf32>
    %c52_i32_534 = arith.constant 52 : i32
    %c64_i32_535 = arith.constant 64 : i32
    %2115 = arith.addi %c64_i32_535, %c52_i32_534 : i32
    %2116 = arith.index_cast %2115 : i32 to index
    %2117 = memref.load %arg4[%2116] : memref<128xf32, #tpu.memory_space<smem>>
    %2118 = vector.broadcast %2117 : f32 to vector<64x128xf32>
    %2119 = arith.mulf %2118, %1177 : vector<64x128xf32>
    %c64_i32_536 = arith.constant 64 : i32
    %2120 = arith.addi %c64_i32_536, %c52_i32_534 : i32
    %2121 = arith.index_cast %2120 : i32 to index
    %2122 = memref.load %arg5[%2121] : memref<128xf32, #tpu.memory_space<smem>>
    %2123 = vector.broadcast %2122 : f32 to vector<64x128xf32>
    %2124 = arith.addf %2119, %2123 : vector<64x128xf32>
    %cst_537 = arith.constant 0.000000e+00 : f32
    %2125 = vector.broadcast %cst_537 : f32 to vector<64x128xf32>
    %2126 = arith.maximumf %2124, %2125 : vector<64x128xf32>
    %c64_i32_538 = arith.constant 64 : i32
    %2127 = arith.addi %c64_i32_538, %c52_i32_534 : i32
    %2128 = arith.index_cast %2127 : i32 to index
    %2129 = memref.load %arg6[%2128] : memref<128xf32, #tpu.memory_space<smem>>
    %2130 = vector.broadcast %2129 : f32 to vector<64x128xf32>
    %2131 = arith.mulf %2130, %2126 : vector<64x128xf32>
    %2132 = arith.addf %2114, %2131 : vector<64x128xf32>
    %c53_i32_539 = arith.constant 53 : i32
    %c64_i32_540 = arith.constant 64 : i32
    %2133 = arith.addi %c64_i32_540, %c53_i32_539 : i32
    %2134 = arith.index_cast %2133 : i32 to index
    %2135 = memref.load %arg4[%2134] : memref<128xf32, #tpu.memory_space<smem>>
    %2136 = vector.broadcast %2135 : f32 to vector<64x128xf32>
    %2137 = arith.mulf %2136, %1177 : vector<64x128xf32>
    %c64_i32_541 = arith.constant 64 : i32
    %2138 = arith.addi %c64_i32_541, %c53_i32_539 : i32
    %2139 = arith.index_cast %2138 : i32 to index
    %2140 = memref.load %arg5[%2139] : memref<128xf32, #tpu.memory_space<smem>>
    %2141 = vector.broadcast %2140 : f32 to vector<64x128xf32>
    %2142 = arith.addf %2137, %2141 : vector<64x128xf32>
    %cst_542 = arith.constant 0.000000e+00 : f32
    %2143 = vector.broadcast %cst_542 : f32 to vector<64x128xf32>
    %2144 = arith.maximumf %2142, %2143 : vector<64x128xf32>
    %c64_i32_543 = arith.constant 64 : i32
    %2145 = arith.addi %c64_i32_543, %c53_i32_539 : i32
    %2146 = arith.index_cast %2145 : i32 to index
    %2147 = memref.load %arg6[%2146] : memref<128xf32, #tpu.memory_space<smem>>
    %2148 = vector.broadcast %2147 : f32 to vector<64x128xf32>
    %2149 = arith.mulf %2148, %2144 : vector<64x128xf32>
    %2150 = arith.addf %2132, %2149 : vector<64x128xf32>
    %c54_i32_544 = arith.constant 54 : i32
    %c64_i32_545 = arith.constant 64 : i32
    %2151 = arith.addi %c64_i32_545, %c54_i32_544 : i32
    %2152 = arith.index_cast %2151 : i32 to index
    %2153 = memref.load %arg4[%2152] : memref<128xf32, #tpu.memory_space<smem>>
    %2154 = vector.broadcast %2153 : f32 to vector<64x128xf32>
    %2155 = arith.mulf %2154, %1177 : vector<64x128xf32>
    %c64_i32_546 = arith.constant 64 : i32
    %2156 = arith.addi %c64_i32_546, %c54_i32_544 : i32
    %2157 = arith.index_cast %2156 : i32 to index
    %2158 = memref.load %arg5[%2157] : memref<128xf32, #tpu.memory_space<smem>>
    %2159 = vector.broadcast %2158 : f32 to vector<64x128xf32>
    %2160 = arith.addf %2155, %2159 : vector<64x128xf32>
    %cst_547 = arith.constant 0.000000e+00 : f32
    %2161 = vector.broadcast %cst_547 : f32 to vector<64x128xf32>
    %2162 = arith.maximumf %2160, %2161 : vector<64x128xf32>
    %c64_i32_548 = arith.constant 64 : i32
    %2163 = arith.addi %c64_i32_548, %c54_i32_544 : i32
    %2164 = arith.index_cast %2163 : i32 to index
    %2165 = memref.load %arg6[%2164] : memref<128xf32, #tpu.memory_space<smem>>
    %2166 = vector.broadcast %2165 : f32 to vector<64x128xf32>
    %2167 = arith.mulf %2166, %2162 : vector<64x128xf32>
    %2168 = arith.addf %2150, %2167 : vector<64x128xf32>
    %c55_i32_549 = arith.constant 55 : i32
    %c64_i32_550 = arith.constant 64 : i32
    %2169 = arith.addi %c64_i32_550, %c55_i32_549 : i32
    %2170 = arith.index_cast %2169 : i32 to index
    %2171 = memref.load %arg4[%2170] : memref<128xf32, #tpu.memory_space<smem>>
    %2172 = vector.broadcast %2171 : f32 to vector<64x128xf32>
    %2173 = arith.mulf %2172, %1177 : vector<64x128xf32>
    %c64_i32_551 = arith.constant 64 : i32
    %2174 = arith.addi %c64_i32_551, %c55_i32_549 : i32
    %2175 = arith.index_cast %2174 : i32 to index
    %2176 = memref.load %arg5[%2175] : memref<128xf32, #tpu.memory_space<smem>>
    %2177 = vector.broadcast %2176 : f32 to vector<64x128xf32>
    %2178 = arith.addf %2173, %2177 : vector<64x128xf32>
    %cst_552 = arith.constant 0.000000e+00 : f32
    %2179 = vector.broadcast %cst_552 : f32 to vector<64x128xf32>
    %2180 = arith.maximumf %2178, %2179 : vector<64x128xf32>
    %c64_i32_553 = arith.constant 64 : i32
    %2181 = arith.addi %c64_i32_553, %c55_i32_549 : i32
    %2182 = arith.index_cast %2181 : i32 to index
    %2183 = memref.load %arg6[%2182] : memref<128xf32, #tpu.memory_space<smem>>
    %2184 = vector.broadcast %2183 : f32 to vector<64x128xf32>
    %2185 = arith.mulf %2184, %2180 : vector<64x128xf32>
    %2186 = arith.addf %2168, %2185 : vector<64x128xf32>
    %c56_i32_554 = arith.constant 56 : i32
    %c64_i32_555 = arith.constant 64 : i32
    %2187 = arith.addi %c64_i32_555, %c56_i32_554 : i32
    %2188 = arith.index_cast %2187 : i32 to index
    %2189 = memref.load %arg4[%2188] : memref<128xf32, #tpu.memory_space<smem>>
    %2190 = vector.broadcast %2189 : f32 to vector<64x128xf32>
    %2191 = arith.mulf %2190, %1177 : vector<64x128xf32>
    %c64_i32_556 = arith.constant 64 : i32
    %2192 = arith.addi %c64_i32_556, %c56_i32_554 : i32
    %2193 = arith.index_cast %2192 : i32 to index
    %2194 = memref.load %arg5[%2193] : memref<128xf32, #tpu.memory_space<smem>>
    %2195 = vector.broadcast %2194 : f32 to vector<64x128xf32>
    %2196 = arith.addf %2191, %2195 : vector<64x128xf32>
    %cst_557 = arith.constant 0.000000e+00 : f32
    %2197 = vector.broadcast %cst_557 : f32 to vector<64x128xf32>
    %2198 = arith.maximumf %2196, %2197 : vector<64x128xf32>
    %c64_i32_558 = arith.constant 64 : i32
    %2199 = arith.addi %c64_i32_558, %c56_i32_554 : i32
    %2200 = arith.index_cast %2199 : i32 to index
    %2201 = memref.load %arg6[%2200] : memref<128xf32, #tpu.memory_space<smem>>
    %2202 = vector.broadcast %2201 : f32 to vector<64x128xf32>
    %2203 = arith.mulf %2202, %2198 : vector<64x128xf32>
    %2204 = arith.addf %2186, %2203 : vector<64x128xf32>
    %c57_i32_559 = arith.constant 57 : i32
    %c64_i32_560 = arith.constant 64 : i32
    %2205 = arith.addi %c64_i32_560, %c57_i32_559 : i32
    %2206 = arith.index_cast %2205 : i32 to index
    %2207 = memref.load %arg4[%2206] : memref<128xf32, #tpu.memory_space<smem>>
    %2208 = vector.broadcast %2207 : f32 to vector<64x128xf32>
    %2209 = arith.mulf %2208, %1177 : vector<64x128xf32>
    %c64_i32_561 = arith.constant 64 : i32
    %2210 = arith.addi %c64_i32_561, %c57_i32_559 : i32
    %2211 = arith.index_cast %2210 : i32 to index
    %2212 = memref.load %arg5[%2211] : memref<128xf32, #tpu.memory_space<smem>>
    %2213 = vector.broadcast %2212 : f32 to vector<64x128xf32>
    %2214 = arith.addf %2209, %2213 : vector<64x128xf32>
    %cst_562 = arith.constant 0.000000e+00 : f32
    %2215 = vector.broadcast %cst_562 : f32 to vector<64x128xf32>
    %2216 = arith.maximumf %2214, %2215 : vector<64x128xf32>
    %c64_i32_563 = arith.constant 64 : i32
    %2217 = arith.addi %c64_i32_563, %c57_i32_559 : i32
    %2218 = arith.index_cast %2217 : i32 to index
    %2219 = memref.load %arg6[%2218] : memref<128xf32, #tpu.memory_space<smem>>
    %2220 = vector.broadcast %2219 : f32 to vector<64x128xf32>
    %2221 = arith.mulf %2220, %2216 : vector<64x128xf32>
    %2222 = arith.addf %2204, %2221 : vector<64x128xf32>
    %c58_i32_564 = arith.constant 58 : i32
    %c64_i32_565 = arith.constant 64 : i32
    %2223 = arith.addi %c64_i32_565, %c58_i32_564 : i32
    %2224 = arith.index_cast %2223 : i32 to index
    %2225 = memref.load %arg4[%2224] : memref<128xf32, #tpu.memory_space<smem>>
    %2226 = vector.broadcast %2225 : f32 to vector<64x128xf32>
    %2227 = arith.mulf %2226, %1177 : vector<64x128xf32>
    %c64_i32_566 = arith.constant 64 : i32
    %2228 = arith.addi %c64_i32_566, %c58_i32_564 : i32
    %2229 = arith.index_cast %2228 : i32 to index
    %2230 = memref.load %arg5[%2229] : memref<128xf32, #tpu.memory_space<smem>>
    %2231 = vector.broadcast %2230 : f32 to vector<64x128xf32>
    %2232 = arith.addf %2227, %2231 : vector<64x128xf32>
    %cst_567 = arith.constant 0.000000e+00 : f32
    %2233 = vector.broadcast %cst_567 : f32 to vector<64x128xf32>
    %2234 = arith.maximumf %2232, %2233 : vector<64x128xf32>
    %c64_i32_568 = arith.constant 64 : i32
    %2235 = arith.addi %c64_i32_568, %c58_i32_564 : i32
    %2236 = arith.index_cast %2235 : i32 to index
    %2237 = memref.load %arg6[%2236] : memref<128xf32, #tpu.memory_space<smem>>
    %2238 = vector.broadcast %2237 : f32 to vector<64x128xf32>
    %2239 = arith.mulf %2238, %2234 : vector<64x128xf32>
    %2240 = arith.addf %2222, %2239 : vector<64x128xf32>
    %c59_i32_569 = arith.constant 59 : i32
    %c64_i32_570 = arith.constant 64 : i32
    %2241 = arith.addi %c64_i32_570, %c59_i32_569 : i32
    %2242 = arith.index_cast %2241 : i32 to index
    %2243 = memref.load %arg4[%2242] : memref<128xf32, #tpu.memory_space<smem>>
    %2244 = vector.broadcast %2243 : f32 to vector<64x128xf32>
    %2245 = arith.mulf %2244, %1177 : vector<64x128xf32>
    %c64_i32_571 = arith.constant 64 : i32
    %2246 = arith.addi %c64_i32_571, %c59_i32_569 : i32
    %2247 = arith.index_cast %2246 : i32 to index
    %2248 = memref.load %arg5[%2247] : memref<128xf32, #tpu.memory_space<smem>>
    %2249 = vector.broadcast %2248 : f32 to vector<64x128xf32>
    %2250 = arith.addf %2245, %2249 : vector<64x128xf32>
    %cst_572 = arith.constant 0.000000e+00 : f32
    %2251 = vector.broadcast %cst_572 : f32 to vector<64x128xf32>
    %2252 = arith.maximumf %2250, %2251 : vector<64x128xf32>
    %c64_i32_573 = arith.constant 64 : i32
    %2253 = arith.addi %c64_i32_573, %c59_i32_569 : i32
    %2254 = arith.index_cast %2253 : i32 to index
    %2255 = memref.load %arg6[%2254] : memref<128xf32, #tpu.memory_space<smem>>
    %2256 = vector.broadcast %2255 : f32 to vector<64x128xf32>
    %2257 = arith.mulf %2256, %2252 : vector<64x128xf32>
    %2258 = arith.addf %2240, %2257 : vector<64x128xf32>
    %c60_i32_574 = arith.constant 60 : i32
    %c64_i32_575 = arith.constant 64 : i32
    %2259 = arith.addi %c64_i32_575, %c60_i32_574 : i32
    %2260 = arith.index_cast %2259 : i32 to index
    %2261 = memref.load %arg4[%2260] : memref<128xf32, #tpu.memory_space<smem>>
    %2262 = vector.broadcast %2261 : f32 to vector<64x128xf32>
    %2263 = arith.mulf %2262, %1177 : vector<64x128xf32>
    %c64_i32_576 = arith.constant 64 : i32
    %2264 = arith.addi %c64_i32_576, %c60_i32_574 : i32
    %2265 = arith.index_cast %2264 : i32 to index
    %2266 = memref.load %arg5[%2265] : memref<128xf32, #tpu.memory_space<smem>>
    %2267 = vector.broadcast %2266 : f32 to vector<64x128xf32>
    %2268 = arith.addf %2263, %2267 : vector<64x128xf32>
    %cst_577 = arith.constant 0.000000e+00 : f32
    %2269 = vector.broadcast %cst_577 : f32 to vector<64x128xf32>
    %2270 = arith.maximumf %2268, %2269 : vector<64x128xf32>
    %c64_i32_578 = arith.constant 64 : i32
    %2271 = arith.addi %c64_i32_578, %c60_i32_574 : i32
    %2272 = arith.index_cast %2271 : i32 to index
    %2273 = memref.load %arg6[%2272] : memref<128xf32, #tpu.memory_space<smem>>
    %2274 = vector.broadcast %2273 : f32 to vector<64x128xf32>
    %2275 = arith.mulf %2274, %2270 : vector<64x128xf32>
    %2276 = arith.addf %2258, %2275 : vector<64x128xf32>
    %c61_i32_579 = arith.constant 61 : i32
    %c64_i32_580 = arith.constant 64 : i32
    %2277 = arith.addi %c64_i32_580, %c61_i32_579 : i32
    %2278 = arith.index_cast %2277 : i32 to index
    %2279 = memref.load %arg4[%2278] : memref<128xf32, #tpu.memory_space<smem>>
    %2280 = vector.broadcast %2279 : f32 to vector<64x128xf32>
    %2281 = arith.mulf %2280, %1177 : vector<64x128xf32>
    %c64_i32_581 = arith.constant 64 : i32
    %2282 = arith.addi %c64_i32_581, %c61_i32_579 : i32
    %2283 = arith.index_cast %2282 : i32 to index
    %2284 = memref.load %arg5[%2283] : memref<128xf32, #tpu.memory_space<smem>>
    %2285 = vector.broadcast %2284 : f32 to vector<64x128xf32>
    %2286 = arith.addf %2281, %2285 : vector<64x128xf32>
    %cst_582 = arith.constant 0.000000e+00 : f32
    %2287 = vector.broadcast %cst_582 : f32 to vector<64x128xf32>
    %2288 = arith.maximumf %2286, %2287 : vector<64x128xf32>
    %c64_i32_583 = arith.constant 64 : i32
    %2289 = arith.addi %c64_i32_583, %c61_i32_579 : i32
    %2290 = arith.index_cast %2289 : i32 to index
    %2291 = memref.load %arg6[%2290] : memref<128xf32, #tpu.memory_space<smem>>
    %2292 = vector.broadcast %2291 : f32 to vector<64x128xf32>
    %2293 = arith.mulf %2292, %2288 : vector<64x128xf32>
    %2294 = arith.addf %2276, %2293 : vector<64x128xf32>
    %c62_i32_584 = arith.constant 62 : i32
    %c64_i32_585 = arith.constant 64 : i32
    %2295 = arith.addi %c64_i32_585, %c62_i32_584 : i32
    %2296 = arith.index_cast %2295 : i32 to index
    %2297 = memref.load %arg4[%2296] : memref<128xf32, #tpu.memory_space<smem>>
    %2298 = vector.broadcast %2297 : f32 to vector<64x128xf32>
    %2299 = arith.mulf %2298, %1177 : vector<64x128xf32>
    %c64_i32_586 = arith.constant 64 : i32
    %2300 = arith.addi %c64_i32_586, %c62_i32_584 : i32
    %2301 = arith.index_cast %2300 : i32 to index
    %2302 = memref.load %arg5[%2301] : memref<128xf32, #tpu.memory_space<smem>>
    %2303 = vector.broadcast %2302 : f32 to vector<64x128xf32>
    %2304 = arith.addf %2299, %2303 : vector<64x128xf32>
    %cst_587 = arith.constant 0.000000e+00 : f32
    %2305 = vector.broadcast %cst_587 : f32 to vector<64x128xf32>
    %2306 = arith.maximumf %2304, %2305 : vector<64x128xf32>
    %c64_i32_588 = arith.constant 64 : i32
    %2307 = arith.addi %c64_i32_588, %c62_i32_584 : i32
    %2308 = arith.index_cast %2307 : i32 to index
    %2309 = memref.load %arg6[%2308] : memref<128xf32, #tpu.memory_space<smem>>
    %2310 = vector.broadcast %2309 : f32 to vector<64x128xf32>
    %2311 = arith.mulf %2310, %2306 : vector<64x128xf32>
    %2312 = arith.addf %2294, %2311 : vector<64x128xf32>
    %c63_i32_589 = arith.constant 63 : i32
    %c64_i32_590 = arith.constant 64 : i32
    %2313 = arith.addi %c64_i32_590, %c63_i32_589 : i32
    %2314 = arith.index_cast %2313 : i32 to index
    %2315 = memref.load %arg4[%2314] : memref<128xf32, #tpu.memory_space<smem>>
    %2316 = vector.broadcast %2315 : f32 to vector<64x128xf32>
    %2317 = arith.mulf %2316, %1177 : vector<64x128xf32>
    %c64_i32_591 = arith.constant 64 : i32
    %2318 = arith.addi %c64_i32_591, %c63_i32_589 : i32
    %2319 = arith.index_cast %2318 : i32 to index
    %2320 = memref.load %arg5[%2319] : memref<128xf32, #tpu.memory_space<smem>>
    %2321 = vector.broadcast %2320 : f32 to vector<64x128xf32>
    %2322 = arith.addf %2317, %2321 : vector<64x128xf32>
    %cst_592 = arith.constant 0.000000e+00 : f32
    %2323 = vector.broadcast %cst_592 : f32 to vector<64x128xf32>
    %2324 = arith.maximumf %2322, %2323 : vector<64x128xf32>
    %c64_i32_593 = arith.constant 64 : i32
    %2325 = arith.addi %c64_i32_593, %c63_i32_589 : i32
    %2326 = arith.index_cast %2325 : i32 to index
    %2327 = memref.load %arg6[%2326] : memref<128xf32, #tpu.memory_space<smem>>
    %2328 = vector.broadcast %2327 : f32 to vector<64x128xf32>
    %2329 = arith.mulf %2328, %2324 : vector<64x128xf32>
    %2330 = arith.addf %2312, %2329 : vector<64x128xf32>
    %c64_i32_594 = arith.constant 64 : i32
    %2331 = arith.addf %1177, %2330 : vector<64x128xf32>
    %c1_595 = arith.constant 1 : index
    %2332 = memref.load %arg7[%c1_595] : memref<2xf32, #tpu.memory_space<smem>>
    %2333 = vector.broadcast %2332 : f32 to vector<64x128xf32>
    %2334 = arith.addf %2331, %2333 : vector<64x128xf32>
    %c0_596 = arith.constant 0 : index
    %c0_597 = arith.constant 0 : index
    %2335 = vector.load %arg8[%c0_596, %c0_597] : memref<32x64xf32, #tpu.memory_space<vmem>>, vector<32x64xf32>
    %cst_598 = arith.constant dense<0.000000e+00> : vector<32x128xf32>
    %2336 = tpu.matmul %2335, %2334, %cst_598 {dimension_numbers = #tpu.dot_dimension_numbers<[1], [0], [0], [1], [0, 0, 1, 1], [], []>} : vector<32x64xf32>, vector<64x128xf32>, vector<32x128xf32> -> vector<32x128xf32>
    %c0_599 = arith.constant 0 : index
    %c0_600 = arith.constant 0 : index
    %2337 = vector.load %arg9[%c0_599, %c0_600] : memref<32x1xf32, #tpu.memory_space<vmem>>, vector<32x1xf32>
    %2338 = vector.broadcast %2337 : vector<32x1xf32> to vector<32x128xf32>
    %2339 = arith.addf %2336, %2338 : vector<32x128xf32>
    %c0_601 = arith.constant 0 : index
    %c0_602 = arith.constant 0 : index
    %2340 = vector.load %arg10[%c0_601, %c0_602] : memref<32x128xf32, #tpu.memory_space<vmem>>, vector<32x128xf32>
    tpu.vector_store %arg10[%c0_601, %c0_602], %2339 {strides = array<i32>} : memref<32x128xf32, #tpu.memory_space<vmem>>, vector<32x128xf32>,
    return
  }
  func.func @transform_0(%arg0: i32) -> (i32, i32) {
    %c0_i32 = arith.constant 0 : i32
    %c0_i32_0 = arith.constant 0 : i32
    return %c0_i32, %arg0 : i32, i32
  }
  func.func @transform_1(%arg0: i32) -> (i32, i32, i32) {
    %c0_i32 = arith.constant 0 : i32
    %c0_i32_0 = arith.constant 0 : i32
    %c0_i32_1 = arith.constant 0 : i32
    %c0_i32_2 = arith.constant 0 : i32
    return %c0_i32, %c0_i32_0, %c0_i32_1 : i32, i32, i32
  }
  func.func @transform_2(%arg0: i32) -> (i32, i32, i32) {
    %c0_i32 = arith.constant 0 : i32
    %c0_i32_0 = arith.constant 0 : i32
    %c0_i32_1 = arith.constant 0 : i32
    %c0_i32_2 = arith.constant 0 : i32
    return %c0_i32, %c0_i32_0, %c0_i32_1 : i32, i32, i32
  }
  func.func @transform_3(%arg0: i32) -> i32 {
    %c0_i32 = arith.constant 0 : i32
    %c0_i32_0 = arith.constant 0 : i32
    return %c0_i32 : i32
  }
  func.func @transform_4(%arg0: i32) -> i32 {
    %c0_i32 = arith.constant 0 : i32
    %c0_i32_0 = arith.constant 0 : i32
    return %c0_i32 : i32
  }
  func.func @transform_5(%arg0: i32) -> i32 {
    %c0_i32 = arith.constant 0 : i32
    %c0_i32_0 = arith.constant 0 : i32
    return %c0_i32 : i32
  }
  func.func @transform_6(%arg0: i32) -> i32 {
    %c0_i32 = arith.constant 0 : i32
    %c0_i32_0 = arith.constant 0 : i32
    return %c0_i32 : i32
  }
  func.func @transform_7(%arg0: i32) -> (i32, i32) {
    %c0_i32 = arith.constant 0 : i32
    %c0_i32_0 = arith.constant 0 : i32
    %c0_i32_1 = arith.constant 0 : i32
    return %c0_i32, %c0_i32_0 : i32, i32
  }
  func.func @transform_8(%arg0: i32) -> (i32, i32) {
    %c0_i32 = arith.constant 0 : i32
    %c0_i32_0 = arith.constant 0 : i32
    %c0_i32_1 = arith.constant 0 : i32
    return %c0_i32, %c0_i32_0 : i32, i32
  }
  func.func @transform_9(%arg0: i32) -> (i32, i32) {
    %c0_i32 = arith.constant 0 : i32
    %c0_i32_0 = arith.constant 0 : i32
    return %c0_i32, %arg0 : i32, i32
  }
}

</mosaic_0001>

<llo_original>
// kernel: _tsmixer_forward_impl.1
$region0: #{_tsmixer_forward_impl.1}
  #allocation0 [shape = 'u32[]', space=smem, size = 0x4, offset = 0x4, fixed_abs, tag = 'smem constant byte address 0x4 - core index']
  #allocation1 [shape = 'u32[72,128]{1,0:T(1,128)}', space=vmem, size = 0x9000, scoped, tag = 'internal scratch']
  %s0 = inlined_call_operand.vmem [shape: f32[64,256], index: 0, kind: input, shape index: {}]
  %s1 = inlined_call_operand.vmem [shape: f32[2,64,64], index: 1, kind: input, shape index: {}]
  %s2 = inlined_call_operand.vmem [shape: f32[2,64,1], index: 2, kind: input, shape index: {}]
  %s3 = inlined_call_operand.vmem [shape: f32[128], index: 3, kind: input, shape index: {}]
  %s4 = inlined_call_operand.vmem [shape: f32[128], index: 4, kind: input, shape index: {}]
  %s5 = inlined_call_operand.vmem [shape: f32[128], index: 5, kind: input, shape index: {}]
  %s6 = inlined_call_operand.vmem [shape: f32[2], index: 6, kind: input, shape index: {}]
  %s7 = inlined_call_operand.vmem [shape: f32[32,64], index: 7, kind: input, shape index: {}]
  %s8 = inlined_call_operand.vmem [shape: f32[32,1], index: 8, kind: input, shape index: {}]
  %s9 = inlined_call_operand.vmem [shape: f32[32,256], index: 9, kind: output, shape index: {}]
  %s10 = sld [smem:[#allocation0]]
  $region157: #{_tsmixer_forward_impl.1} parent=0
    _
  %s12 = ssub.s32 1, %s10
  %s13 = scalar_select 0, %s12, %s10
  $region1: #{_tsmixer_forward_impl.1} parent=0
    #allocation2 [shape = 'u8[65536]{0}', space=vmem, size = 0x10000, scoped, tag = 'input window, operand 0']
    #allocation3 [shape = 'u8[512]{0}', space=smem, size = 0x200, scoped, tag = 'input window, operand 3, single buffered']
    #allocation4 [shape = 's32[2]{0}', space=sflag, size = 0x8, scoped, tag = 'scoped memory for _tsmixer_forward_impl.1']
    #allocation5 [shape = 'u8[512]{0}', space=smem, size = 0x200, scoped, tag = 'input window, operand 4, single buffered']
    #allocation6 [shape = 's32[1]{0}', space=sflag, size = 0x4, scoped, tag = 'scoped memory for _tsmixer_forward_impl.1']
    #allocation7 [shape = 'u8[512]{0}', space=smem, size = 0x200, scoped, tag = 'input window, operand 5, single buffered']
    #allocation8 [shape = 'u8[512]{0}', space=smem, size = 0x200, scoped, tag = 'input window, operand 6, single buffered']
    #allocation9 [shape = 's32[1]{0}', space=sflag, size = 0x4, scoped, tag = 'scoped memory for _tsmixer_forward_impl.1']
    #allocation10 [shape = 'u8[32768]{0}', space=vmem, size = 0x8000, scoped, tag = 'output window, operand 0']
    %14 = vsyncpa [#allocation4], 0
    %15 = vsyncpa [#allocation6], 0
    %16 = vsyncpa [#allocation9], 0
    loop: start=0, step=1, limit=4
    $region2: #{_tsmixer_forward_impl.1} parent=1 // loop_pre_header
      _
    $region3: #{_tsmixer_forward_impl.1} parent=1 // loop_header
      %s18 = sphi 0, %s22
      %p19 = scmp.ge.s32.totalorder %s18, 4
      %s28 = sphi 0, %s30
      %s31 = sphi 0, %s28
      %s32 = sphi 0, %s31
      %s48 = sphi 0, %s32
      %s52 = sphi 0, %s52
      %s54 = sphi 0, %s52
      %s55 = sphi 0, %s54
      %s69 = sphi 0, %s55
      %s73 = sphi 0, %s73
      %s75 = sphi 0, %s73
      %s76 = sphi 0, %s75
      %s90 = sphi 0, %s76
      %s94 = sphi 0, %s94
      %s96 = sphi 0, %s94
      %s97 = sphi 0, %s96
      %s111 = sphi 0, %s97
      %s115 = sphi 0, %s115
      %s117 = sphi 0, %s115
      %s118 = sphi 0, %s117
      %s132 = sphi 0, %s118
      %s136 = sphi 0, %s136
      %s138 = sphi 0, %s136
      %s139 = sphi 0, %s138
      %s153 = sphi 0, %s139
      %s157 = sphi 0, %s157
      %s159 = sphi 0, %s157
      %s160 = sphi 0, %s159
      %s174 = sphi 0, %s160
      %s178 = sphi 0, %s178
      %s180 = sphi 0, %s178
      %s181 = sphi 0, %s180
      %s195 = sphi 0, %s181
      %s199 = sphi 0, %s199
      %s201 = sphi 0, %s199
      %s202 = sphi 0, %s201
      %s216 = sphi 0, %s202
      %s222 = sphi 0, %s224
      %s225 = sphi 0, %s222
      %s226 = sphi 0, %s225
      %s242 = sphi 0, %s226
    $region4: #{_tsmixer_forward_impl.1} parent=1 // loop_header_branch
      %21 = sbr.rel (%p19) target = $region8
    $region5: #{_tsmixer_forward_impl.1} parent=1 // loop_body
      %s23 = ssub.s32 %s18, 1
      %s24 = ssub.s32 %s18, 2
      %s25 = sadd.s32 %s18, 1
      %s26 = ssub.s32 %s18, %s25
      %p27 = scmp.eq.s32.totalorder %s26, 0
      %s29 = sadd.s32 %s28, 1
      %s30 = scalar_select %p27, %s28, %s29
      %p33 = pneg %p27
      %p34 = scmp.eq.s32.totalorder %s18, 1
      %p35 = por %p33, %p34
      %p36 = scmp.ne.s32.totalorder %s28, %s31
      %p37 = scmp.eq.s32.totalorder %s18, 0
      %p38 = por %p36, %p37
      %p39 = scmp.ne.s32.totalorder %s28, %s31
      %p40 = scmp.eq.s32.totalorder %s23, 1
      %p41 = por %p39, %p40
      %p42 = scmp.ne.s32.totalorder %s31, %s32
      %p43 = scmp.eq.s32.totalorder %s23, 0
      %p44 = por %p42, %p43
      %p45 = scmp.ne.s32.totalorder %s31, %s32
      %p46 = scmp.eq.s32.totalorder %s24, 1
      %p47 = por %p45, %p46
      %p49 = scmp.ne.s32.totalorder %s32, %s48
      %p50 = scmp.eq.s32.totalorder %s24, 0
      %p51 = por %p49, %p50
      %s53 = sadd.s32 %s52, 1
      %p56 = scmp.eq.s32.totalorder %s18, 1
      %p57 = scmp.ne.s32.totalorder %s52, %s54
      %p58 = scmp.eq.s32.totalorder %s18, 0
      %p59 = por %p57, %p58
      %p60 = scmp.ne.s32.totalorder %s52, %s54
      %p61 = scmp.eq.s32.totalorder %s23, 1
      %p62 = por %p60, %p61
      %p63 = scmp.ne.s32.totalorder %s54, %s55
      %p64 = scmp.eq.s32.totalorder %s23, 0
      %p65 = por %p63, %p64
      %p66 = scmp.ne.s32.totalorder %s54, %s55
      %p67 = scmp.eq.s32.totalorder %s24, 1
      %p68 = por %p66, %p67
      %p70 = scmp.ne.s32.totalorder %s55, %s69
      %p71 = scmp.eq.s32.totalorder %s24, 0
      %p72 = por %p70, %p71
      %s74 = sadd.s32 %s73, 1
      %p77 = scmp.eq.s32.totalorder %s18, 1
      %p78 = scmp.ne.s32.totalorder %s73, %s75
      %p79 = scmp.eq.s32.totalorder %s18, 0
      %p80 = por %p78, %p79
      %p81 = scmp.ne.s32.totalorder %s73, %s75
      %p82 = scmp.eq.s32.totalorder %s23, 1
      %p83 = por %p81, %p82
      %p84 = scmp.ne.s32.totalorder %s75, %s76
      %p85 = scmp.eq.s32.totalorder %s23, 0
      %p86 = por %p84, %p85
      %p87 = scmp.ne.s32.totalorder %s75, %s76
      %p88 = scmp.eq.s32.totalorder %s24, 1
      %p89 = por %p87, %p88
      %p91 = scmp.ne.s32.totalorder %s76, %s90
      %p92 = scmp.eq.s32.totalorder %s24, 0
      %p93 = por %p91, %p92
      %s95 = sadd.s32 %s94, 1
      %p98 = scmp.eq.s32.totalorder %s18, 1
      %p99 = scmp.ne.s32.totalorder %s94, %s96
      %p100 = scmp.eq.s32.totalorder %s18, 0
      %p101 = por %p99, %p100
      %p102 = scmp.ne.s32.totalorder %s94, %s96
      %p103 = scmp.eq.s32.totalorder %s23, 1
      %p104 = por %p102, %p103
      %p105 = scmp.ne.s32.totalorder %s96, %s97
      %p106 = scmp.eq.s32.totalorder %s23, 0
      %p107 = por %p105, %p106
      %p108 = scmp.ne.s32.totalorder %s96, %s97
      %p109 = scmp.eq.s32.totalorder %s24, 1
      %p110 = por %p108, %p109
      %p112 = scmp.ne.s32.totalorder %s97, %s111
      %p113 = scmp.eq.s32.totalorder %s24, 0
      %p114 = por %p112, %p113
      %s116 = sadd.s32 %s115, 1
      %p119 = scmp.eq.s32.totalorder %s18, 1
      %p120 = scmp.ne.s32.totalorder %s115, %s117
      %p121 = scmp.eq.s32.totalorder %s18, 0
      %p122 = por %p120, %p121
      %p123 = scmp.ne.s32.totalorder %s115, %s117
      %p124 = scmp.eq.s32.totalorder %s23, 1
      %p125 = por %p123, %p124
      %p126 = scmp.ne.s32.totalorder %s117, %s118
      %p127 = scmp.eq.s32.totalorder %s23, 0
      %p128 = por %p126, %p127
      %p129 = scmp.ne.s32.totalorder %s117, %s118
      %p130 = scmp.eq.s32.totalorder %s24, 1
      %p131 = por %p129, %p130
      %p133 = scmp.ne.s32.totalorder %s118, %s132
      %p134 = scmp.eq.s32.totalorder %s24, 0
      %p135 = por %p133, %p134
      %s137 = sadd.s32 %s136, 1
      %p140 = scmp.eq.s32.totalorder %s18, 1
      %p141 = scmp.ne.s32.totalorder %s136, %s138
      %p142 = scmp.eq.s32.totalorder %s18, 0
      %p143 = por %p141, %p142
      %p144 = scmp.ne.s32.totalorder %s136, %s138
      %p145 = scmp.eq.s32.totalorder %s23, 1
      %p146 = por %p144, %p145
      %p147 = scmp.ne.s32.totalorder %s138, %s139
      %p148 = scmp.eq.s32.totalorder %s23, 0
      %p149 = por %p147, %p148
      %p150 = scmp.ne.s32.totalorder %s138, %s139
      %p151 = scmp.eq.s32.totalorder %s24, 1
      %p152 = por %p150, %p151
      %p154 = scmp.ne.s32.totalorder %s139, %s153
      %p155 = scmp.eq.s32.totalorder %s24, 0
      %p156 = por %p154, %p155
      %s158 = sadd.s32 %s157, 1
      %p161 = scmp.eq.s32.totalorder %s18, 1
      %p162 = scmp.ne.s32.totalorder %s157, %s159
      %p163 = scmp.eq.s32.totalorder %s18, 0
      %p164 = por %p162, %p163
      %p165 = scmp.ne.s32.totalorder %s157, %s159
      %p166 = scmp.eq.s32.totalorder %s23, 1
      %p167 = por %p165, %p166
      %p168 = scmp.ne.s32.totalorder %s159, %s160
      %p169 = scmp.eq.s32.totalorder %s23, 0
      %p170 = por %p168, %p169
      %p171 = scmp.ne.s32.totalorder %s159, %s160
      %p172 = scmp.eq.s32.totalorder %s24, 1
      %p173 = por %p171, %p172
      %p175 = scmp.ne.s32.totalorder %s160, %s174
      %p176 = scmp.eq.s32.totalorder %s24, 0
      %p177 = por %p175, %p176
      %s179 = sadd.s32 %s178, 1
      %p182 = scmp.eq.s32.totalorder %s18, 1
      %p183 = scmp.ne.s32.totalorder %s178, %s180
      %p184 = scmp.eq.s32.totalorder %s18, 0
      %p185 = por %p183, %p184
      %p186 = scmp.ne.s32.totalorder %s178, %s180
      %p187 = scmp.eq.s32.totalorder %s23, 1
      %p188 = por %p186, %p187
      %p189 = scmp.ne.s32.totalorder %s180, %s181
      %p190 = scmp.eq.s32.totalorder %s23, 0
      %p191 = por %p189, %p190
      %p192 = scmp.ne.s32.totalorder %s180, %s181
      %p193 = scmp.eq.s32.totalorder %s24, 1
      %p194 = por %p192, %p193
      %p196 = scmp.ne.s32.totalorder %s181, %s195
      %p197 = scmp.eq.s32.totalorder %s24, 0
      %p198 = por %p196, %p197
      %s200 = sadd.s32 %s199, 1
      %p203 = scmp.eq.s32.totalorder %s18, 1
      %p204 = scmp.ne.s32.totalorder %s199, %s201
      %p205 = scmp.eq.s32.totalorder %s18, 0
      %p206 = por %p204, %p205
      %p207 = scmp.ne.s32.totalorder %s199, %s201
      %p208 = scmp.eq.s32.totalorder %s23, 1
      %p209 = por %p207, %p208
      %p210 = scmp.ne.s32.totalorder %s201, %s202
      %p211 = scmp.eq.s32.totalorder %s23, 0
      %p212 = por %p210, %p211
      %p213 = scmp.ne.s32.totalorder %s201, %s202
      %p214 = scmp.eq.s32.totalorder %s24, 1
      %p215 = por %p213, %p214
      %p217 = scmp.ne.s32.totalorder %s202, %s216
      %p218 = scmp.eq.s32.totalorder %s24, 0
      %p219 = por %p217, %p218
      %s220 = ssub.s32 %s18, %s25
      %p221 = scmp.eq.s32.totalorder %s220, 0
      %s223 = sadd.s32 %s222, 1
      %s224 = scalar_select %p221, %s222, %s223
      %p227 = pneg %p221
      %p228 = scmp.eq.s32.totalorder %s18, 1
      %p229 = por %p227, %p228
      %p230 = scmp.ne.s32.totalorder %s222, %s225
      %p231 = scmp.eq.s32.totalorder %s18, 0
      %p232 = por %p230, %p231
      %p233 = scmp.ne.s32.totalorder %s222, %s225
      %p234 = scmp.eq.s32.totalorder %s23, 1
      %p235 = por %p233, %p234
      %p236 = scmp.ne.s32.totalorder %s225, %s226
      %p237 = scmp.eq.s32.totalorder %s23, 0
      %p238 = por %p236, %p237
      %p239 = scmp.ne.s32.totalorder %s225, %s226
      %p240 = scmp.eq.s32.totalorder %s24, 1
      %p241 = por %p239, %p240
      %p243 = scmp.ne.s32.totalorder %s226, %s242
      %p244 = scmp.eq.s32.totalorder %s24, 0
      %p245 = por %p243, %p244
      %p246 = scmp.le.s32.totalorder 1, %s18
      %p247 = scmp.lt.s32.totalorder %s18, 3
      %p248 = pnand %p246, %p247
      %p249 = pneg %p248
      // Predicated region
      $region9: #{_tsmixer_forward_impl.1} parent=5 // pred_check
        _
      $region10: #{_tsmixer_forward_impl.1} parent=5 // pred_check_branch
        %251 = sbr.rel (%p248) target = $region12
      $region11: #{_tsmixer_forward_impl.1} parent=5 // pred_region
        %s252 = ssub.s32 %s18, 1
        // Predicated region
        $region13: #{_tsmixer_forward_impl.1} parent=11 // pred_check
          %p253 = pneg %p65
        $region14: #{_tsmixer_forward_impl.1} parent=11 // pred_check_branch
          %255 = sbr.rel (%p253) target = $region16
        $region15: #{_tsmixer_forward_impl.1} parent=11 // pred_region
          _
        $region16: #{_tsmixer_forward_impl.1} parent=11 // pred_fallthru
          _
        // Predicated region
        $region17: #{_tsmixer_forward_impl.1} parent=11 // pred_check
          %p256 = pneg %p86
        $region18: #{_tsmixer_forward_impl.1} parent=11 // pred_check_branch
          %258 = sbr.rel (%p256) target = $region20
        $region19: #{_tsmixer_forward_impl.1} parent=11 // pred_region
          _
        $region20: #{_tsmixer_forward_impl.1} parent=11 // pred_fallthru
          _
        // Predicated region
        $region21: #{_tsmixer_forward_impl.1} parent=11 // pred_check
          %p259 = pneg %p107
        $region22: #{_tsmixer_forward_impl.1} parent=11 // pred_check_branch
          %261 = sbr.rel (%p259) target = $region24
        $region23: #{_tsmixer_forward_impl.1} parent=11 // pred_region
          %263 = vsyncadd [#allocation4], 0
          %s265 = sshll.u32 %s3, 4
          %s266 = int_to_ptr.vmem [resolvable:$true] %s265
          %268 = dma.vmem_to_smem %s266, 16, [#allocation3], [#allocation4]
        $region24: #{_tsmixer_forward_impl.1} parent=11 // pred_fallthru
          _
        // Predicated region
        $region25: #{_tsmixer_forward_impl.1} parent=11 // pred_check
          %p269 = pneg %p128
        $region26: #{_tsmixer_forward_impl.1} parent=11 // pred_check_branch
          %271 = sbr.rel (%p269) target = $region28
        $region27: #{_tsmixer_forward_impl.1} parent=11 // pred_region
          %273 = vsyncadd [#allocation6], 0
          %s275 = sshll.u32 %s4, 4
          %s276 = int_to_ptr.vmem [resolvable:$true] %s275
          %278 = dma.vmem_to_smem %s276, 16, [#allocation5], [#allocation6]
        $region28: #{_tsmixer_forward_impl.1} parent=11 // pred_fallthru
          _
        // Predicated region
        $region29: #{_tsmixer_forward_impl.1} parent=11 // pred_check
          %p279 = pneg %p149
        $region30: #{_tsmixer_forward_impl.1} parent=11 // pred_check_branch
          %281 = sbr.rel (%p279) target = $region32
        $region31: #{_tsmixer_forward_impl.1} parent=11 // pred_region
          %283 = vsyncadd [#allocation6], 0
          %s285 = sshll.u32 %s5, 4
          %s286 = int_to_ptr.vmem [resolvable:$true] %s285
          %288 = dma.vmem_to_smem %s286, 16, [#allocation7], [#allocation6]
        $region32: #{_tsmixer_forward_impl.1} parent=11 // pred_fallthru
          _
        // Predicated region
        $region33: #{_tsmixer_forward_impl.1} parent=11 // pred_check
          %p289 = pneg %p170
        $region34: #{_tsmixer_forward_impl.1} parent=11 // pred_check_branch
          %291 = sbr.rel (%p289) target = $region36
        $region35: #{_tsmixer_forward_impl.1} parent=11 // pred_region
          %293 = vsyncadd [#allocation9], 0
          %s295 = sshll.u32 %s6, 4
          %s296 = int_to_ptr.vmem [resolvable:$true] %s295
          %298 = dma.vmem_to_smem %s296, 16, [#allocation8], [#allocation9]
        $region36: #{_tsmixer_forward_impl.1} parent=11 // pred_fallthru
          _
        // Predicated region
        $region37: #{_tsmixer_forward_impl.1} parent=11 // pred_check
          %p299 = pneg %p191
        $region38: #{_tsmixer_forward_impl.1} parent=11 // pred_check_branch
          %301 = sbr.rel (%p299) target = $region40
        $region39: #{_tsmixer_forward_impl.1} parent=11 // pred_region
          _
        $region40: #{_tsmixer_forward_impl.1} parent=11 // pred_fallthru
          _
        // Predicated region
        $region41: #{_tsmixer_forward_impl.1} parent=11 // pred_check
          %p302 = pneg %p212
        $region42: #{_tsmixer_forward_impl.1} parent=11 // pred_check_branch
          %304 = sbr.rel (%p302) target = $region44
        $region43: #{_tsmixer_forward_impl.1} parent=11 // pred_region
          _
        $region44: #{_tsmixer_forward_impl.1} parent=11 // pred_fallthru
          _
      $region12: #{_tsmixer_forward_impl.1} parent=5 // pred_fallthru
        _
      %p305 = scmp.lt.s32.totalorder %s18, 2
      // Predicated region
      $region45: #{_tsmixer_forward_impl.1} parent=5 // pred_check
        %p306 = pneg %p305
      $region46: #{_tsmixer_forward_impl.1} parent=5 // pred_check_branch
        %308 = sbr.rel (%p306) target = $region48
      $region47: #{_tsmixer_forward_impl.1} parent=5 // pred_region
        // Predicated region
        $region49: #{_tsmixer_forward_impl.1} parent=47 // pred_check
          %p309 = pneg %p38
        $region50: #{_tsmixer_forward_impl.1} parent=47 // pred_check_branch
          %311 = sbr.rel (%p309) target = $region52
        $region51: #{_tsmixer_forward_impl.1} parent=47 // pred_region
          %s312 = sand.u32 %s28, 1
          %s313 = sand.u32 %s28, 1
          %s314 = smul.addr %s313, 64
          %s315 = scalar_lea.vmem [#allocation2], %s314
          %s316 = smul.addr %s18, 8
          %s317 = scalar_lea.vmem %s0, %s316
          // Predicated region
          $region53: #{_tsmixer_forward_impl.1} parent=51 // pred_check
            _
          $region54: #{_tsmixer_forward_impl.1} parent=51 // pred_check_branch
            %319 = sbr.rel (0) target = $region56
          $region55: #{_tsmixer_forward_impl.1} parent=51 // pred_region
            // Predicated region
            $region57: #{_tsmixer_forward_impl.1} parent=55 // pred_check
              _
            $region58: #{_tsmixer_forward_impl.1} parent=55 // pred_check_branch
              %321 = sbr.rel (0) target = $region60
            $region59: #{_tsmixer_forward_impl.1} parent=55 // pred_region
              // Predicated region
              $region72: #{_tsmixer_forward_impl.1} parent=59 // pred_check
                _
              $region73: #{_tsmixer_forward_impl.1} parent=59 // pred_check_branch
                %351 = sbr.rel (0) target = $region75
              $region74: #{_tsmixer_forward_impl.1} parent=59 // pred_region
                loop: start=0, step=1, limit=1
                $region76: #{_tsmixer_forward_impl.1} parent=74 // loop_pre_header
                  _
                $region77: #{_tsmixer_forward_impl.1} parent=74 // loop_header
                  %s353 = sphi 0, %s357
                  %p354 = scmp.ge.s32.totalorder %s353, 1
                  %s358 = sphi %s317, %s317
                  %s359 = sphi %s315, %s315
                $region78: #{_tsmixer_forward_impl.1} parent=74 // loop_header_branch
                  %356 = sbr.rel (%p354) target = $region82
                $region79: #{_tsmixer_forward_impl.1} parent=74 // loop_body
                  %v360 = vld [vmem:[%s358] sm:$0xff]
                  %361 = vst [vmem:[%s359] sm:$0xff] %v360
                  %v362 = vld [vmem:[%s358 + $0x10] sm:$0xff]
                  %363 = vst [vmem:[%s359 + $0x8] sm:$0xff] %v362
                  %v364 = vld [vmem:[%s358 + $0x20] sm:$0xff]
                  %365 = vst [vmem:[%s359 + $0x10] sm:$0xff] %v364
                  %v366 = vld [vmem:[%s358 + $0x30] sm:$0xff]
                  %367 = vst [vmem:[%s359 + $0x18] sm:$0xff] %v366
                  %v368 = vld [vmem:[%s358 + $0x40] sm:$0xff]
                  %369 = vst [vmem:[%s359 + $0x20] sm:$0xff] %v368
                  %v370 = vld [vmem:[%s358 + $0x50] sm:$0xff]
                  %371 = vst [vmem:[%s359 + $0x28] sm:$0xff] %v370
                  %v372 = vld [vmem:[%s358 + $0x60] sm:$0xff]
                  %373 = vst [vmem:[%s359 + $0x30] sm:$0xff] %v372
                  %v374 = vld [vmem:[%s358 + $0x70] sm:$0xff]
                  %375 = vst [vmem:[%s359 + $0x38] sm:$0xff] %v374
                $region80: #{_tsmixer_forward_impl.1} parent=74 // loop_footer
                  %s357 = sadd.s32 1, %s353
                $region81: #{_tsmixer_forward_impl.1} parent=74 // loop_footer_branch
                  %352 = sbr.rel target = $region77
                $region82: #{_tsmixer_forward_impl.1} parent=74 // loop_exit
                  _
              $region75: #{_tsmixer_forward_impl.1} parent=59 // pred_fallthru
                _
              // Predicated region
              $region83: #{_tsmixer_forward_impl.1} parent=59 // pred_check
                _
              $region84: #{_tsmixer_forward_impl.1} parent=59 // pred_check_branch
                %377 = sbr.rel target = $region86
              $region85: #{_tsmixer_forward_impl.1} parent=59 // pred_region
                _
              $region86: #{_tsmixer_forward_impl.1} parent=59 // pred_fallthru
                _
            $region60: #{_tsmixer_forward_impl.1} parent=55 // pred_fallthru
              _
            // Predicated region
            $region61: #{_tsmixer_forward_impl.1} parent=55 // pred_check
              _
            $region62: #{_tsmixer_forward_impl.1} parent=55 // pred_check_branch
              %323 = sbr.rel target = $region64
            $region63: #{_tsmixer_forward_impl.1} parent=55 // pred_region
              %s325 = ssub.s32 256, 1
              loop: start=0, step=1, limit=1
              $region65: #{_tsmixer_forward_impl.1} parent=63 // loop_pre_header
                _
              $region66: #{_tsmixer_forward_impl.1} parent=63 // loop_header
                %s327 = sphi 0, %s331
                %p328 = scmp.ge.s32.totalorder %s327, 1
                %s332 = sphi %s317, %s317
                %s333 = sphi %s315, %s315
              $region67: #{_tsmixer_forward_impl.1} parent=63 // loop_header_branch
                %330 = sbr.rel (%p328) target = $region71
              $region68: #{_tsmixer_forward_impl.1} parent=63 // loop_body
                %v334 = vld [vmem:[%s332] sm:%s325]
                %335 = vst [vmem:[%s333] sm:%s325] %v334
                %v336 = vld [vmem:[%s332 + $0x10] sm:%s325]
                %337 = vst [vmem:[%s333 + $0x8] sm:%s325] %v336
                %v338 = vld [vmem:[%s332 + $0x20] sm:%s325]
                %339 = vst [vmem:[%s333 + $0x10] sm:%s325] %v338
                %v340 = vld [vmem:[%s332 + $0x30] sm:%s325]
                %341 = vst [vmem:[%s333 + $0x18] sm:%s325] %v340
                %v342 = vld [vmem:[%s332 + $0x40] sm:%s325]
                %343 = vst [vmem:[%s333 + $0x20] sm:%s325] %v342
                %v344 = vld [vmem:[%s332 + $0x50] sm:%s325]
                %345 = vst [vmem:[%s333 + $0x28] sm:%s325] %v344
                %v346 = vld [vmem:[%s332 + $0x60] sm:%s325]
                %347 = vst [vmem:[%s333 + $0x30] sm:%s325] %v346
                %v348 = vld [vmem:[%s332 + $0x70] sm:%s325]
                %349 = vst [vmem:[%s333 + $0x38] sm:%s325] %v348
              $region69: #{_tsmixer_forward_impl.1} parent=63 // loop_footer
                %s331 = sadd.s32 1, %s327
              $region70: #{_tsmixer_forward_impl.1} parent=63 // loop_footer_branch
                %326 = sbr.rel target = $region66
              $region71: #{_tsmixer_forward_impl.1} parent=63 // loop_exit
                _
            $region64: #{_tsmixer_forward_impl.1} parent=55 // pred_fallthru
              _
          $region56: #{_tsmixer_forward_impl.1} parent=51 // pred_fallthru
            _
          %378 = vnop
        $region52: #{_tsmixer_forward_impl.1} parent=47 // pred_fallthru
          _
      $region48: #{_tsmixer_forward_impl.1} parent=5 // pred_fallthru
        _
      %p379 = scmp.le.s32.totalorder 1, %s18
      %p380 = scmp.lt.s32.totalorder %s18, 3
      %p381 = pnand %p379, %p380
      %p382 = pneg %p381
      // Predicated region
      $region87: #{_tsmixer_forward_impl.1} parent=5 // pred_check
        _
      $region88: #{_tsmixer_forward_impl.1} parent=5 // pred_check_branch
        %384 = sbr.rel (%p381) target = $region90
      $region89: #{_tsmixer_forward_impl.1} parent=5 // pred_region
        %s385 = ssub.s32 %s18, 1
        %s386 = sand.u32 %s31, 1
        %s387 = sand.u32 %s31, 1
        %s388 = smul.addr %s387, 64
        %s389 = scalar_lea.vmem [#allocation2], %s388
        // Predicated region
        $region91: #{_tsmixer_forward_impl.1} parent=89 // pred_check
          %p390 = pneg %p44
        $region92: #{_tsmixer_forward_impl.1} parent=89 // pred_check_branch
          %392 = sbr.rel (%p390) target = $region94
        $region93: #{_tsmixer_forward_impl.1} parent=89 // pred_region
          _
        $region94: #{_tsmixer_forward_impl.1} parent=89 // pred_fallthru
          _
        // Predicated region
        $region95: #{_tsmixer_forward_impl.1} parent=89 // pred_check
          %p393 = pneg %p107
        $region96: #{_tsmixer_forward_impl.1} parent=89 // pred_check_branch
          %395 = sbr.rel (%p393) target = $region98
        $region97: #{_tsmixer_forward_impl.1} parent=89 // pred_region
          %397 = dma.done [#allocation4], 16
        $region98: #{_tsmixer_forward_impl.1} parent=89 // pred_fallthru
          _
        // Predicated region
        $region99: #{_tsmixer_forward_impl.1} parent=89 // pred_check
          %p398 = pneg %p128
        $region100: #{_tsmixer_forward_impl.1} parent=89 // pred_check_branch
          %400 = sbr.rel (%p398) target = $region102
        $region101: #{_tsmixer_forward_impl.1} parent=89 // pred_region
          %402 = dma.done [#allocation6], 16
        $region102: #{_tsmixer_forward_impl.1} parent=89 // pred_fallthru
          _
        // Predicated region
        $region103: #{_tsmixer_forward_impl.1} parent=89 // pred_check
          %p403 = pneg %p149
        $region104: #{_tsmixer_forward_impl.1} parent=89 // pred_check_branch
          %405 = sbr.rel (%p403) target = $region106
        $region105: #{_tsmixer_forward_impl.1} parent=89 // pred_region
          %407 = dma.done [#allocation6], 16
        $region106: #{_tsmixer_forward_impl.1} parent=89 // pred_fallthru
          _
        // Predicated region
        $region107: #{_tsmixer_forward_impl.1} parent=89 // pred_check
          %p408 = pneg %p170
        $region108: #{_tsmixer_forward_impl.1} parent=89 // pred_check_branch
          %410 = sbr.rel (%p408) target = $region110
        $region109: #{_tsmixer_forward_impl.1} parent=89 // pred_region
          %412 = dma.done [#allocation9], 16
        $region110: #{_tsmixer_forward_impl.1} parent=89 // pred_fallthru
          _
        %413 = sfence
        %s414 = sand.u32 %s31, 1
        %s415 = sand.u32 %s31, 1
        %s416 = smul.addr %s415, 64
        %s417 = scalar_lea.vmem [#allocation2], %s416
        %p418 = pneg %p44
        %p419 = pneg %p41
        %p420 = pneg %p65
        %p421 = pneg %p62
        %p422 = pneg %p86
        %p423 = pneg %p83
        %p424 = pneg %p107
        %p425 = pneg %p104
        %p426 = pneg %p128
        %p427 = pneg %p125
        %p428 = pneg %p149
        %p429 = pneg %p146
        %p430 = pneg %p170
        %p431 = pneg %p167
        %p432 = pneg %p191
        %p433 = pneg %p188
        %p434 = pneg %p212
        %p435 = pneg %p209
        %p436 = pneg %p238
        %p437 = pneg %p235
        %s438 = sand.u32 %s225, 1
        %s439 = sand.u32 %s225, 1
        %s440 = smul.addr %s439, 32
        %s441 = scalar_lea.vmem [#allocation10], %s440
        %v442 = vld [vmem:[%s389] sm:$0xff]
        %v443 = vld [vmem:[%s389 + $0x8] sm:$0xff]
        %v444 = vld [vmem:[%s389 + $0x10] sm:$0xff]
        %v445 = vld [vmem:[%s389 + $0x18] sm:$0xff]
        %v446 = vld [vmem:[%s389 + $0x20] sm:$0xff]
        %v447 = vld [vmem:[%s389 + $0x28] sm:$0xff]
        %v448 = vld [vmem:[%s389 + $0x30] sm:$0xff]
        %v449 = vld [vmem:[%s389 + $0x38] sm:$0xff]
        %v450 = vld [vmem:[%s1] sm:$0xff]
        %v451 = vld [vmem:[%s1 + $0x8] sm:$0xff]
        %v452 = vld [vmem:[%s1 + $0x10] sm:$0xff]
        %v453 = vld [vmem:[%s1 + $0x18] sm:$0xff]
        %v454 = vld [vmem:[%s1 + $0x20] sm:$0xff]
        %v455 = vld [vmem:[%s1 + $0x28] sm:$0xff]
        %v456 = vld [vmem:[%s1 + $0x30] sm:$0xff]
        %v457 = vld [vmem:[%s1 + $0x38] sm:$0xff]
        %v458 = vld [vmem:[%s2] sm:$0xff]
        %v459 = vld [vmem:[%s2 + $0x8] sm:$0xff]
        %v460 = vld [vmem:[%s2 + $0x10] sm:$0xff]
        %v461 = vld [vmem:[%s2 + $0x18] sm:$0xff]
        %v462 = vld [vmem:[%s2 + $0x20] sm:$0xff]
        %v463 = vld [vmem:[%s2 + $0x28] sm:$0xff]
        %v464 = vld [vmem:[%s2 + $0x30] sm:$0xff]
        %v465 = vld [vmem:[%s2 + $0x38] sm:$0xff]
        %467 = vset.pattern.permute.xlu0 0
        %468 = vperm.xlu0 %467, %v458
        %v469 = vpop.permute.xlu0 %468
        %472 = vset.pattern.permute.xlu0 0
        %473 = vperm.xlu0 %472, %v459
        %v474 = vpop.permute.xlu0 %473
        %477 = vset.pattern.permute.xlu0 0
        %478 = vperm.xlu0 %477, %v460
        %v479 = vpop.permute.xlu0 %478
        %482 = vset.pattern.permute.xlu0 0
        %483 = vperm.xlu0 %482, %v461
        %v484 = vpop.permute.xlu0 %483
        %487 = vset.pattern.permute.xlu0 0
        %488 = vperm.xlu0 %487, %v462
        %v489 = vpop.permute.xlu0 %488
        %492 = vset.pattern.permute.xlu0 0
        %493 = vperm.xlu0 %492, %v463
        %v494 = vpop.permute.xlu0 %493
        %497 = vset.pattern.permute.xlu0 0
        %498 = vperm.xlu0 %497, %v464
        %v499 = vpop.permute.xlu0 %498
        %502 = vset.pattern.permute.xlu0 0
        %503 = vperm.xlu0 %502, %v465
        %v504 = vpop.permute.xlu0 %503
        %vm506 = vcmask 523264
        %v508 = vsel %vm506, %v450, 0
        %v511 = vsel %vm506, %v451, 0
        %v514 = vsel %vm506, %v452, 0
        %v517 = vsel %vm506, %v453, 0
        %v520 = vsel %vm506, %v454, 0
        %v523 = vsel %vm506, %v455, 0
        %v526 = vsel %vm506, %v456, 0
        %v529 = vsel %vm506, %v457, 0
        %531 = vmatpush.msra.mxu0 0.0
        %532 = vmatpush.msra.mxu0 0.0
        %533 = vmatpush.msra.mxu0 0.0
        %534 = vmatpush.msra.mxu0 0.0
        %535 = vmatpush.msra.mxu0 0.0
        %536 = vmatpush.msra.mxu0 0.0
        %537 = vmatpush.msra.mxu0 0.0
        %538 = vmatpush.msra.mxu0 0.0
        %539 = vmatpush.msra.mxu0 %v449
        %540 = vmatpush.msra.mxu0 %v448
        %541 = vmatpush.msra.mxu0 %v447
        %542 = vmatpush.msra.mxu0 %v446
        %543 = vmatpush.msra.mxu0 %v445
        %544 = vmatpush.msra.mxu0 %v444
        %545 = vmatpush.msra.mxu0 %v443
        %546 = vmatpush.msra.mxu0 %v442
        %547 = vmatmul.f32.gmra.mxu0 %v508
        %v548 = vpop.f32.mrf.mxu0
        %v549 = vadd.f32 %v469, %v548
        %550 = vmatmul.f32.gmra.mxu0 %v511
        %v551 = vpop.f32.mrf.mxu0
        %v552 = vadd.f32 %v474, %v551
        %553 = vmatmul.f32.gmra.mxu0 %v514
        %v554 = vpop.f32.mrf.mxu0
        %v555 = vadd.f32 %v479, %v554
        %556 = vmatmul.f32.gmra.mxu0 %v517
        %v557 = vpop.f32.mrf.mxu0
        %v558 = vadd.f32 %v484, %v557
        %559 = vmatmul.f32.gmra.mxu0 %v520
        %v560 = vpop.f32.mrf.mxu0
        %v561 = vadd.f32 %v489, %v560
        %562 = vmatmul.f32.gmra.mxu0 %v523
        %v563 = vpop.f32.mrf.mxu0
        %v564 = vadd.f32 %v494, %v563
        %565 = vmatmul.f32.gmra.mxu0 %v526
        %v566 = vpop.f32.mrf.mxu0
        %v567 = vadd.f32 %v499, %v566
        %568 = vmatmul.f32.gmra.mxu0 %v529
        %v569 = vpop.f32.mrf.mxu0
        %v570 = vadd.f32 %v504, %v569
        %571 = vdwg.mxu0
        %v572 = vmax.f32 %v549, 0.0
        %v573 = vmax.f32 %v552, 0.0
        %v574 = vmax.f32 %v555, 0.0
        %v575 = vmax.f32 %v558, 0.0
        %v576 = vmax.f32 %v561, 0.0
        %v577 = vmax.f32 %v564, 0.0
        %v578 = vmax.f32 %v567, 0.0
        %v579 = vmax.f32 %v570, 0.0
        %v580 = vadd.f32 %v442, %v572
        %v581 = vadd.f32 %v443, %v573
        %v582 = vadd.f32 %v444, %v574
        %v583 = vadd.f32 %v445, %v575
        %v584 = vadd.f32 %v446, %v576
        %v585 = vadd.f32 %v447, %v577
        %v586 = vadd.f32 %v448, %v578
        %v587 = vadd.f32 %v449, %v579
        %s588 = sld [smem:[#allocation3]]
        %v589 = vstv %s588
        %v590 = vmul.f32 %v589, %v580
        %v591 = vmul.f32 %v589, %v581
        %v592 = vmul.f32 %v589, %v582
        %v593 = vmul.f32 %v589, %v583
        %v594 = vmul.f32 %v589, %v584
        %v595 = vmul.f32 %v589, %v585
        %v596 = vmul.f32 %v589, %v586
        %v597 = vmul.f32 %v589, %v587
        %s598 = sld [smem:[#allocation5]]
        %v599 = vstv %s598
        %v600 = vadd.f32 %v590, %v599
        %v601 = vadd.f32 %v591, %v599
        %v602 = vadd.f32 %v592, %v599
        %v603 = vadd.f32 %v593, %v599
        %v604 = vadd.f32 %v594, %v599
        %v605 = vadd.f32 %v595, %v599
        %v606 = vadd.f32 %v596, %v599
        %v607 = vadd.f32 %v597, %v599
        %v608 = vmax.f32 %v600, 0.0
        %v609 = vmax.f32 %v601, 0.0
        %v610 = vmax.f32 %v602, 0.0
        %v611 = vmax.f32 %v603, 0.0
        %v612 = vmax.f32 %v604, 0.0
        %v613 = vmax.f32 %v605, 0.0
        %v614 = vmax.f32 %v606, 0.0
        %v615 = vmax.f32 %v607, 0.0
        %s616 = sld [smem:[#allocation7]]
        %v617 = vstv %s616
        %v618 = vmul.f32 %v617, %v608
        %v619 = vmul.f32 %v617, %v609
        %v620 = vmul.f32 %v617, %v610
        %v621 = vmul.f32 %v617, %v611
        %v622 = vmul.f32 %v617, %v612
        %v623 = vmul.f32 %v617, %v613
        %v624 = vmul.f32 %v617, %v614
        %v625 = vmul.f32 %v617, %v615
        %v626 = vadd.f32 %v618, 0.0
        %v627 = vadd.f32 %v619, 0.0
        %v628 = vadd.f32 %v620, 0.0
        %v629 = vadd.f32 %v621, 0.0
        %v630 = vadd.f32 %v622, 0.0
        %v631 = vadd.f32 %v623, 0.0
        %v632 = vadd.f32 %v624, 0.0
        %v633 = vadd.f32 %v625, 0.0
        %s634 = sld [smem:[#allocation3 + $0x1]]
        %v635 = vstv %s634
        %v636 = vmul.f32 %v635, %v580
        %v637 = vmul.f32 %v635, %v581
        %v638 = vmul.f32 %v635, %v582
        %v639 = vmul.f32 %v635, %v583
        %v640 = vmul.f32 %v635, %v584
        %v641 = vmul.f32 %v635, %v585
        %v642 = vmul.f32 %v635, %v586
        %v643 = vmul.f32 %v635, %v587
        %s644 = sld [smem:[#allocation5 + $0x1]]
        %v645 = vstv %s644
        %v646 = vadd.f32 %v636, %v645
        %v647 = vadd.f32 %v637, %v645
        %v648 = vadd.f32 %v638, %v645
        %v649 = vadd.f32 %v639, %v645
        %v650 = vadd.f32 %v640, %v645
        %v651 = vadd.f32 %v641, %v645
        %v652 = vadd.f32 %v642, %v645
        %v653 = vadd.f32 %v643, %v645
        %v654 = vmax.f32 %v646, 0.0
        %v655 = vmax.f32 %v647, 0.0
        %v656 = vmax.f32 %v648, 0.0
        %v657 = vmax.f32 %v649, 0.0
        %v658 = vmax.f32 %v650, 0.0
        %v659 = vmax.f32 %v651, 0.0
        %v660 = vmax.f32 %v652, 0.0
        %v661 = vmax.f32 %v653, 0.0
        %s662 = sld [smem:[#allocation7 + $0x1]]
        %v663 = vstv %s662
        %v664 = vmul.f32 %v663, %v654
        %v665 = vmul.f32 %v663, %v655
        %v666 = vmul.f32 %v663, %v656
        %v667 = vmul.f32 %v663, %v657
        %v668 = vmul.f32 %v663, %v658
        %v669 = vmul.f32 %v663, %v659
        %v670 = vmul.f32 %v663, %v660
        %v671 = vmul.f32 %v663, %v661
        %v672 = vadd.f32 %v626, %v664
        %v673 = vadd.f32 %v627, %v665
        %v674 = vadd.f32 %v628, %v666
        %v675 = vadd.f32 %v629, %v667
        %v676 = vadd.f32 %v630, %v668
        %v677 = vadd.f32 %v631, %v669
        %v678 = vadd.f32 %v632, %v670
        %v679 = vadd.f32 %v633, %v671
        %s680 = sld [smem:[#allocation3 + $0x2]]
        %v681 = vstv %s680
        %v682 = vmul.f32 %v681, %v580
        %v683 = vmul.f32 %v681, %v581
        %v684 = vmul.f32 %v681, %v582
        %v685 = vmul.f32 %v681, %v583
        %v686 = vmul.f32 %v681, %v584
        %v687 = vmul.f32 %v681, %v585
        %v688 = vmul.f32 %v681, %v586
        %v689 = vmul.f32 %v681, %v587
        %s690 = sld [smem:[#allocation5 + $0x2]]
        %v691 = vstv %s690
        %v692 = vadd.f32 %v682, %v691
        %v693 = vadd.f32 %v683, %v691
        %v694 = vadd.f32 %v684, %v691
        %v695 = vadd.f32 %v685, %v691
        %v696 = vadd.f32 %v686, %v691
        %v697 = vadd.f32 %v687, %v691
        %v698 = vadd.f32 %v688, %v691
        %v699 = vadd.f32 %v689, %v691
        %v700 = vmax.f32 %v692, 0.0
        %v701 = vmax.f32 %v693, 0.0
        %v702 = vmax.f32 %v694, 0.0
        %v703 = vmax.f32 %v695, 0.0
        %v704 = vmax.f32 %v696, 0.0
        %v705 = vmax.f32 %v697, 0.0
        %v706 = vmax.f32 %v698, 0.0
        %v707 = vmax.f32 %v699, 0.0
        %s708 = sld [smem:[#allocation7 + $0x2]]
        %v709 = vstv %s708
        %v710 = vmul.f32 %v709, %v700
        %v711 = vmul.f32 %v709, %v701
        %v712 = vmul.f32 %v709, %v702
        %v713 = vmul.f32 %v709, %v703
        %v714 = vmul.f32 %v709, %v704
        %v715 = vmul.f32 %v709, %v705
        %v716 = vmul.f32 %v709, %v706
        %v717 = vmul.f32 %v709, %v707
        %v718 = vadd.f32 %v672, %v710
        %v719 = vadd.f32 %v673, %v711
        %v720 = vadd.f32 %v674, %v712
        %v721 = vadd.f32 %v675, %v713
        %v722 = vadd.f32 %v676, %v714
        %v723 = vadd.f32 %v677, %v715
        %v724 = vadd.f32 %v678, %v716
        %v725 = vadd.f32 %v679, %v717
        %s726 = sld [smem:[#allocation3 + $0x3]]
        %v727 = vstv %s726
        %v728 = vmul.f32 %v727, %v580
        %v729 = vmul.f32 %v727, %v581
        %v730 = vmul.f32 %v727, %v582
        %v731 = vmul.f32 %v727, %v583
        %v732 = vmul.f32 %v727, %v584
        %v733 = vmul.f32 %v727, %v585
        %v734 = vmul.f32 %v727, %v586
        %v735 = vmul.f32 %v727, %v587
        %s736 = sld [smem:[#allocation5 + $0x3]]
        %v737 = vstv %s736
        %v738 = vadd.f32 %v728, %v737
        %v739 = vadd.f32 %v729, %v737
        %v740 = vadd.f32 %v730, %v737
        %v741 = vadd.f32 %v731, %v737
        %v742 = vadd.f32 %v732, %v737
        %v743 = vadd.f32 %v733, %v737
        %v744 = vadd.f32 %v734, %v737
        %v745 = vadd.f32 %v735, %v737
        %v746 = vmax.f32 %v738, 0.0
        %v747 = vmax.f32 %v739, 0.0
        %v748 = vmax.f32 %v740, 0.0
        %v749 = vmax.f32 %v741, 0.0
        %v750 = vmax.f32 %v742, 0.0
        %v751 = vmax.f32 %v743, 0.0
        %v752 = vmax.f32 %v744, 0.0
        %v753 = vmax.f32 %v745, 0.0
        %s754 = sld [smem:[#allocation7 + $0x3]]
        %v755 = vstv %s754
        %v756 = vmul.f32 %v755, %v746
        %v757 = vmul.f32 %v755, %v747
        %v758 = vmul.f32 %v755, %v748
        %v759 = vmul.f32 %v755, %v749
        %v760 = vmul.f32 %v755, %v750
        %v761 = vmul.f32 %v755, %v751
        %v762 = vmul.f32 %v755, %v752
        %v763 = vmul.f32 %v755, %v753
        %v764 = vadd.f32 %v718, %v756
        %v765 = vadd.f32 %v719, %v757
        %v766 = vadd.f32 %v720, %v758
        %v767 = vadd.f32 %v721, %v759
        %v768 = vadd.f32 %v722, %v760
        %v769 = vadd.f32 %v723, %v761
        %v770 = vadd.f32 %v724, %v762
        %v771 = vadd.f32 %v725, %v763
        %s772 = sld [smem:[#allocation3 + $0x4]]
        %v773 = vstv %s772
        %v774 = vmul.f32 %v773, %v580
        %v775 = vmul.f32 %v773, %v581
        %v776 = vmul.f32 %v773, %v582
        %v777 = vmul.f32 %v773, %v583
        %v778 = vmul.f32 %v773, %v584
        %v779 = vmul.f32 %v773, %v585
        %v780 = vmul.f32 %v773, %v586
        %v781 = vmul.f32 %v773, %v587
        %s782 = sld [smem:[#allocation5 + $0x4]]
        %v783 = vstv %s782
        %v784 = vadd.f32 %v774, %v783
        %v785 = vadd.f32 %v775, %v783
        %v786 = vadd.f32 %v776, %v783
        %v787 = vadd.f32 %v777, %v783
        %v788 = vadd.f32 %v778, %v783
        %v789 = vadd.f32 %v779, %v783
        %v790 = vadd.f32 %v780, %v783
        %v791 = vadd.f32 %v781, %v783
        %v792 = vmax.f32 %v784, 0.0
        %v793 = vmax.f32 %v785, 0.0
        %v794 = vmax.f32 %v786, 0.0
        %v795 = vmax.f32 %v787, 0.0
        %v796 = vmax.f32 %v788, 0.0
        %v797 = vmax.f32 %v789, 0.0
        %v798 = vmax.f32 %v790, 0.0
        %v799 = vmax.f32 %v791, 0.0
        %s800 = sld [smem:[#allocation7 + $0x4]]
        %v801 = vstv %s800
        %v802 = vmul.f32 %v801, %v792
        %v803 = vmul.f32 %v801, %v793
        %v804 = vmul.f32 %v801, %v794
        %v805 = vmul.f32 %v801, %v795
        %v806 = vmul.f32 %v801, %v796
        %v807 = vmul.f32 %v801, %v797
        %v808 = vmul.f32 %v801, %v798
        %v809 = vmul.f32 %v801, %v799
        %v810 = vadd.f32 %v764, %v802
        %v811 = vadd.f32 %v765, %v803
        %v812 = vadd.f32 %v766, %v804
        %v813 = vadd.f32 %v767, %v805
        %v814 = vadd.f32 %v768, %v806
        %v815 = vadd.f32 %v769, %v807
        %v816 = vadd.f32 %v770, %v808
        %v817 = vadd.f32 %v771, %v809
        %s818 = sld [smem:[#allocation3 + $0x5]]
        %v819 = vstv %s818
        %v820 = vmul.f32 %v819, %v580
        %v821 = vmul.f32 %v819, %v581
        %v822 = vmul.f32 %v819, %v582
        %v823 = vmul.f32 %v819, %v583
        %v824 = vmul.f32 %v819, %v584
        %v825 = vmul.f32 %v819, %v585
        %v826 = vmul.f32 %v819, %v586
        %v827 = vmul.f32 %v819, %v587
        %s828 = sld [smem:[#allocation5 + $0x5]]
        %v829 = vstv %s828
        %v830 = vadd.f32 %v820, %v829
        %v831 = vadd.f32 %v821, %v829
        %v832 = vadd.f32 %v822, %v829
        %v833 = vadd.f32 %v823, %v829
        %v834 = vadd.f32 %v824, %v829
        %v835 = vadd.f32 %v825, %v829
        %v836 = vadd.f32 %v826, %v829
        %v837 = vadd.f32 %v827, %v829
        %v838 = vmax.f32 %v830, 0.0
        %v839 = vmax.f32 %v831, 0.0
        %v840 = vmax.f32 %v832, 0.0
        %v841 = vmax.f32 %v833, 0.0
        %v842 = vmax.f32 %v834, 0.0
        %v843 = vmax.f32 %v835, 0.0
        %v844 = vmax.f32 %v836, 0.0
        %v845 = vmax.f32 %v837, 0.0
        %s846 = sld [smem:[#allocation7 + $0x5]]
        %v847 = vstv %s846
        %v848 = vmul.f32 %v847, %v838
        %v849 = vmul.f32 %v847, %v839
        %v850 = vmul.f32 %v847, %v840
        %v851 = vmul.f32 %v847, %v841
        %v852 = vmul.f32 %v847, %v842
        %v853 = vmul.f32 %v847, %v843
        %v854 = vmul.f32 %v847, %v844
        %v855 = vmul.f32 %v847, %v845
        %v856 = vadd.f32 %v810, %v848
        %v857 = vadd.f32 %v811, %v849
        %v858 = vadd.f32 %v812, %v850
        %v859 = vadd.f32 %v813, %v851
        %v860 = vadd.f32 %v814, %v852
        %v861 = vadd.f32 %v815, %v853
        %v862 = vadd.f32 %v816, %v854
        %v863 = vadd.f32 %v817, %v855
        %s864 = sld [smem:[#allocation3 + $0x6]]
        %v865 = vstv %s864
        %v866 = vmul.f32 %v865, %v580
        %v867 = vmul.f32 %v865, %v581
        %v868 = vmul.f32 %v865, %v582
        %v869 = vmul.f32 %v865, %v583
        %v870 = vmul.f32 %v865, %v584
        %v871 = vmul.f32 %v865, %v585
        %v872 = vmul.f32 %v865, %v586
        %v873 = vmul.f32 %v865, %v587
        %s874 = sld [smem:[#allocation5 + $0x6]]
        %v875 = vstv %s874
        %v876 = vadd.f32 %v866, %v875
        %v877 = vadd.f32 %v867, %v875
        %v878 = vadd.f32 %v868, %v875
        %v879 = vadd.f32 %v869, %v875
        %v880 = vadd.f32 %v870, %v875
        %v881 = vadd.f32 %v871, %v875
        %v882 = vadd.f32 %v872, %v875
        %v883 = vadd.f32 %v873, %v875
        %v884 = vmax.f32 %v876, 0.0
        %v885 = vmax.f32 %v877, 0.0
        %v886 = vmax.f32 %v878, 0.0
        %v887 = vmax.f32 %v879, 0.0
        %v888 = vmax.f32 %v880, 0.0
        %v889 = vmax.f32 %v881, 0.0
        %v890 = vmax.f32 %v882, 0.0
        %v891 = vmax.f32 %v883, 0.0
        %s892 = sld [smem:[#allocation7 + $0x6]]
        %v893 = vstv %s892
        %v894 = vmul.f32 %v893, %v884
        %v895 = vmul.f32 %v893, %v885
        %v896 = vmul.f32 %v893, %v886
        %v897 = vmul.f32 %v893, %v887
        %v898 = vmul.f32 %v893, %v888
        %v899 = vmul.f32 %v893, %v889
        %v900 = vmul.f32 %v893, %v890
        %v901 = vmul.f32 %v893, %v891
        %v902 = vadd.f32 %v856, %v894
        %v903 = vadd.f32 %v857, %v895
        %v904 = vadd.f32 %v858, %v896
        %v905 = vadd.f32 %v859, %v897
        %v906 = vadd.f32 %v860, %v898
        %v907 = vadd.f32 %v861, %v899
        %v908 = vadd.f32 %v862, %v900
        %v909 = vadd.f32 %v863, %v901
        %s910 = sld [smem:[#allocation3 + $0x7]]
        %v911 = vstv %s910
        %v912 = vmul.f32 %v911, %v580
        %v913 = vmul.f32 %v911, %v581
        %v914 = vmul.f32 %v911, %v582
        %v915 = vmul.f32 %v911, %v583
        %v916 = vmul.f32 %v911, %v584
        %v917 = vmul.f32 %v911, %v585
        %v918 = vmul.f32 %v911, %v586
        %v919 = vmul.f32 %v911, %v587
        %s920 = sld [smem:[#allocation5 + $0x7]]
        %v921 = vstv %s920
        %v922 = vadd.f32 %v912, %v921
        %v923 = vadd.f32 %v913, %v921
        %v924 = vadd.f32 %v914, %v921
        %v925 = vadd.f32 %v915, %v921
        %v926 = vadd.f32 %v916, %v921
        %v927 = vadd.f32 %v917, %v921
        %v928 = vadd.f32 %v918, %v921
        %v929 = vadd.f32 %v919, %v921
        %v930 = vmax.f32 %v922, 0.0
        %v931 = vmax.f32 %v923, 0.0
        %v932 = vmax.f32 %v924, 0.0
        %v933 = vmax.f32 %v925, 0.0
        %v934 = vmax.f32 %v926, 0.0
        %v935 = vmax.f32 %v927, 0.0
        %v936 = vmax.f32 %v928, 0.0
        %v937 = vmax.f32 %v929, 0.0
        %s938 = sld [smem:[#allocation7 + $0x7]]
        %v939 = vstv %s938
        %v940 = vmul.f32 %v939, %v930
        %v941 = vmul.f32 %v939, %v931
        %v942 = vmul.f32 %v939, %v932
        %v943 = vmul.f32 %v939, %v933
        %v944 = vmul.f32 %v939, %v934
        %v945 = vmul.f32 %v939, %v935
        %v946 = vmul.f32 %v939, %v936
        %v947 = vmul.f32 %v939, %v937
        %v948 = vadd.f32 %v902, %v940
        %v949 = vadd.f32 %v903, %v941
        %v950 = vadd.f32 %v904, %v942
        %v951 = vadd.f32 %v905, %v943
        %v952 = vadd.f32 %v906, %v944
        %v953 = vadd.f32 %v907, %v945
        %v954 = vadd.f32 %v908, %v946
        %v955 = vadd.f32 %v909, %v947
        %s956 = sld [smem:[#allocation3 + $0x8]]
        %v957 = vstv %s956
        %v958 = vmul.f32 %v957, %v580
        %v959 = vmul.f32 %v957, %v581
        %v960 = vmul.f32 %v957, %v582
        %v961 = vmul.f32 %v957, %v583
        %v962 = vmul.f32 %v957, %v584
        %v963 = vmul.f32 %v957, %v585
        %v964 = vmul.f32 %v957, %v586
        %v965 = vmul.f32 %v957, %v587
        %s966 = sld [smem:[#allocation5 + $0x8]]
        %v967 = vstv %s966
        %v968 = vadd.f32 %v958, %v967
        %v969 = vadd.f32 %v959, %v967
        %v970 = vadd.f32 %v960, %v967
        %v971 = vadd.f32 %v961, %v967
        %v972 = vadd.f32 %v962, %v967
        %v973 = vadd.f32 %v963, %v967
        %v974 = vadd.f32 %v964, %v967
        %v975 = vadd.f32 %v965, %v967
        %v976 = vmax.f32 %v968, 0.0
        %v977 = vmax.f32 %v969, 0.0
        %v978 = vmax.f32 %v970, 0.0
        %v979 = vmax.f32 %v971, 0.0
        %v980 = vmax.f32 %v972, 0.0
        %v981 = vmax.f32 %v973, 0.0
        %v982 = vmax.f32 %v974, 0.0
        %v983 = vmax.f32 %v975, 0.0
        %s984 = sld [smem:[#allocation7 + $0x8]]
        %v985 = vstv %s984
        %v986 = vmul.f32 %v985, %v976
        %v987 = vmul.f32 %v985, %v977
        %v988 = vmul.f32 %v985, %v978
        %v989 = vmul.f32 %v985, %v979
        %v990 = vmul.f32 %v985, %v980
        %v991 = vmul.f32 %v985, %v981
        %v992 = vmul.f32 %v985, %v982
        %v993 = vmul.f32 %v985, %v983
        %v994 = vadd.f32 %v948, %v986
        %v995 = vadd.f32 %v949, %v987
        %v996 = vadd.f32 %v950, %v988
        %v997 = vadd.f32 %v951, %v989
        %v998 = vadd.f32 %v952, %v990
        %v999 = vadd.f32 %v953, %v991
        %v1000 = vadd.f32 %v954, %v992
        %v1001 = vadd.f32 %v955, %v993
        %s1002 = sld [smem:[#allocation3 + $0x9]]
        %v1003 = vstv %s1002
        %v1004 = vmul.f32 %v1003, %v580
        %v1005 = vmul.f32 %v1003, %v581
        %v1006 = vmul.f32 %v1003, %v582
        %v1007 = vmul.f32 %v1003, %v583
        %v1008 = vmul.f32 %v1003, %v584
        %v1009 = vmul.f32 %v1003, %v585
        %v1010 = vmul.f32 %v1003, %v586
        %v1011 = vmul.f32 %v1003, %v587
        %s1012 = sld [smem:[#allocation5 + $0x9]]
        %v1013 = vstv %s1012
        %v1014 = vadd.f32 %v1004, %v1013
        %v1015 = vadd.f32 %v1005, %v1013
        %v1016 = vadd.f32 %v1006, %v1013
        %v1017 = vadd.f32 %v1007, %v1013
        %v1018 = vadd.f32 %v1008, %v1013
        %v1019 = vadd.f32 %v1009, %v1013
        %v1020 = vadd.f32 %v1010, %v1013
        %v1021 = vadd.f32 %v1011, %v1013
        %v1022 = vmax.f32 %v1014, 0.0
        %v1023 = vmax.f32 %v1015, 0.0
        %v1024 = vmax.f32 %v1016, 0.0
        %v1025 = vmax.f32 %v1017, 0.0
        %v1026 = vmax.f32 %v1018, 0.0
        %v1027 = vmax.f32 %v1019, 0.0
        %v1028 = vmax.f32 %v1020, 0.0
        %v1029 = vmax.f32 %v1021, 0.0
        %s1030 = sld [smem:[#allocation7 + $0x9]]
        %v1031 = vstv %s1030
        %v1032 = vmul.f32 %v1031, %v1022
        %v1033 = vmul.f32 %v1031, %v1023
        %v1034 = vmul.f32 %v1031, %v1024
        %v1035 = vmul.f32 %v1031, %v1025
        %v1036 = vmul.f32 %v1031, %v1026
        %v1037 = vmul.f32 %v1031, %v1027
        %v1038 = vmul.f32 %v1031, %v1028
        %v1039 = vmul.f32 %v1031, %v1029
        %v1040 = vadd.f32 %v994, %v1032
        %v1041 = vadd.f32 %v995, %v1033
        %v1042 = vadd.f32 %v996, %v1034
        %v1043 = vadd.f32 %v997, %v1035
        %v1044 = vadd.f32 %v998, %v1036
        %v1045 = vadd.f32 %v999, %v1037
        %v1046 = vadd.f32 %v1000, %v1038
        %v1047 = vadd.f32 %v1001, %v1039
        %s1048 = sld [smem:[#allocation3 + $0xa]]
        %v1049 = vstv %s1048
        %v1050 = vmul.f32 %v1049, %v580
        %v1051 = vmul.f32 %v1049, %v581
        %v1052 = vmul.f32 %v1049, %v582
        %v1053 = vmul.f32 %v1049, %v583
        %v1054 = vmul.f32 %v1049, %v584
        %v1055 = vmul.f32 %v1049, %v585
        %v1056 = vmul.f32 %v1049, %v586
        %v1057 = vmul.f32 %v1049, %v587
        %s1058 = sld [smem:[#allocation5 + $0xa]]
        %v1059 = vstv %s1058
        %v1060 = vadd.f32 %v1050, %v1059
        %v1061 = vadd.f32 %v1051, %v1059
        %v1062 = vadd.f32 %v1052, %v1059
        %v1063 = vadd.f32 %v1053, %v1059
        %v1064 = vadd.f32 %v1054, %v1059
        %v1065 = vadd.f32 %v1055, %v1059
        %v1066 = vadd.f32 %v1056, %v1059
        %v1067 = vadd.f32 %v1057, %v1059
        %v1068 = vmax.f32 %v1060, 0.0
        %v1069 = vmax.f32 %v1061, 0.0
        %v1070 = vmax.f32 %v1062, 0.0
        %v1071 = vmax.f32 %v1063, 0.0
        %v1072 = vmax.f32 %v1064, 0.0
        %v1073 = vmax.f32 %v1065, 0.0
        %v1074 = vmax.f32 %v1066, 0.0
        %v1075 = vmax.f32 %v1067, 0.0
        %s1076 = sld [smem:[#allocation7 + $0xa]]
        %v1077 = vstv %s1076
        %v1078 = vmul.f32 %v1077, %v1068
        %v1079 = vmul.f32 %v1077, %v1069
        %v1080 = vmul.f32 %v1077, %v1070
        %v1081 = vmul.f32 %v1077, %v1071
        %v1082 = vmul.f32 %v1077, %v1072
        %v1083 = vmul.f32 %v1077, %v1073
        %v1084 = vmul.f32 %v1077, %v1074
        %v1085 = vmul.f32 %v1077, %v1075
        %v1086 = vadd.f32 %v1040, %v1078
        %v1087 = vadd.f32 %v1041, %v1079
        %v1088 = vadd.f32 %v1042, %v1080
        %v1089 = vadd.f32 %v1043, %v1081
        %v1090 = vadd.f32 %v1044, %v1082
        %v1091 = vadd.f32 %v1045, %v1083
        %v1092 = vadd.f32 %v1046, %v1084
        %v1093 = vadd.f32 %v1047, %v1085
        %s1094 = sld [smem:[#allocation3 + $0xb]]
        %v1095 = vstv %s1094
        %v1096 = vmul.f32 %v1095, %v580
        %v1097 = vmul.f32 %v1095, %v581
        %v1098 = vmul.f32 %v1095, %v582
        %v1099 = vmul.f32 %v1095, %v583
        %v1100 = vmul.f32 %v1095, %v584
        %v1101 = vmul.f32 %v1095, %v585
        %v1102 = vmul.f32 %v1095, %v586
        %v1103 = vmul.f32 %v1095, %v587
        %s1104 = sld [smem:[#allocation5 + $0xb]]
        %v1105 = vstv %s1104
        %v1106 = vadd.f32 %v1096, %v1105
        %v1107 = vadd.f32 %v1097, %v1105
        %v1108 = vadd.f32 %v1098, %v1105
        %v1109 = vadd.f32 %v1099, %v1105
        %v1110 = vadd.f32 %v1100, %v1105
        %v1111 = vadd.f32 %v1101, %v1105
        %v1112 = vadd.f32 %v1102, %v1105
        %v1113 = vadd.f32 %v1103, %v1105
        %v1114 = vmax.f32 %v1106, 0.0
        %v1115 = vmax.f32 %v1107, 0.0
        %v1116 = vmax.f32 %v1108, 0.0
        %v1117 = vmax.f32 %v1109, 0.0
        %v1118 = vmax.f32 %v1110, 0.0
        %v1119 = vmax.f32 %v1111, 0.0
        %v1120 = vmax.f32 %v1112, 0.0
        %v1121 = vmax.f32 %v1113, 0.0
        %s1122 = sld [smem:[#allocation7 + $0xb]]
        %v1123 = vstv %s1122
        %v1124 = vmul.f32 %v1123, %v1114
        %v1125 = vmul.f32 %v1123, %v1115
        %v1126 = vmul.f32 %v1123, %v1116
        %v1127 = vmul.f32 %v1123, %v1117
        %v1128 = vmul.f32 %v1123, %v1118
        %v1129 = vmul.f32 %v1123, %v1119
        %v1130 = vmul.f32 %v1123, %v1120
        %v1131 = vmul.f32 %v1123, %v1121
        %v1132 = vadd.f32 %v1086, %v1124
        %v1133 = vadd.f32 %v1087, %v1125
        %v1134 = vadd.f32 %v1088, %v1126
        %v1135 = vadd.f32 %v1089, %v1127
        %v1136 = vadd.f32 %v1090, %v1128
        %v1137 = vadd.f32 %v1091, %v1129
        %v1138 = vadd.f32 %v1092, %v1130
        %v1139 = vadd.f32 %v1093, %v1131
        %s1140 = sld [smem:[#allocation3 + $0xc]]
        %v1141 = vstv %s1140
        %v1142 = vmul.f32 %v1141, %v580
        %v1143 = vmul.f32 %v1141, %v581
        %v1144 = vmul.f32 %v1141, %v582
        %v1145 = vmul.f32 %v1141, %v583
        %v1146 = vmul.f32 %v1141, %v584
        %v1147 = vmul.f32 %v1141, %v585
        %v1148 = vmul.f32 %v1141, %v586
        %v1149 = vmul.f32 %v1141, %v587
        %s1150 = sld [smem:[#allocation5 + $0xc]]
        %v1151 = vstv %s1150
        %v1152 = vadd.f32 %v1142, %v1151
        %v1153 = vadd.f32 %v1143, %v1151
        %v1154 = vadd.f32 %v1144, %v1151
        %v1155 = vadd.f32 %v1145, %v1151
        %v1156 = vadd.f32 %v1146, %v1151
        %v1157 = vadd.f32 %v1147, %v1151
        %v1158 = vadd.f32 %v1148, %v1151
        %v1159 = vadd.f32 %v1149, %v1151
        %v1160 = vmax.f32 %v1152, 0.0
        %v1161 = vmax.f32 %v1153, 0.0
        %v1162 = vmax.f32 %v1154, 0.0
        %v1163 = vmax.f32 %v1155, 0.0
        %v1164 = vmax.f32 %v1156, 0.0
        %v1165 = vmax.f32 %v1157, 0.0
        %v1166 = vmax.f32 %v1158, 0.0
        %v1167 = vmax.f32 %v1159, 0.0
        %s1168 = sld [smem:[#allocation7 + $0xc]]
        %v1169 = vstv %s1168
        %v1170 = vmul.f32 %v1169, %v1160
        %v1171 = vmul.f32 %v1169, %v1161
        %v1172 = vmul.f32 %v1169, %v1162
        %v1173 = vmul.f32 %v1169, %v1163
        %v1174 = vmul.f32 %v1169, %v1164
        %v1175 = vmul.f32 %v1169, %v1165
        %v1176 = vmul.f32 %v1169, %v1166
        %v1177 = vmul.f32 %v1169, %v1167
        %v1178 = vadd.f32 %v1132, %v1170
        %v1179 = vadd.f32 %v1133, %v1171
        %v1180 = vadd.f32 %v1134, %v1172
        %v1181 = vadd.f32 %v1135, %v1173
        %v1182 = vadd.f32 %v1136, %v1174
        %v1183 = vadd.f32 %v1137, %v1175
        %v1184 = vadd.f32 %v1138, %v1176
        %v1185 = vadd.f32 %v1139, %v1177
        %s1186 = sld [smem:[#allocation3 + $0xd]]
        %v1187 = vstv %s1186
        %v1188 = vmul.f32 %v1187, %v580
        %v1189 = vmul.f32 %v1187, %v581
        %v1190 = vmul.f32 %v1187, %v582
        %v1191 = vmul.f32 %v1187, %v583
        %v1192 = vmul.f32 %v1187, %v584
        %v1193 = vmul.f32 %v1187, %v585
        %v1194 = vmul.f32 %v1187, %v586
        %v1195 = vmul.f32 %v1187, %v587
        %s1196 = sld [smem:[#allocation5 + $0xd]]
        %v1197 = vstv %s1196
        %v1198 = vadd.f32 %v1188, %v1197
        %v1199 = vadd.f32 %v1189, %v1197
        %v1200 = vadd.f32 %v1190, %v1197
        %v1201 = vadd.f32 %v1191, %v1197
        %v1202 = vadd.f32 %v1192, %v1197
        %v1203 = vadd.f32 %v1193, %v1197
        %v1204 = vadd.f32 %v1194, %v1197
        %v1205 = vadd.f32 %v1195, %v1197
        %v1206 = vmax.f32 %v1198, 0.0
        %v1207 = vmax.f32 %v1199, 0.0
        %v1208 = vmax.f32 %v1200, 0.0
        %v1209 = vmax.f32 %v1201, 0.0
        %v1210 = vmax.f32 %v1202, 0.0
        %v1211 = vmax.f32 %v1203, 0.0
        %v1212 = vmax.f32 %v1204, 0.0
        %v1213 = vmax.f32 %v1205, 0.0
        %s1214 = sld [smem:[#allocation7 + $0xd]]
        %v1215 = vstv %s1214
        %v1216 = vmul.f32 %v1215, %v1206
        %v1217 = vmul.f32 %v1215, %v1207
        %v1218 = vmul.f32 %v1215, %v1208
        %v1219 = vmul.f32 %v1215, %v1209
        %v1220 = vmul.f32 %v1215, %v1210
        %v1221 = vmul.f32 %v1215, %v1211
        %v1222 = vmul.f32 %v1215, %v1212
        %v1223 = vmul.f32 %v1215, %v1213
        %v1224 = vadd.f32 %v1178, %v1216
        %v1225 = vadd.f32 %v1179, %v1217
        %v1226 = vadd.f32 %v1180, %v1218
        %v1227 = vadd.f32 %v1181, %v1219
        %v1228 = vadd.f32 %v1182, %v1220
        %v1229 = vadd.f32 %v1183, %v1221
        %v1230 = vadd.f32 %v1184, %v1222
        %v1231 = vadd.f32 %v1185, %v1223
        %s1232 = sld [smem:[#allocation3 + $0xe]]
        %v1233 = vstv %s1232
        %v1234 = vmul.f32 %v1233, %v580
        %v1235 = vmul.f32 %v1233, %v581
        %v1236 = vmul.f32 %v1233, %v582
        %v1237 = vmul.f32 %v1233, %v583
        %v1238 = vmul.f32 %v1233, %v584
        %v1239 = vmul.f32 %v1233, %v585
        %v1240 = vmul.f32 %v1233, %v586
        %v1241 = vmul.f32 %v1233, %v587
        %s1242 = sld [smem:[#allocation5 + $0xe]]
        %v1243 = vstv %s1242
        %v1244 = vadd.f32 %v1234, %v1243
        %v1245 = vadd.f32 %v1235, %v1243
        %v1246 = vadd.f32 %v1236, %v1243
        %v1247 = vadd.f32 %v1237, %v1243
        %v1248 = vadd.f32 %v1238, %v1243
        %v1249 = vadd.f32 %v1239, %v1243
        %v1250 = vadd.f32 %v1240, %v1243
        %v1251 = vadd.f32 %v1241, %v1243
        %v1252 = vmax.f32 %v1244, 0.0
        %v1253 = vmax.f32 %v1245, 0.0
        %v1254 = vmax.f32 %v1246, 0.0
        %v1255 = vmax.f32 %v1247, 0.0
        %v1256 = vmax.f32 %v1248, 0.0
        %v1257 = vmax.f32 %v1249, 0.0
        %v1258 = vmax.f32 %v1250, 0.0
        %v1259 = vmax.f32 %v1251, 0.0
        %s1260 = sld [smem:[#allocation7 + $0xe]]
        %v1261 = vstv %s1260
        %v1262 = vmul.f32 %v1261, %v1252
        %v1263 = vmul.f32 %v1261, %v1253
        %v1264 = vmul.f32 %v1261, %v1254
        %v1265 = vmul.f32 %v1261, %v1255
        %v1266 = vmul.f32 %v1261, %v1256
        %v1267 = vmul.f32 %v1261, %v1257
        %v1268 = vmul.f32 %v1261, %v1258
        %v1269 = vmul.f32 %v1261, %v1259
        %v1270 = vadd.f32 %v1224, %v1262
        %v1271 = vadd.f32 %v1225, %v1263
        %v1272 = vadd.f32 %v1226, %v1264
        %v1273 = vadd.f32 %v1227, %v1265
        %v1274 = vadd.f32 %v1228, %v1266
        %v1275 = vadd.f32 %v1229, %v1267
        %v1276 = vadd.f32 %v1230, %v1268
        %v1277 = vadd.f32 %v1231, %v1269
        %s1278 = sld [smem:[#allocation3 + $0xf]]
        %v1279 = vstv %s1278
        %v1280 = vmul.f32 %v1279, %v580
        %v1281 = vmul.f32 %v1279, %v581
        %v1282 = vmul.f32 %v1279, %v582
        %v1283 = vmul.f32 %v1279, %v583
        %v1284 = vmul.f32 %v1279, %v584
        %v1285 = vmul.f32 %v1279, %v585
        %v1286 = vmul.f32 %v1279, %v586
        %v1287 = vmul.f32 %v1279, %v587
        %s1288 = sld [smem:[#allocation5 + $0xf]]
        %v1289 = vstv %s1288
        %v1290 = vadd.f32 %v1280, %v1289
        %v1291 = vadd.f32 %v1281, %v1289
        %v1292 = vadd.f32 %v1282, %v1289
        %v1293 = vadd.f32 %v1283, %v1289
        %v1294 = vadd.f32 %v1284, %v1289
        %v1295 = vadd.f32 %v1285, %v1289
        %v1296 = vadd.f32 %v1286, %v1289
        %v1297 = vadd.f32 %v1287, %v1289
        %v1298 = vmax.f32 %v1290, 0.0
        %v1299 = vmax.f32 %v1291, 0.0
        %v1300 = vmax.f32 %v1292, 0.0
        %v1301 = vmax.f32 %v1293, 0.0
        %v1302 = vmax.f32 %v1294, 0.0
        %v1303 = vmax.f32 %v1295, 0.0
        %v1304 = vmax.f32 %v1296, 0.0
        %v1305 = vmax.f32 %v1297, 0.0
        %s1306 = sld [smem:[#allocation7 + $0xf]]
        %v1307 = vstv %s1306
        %v1308 = vmul.f32 %v1307, %v1298
        %v1309 = vmul.f32 %v1307, %v1299
        %v1310 = vmul.f32 %v1307, %v1300
        %v1311 = vmul.f32 %v1307, %v1301
        %v1312 = vmul.f32 %v1307, %v1302
        %v1313 = vmul.f32 %v1307, %v1303
        %v1314 = vmul.f32 %v1307, %v1304
        %v1315 = vmul.f32 %v1307, %v1305
        %v1316 = vadd.f32 %v1270, %v1308
        %v1317 = vadd.f32 %v1271, %v1309
        %v1318 = vadd.f32 %v1272, %v1310
        %v1319 = vadd.f32 %v1273, %v1311
        %v1320 = vadd.f32 %v1274, %v1312
        %v1321 = vadd.f32 %v1275, %v1313
        %v1322 = vadd.f32 %v1276, %v1314
        %v1323 = vadd.f32 %v1277, %v1315
        %s1324 = sld [smem:[#allocation3 + $0x10]]
        %v1325 = vstv %s1324
        %v1326 = vmul.f32 %v1325, %v580
        %v1327 = vmul.f32 %v1325, %v581
        %v1328 = vmul.f32 %v1325, %v582
        %v1329 = vmul.f32 %v1325, %v583
        %v1330 = vmul.f32 %v1325, %v584
        %v1331 = vmul.f32 %v1325, %v585
        %v1332 = vmul.f32 %v1325, %v586
        %v1333 = vmul.f32 %v1325, %v587
        %s1334 = sld [smem:[#allocation5 + $0x10]]
        %v1335 = vstv %s1334
        %v1336 = vadd.f32 %v1326, %v1335
        %v1337 = vadd.f32 %v1327, %v1335
        %v1338 = vadd.f32 %v1328, %v1335
        %v1339 = vadd.f32 %v1329, %v1335
        %v1340 = vadd.f32 %v1330, %v1335
        %v1341 = vadd.f32 %v1331, %v1335
        %v1342 = vadd.f32 %v1332, %v1335
        %v1343 = vadd.f32 %v1333, %v1335
        %v1344 = vmax.f32 %v1336, 0.0
        %v1345 = vmax.f32 %v1337, 0.0
        %v1346 = vmax.f32 %v1338, 0.0
        %v1347 = vmax.f32 %v1339, 0.0
        %v1348 = vmax.f32 %v1340, 0.0
        %v1349 = vmax.f32 %v1341, 0.0
        %v1350 = vmax.f32 %v1342, 0.0
        %v1351 = vmax.f32 %v1343, 0.0
        %s1352 = sld [smem:[#allocation7 + $0x10]]
        %v1353 = vstv %s1352
        %v1354 = vmul.f32 %v1353, %v1344
        %v1355 = vmul.f32 %v1353, %v1345
        %v1356 = vmul.f32 %v1353, %v1346
        %v1357 = vmul.f32 %v1353, %v1347
        %v1358 = vmul.f32 %v1353, %v1348
        %v1359 = vmul.f32 %v1353, %v1349
        %v1360 = vmul.f32 %v1353, %v1350
        %v1361 = vmul.f32 %v1353, %v1351
        %v1362 = vadd.f32 %v1316, %v1354
        %v1363 = vadd.f32 %v1317, %v1355
        %v1364 = vadd.f32 %v1318, %v1356
        %v1365 = vadd.f32 %v1319, %v1357
        %v1366 = vadd.f32 %v1320, %v1358
        %v1367 = vadd.f32 %v1321, %v1359
        %v1368 = vadd.f32 %v1322, %v1360
        %v1369 = vadd.f32 %v1323, %v1361
        %s1370 = sld [smem:[#allocation3 + $0x11]]
        %v1371 = vstv %s1370
        %v1372 = vmul.f32 %v1371, %v580
        %v1373 = vmul.f32 %v1371, %v581
        %v1374 = vmul.f32 %v1371, %v582
        %v1375 = vmul.f32 %v1371, %v583
        %v1376 = vmul.f32 %v1371, %v584
        %v1377 = vmul.f32 %v1371, %v585
        %v1378 = vmul.f32 %v1371, %v586
        %v1379 = vmul.f32 %v1371, %v587
        %s1380 = sld [smem:[#allocation5 + $0x11]]
        %v1381 = vstv %s1380
        %v1382 = vadd.f32 %v1372, %v1381
        %v1383 = vadd.f32 %v1373, %v1381
        %v1384 = vadd.f32 %v1374, %v1381
        %v1385 = vadd.f32 %v1375, %v1381
        %v1386 = vadd.f32 %v1376, %v1381
        %v1387 = vadd.f32 %v1377, %v1381
        %v1388 = vadd.f32 %v1378, %v1381
        %v1389 = vadd.f32 %v1379, %v1381
        %v1390 = vmax.f32 %v1382, 0.0
        %v1391 = vmax.f32 %v1383, 0.0
        %v1392 = vmax.f32 %v1384, 0.0
        %v1393 = vmax.f32 %v1385, 0.0
        %v1394 = vmax.f32 %v1386, 0.0
        %v1395 = vmax.f32 %v1387, 0.0
        %v1396 = vmax.f32 %v1388, 0.0
        %v1397 = vmax.f32 %v1389, 0.0
        %s1398 = sld [smem:[#allocation7 + $0x11]]
        %v1399 = vstv %s1398
        %v1400 = vmul.f32 %v1399, %v1390
        %v1401 = vmul.f32 %v1399, %v1391
        %v1402 = vmul.f32 %v1399, %v1392
        %v1403 = vmul.f32 %v1399, %v1393
        %v1404 = vmul.f32 %v1399, %v1394
        %v1405 = vmul.f32 %v1399, %v1395
        %v1406 = vmul.f32 %v1399, %v1396
        %v1407 = vmul.f32 %v1399, %v1397
        %v1408 = vadd.f32 %v1362, %v1400
        %v1409 = vadd.f32 %v1363, %v1401
        %v1410 = vadd.f32 %v1364, %v1402
        %v1411 = vadd.f32 %v1365, %v1403
        %v1412 = vadd.f32 %v1366, %v1404
        %v1413 = vadd.f32 %v1367, %v1405
        %v1414 = vadd.f32 %v1368, %v1406
        %v1415 = vadd.f32 %v1369, %v1407
        %s1416 = sld [smem:[#allocation3 + $0x12]]
        %v1417 = vstv %s1416
        %v1418 = vmul.f32 %v1417, %v580
        %v1419 = vmul.f32 %v1417, %v581
        %v1420 = vmul.f32 %v1417, %v582
        %v1421 = vmul.f32 %v1417, %v583
        %v1422 = vmul.f32 %v1417, %v584
        %v1423 = vmul.f32 %v1417, %v585
        %v1424 = vmul.f32 %v1417, %v586
        %v1425 = vmul.f32 %v1417, %v587
        %s1426 = sld [smem:[#allocation5 + $0x12]]
        %v1427 = vstv %s1426
        %v1428 = vadd.f32 %v1418, %v1427
        %v1429 = vadd.f32 %v1419, %v1427
        %v1430 = vadd.f32 %v1420, %v1427
        %v1431 = vadd.f32 %v1421, %v1427
        %v1432 = vadd.f32 %v1422, %v1427
        %v1433 = vadd.f32 %v1423, %v1427
        %v1434 = vadd.f32 %v1424, %v1427
        %v1435 = vadd.f32 %v1425, %v1427
        %v1436 = vmax.f32 %v1428, 0.0
        %v1437 = vmax.f32 %v1429, 0.0
        %v1438 = vmax.f32 %v1430, 0.0
        %v1439 = vmax.f32 %v1431, 0.0
        %v1440 = vmax.f32 %v1432, 0.0
        %v1441 = vmax.f32 %v1433, 0.0
        %v1442 = vmax.f32 %v1434, 0.0
        %v1443 = vmax.f32 %v1435, 0.0
        %s1444 = sld [smem:[#allocation7 + $0x12]]
        %v1445 = vstv %s1444
        %v1446 = vmul.f32 %v1445, %v1436
        %v1447 = vmul.f32 %v1445, %v1437
        %v1448 = vmul.f32 %v1445, %v1438
        %v1449 = vmul.f32 %v1445, %v1439
        %v1450 = vmul.f32 %v1445, %v1440
        %v1451 = vmul.f32 %v1445, %v1441
        %v1452 = vmul.f32 %v1445, %v1442
        %v1453 = vmul.f32 %v1445, %v1443
        %v1454 = vadd.f32 %v1408, %v1446
        %v1455 = vadd.f32 %v1409, %v1447
        %v1456 = vadd.f32 %v1410, %v1448
        %v1457 = vadd.f32 %v1411, %v1449
        %v1458 = vadd.f32 %v1412, %v1450
        %v1459 = vadd.f32 %v1413, %v1451
        %v1460 = vadd.f32 %v1414, %v1452
        %v1461 = vadd.f32 %v1415, %v1453
        %s1462 = sld [smem:[#allocation3 + $0x13]]
        %v1463 = vstv %s1462
        %v1464 = vmul.f32 %v1463, %v580
        %v1465 = vmul.f32 %v1463, %v581
        %v1466 = vmul.f32 %v1463, %v582
        %v1467 = vmul.f32 %v1463, %v583
        %v1468 = vmul.f32 %v1463, %v584
        %v1469 = vmul.f32 %v1463, %v585
        %v1470 = vmul.f32 %v1463, %v586
        %v1471 = vmul.f32 %v1463, %v587
        %s1472 = sld [smem:[#allocation5 + $0x13]]
        %v1473 = vstv %s1472
        %v1474 = vadd.f32 %v1464, %v1473
        %v1475 = vadd.f32 %v1465, %v1473
        %v1476 = vadd.f32 %v1466, %v1473
        %v1477 = vadd.f32 %v1467, %v1473
        %v1478 = vadd.f32 %v1468, %v1473
        %v1479 = vadd.f32 %v1469, %v1473
        %v1480 = vadd.f32 %v1470, %v1473
        %v1481 = vadd.f32 %v1471, %v1473
        %v1482 = vmax.f32 %v1474, 0.0
        %v1483 = vmax.f32 %v1475, 0.0
        %v1484 = vmax.f32 %v1476, 0.0
        %v1485 = vmax.f32 %v1477, 0.0
        %v1486 = vmax.f32 %v1478, 0.0
        %v1487 = vmax.f32 %v1479, 0.0
        %v1488 = vmax.f32 %v1480, 0.0
        %v1489 = vmax.f32 %v1481, 0.0
        %s1490 = sld [smem:[#allocation7 + $0x13]]
        %v1491 = vstv %s1490
        %v1492 = vmul.f32 %v1491, %v1482
        %v1493 = vmul.f32 %v1491, %v1483
        %v1494 = vmul.f32 %v1491, %v1484
        %v1495 = vmul.f32 %v1491, %v1485
        %v1496 = vmul.f32 %v1491, %v1486
        %v1497 = vmul.f32 %v1491, %v1487
        %v1498 = vmul.f32 %v1491, %v1488
        %v1499 = vmul.f32 %v1491, %v1489
        %v1500 = vadd.f32 %v1454, %v1492
        %v1501 = vadd.f32 %v1455, %v1493
        %v1502 = vadd.f32 %v1456, %v1494
        %v1503 = vadd.f32 %v1457, %v1495
        %v1504 = vadd.f32 %v1458, %v1496
        %v1505 = vadd.f32 %v1459, %v1497
        %v1506 = vadd.f32 %v1460, %v1498
        %v1507 = vadd.f32 %v1461, %v1499
        %s1508 = sld [smem:[#allocation3 + $0x14]]
        %v1509 = vstv %s1508
        %v1510 = vmul.f32 %v1509, %v580
        %v1511 = vmul.f32 %v1509, %v581
        %v1512 = vmul.f32 %v1509, %v582
        %v1513 = vmul.f32 %v1509, %v583
        %v1514 = vmul.f32 %v1509, %v584
        %v1515 = vmul.f32 %v1509, %v585
        %v1516 = vmul.f32 %v1509, %v586
        %v1517 = vmul.f32 %v1509, %v587
        %s1518 = sld [smem:[#allocation5 + $0x14]]
        %v1519 = vstv %s1518
        %v1520 = vadd.f32 %v1510, %v1519
        %v1521 = vadd.f32 %v1511, %v1519
        %v1522 = vadd.f32 %v1512, %v1519
        %v1523 = vadd.f32 %v1513, %v1519
        %v1524 = vadd.f32 %v1514, %v1519
        %v1525 = vadd.f32 %v1515, %v1519
        %v1526 = vadd.f32 %v1516, %v1519
        %v1527 = vadd.f32 %v1517, %v1519
        %v1528 = vmax.f32 %v1520, 0.0
        %v1529 = vmax.f32 %v1521, 0.0
        %v1530 = vmax.f32 %v1522, 0.0
        %v1531 = vmax.f32 %v1523, 0.0
        %v1532 = vmax.f32 %v1524, 0.0
        %v1533 = vmax.f32 %v1525, 0.0
        %v1534 = vmax.f32 %v1526, 0.0
        %v1535 = vmax.f32 %v1527, 0.0
        %s1536 = sld [smem:[#allocation7 + $0x14]]
        %v1537 = vstv %s1536
        %v1538 = vmul.f32 %v1537, %v1528
        %v1539 = vmul.f32 %v1537, %v1529
        %v1540 = vmul.f32 %v1537, %v1530
        %v1541 = vmul.f32 %v1537, %v1531
        %v1542 = vmul.f32 %v1537, %v1532
        %v1543 = vmul.f32 %v1537, %v1533
        %v1544 = vmul.f32 %v1537, %v1534
        %v1545 = vmul.f32 %v1537, %v1535
        %v1546 = vadd.f32 %v1500, %v1538
        %v1547 = vadd.f32 %v1501, %v1539
        %v1548 = vadd.f32 %v1502, %v1540
        %v1549 = vadd.f32 %v1503, %v1541
        %v1550 = vadd.f32 %v1504, %v1542
        %v1551 = vadd.f32 %v1505, %v1543
        %v1552 = vadd.f32 %v1506, %v1544
        %v1553 = vadd.f32 %v1507, %v1545
        %s1554 = sld [smem:[#allocation3 + $0x15]]
        %v1555 = vstv %s1554
        %v1556 = vmul.f32 %v1555, %v580
        %v1557 = vmul.f32 %v1555, %v581
        %v1558 = vmul.f32 %v1555, %v582
        %v1559 = vmul.f32 %v1555, %v583
        %v1560 = vmul.f32 %v1555, %v584
        %v1561 = vmul.f32 %v1555, %v585
        %v1562 = vmul.f32 %v1555, %v586
        %v1563 = vmul.f32 %v1555, %v587
        %s1564 = sld [smem:[#allocation5 + $0x15]]
        %v1565 = vstv %s1564
        %v1566 = vadd.f32 %v1556, %v1565
        %v1567 = vadd.f32 %v1557, %v1565
        %v1568 = vadd.f32 %v1558, %v1565
        %v1569 = vadd.f32 %v1559, %v1565
        %v1570 = vadd.f32 %v1560, %v1565
        %v1571 = vadd.f32 %v1561, %v1565
        %v1572 = vadd.f32 %v1562, %v1565
        %v1573 = vadd.f32 %v1563, %v1565
        %v1574 = vmax.f32 %v1566, 0.0
        %v1575 = vmax.f32 %v1567, 0.0
        %v1576 = vmax.f32 %v1568, 0.0
        %v1577 = vmax.f32 %v1569, 0.0
        %v1578 = vmax.f32 %v1570, 0.0
        %v1579 = vmax.f32 %v1571, 0.0
        %v1580 = vmax.f32 %v1572, 0.0
        %v1581 = vmax.f32 %v1573, 0.0
        %s1582 = sld [smem:[#allocation7 + $0x15]]
        %v1583 = vstv %s1582
        %v1584 = vmul.f32 %v1583, %v1574
        %v1585 = vmul.f32 %v1583, %v1575
        %v1586 = vmul.f32 %v1583, %v1576
        %v1587 = vmul.f32 %v1583, %v1577
        %v1588 = vmul.f32 %v1583, %v1578
        %v1589 = vmul.f32 %v1583, %v1579
        %v1590 = vmul.f32 %v1583, %v1580
        %v1591 = vmul.f32 %v1583, %v1581
        %v1592 = vadd.f32 %v1546, %v1584
        %v1593 = vadd.f32 %v1547, %v1585
        %v1594 = vadd.f32 %v1548, %v1586
        %v1595 = vadd.f32 %v1549, %v1587
        %v1596 = vadd.f32 %v1550, %v1588
        %v1597 = vadd.f32 %v1551, %v1589
        %v1598 = vadd.f32 %v1552, %v1590
        %v1599 = vadd.f32 %v1553, %v1591
        %s1600 = sld [smem:[#allocation3 + $0x16]]
        %v1601 = vstv %s1600
        %v1602 = vmul.f32 %v1601, %v580
        %v1603 = vmul.f32 %v1601, %v581
        %v1604 = vmul.f32 %v1601, %v582
        %v1605 = vmul.f32 %v1601, %v583
        %v1606 = vmul.f32 %v1601, %v584
        %v1607 = vmul.f32 %v1601, %v585
        %v1608 = vmul.f32 %v1601, %v586
        %v1609 = vmul.f32 %v1601, %v587
        %s1610 = sld [smem:[#allocation5 + $0x16]]
        %v1611 = vstv %s1610
        %v1612 = vadd.f32 %v1602, %v1611
        %v1613 = vadd.f32 %v1603, %v1611
        %v1614 = vadd.f32 %v1604, %v1611
        %v1615 = vadd.f32 %v1605, %v1611
        %v1616 = vadd.f32 %v1606, %v1611
        %v1617 = vadd.f32 %v1607, %v1611
        %v1618 = vadd.f32 %v1608, %v1611
        %v1619 = vadd.f32 %v1609, %v1611
        %v1620 = vmax.f32 %v1612, 0.0
        %v1621 = vmax.f32 %v1613, 0.0
        %v1622 = vmax.f32 %v1614, 0.0
        %v1623 = vmax.f32 %v1615, 0.0
        %v1624 = vmax.f32 %v1616, 0.0
        %v1625 = vmax.f32 %v1617, 0.0
        %v1626 = vmax.f32 %v1618, 0.0
        %v1627 = vmax.f32 %v1619, 0.0
        %s1628 = sld [smem:[#allocation7 + $0x16]]
        %v1629 = vstv %s1628
        %v1630 = vmul.f32 %v1629, %v1620
        %v1631 = vmul.f32 %v1629, %v1621
        %v1632 = vmul.f32 %v1629, %v1622
        %v1633 = vmul.f32 %v1629, %v1623
        %v1634 = vmul.f32 %v1629, %v1624
        %v1635 = vmul.f32 %v1629, %v1625
        %v1636 = vmul.f32 %v1629, %v1626
        %v1637 = vmul.f32 %v1629, %v1627
        %v1638 = vadd.f32 %v1592, %v1630
        %v1639 = vadd.f32 %v1593, %v1631
        %v1640 = vadd.f32 %v1594, %v1632
        %v1641 = vadd.f32 %v1595, %v1633
        %v1642 = vadd.f32 %v1596, %v1634
        %v1643 = vadd.f32 %v1597, %v1635
        %v1644 = vadd.f32 %v1598, %v1636
        %v1645 = vadd.f32 %v1599, %v1637
        %s1646 = sld [smem:[#allocation3 + $0x17]]
        %v1647 = vstv %s1646
        %v1648 = vmul.f32 %v1647, %v580
        %v1649 = vmul.f32 %v1647, %v581
        %v1650 = vmul.f32 %v1647, %v582
        %v1651 = vmul.f32 %v1647, %v583
        %v1652 = vmul.f32 %v1647, %v584
        %v1653 = vmul.f32 %v1647, %v585
        %v1654 = vmul.f32 %v1647, %v586
        %v1655 = vmul.f32 %v1647, %v587
        %s1656 = sld [smem:[#allocation5 + $0x17]]
        %v1657 = vstv %s1656
        %v1658 = vadd.f32 %v1648, %v1657
        %v1659 = vadd.f32 %v1649, %v1657
        %v1660 = vadd.f32 %v1650, %v1657
        %v1661 = vadd.f32 %v1651, %v1657
        %v1662 = vadd.f32 %v1652, %v1657
        %v1663 = vadd.f32 %v1653, %v1657
        %v1664 = vadd.f32 %v1654, %v1657
        %v1665 = vadd.f32 %v1655, %v1657
        %v1666 = vmax.f32 %v1658, 0.0
        %v1667 = vmax.f32 %v1659, 0.0
        %v1668 = vmax.f32 %v1660, 0.0
        %v1669 = vmax.f32 %v1661, 0.0
        %v1670 = vmax.f32 %v1662, 0.0
        %v1671 = vmax.f32 %v1663, 0.0
        %v1672 = vmax.f32 %v1664, 0.0
        %v1673 = vmax.f32 %v1665, 0.0
        %s1674 = sld [smem:[#allocation7 + $0x17]]
        %v1675 = vstv %s1674
        %v1676 = vmul.f32 %v1675, %v1666
        %v1677 = vmul.f32 %v1675, %v1667
        %v1678 = vmul.f32 %v1675, %v1668
        %v1679 = vmul.f32 %v1675, %v1669
        %v1680 = vmul.f32 %v1675, %v1670
        %v1681 = vmul.f32 %v1675, %v1671
        %v1682 = vmul.f32 %v1675, %v1672
        %v1683 = vmul.f32 %v1675, %v1673
        %v1684 = vadd.f32 %v1638, %v1676
        %v1685 = vadd.f32 %v1639, %v1677
        %v1686 = vadd.f32 %v1640, %v1678
        %v1687 = vadd.f32 %v1641, %v1679
        %v1688 = vadd.f32 %v1642, %v1680
        %v1689 = vadd.f32 %v1643, %v1681
        %v1690 = vadd.f32 %v1644, %v1682
        %v1691 = vadd.f32 %v1645, %v1683
        %s1692 = sld [smem:[#allocation3 + $0x18]]
        %v1693 = vstv %s1692
        %v1694 = vmul.f32 %v1693, %v580
        %v1695 = vmul.f32 %v1693, %v581
        %v1696 = vmul.f32 %v1693, %v582
        %v1697 = vmul.f32 %v1693, %v583
        %v1698 = vmul.f32 %v1693, %v584
        %v1699 = vmul.f32 %v1693, %v585
        %v1700 = vmul.f32 %v1693, %v586
        %v1701 = vmul.f32 %v1693, %v587
        %s1702 = sld [smem:[#allocation5 + $0x18]]
        %v1703 = vstv %s1702
        %v1704 = vadd.f32 %v1694, %v1703
        %v1705 = vadd.f32 %v1695, %v1703
        %v1706 = vadd.f32 %v1696, %v1703
        %v1707 = vadd.f32 %v1697, %v1703
        %v1708 = vadd.f32 %v1698, %v1703
        %v1709 = vadd.f32 %v1699, %v1703
        %v1710 = vadd.f32 %v1700, %v1703
        %v1711 = vadd.f32 %v1701, %v1703
        %v1712 = vmax.f32 %v1704, 0.0
        %v1713 = vmax.f32 %v1705, 0.0
        %v1714 = vmax.f32 %v1706, 0.0
        %v1715 = vmax.f32 %v1707, 0.0
        %v1716 = vmax.f32 %v1708, 0.0
        %v1717 = vmax.f32 %v1709, 0.0
        %v1718 = vmax.f32 %v1710, 0.0
        %v1719 = vmax.f32 %v1711, 0.0
        %s1720 = sld [smem:[#allocation7 + $0x18]]
        %v1721 = vstv %s1720
        %v1722 = vmul.f32 %v1721, %v1712
        %v1723 = vmul.f32 %v1721, %v1713
        %v1724 = vmul.f32 %v1721, %v1714
        %v1725 = vmul.f32 %v1721, %v1715
        %v1726 = vmul.f32 %v1721, %v1716
        %v1727 = vmul.f32 %v1721, %v1717
        %v1728 = vmul.f32 %v1721, %v1718
        %v1729 = vmul.f32 %v1721, %v1719
        %v1730 = vadd.f32 %v1684, %v1722
        %v1731 = vadd.f32 %v1685, %v1723
        %v1732 = vadd.f32 %v1686, %v1724
        %v1733 = vadd.f32 %v1687, %v1725
        %v1734 = vadd.f32 %v1688, %v1726
        %v1735 = vadd.f32 %v1689, %v1727
        %v1736 = vadd.f32 %v1690, %v1728
        %v1737 = vadd.f32 %v1691, %v1729
        %s1738 = sld [smem:[#allocation3 + $0x19]]
        %v1739 = vstv %s1738
        %v1740 = vmul.f32 %v1739, %v580
        %v1741 = vmul.f32 %v1739, %v581
        %v1742 = vmul.f32 %v1739, %v582
        %v1743 = vmul.f32 %v1739, %v583
        %v1744 = vmul.f32 %v1739, %v584
        %v1745 = vmul.f32 %v1739, %v585
        %v1746 = vmul.f32 %v1739, %v586
        %v1747 = vmul.f32 %v1739, %v587
        %s1748 = sld [smem:[#allocation5 + $0x19]]
        %v1749 = vstv %s1748
        %v1750 = vadd.f32 %v1740, %v1749
        %v1751 = vadd.f32 %v1741, %v1749
        %v1752 = vadd.f32 %v1742, %v1749
        %v1753 = vadd.f32 %v1743, %v1749
        %v1754 = vadd.f32 %v1744, %v1749
        %v1755 = vadd.f32 %v1745, %v1749
        %v1756 = vadd.f32 %v1746, %v1749
        %v1757 = vadd.f32 %v1747, %v1749
        %v1758 = vmax.f32 %v1750, 0.0
        %v1759 = vmax.f32 %v1751, 0.0
        %v1760 = vmax.f32 %v1752, 0.0
        %v1761 = vmax.f32 %v1753, 0.0
        %v1762 = vmax.f32 %v1754, 0.0
        %v1763 = vmax.f32 %v1755, 0.0
        %v1764 = vmax.f32 %v1756, 0.0
        %v1765 = vmax.f32 %v1757, 0.0
        %s1766 = sld [smem:[#allocation7 + $0x19]]
        %v1767 = vstv %s1766
        %v1768 = vmul.f32 %v1767, %v1758
        %v1769 = vmul.f32 %v1767, %v1759
        %v1770 = vmul.f32 %v1767, %v1760
        %v1771 = vmul.f32 %v1767, %v1761
        %v1772 = vmul.f32 %v1767, %v1762
        %v1773 = vmul.f32 %v1767, %v1763
        %v1774 = vmul.f32 %v1767, %v1764
        %v1775 = vmul.f32 %v1767, %v1765
        %v1776 = vadd.f32 %v1730, %v1768
        %v1777 = vadd.f32 %v1731, %v1769
        %v1778 = vadd.f32 %v1732, %v1770
        %v1779 = vadd.f32 %v1733, %v1771
        %v1780 = vadd.f32 %v1734, %v1772
        %v1781 = vadd.f32 %v1735, %v1773
        %v1782 = vadd.f32 %v1736, %v1774
        %v1783 = vadd.f32 %v1737, %v1775
        %s1784 = sld [smem:[#allocation3 + $0x1a]]
        %v1785 = vstv %s1784
        %v1786 = vmul.f32 %v1785, %v580
        %v1787 = vmul.f32 %v1785, %v581
        %v1788 = vmul.f32 %v1785, %v582
        %v1789 = vmul.f32 %v1785, %v583
        %v1790 = vmul.f32 %v1785, %v584
        %v1791 = vmul.f32 %v1785, %v585
        %v1792 = vmul.f32 %v1785, %v586
        %v1793 = vmul.f32 %v1785, %v587
        %s1794 = sld [smem:[#allocation5 + $0x1a]]
        %v1795 = vstv %s1794
        %v1796 = vadd.f32 %v1786, %v1795
        %v1797 = vadd.f32 %v1787, %v1795
        %v1798 = vadd.f32 %v1788, %v1795
        %v1799 = vadd.f32 %v1789, %v1795
        %v1800 = vadd.f32 %v1790, %v1795
        %v1801 = vadd.f32 %v1791, %v1795
        %v1802 = vadd.f32 %v1792, %v1795
        %v1803 = vadd.f32 %v1793, %v1795
        %v1804 = vmax.f32 %v1796, 0.0
        %v1805 = vmax.f32 %v1797, 0.0
        %v1806 = vmax.f32 %v1798, 0.0
        %v1807 = vmax.f32 %v1799, 0.0
        %v1808 = vmax.f32 %v1800, 0.0
        %v1809 = vmax.f32 %v1801, 0.0
        %v1810 = vmax.f32 %v1802, 0.0
        %v1811 = vmax.f32 %v1803, 0.0
        %s1812 = sld [smem:[#allocation7 + $0x1a]]
        %v1813 = vstv %s1812
        %v1814 = vmul.f32 %v1813, %v1804
        %v1815 = vmul.f32 %v1813, %v1805
        %v1816 = vmul.f32 %v1813, %v1806
        %v1817 = vmul.f32 %v1813, %v1807
        %v1818 = vmul.f32 %v1813, %v1808
        %v1819 = vmul.f32 %v1813, %v1809
        %v1820 = vmul.f32 %v1813, %v1810
        %v1821 = vmul.f32 %v1813, %v1811
        %v1822 = vadd.f32 %v1776, %v1814
        %v1823 = vadd.f32 %v1777, %v1815
        %v1824 = vadd.f32 %v1778, %v1816
        %v1825 = vadd.f32 %v1779, %v1817
        %v1826 = vadd.f32 %v1780, %v1818
        %v1827 = vadd.f32 %v1781, %v1819
        %v1828 = vadd.f32 %v1782, %v1820
        %v1829 = vadd.f32 %v1783, %v1821
        %s1830 = sld [smem:[#allocation3 + $0x1b]]
        %v1831 = vstv %s1830
        %v1832 = vmul.f32 %v1831, %v580
        %v1833 = vmul.f32 %v1831, %v581
        %v1834 = vmul.f32 %v1831, %v582
        %v1835 = vmul.f32 %v1831, %v583
        %v1836 = vmul.f32 %v1831, %v584
        %v1837 = vmul.f32 %v1831, %v585
        %v1838 = vmul.f32 %v1831, %v586
        %v1839 = vmul.f32 %v1831, %v587
        %s1840 = sld [smem:[#allocation5 + $0x1b]]
        %v1841 = vstv %s1840
        %v1842 = vadd.f32 %v1832, %v1841
        %v1843 = vadd.f32 %v1833, %v1841
        %v1844 = vadd.f32 %v1834, %v1841
        %v1845 = vadd.f32 %v1835, %v1841
        %v1846 = vadd.f32 %v1836, %v1841
        %v1847 = vadd.f32 %v1837, %v1841
        %v1848 = vadd.f32 %v1838, %v1841
        %v1849 = vadd.f32 %v1839, %v1841
        %v1850 = vmax.f32 %v1842, 0.0
        %v1851 = vmax.f32 %v1843, 0.0
        %v1852 = vmax.f32 %v1844, 0.0
        %v1853 = vmax.f32 %v1845, 0.0
        %v1854 = vmax.f32 %v1846, 0.0
        %v1855 = vmax.f32 %v1847, 0.0
        %v1856 = vmax.f32 %v1848, 0.0
        %v1857 = vmax.f32 %v1849, 0.0
        %s1858 = sld [smem:[#allocation7 + $0x1b]]
        %v1859 = vstv %s1858
        %v1860 = vmul.f32 %v1859, %v1850
        %v1861 = vmul.f32 %v1859, %v1851
        %v1862 = vmul.f32 %v1859, %v1852
        %v1863 = vmul.f32 %v1859, %v1853
        %v1864 = vmul.f32 %v1859, %v1854
        %v1865 = vmul.f32 %v1859, %v1855
        %v1866 = vmul.f32 %v1859, %v1856
        %v1867 = vmul.f32 %v1859, %v1857
        %v1868 = vadd.f32 %v1822, %v1860
        %v1869 = vadd.f32 %v1823, %v1861
        %v1870 = vadd.f32 %v1824, %v1862
        %v1871 = vadd.f32 %v1825, %v1863
        %v1872 = vadd.f32 %v1826, %v1864
        %v1873 = vadd.f32 %v1827, %v1865
        %v1874 = vadd.f32 %v1828, %v1866
        %v1875 = vadd.f32 %v1829, %v1867
        %s1876 = sld [smem:[#allocation3 + $0x1c]]
        %v1877 = vstv %s1876
        %v1878 = vmul.f32 %v1877, %v580
        %v1879 = vmul.f32 %v1877, %v581
        %v1880 = vmul.f32 %v1877, %v582
        %v1881 = vmul.f32 %v1877, %v583
        %v1882 = vmul.f32 %v1877, %v584
        %v1883 = vmul.f32 %v1877, %v585
        %v1884 = vmul.f32 %v1877, %v586
        %v1885 = vmul.f32 %v1877, %v587
        %s1886 = sld [smem:[#allocation5 + $0x1c]]
        %v1887 = vstv %s1886
        %v1888 = vadd.f32 %v1878, %v1887
        %v1889 = vadd.f32 %v1879, %v1887
        %v1890 = vadd.f32 %v1880, %v1887
        %v1891 = vadd.f32 %v1881, %v1887
        %v1892 = vadd.f32 %v1882, %v1887
        %v1893 = vadd.f32 %v1883, %v1887
        %v1894 = vadd.f32 %v1884, %v1887
        %v1895 = vadd.f32 %v1885, %v1887
        %v1896 = vmax.f32 %v1888, 0.0
        %v1897 = vmax.f32 %v1889, 0.0
        %v1898 = vmax.f32 %v1890, 0.0
        %v1899 = vmax.f32 %v1891, 0.0
        %v1900 = vmax.f32 %v1892, 0.0
        %v1901 = vmax.f32 %v1893, 0.0
        %v1902 = vmax.f32 %v1894, 0.0
        %v1903 = vmax.f32 %v1895, 0.0
        %s1904 = sld [smem:[#allocation7 + $0x1c]]
        %v1905 = vstv %s1904
        %v1906 = vmul.f32 %v1905, %v1896
        %v1907 = vmul.f32 %v1905, %v1897
        %v1908 = vmul.f32 %v1905, %v1898
        %v1909 = vmul.f32 %v1905, %v1899
        %v1910 = vmul.f32 %v1905, %v1900
        %v1911 = vmul.f32 %v1905, %v1901
        %v1912 = vmul.f32 %v1905, %v1902
        %v1913 = vmul.f32 %v1905, %v1903
        %v1914 = vadd.f32 %v1868, %v1906
        %v1915 = vadd.f32 %v1869, %v1907
        %v1916 = vadd.f32 %v1870, %v1908
        %v1917 = vadd.f32 %v1871, %v1909
        %v1918 = vadd.f32 %v1872, %v1910
        %v1919 = vadd.f32 %v1873, %v1911
        %v1920 = vadd.f32 %v1874, %v1912
        %v1921 = vadd.f32 %v1875, %v1913
        %s1922 = sld [smem:[#allocation3 + $0x1d]]
        %v1923 = vstv %s1922
        %v1924 = vmul.f32 %v1923, %v580
        %v1925 = vmul.f32 %v1923, %v581
        %v1926 = vmul.f32 %v1923, %v582
        %v1927 = vmul.f32 %v1923, %v583
        %v1928 = vmul.f32 %v1923, %v584
        %v1929 = vmul.f32 %v1923, %v585
        %v1930 = vmul.f32 %v1923, %v586
        %v1931 = vmul.f32 %v1923, %v587
        %s1932 = sld [smem:[#allocation5 + $0x1d]]
        %v1933 = vstv %s1932
        %v1934 = vadd.f32 %v1924, %v1933
        %v1935 = vadd.f32 %v1925, %v1933
        %v1936 = vadd.f32 %v1926, %v1933
        %v1937 = vadd.f32 %v1927, %v1933
        %v1938 = vadd.f32 %v1928, %v1933
        %v1939 = vadd.f32 %v1929, %v1933
        %v1940 = vadd.f32 %v1930, %v1933
        %v1941 = vadd.f32 %v1931, %v1933
        %v1942 = vmax.f32 %v1934, 0.0
        %v1943 = vmax.f32 %v1935, 0.0
        %v1944 = vmax.f32 %v1936, 0.0
        %v1945 = vmax.f32 %v1937, 0.0
        %v1946 = vmax.f32 %v1938, 0.0
        %v1947 = vmax.f32 %v1939, 0.0
        %v1948 = vmax.f32 %v1940, 0.0
        %v1949 = vmax.f32 %v1941, 0.0
        %s1950 = sld [smem:[#allocation7 + $0x1d]]
        %v1951 = vstv %s1950
        %v1952 = vmul.f32 %v1951, %v1942
        %v1953 = vmul.f32 %v1951, %v1943
        %v1954 = vmul.f32 %v1951, %v1944
        %v1955 = vmul.f32 %v1951, %v1945
        %v1956 = vmul.f32 %v1951, %v1946
        %v1957 = vmul.f32 %v1951, %v1947
        %v1958 = vmul.f32 %v1951, %v1948
        %v1959 = vmul.f32 %v1951, %v1949
        %v1960 = vadd.f32 %v1914, %v1952
        %v1961 = vadd.f32 %v1915, %v1953
        %v1962 = vadd.f32 %v1916, %v1954
        %v1963 = vadd.f32 %v1917, %v1955
        %v1964 = vadd.f32 %v1918, %v1956
        %v1965 = vadd.f32 %v1919, %v1957
        %v1966 = vadd.f32 %v1920, %v1958
        %v1967 = vadd.f32 %v1921, %v1959
        %s1968 = sld [smem:[#allocation3 + $0x1e]]
        %v1969 = vstv %s1968
        %v1970 = vmul.f32 %v1969, %v580
        %v1971 = vmul.f32 %v1969, %v581
        %v1972 = vmul.f32 %v1969, %v582
        %v1973 = vmul.f32 %v1969, %v583
        %v1974 = vmul.f32 %v1969, %v584
        %v1975 = vmul.f32 %v1969, %v585
        %v1976 = vmul.f32 %v1969, %v586
        %v1977 = vmul.f32 %v1969, %v587
        %s1978 = sld [smem:[#allocation5 + $0x1e]]
        %v1979 = vstv %s1978
        %v1980 = vadd.f32 %v1970, %v1979
        %v1981 = vadd.f32 %v1971, %v1979
        %v1982 = vadd.f32 %v1972, %v1979
        %v1983 = vadd.f32 %v1973, %v1979
        %v1984 = vadd.f32 %v1974, %v1979
        %v1985 = vadd.f32 %v1975, %v1979
        %v1986 = vadd.f32 %v1976, %v1979
        %v1987 = vadd.f32 %v1977, %v1979
        %v1988 = vmax.f32 %v1980, 0.0
        %v1989 = vmax.f32 %v1981, 0.0
        %v1990 = vmax.f32 %v1982, 0.0
        %v1991 = vmax.f32 %v1983, 0.0
        %v1992 = vmax.f32 %v1984, 0.0
        %v1993 = vmax.f32 %v1985, 0.0
        %v1994 = vmax.f32 %v1986, 0.0
        %v1995 = vmax.f32 %v1987, 0.0
        %s1996 = sld [smem:[#allocation7 + $0x1e]]
        %v1997 = vstv %s1996
        %v1998 = vmul.f32 %v1997, %v1988
        %v1999 = vmul.f32 %v1997, %v1989
        %v2000 = vmul.f32 %v1997, %v1990
        %v2001 = vmul.f32 %v1997, %v1991
        %v2002 = vmul.f32 %v1997, %v1992
        %v2003 = vmul.f32 %v1997, %v1993
        %v2004 = vmul.f32 %v1997, %v1994
        %v2005 = vmul.f32 %v1997, %v1995
        %v2006 = vadd.f32 %v1960, %v1998
        %v2007 = vadd.f32 %v1961, %v1999
        %v2008 = vadd.f32 %v1962, %v2000
        %v2009 = vadd.f32 %v1963, %v2001
        %v2010 = vadd.f32 %v1964, %v2002
        %v2011 = vadd.f32 %v1965, %v2003
        %v2012 = vadd.f32 %v1966, %v2004
        %v2013 = vadd.f32 %v1967, %v2005
        %s2014 = sld [smem:[#allocation3 + $0x1f]]
        %v2015 = vstv %s2014
        %v2016 = vmul.f32 %v2015, %v580
        %v2017 = vmul.f32 %v2015, %v581
        %v2018 = vmul.f32 %v2015, %v582
        %v2019 = vmul.f32 %v2015, %v583
        %v2020 = vmul.f32 %v2015, %v584
        %v2021 = vmul.f32 %v2015, %v585
        %v2022 = vmul.f32 %v2015, %v586
        %v2023 = vmul.f32 %v2015, %v587
        %s2024 = sld [smem:[#allocation5 + $0x1f]]
        %v2025 = vstv %s2024
        %v2026 = vadd.f32 %v2016, %v2025
        %v2027 = vadd.f32 %v2017, %v2025
        %v2028 = vadd.f32 %v2018, %v2025
        %v2029 = vadd.f32 %v2019, %v2025
        %v2030 = vadd.f32 %v2020, %v2025
        %v2031 = vadd.f32 %v2021, %v2025
        %v2032 = vadd.f32 %v2022, %v2025
        %v2033 = vadd.f32 %v2023, %v2025
        %v2034 = vmax.f32 %v2026, 0.0
        %v2035 = vmax.f32 %v2027, 0.0
        %v2036 = vmax.f32 %v2028, 0.0
        %v2037 = vmax.f32 %v2029, 0.0
        %v2038 = vmax.f32 %v2030, 0.0
        %v2039 = vmax.f32 %v2031, 0.0
        %v2040 = vmax.f32 %v2032, 0.0
        %v2041 = vmax.f32 %v2033, 0.0
        %s2042 = sld [smem:[#allocation7 + $0x1f]]
        %v2043 = vstv %s2042
        %v2044 = vmul.f32 %v2043, %v2034
        %v2045 = vmul.f32 %v2043, %v2035
        %v2046 = vmul.f32 %v2043, %v2036
        %v2047 = vmul.f32 %v2043, %v2037
        %v2048 = vmul.f32 %v2043, %v2038
        %v2049 = vmul.f32 %v2043, %v2039
        %v2050 = vmul.f32 %v2043, %v2040
        %v2051 = vmul.f32 %v2043, %v2041
        %v2052 = vadd.f32 %v2006, %v2044
        %v2053 = vadd.f32 %v2007, %v2045
        %v2054 = vadd.f32 %v2008, %v2046
        %v2055 = vadd.f32 %v2009, %v2047
        %v2056 = vadd.f32 %v2010, %v2048
        %v2057 = vadd.f32 %v2011, %v2049
        %v2058 = vadd.f32 %v2012, %v2050
        %v2059 = vadd.f32 %v2013, %v2051
        %s2060 = sld [smem:[#allocation3 + $0x20]]
        %v2061 = vstv %s2060
        %v2062 = vmul.f32 %v2061, %v580
        %v2063 = vmul.f32 %v2061, %v581
        %v2064 = vmul.f32 %v2061, %v582
        %v2065 = vmul.f32 %v2061, %v583
        %v2066 = vmul.f32 %v2061, %v584
        %v2067 = vmul.f32 %v2061, %v585
        %v2068 = vmul.f32 %v2061, %v586
        %v2069 = vmul.f32 %v2061, %v587
        %s2070 = sld [smem:[#allocation5 + $0x20]]
        %v2071 = vstv %s2070
        %v2072 = vadd.f32 %v2062, %v2071
        %v2073 = vadd.f32 %v2063, %v2071
        %v2074 = vadd.f32 %v2064, %v2071
        %v2075 = vadd.f32 %v2065, %v2071
        %v2076 = vadd.f32 %v2066, %v2071
        %v2077 = vadd.f32 %v2067, %v2071
        %v2078 = vadd.f32 %v2068, %v2071
        %v2079 = vadd.f32 %v2069, %v2071
        %v2080 = vmax.f32 %v2072, 0.0
        %v2081 = vmax.f32 %v2073, 0.0
        %v2082 = vmax.f32 %v2074, 0.0
        %v2083 = vmax.f32 %v2075, 0.0
        %v2084 = vmax.f32 %v2076, 0.0
        %v2085 = vmax.f32 %v2077, 0.0
        %v2086 = vmax.f32 %v2078, 0.0
        %v2087 = vmax.f32 %v2079, 0.0
        %s2088 = sld [smem:[#allocation7 + $0x20]]
        %v2089 = vstv %s2088
        %v2090 = vmul.f32 %v2089, %v2080
        %v2091 = vmul.f32 %v2089, %v2081
        %v2092 = vmul.f32 %v2089, %v2082
        %v2093 = vmul.f32 %v2089, %v2083
        %v2094 = vmul.f32 %v2089, %v2084
        %v2095 = vmul.f32 %v2089, %v2085
        %v2096 = vmul.f32 %v2089, %v2086
        %v2097 = vmul.f32 %v2089, %v2087
        %v2098 = vadd.f32 %v2052, %v2090
        %v2099 = vadd.f32 %v2053, %v2091
        %v2100 = vadd.f32 %v2054, %v2092
        %v2101 = vadd.f32 %v2055, %v2093
        %v2102 = vadd.f32 %v2056, %v2094
        %v2103 = vadd.f32 %v2057, %v2095
        %v2104 = vadd.f32 %v2058, %v2096
        %v2105 = vadd.f32 %v2059, %v2097
        %s2106 = sld [smem:[#allocation3 + $0x21]]
        %v2107 = vstv %s2106
        %v2108 = vmul.f32 %v2107, %v580
        %v2109 = vmul.f32 %v2107, %v581
        %v2110 = vmul.f32 %v2107, %v582
        %v2111 = vmul.f32 %v2107, %v583
        %v2112 = vmul.f32 %v2107, %v584
        %v2113 = vmul.f32 %v2107, %v585
        %v2114 = vmul.f32 %v2107, %v586
        %v2115 = vmul.f32 %v2107, %v587
        %s2116 = sld [smem:[#allocation5 + $0x21]]
        %v2117 = vstv %s2116
        %v2118 = vadd.f32 %v2108, %v2117
        %v2119 = vadd.f32 %v2109, %v2117
        %v2120 = vadd.f32 %v2110, %v2117
        %v2121 = vadd.f32 %v2111, %v2117
        %v2122 = vadd.f32 %v2112, %v2117
        %v2123 = vadd.f32 %v2113, %v2117
        %v2124 = vadd.f32 %v2114, %v2117
        %v2125 = vadd.f32 %v2115, %v2117
        %v2126 = vmax.f32 %v2118, 0.0
        %v2127 = vmax.f32 %v2119, 0.0
        %v2128 = vmax.f32 %v2120, 0.0
        %v2129 = vmax.f32 %v2121, 0.0
        %v2130 = vmax.f32 %v2122, 0.0
        %v2131 = vmax.f32 %v2123, 0.0
        %v2132 = vmax.f32 %v2124, 0.0
        %v2133 = vmax.f32 %v2125, 0.0
        %s2134 = sld [smem:[#allocation7 + $0x21]]
        %v2135 = vstv %s2134
        %v2136 = vmul.f32 %v2135, %v2126
        %v2137 = vmul.f32 %v2135, %v2127
        %v2138 = vmul.f32 %v2135, %v2128
        %v2139 = vmul.f32 %v2135, %v2129
        %v2140 = vmul.f32 %v2135, %v2130
        %v2141 = vmul.f32 %v2135, %v2131
        %v2142 = vmul.f32 %v2135, %v2132
        %v2143 = vmul.f32 %v2135, %v2133
        %v2144 = vadd.f32 %v2098, %v2136
        %v2145 = vadd.f32 %v2099, %v2137
        %v2146 = vadd.f32 %v2100, %v2138
        %v2147 = vadd.f32 %v2101, %v2139
        %v2148 = vadd.f32 %v2102, %v2140
        %v2149 = vadd.f32 %v2103, %v2141
        %v2150 = vadd.f32 %v2104, %v2142
        %v2151 = vadd.f32 %v2105, %v2143
        %s2152 = sld [smem:[#allocation3 + $0x22]]
        %v2153 = vstv %s2152
        %v2154 = vmul.f32 %v2153, %v580
        %v2155 = vmul.f32 %v2153, %v581
        %v2156 = vmul.f32 %v2153, %v582
        %v2157 = vmul.f32 %v2153, %v583
        %v2158 = vmul.f32 %v2153, %v584
        %v2159 = vmul.f32 %v2153, %v585
        %v2160 = vmul.f32 %v2153, %v586
        %v2161 = vmul.f32 %v2153, %v587
        %s2162 = sld [smem:[#allocation5 + $0x22]]
        %v2163 = vstv %s2162
        %v2164 = vadd.f32 %v2154, %v2163
        %v2165 = vadd.f32 %v2155, %v2163
        %v2166 = vadd.f32 %v2156, %v2163
        %v2167 = vadd.f32 %v2157, %v2163
        %v2168 = vadd.f32 %v2158, %v2163
        %v2169 = vadd.f32 %v2159, %v2163
        %v2170 = vadd.f32 %v2160, %v2163
        %v2171 = vadd.f32 %v2161, %v2163
        %v2172 = vmax.f32 %v2164, 0.0
        %v2173 = vmax.f32 %v2165, 0.0
        %v2174 = vmax.f32 %v2166, 0.0
        %v2175 = vmax.f32 %v2167, 0.0
        %v2176 = vmax.f32 %v2168, 0.0
        %v2177 = vmax.f32 %v2169, 0.0
        %v2178 = vmax.f32 %v2170, 0.0
        %v2179 = vmax.f32 %v2171, 0.0
        %s2180 = sld [smem:[#allocation7 + $0x22]]
        %v2181 = vstv %s2180
        %v2182 = vmul.f32 %v2181, %v2172
        %v2183 = vmul.f32 %v2181, %v2173
        %v2184 = vmul.f32 %v2181, %v2174
        %v2185 = vmul.f32 %v2181, %v2175
        %v2186 = vmul.f32 %v2181, %v2176
        %v2187 = vmul.f32 %v2181, %v2177
        %v2188 = vmul.f32 %v2181, %v2178
        %v2189 = vmul.f32 %v2181, %v2179
        %v2190 = vadd.f32 %v2144, %v2182
        %v2191 = vadd.f32 %v2145, %v2183
        %v2192 = vadd.f32 %v2146, %v2184
        %v2193 = vadd.f32 %v2147, %v2185
        %v2194 = vadd.f32 %v2148, %v2186
        %v2195 = vadd.f32 %v2149, %v2187
        %v2196 = vadd.f32 %v2150, %v2188
        %v2197 = vadd.f32 %v2151, %v2189
        %s2198 = sld [smem:[#allocation3 + $0x23]]
        %v2199 = vstv %s2198
        %v2200 = vmul.f32 %v2199, %v580
        %v2201 = vmul.f32 %v2199, %v581
        %v2202 = vmul.f32 %v2199, %v582
        %v2203 = vmul.f32 %v2199, %v583
        %v2204 = vmul.f32 %v2199, %v584
        %v2205 = vmul.f32 %v2199, %v585
        %v2206 = vmul.f32 %v2199, %v586
        %v2207 = vmul.f32 %v2199, %v587
        %s2208 = sld [smem:[#allocation5 + $0x23]]
        %v2209 = vstv %s2208
        %v2210 = vadd.f32 %v2200, %v2209
        %v2211 = vadd.f32 %v2201, %v2209
        %v2212 = vadd.f32 %v2202, %v2209
        %v2213 = vadd.f32 %v2203, %v2209
        %v2214 = vadd.f32 %v2204, %v2209
        %v2215 = vadd.f32 %v2205, %v2209
        %v2216 = vadd.f32 %v2206, %v2209
        %v2217 = vadd.f32 %v2207, %v2209
        %v2218 = vmax.f32 %v2210, 0.0
        %v2219 = vmax.f32 %v2211, 0.0
        %v2220 = vmax.f32 %v2212, 0.0
        %v2221 = vmax.f32 %v2213, 0.0
        %v2222 = vmax.f32 %v2214, 0.0
        %v2223 = vmax.f32 %v2215, 0.0
        %v2224 = vmax.f32 %v2216, 0.0
        %v2225 = vmax.f32 %v2217, 0.0
        %s2226 = sld [smem:[#allocation7 + $0x23]]
        %v2227 = vstv %s2226
        %v2228 = vmul.f32 %v2227, %v2218
        %v2229 = vmul.f32 %v2227, %v2219
        %v2230 = vmul.f32 %v2227, %v2220
        %v2231 = vmul.f32 %v2227, %v2221
        %v2232 = vmul.f32 %v2227, %v2222
        %v2233 = vmul.f32 %v2227, %v2223
        %v2234 = vmul.f32 %v2227, %v2224
        %v2235 = vmul.f32 %v2227, %v2225
        %v2236 = vadd.f32 %v2190, %v2228
        %v2237 = vadd.f32 %v2191, %v2229
        %v2238 = vadd.f32 %v2192, %v2230
        %v2239 = vadd.f32 %v2193, %v2231
        %v2240 = vadd.f32 %v2194, %v2232
        %v2241 = vadd.f32 %v2195, %v2233
        %v2242 = vadd.f32 %v2196, %v2234
        %v2243 = vadd.f32 %v2197, %v2235
        %s2244 = sld [smem:[#allocation3 + $0x24]]
        %v2245 = vstv %s2244
        %v2246 = vmul.f32 %v2245, %v580
        %v2247 = vmul.f32 %v2245, %v581
        %v2248 = vmul.f32 %v2245, %v582
        %v2249 = vmul.f32 %v2245, %v583
        %v2250 = vmul.f32 %v2245, %v584
        %v2251 = vmul.f32 %v2245, %v585
        %v2252 = vmul.f32 %v2245, %v586
        %v2253 = vmul.f32 %v2245, %v587
        %s2254 = sld [smem:[#allocation5 + $0x24]]
        %v2255 = vstv %s2254
        %v2256 = vadd.f32 %v2246, %v2255
        %v2257 = vadd.f32 %v2247, %v2255
        %v2258 = vadd.f32 %v2248, %v2255
        %v2259 = vadd.f32 %v2249, %v2255
        %v2260 = vadd.f32 %v2250, %v2255
        %v2261 = vadd.f32 %v2251, %v2255
        %v2262 = vadd.f32 %v2252, %v2255
        %v2263 = vadd.f32 %v2253, %v2255
        %v2264 = vmax.f32 %v2256, 0.0
        %v2265 = vmax.f32 %v2257, 0.0
        %v2266 = vmax.f32 %v2258, 0.0
        %v2267 = vmax.f32 %v2259, 0.0
        %v2268 = vmax.f32 %v2260, 0.0
        %v2269 = vmax.f32 %v2261, 0.0
        %v2270 = vmax.f32 %v2262, 0.0
        %v2271 = vmax.f32 %v2263, 0.0
        %s2272 = sld [smem:[#allocation7 + $0x24]]
        %v2273 = vstv %s2272
        %v2274 = vmul.f32 %v2273, %v2264
        %v2275 = vmul.f32 %v2273, %v2265
        %v2276 = vmul.f32 %v2273, %v2266
        %v2277 = vmul.f32 %v2273, %v2267
        %v2278 = vmul.f32 %v2273, %v2268
        %v2279 = vmul.f32 %v2273, %v2269
        %v2280 = vmul.f32 %v2273, %v2270
        %v2281 = vmul.f32 %v2273, %v2271
        %v2282 = vadd.f32 %v2236, %v2274
        %v2283 = vadd.f32 %v2237, %v2275
        %v2284 = vadd.f32 %v2238, %v2276
        %v2285 = vadd.f32 %v2239, %v2277
        %v2286 = vadd.f32 %v2240, %v2278
        %v2287 = vadd.f32 %v2241, %v2279
        %v2288 = vadd.f32 %v2242, %v2280
        %v2289 = vadd.f32 %v2243, %v2281
        %s2290 = sld [smem:[#allocation3 + $0x25]]
        %v2291 = vstv %s2290
        %v2292 = vmul.f32 %v2291, %v580
        %v2293 = vmul.f32 %v2291, %v581
        %v2294 = vmul.f32 %v2291, %v582
        %v2295 = vmul.f32 %v2291, %v583
        %v2296 = vmul.f32 %v2291, %v584
        %v2297 = vmul.f32 %v2291, %v585
        %v2298 = vmul.f32 %v2291, %v586
        %v2299 = vmul.f32 %v2291, %v587
        %s2300 = sld [smem:[#allocation5 + $0x25]]
        %v2301 = vstv %s2300
        %v2302 = vadd.f32 %v2292, %v2301
        %v2303 = vadd.f32 %v2293, %v2301
        %v2304 = vadd.f32 %v2294, %v2301
        %v2305 = vadd.f32 %v2295, %v2301
        %v2306 = vadd.f32 %v2296, %v2301
        %v2307 = vadd.f32 %v2297, %v2301
        %v2308 = vadd.f32 %v2298, %v2301
        %v2309 = vadd.f32 %v2299, %v2301
        %v2310 = vmax.f32 %v2302, 0.0
        %v2311 = vmax.f32 %v2303, 0.0
        %v2312 = vmax.f32 %v2304, 0.0
        %v2313 = vmax.f32 %v2305, 0.0
        %v2314 = vmax.f32 %v2306, 0.0
        %v2315 = vmax.f32 %v2307, 0.0
        %v2316 = vmax.f32 %v2308, 0.0
        %v2317 = vmax.f32 %v2309, 0.0
        %s2318 = sld [smem:[#allocation7 + $0x25]]
        %v2319 = vstv %s2318
        %v2320 = vmul.f32 %v2319, %v2310
        %v2321 = vmul.f32 %v2319, %v2311
        %v2322 = vmul.f32 %v2319, %v2312
        %v2323 = vmul.f32 %v2319, %v2313
        %v2324 = vmul.f32 %v2319, %v2314
        %v2325 = vmul.f32 %v2319, %v2315
        %v2326 = vmul.f32 %v2319, %v2316
        %v2327 = vmul.f32 %v2319, %v2317
        %v2328 = vadd.f32 %v2282, %v2320
        %v2329 = vadd.f32 %v2283, %v2321
        %v2330 = vadd.f32 %v2284, %v2322
        %v2331 = vadd.f32 %v2285, %v2323
        %v2332 = vadd.f32 %v2286, %v2324
        %v2333 = vadd.f32 %v2287, %v2325
        %v2334 = vadd.f32 %v2288, %v2326
        %v2335 = vadd.f32 %v2289, %v2327
        %s2336 = sld [smem:[#allocation3 + $0x26]]
        %v2337 = vstv %s2336
        %v2338 = vmul.f32 %v2337, %v580
        %v2339 = vmul.f32 %v2337, %v581
        %v2340 = vmul.f32 %v2337, %v582
        %v2341 = vmul.f32 %v2337, %v583
        %v2342 = vmul.f32 %v2337, %v584
        %v2343 = vmul.f32 %v2337, %v585
        %v2344 = vmul.f32 %v2337, %v586
        %v2345 = vmul.f32 %v2337, %v587
        %s2346 = sld [smem:[#allocation5 + $0x26]]
        %v2347 = vstv %s2346
        %v2348 = vadd.f32 %v2338, %v2347
        %v2349 = vadd.f32 %v2339, %v2347
        %v2350 = vadd.f32 %v2340, %v2347
        %v2351 = vadd.f32 %v2341, %v2347
        %v2352 = vadd.f32 %v2342, %v2347
        %v2353 = vadd.f32 %v2343, %v2347
        %v2354 = vadd.f32 %v2344, %v2347
        %v2355 = vadd.f32 %v2345, %v2347
        %v2356 = vmax.f32 %v2348, 0.0
        %v2357 = vmax.f32 %v2349, 0.0
        %v2358 = vmax.f32 %v2350, 0.0
        %v2359 = vmax.f32 %v2351, 0.0
        %v2360 = vmax.f32 %v2352, 0.0
        %v2361 = vmax.f32 %v2353, 0.0
        %v2362 = vmax.f32 %v2354, 0.0
        %v2363 = vmax.f32 %v2355, 0.0
        %s2364 = sld [smem:[#allocation7 + $0x26]]
        %v2365 = vstv %s2364
        %v2366 = vmul.f32 %v2365, %v2356
        %v2367 = vmul.f32 %v2365, %v2357
        %v2368 = vmul.f32 %v2365, %v2358
        %v2369 = vmul.f32 %v2365, %v2359
        %v2370 = vmul.f32 %v2365, %v2360
        %v2371 = vmul.f32 %v2365, %v2361
        %v2372 = vmul.f32 %v2365, %v2362
        %v2373 = vmul.f32 %v2365, %v2363
        %v2374 = vadd.f32 %v2328, %v2366
        %v2375 = vadd.f32 %v2329, %v2367
        %v2376 = vadd.f32 %v2330, %v2368
        %v2377 = vadd.f32 %v2331, %v2369
        %v2378 = vadd.f32 %v2332, %v2370
        %v2379 = vadd.f32 %v2333, %v2371
        %v2380 = vadd.f32 %v2334, %v2372
        %v2381 = vadd.f32 %v2335, %v2373
        %s2382 = sld [smem:[#allocation3 + $0x27]]
        %v2383 = vstv %s2382
        %v2384 = vmul.f32 %v2383, %v580
        %v2385 = vmul.f32 %v2383, %v581
        %v2386 = vmul.f32 %v2383, %v582
        %v2387 = vmul.f32 %v2383, %v583
        %v2388 = vmul.f32 %v2383, %v584
        %v2389 = vmul.f32 %v2383, %v585
        %v2390 = vmul.f32 %v2383, %v586
        %v2391 = vmul.f32 %v2383, %v587
        %s2392 = sld [smem:[#allocation5 + $0x27]]
        %v2393 = vstv %s2392
        %v2394 = vadd.f32 %v2384, %v2393
        %v2395 = vadd.f32 %v2385, %v2393
        %v2396 = vadd.f32 %v2386, %v2393
        %v2397 = vadd.f32 %v2387, %v2393
        %v2398 = vadd.f32 %v2388, %v2393
        %v2399 = vadd.f32 %v2389, %v2393
        %v2400 = vadd.f32 %v2390, %v2393
        %v2401 = vadd.f32 %v2391, %v2393
        %v2402 = vmax.f32 %v2394, 0.0
        %v2403 = vmax.f32 %v2395, 0.0
        %v2404 = vmax.f32 %v2396, 0.0
        %v2405 = vmax.f32 %v2397, 0.0
        %v2406 = vmax.f32 %v2398, 0.0
        %v2407 = vmax.f32 %v2399, 0.0
        %v2408 = vmax.f32 %v2400, 0.0
        %v2409 = vmax.f32 %v2401, 0.0
        %s2410 = sld [smem:[#allocation7 + $0x27]]
        %v2411 = vstv %s2410
        %v2412 = vmul.f32 %v2411, %v2402
        %v2413 = vmul.f32 %v2411, %v2403
        %v2414 = vmul.f32 %v2411, %v2404
        %v2415 = vmul.f32 %v2411, %v2405
        %v2416 = vmul.f32 %v2411, %v2406
        %v2417 = vmul.f32 %v2411, %v2407
        %v2418 = vmul.f32 %v2411, %v2408
        %v2419 = vmul.f32 %v2411, %v2409
        %v2420 = vadd.f32 %v2374, %v2412
        %v2421 = vadd.f32 %v2375, %v2413
        %v2422 = vadd.f32 %v2376, %v2414
        %v2423 = vadd.f32 %v2377, %v2415
        %v2424 = vadd.f32 %v2378, %v2416
        %v2425 = vadd.f32 %v2379, %v2417
        %v2426 = vadd.f32 %v2380, %v2418
        %v2427 = vadd.f32 %v2381, %v2419
        %s2428 = sld [smem:[#allocation3 + $0x28]]
        %v2429 = vstv %s2428
        %v2430 = vmul.f32 %v2429, %v580
        %v2431 = vmul.f32 %v2429, %v581
        %v2432 = vmul.f32 %v2429, %v582
        %v2433 = vmul.f32 %v2429, %v583
        %v2434 = vmul.f32 %v2429, %v584
        %v2435 = vmul.f32 %v2429, %v585
        %v2436 = vmul.f32 %v2429, %v586
        %v2437 = vmul.f32 %v2429, %v587
        %s2438 = sld [smem:[#allocation5 + $0x28]]
        %v2439 = vstv %s2438
        %v2440 = vadd.f32 %v2430, %v2439
        %v2441 = vadd.f32 %v2431, %v2439
        %v2442 = vadd.f32 %v2432, %v2439
        %v2443 = vadd.f32 %v2433, %v2439
        %v2444 = vadd.f32 %v2434, %v2439
        %v2445 = vadd.f32 %v2435, %v2439
        %v2446 = vadd.f32 %v2436, %v2439
        %v2447 = vadd.f32 %v2437, %v2439
        %v2448 = vmax.f32 %v2440, 0.0
        %v2449 = vmax.f32 %v2441, 0.0
        %v2450 = vmax.f32 %v2442, 0.0
        %v2451 = vmax.f32 %v2443, 0.0
        %v2452 = vmax.f32 %v2444, 0.0
        %v2453 = vmax.f32 %v2445, 0.0
        %v2454 = vmax.f32 %v2446, 0.0
        %v2455 = vmax.f32 %v2447, 0.0
        %s2456 = sld [smem:[#allocation7 + $0x28]]
        %v2457 = vstv %s2456
        %v2458 = vmul.f32 %v2457, %v2448
        %v2459 = vmul.f32 %v2457, %v2449
        %v2460 = vmul.f32 %v2457, %v2450
        %v2461 = vmul.f32 %v2457, %v2451
        %v2462 = vmul.f32 %v2457, %v2452
        %v2463 = vmul.f32 %v2457, %v2453
        %v2464 = vmul.f32 %v2457, %v2454
        %v2465 = vmul.f32 %v2457, %v2455
        %v2466 = vadd.f32 %v2420, %v2458
        %v2467 = vadd.f32 %v2421, %v2459
        %v2468 = vadd.f32 %v2422, %v2460
        %v2469 = vadd.f32 %v2423, %v2461
        %v2470 = vadd.f32 %v2424, %v2462
        %v2471 = vadd.f32 %v2425, %v2463
        %v2472 = vadd.f32 %v2426, %v2464
        %v2473 = vadd.f32 %v2427, %v2465
        %s2474 = sld [smem:[#allocation3 + $0x29]]
        %v2475 = vstv %s2474
        %v2476 = vmul.f32 %v2475, %v580
        %v2477 = vmul.f32 %v2475, %v581
        %v2478 = vmul.f32 %v2475, %v582
        %v2479 = vmul.f32 %v2475, %v583
        %v2480 = vmul.f32 %v2475, %v584
        %v2481 = vmul.f32 %v2475, %v585
        %v2482 = vmul.f32 %v2475, %v586
        %v2483 = vmul.f32 %v2475, %v587
        %s2484 = sld [smem:[#allocation5 + $0x29]]
        %v2485 = vstv %s2484
        %v2486 = vadd.f32 %v2476, %v2485
        %v2487 = vadd.f32 %v2477, %v2485
        %v2488 = vadd.f32 %v2478, %v2485
        %v2489 = vadd.f32 %v2479, %v2485
        %v2490 = vadd.f32 %v2480, %v2485
        %v2491 = vadd.f32 %v2481, %v2485
        %v2492 = vadd.f32 %v2482, %v2485
        %v2493 = vadd.f32 %v2483, %v2485
        %v2494 = vmax.f32 %v2486, 0.0
        %v2495 = vmax.f32 %v2487, 0.0
        %v2496 = vmax.f32 %v2488, 0.0
        %v2497 = vmax.f32 %v2489, 0.0
        %v2498 = vmax.f32 %v2490, 0.0
        %v2499 = vmax.f32 %v2491, 0.0
        %v2500 = vmax.f32 %v2492, 0.0
        %v2501 = vmax.f32 %v2493, 0.0
        %s2502 = sld [smem:[#allocation7 + $0x29]]
        %v2503 = vstv %s2502
        %v2504 = vmul.f32 %v2503, %v2494
        %v2505 = vmul.f32 %v2503, %v2495
        %v2506 = vmul.f32 %v2503, %v2496
        %v2507 = vmul.f32 %v2503, %v2497
        %v2508 = vmul.f32 %v2503, %v2498
        %v2509 = vmul.f32 %v2503, %v2499
        %v2510 = vmul.f32 %v2503, %v2500
        %v2511 = vmul.f32 %v2503, %v2501
        %v2512 = vadd.f32 %v2466, %v2504
        %v2513 = vadd.f32 %v2467, %v2505
        %v2514 = vadd.f32 %v2468, %v2506
        %v2515 = vadd.f32 %v2469, %v2507
        %v2516 = vadd.f32 %v2470, %v2508
        %v2517 = vadd.f32 %v2471, %v2509
        %v2518 = vadd.f32 %v2472, %v2510
        %v2519 = vadd.f32 %v2473, %v2511
        %s2520 = sld [smem:[#allocation3 + $0x2a]]
        %v2521 = vstv %s2520
        %v2522 = vmul.f32 %v2521, %v580
        %v2523 = vmul.f32 %v2521, %v581
        %v2524 = vmul.f32 %v2521, %v582
        %v2525 = vmul.f32 %v2521, %v583
        %v2526 = vmul.f32 %v2521, %v584
        %v2527 = vmul.f32 %v2521, %v585
        %v2528 = vmul.f32 %v2521, %v586
        %v2529 = vmul.f32 %v2521, %v587
        %s2530 = sld [smem:[#allocation5 + $0x2a]]
        %v2531 = vstv %s2530
        %v2532 = vadd.f32 %v2522, %v2531
        %v2533 = vadd.f32 %v2523, %v2531
        %v2534 = vadd.f32 %v2524, %v2531
        %v2535 = vadd.f32 %v2525, %v2531
        %v2536 = vadd.f32 %v2526, %v2531
        %v2537 = vadd.f32 %v2527, %v2531
        %v2538 = vadd.f32 %v2528, %v2531
        %v2539 = vadd.f32 %v2529, %v2531
        %v2540 = vmax.f32 %v2532, 0.0
        %v2541 = vmax.f32 %v2533, 0.0
        %v2542 = vmax.f32 %v2534, 0.0
        %v2543 = vmax.f32 %v2535, 0.0
        %v2544 = vmax.f32 %v2536, 0.0
        %v2545 = vmax.f32 %v2537, 0.0
        %v2546 = vmax.f32 %v2538, 0.0
        %v2547 = vmax.f32 %v2539, 0.0
        %s2548 = sld [smem:[#allocation7 + $0x2a]]
        %v2549 = vstv %s2548
        %v2550 = vmul.f32 %v2549, %v2540
        %v2551 = vmul.f32 %v2549, %v2541
        %v2552 = vmul.f32 %v2549, %v2542
        %v2553 = vmul.f32 %v2549, %v2543
        %v2554 = vmul.f32 %v2549, %v2544
        %v2555 = vmul.f32 %v2549, %v2545
        %v2556 = vmul.f32 %v2549, %v2546
        %v2557 = vmul.f32 %v2549, %v2547
        %v2558 = vadd.f32 %v2512, %v2550
        %v2559 = vadd.f32 %v2513, %v2551
        %v2560 = vadd.f32 %v2514, %v2552
        %v2561 = vadd.f32 %v2515, %v2553
        %v2562 = vadd.f32 %v2516, %v2554
        %v2563 = vadd.f32 %v2517, %v2555
        %v2564 = vadd.f32 %v2518, %v2556
        %v2565 = vadd.f32 %v2519, %v2557
        %s2566 = sld [smem:[#allocation3 + $0x2b]]
        %v2567 = vstv %s2566
        %v2568 = vmul.f32 %v2567, %v580
        %v2569 = vmul.f32 %v2567, %v581
        %v2570 = vmul.f32 %v2567, %v582
        %v2571 = vmul.f32 %v2567, %v583
        %v2572 = vmul.f32 %v2567, %v584
        %v2573 = vmul.f32 %v2567, %v585
        %v2574 = vmul.f32 %v2567, %v586
        %v2575 = vmul.f32 %v2567, %v587
        %s2576 = sld [smem:[#allocation5 + $0x2b]]
        %v2577 = vstv %s2576
        %v2578 = vadd.f32 %v2568, %v2577
        %v2579 = vadd.f32 %v2569, %v2577
        %v2580 = vadd.f32 %v2570, %v2577
        %v2581 = vadd.f32 %v2571, %v2577
        %v2582 = vadd.f32 %v2572, %v2577
        %v2583 = vadd.f32 %v2573, %v2577
        %v2584 = vadd.f32 %v2574, %v2577
        %v2585 = vadd.f32 %v2575, %v2577
        %v2586 = vmax.f32 %v2578, 0.0
        %v2587 = vmax.f32 %v2579, 0.0
        %v2588 = vmax.f32 %v2580, 0.0
        %v2589 = vmax.f32 %v2581, 0.0
        %v2590 = vmax.f32 %v2582, 0.0
        %v2591 = vmax.f32 %v2583, 0.0
        %v2592 = vmax.f32 %v2584, 0.0
        %v2593 = vmax.f32 %v2585, 0.0
        %s2594 = sld [smem:[#allocation7 + $0x2b]]
        %v2595 = vstv %s2594
        %v2596 = vmul.f32 %v2595, %v2586
        %v2597 = vmul.f32 %v2595, %v2587
        %v2598 = vmul.f32 %v2595, %v2588
        %v2599 = vmul.f32 %v2595, %v2589
        %v2600 = vmul.f32 %v2595, %v2590
        %v2601 = vmul.f32 %v2595, %v2591
        %v2602 = vmul.f32 %v2595, %v2592
        %v2603 = vmul.f32 %v2595, %v2593
        %v2604 = vadd.f32 %v2558, %v2596
        %v2605 = vadd.f32 %v2559, %v2597
        %v2606 = vadd.f32 %v2560, %v2598
        %v2607 = vadd.f32 %v2561, %v2599
        %v2608 = vadd.f32 %v2562, %v2600
        %v2609 = vadd.f32 %v2563, %v2601
        %v2610 = vadd.f32 %v2564, %v2602
        %v2611 = vadd.f32 %v2565, %v2603
        %s2612 = sld [smem:[#allocation3 + $0x2c]]
        %v2613 = vstv %s2612
        %v2614 = vmul.f32 %v2613, %v580
        %v2615 = vmul.f32 %v2613, %v581
        %v2616 = vmul.f32 %v2613, %v582
        %v2617 = vmul.f32 %v2613, %v583
        %v2618 = vmul.f32 %v2613, %v584
        %v2619 = vmul.f32 %v2613, %v585
        %v2620 = vmul.f32 %v2613, %v586
        %v2621 = vmul.f32 %v2613, %v587
        %s2622 = sld [smem:[#allocation5 + $0x2c]]
        %v2623 = vstv %s2622
        %v2624 = vadd.f32 %v2614, %v2623
        %v2625 = vadd.f32 %v2615, %v2623
        %v2626 = vadd.f32 %v2616, %v2623
        %v2627 = vadd.f32 %v2617, %v2623
        %v2628 = vadd.f32 %v2618, %v2623
        %v2629 = vadd.f32 %v2619, %v2623
        %v2630 = vadd.f32 %v2620, %v2623
        %v2631 = vadd.f32 %v2621, %v2623
        %v2632 = vmax.f32 %v2624, 0.0
        %v2633 = vmax.f32 %v2625, 0.0
        %v2634 = vmax.f32 %v2626, 0.0
        %v2635 = vmax.f32 %v2627, 0.0
        %v2636 = vmax.f32 %v2628, 0.0
        %v2637 = vmax.f32 %v2629, 0.0
        %v2638 = vmax.f32 %v2630, 0.0
        %v2639 = vmax.f32 %v2631, 0.0
        %s2640 = sld [smem:[#allocation7 + $0x2c]]
        %v2641 = vstv %s2640
        %v2642 = vmul.f32 %v2641, %v2632
        %v2643 = vmul.f32 %v2641, %v2633
        %v2644 = vmul.f32 %v2641, %v2634
        %v2645 = vmul.f32 %v2641, %v2635
        %v2646 = vmul.f32 %v2641, %v2636
        %v2647 = vmul.f32 %v2641, %v2637
        %v2648 = vmul.f32 %v2641, %v2638
        %v2649 = vmul.f32 %v2641, %v2639
        %v2650 = vadd.f32 %v2604, %v2642
        %v2651 = vadd.f32 %v2605, %v2643
        %v2652 = vadd.f32 %v2606, %v2644
        %v2653 = vadd.f32 %v2607, %v2645
        %v2654 = vadd.f32 %v2608, %v2646
        %v2655 = vadd.f32 %v2609, %v2647
        %v2656 = vadd.f32 %v2610, %v2648
        %v2657 = vadd.f32 %v2611, %v2649
        %s2658 = sld [smem:[#allocation3 + $0x2d]]
        %v2659 = vstv %s2658
        %v2660 = vmul.f32 %v2659, %v580
        %v2661 = vmul.f32 %v2659, %v581
        %v2662 = vmul.f32 %v2659, %v582
        %v2663 = vmul.f32 %v2659, %v583
        %v2664 = vmul.f32 %v2659, %v584
        %v2665 = vmul.f32 %v2659, %v585
        %v2666 = vmul.f32 %v2659, %v586
        %v2667 = vmul.f32 %v2659, %v587
        %s2668 = sld [smem:[#allocation5 + $0x2d]]
        %v2669 = vstv %s2668
        %v2670 = vadd.f32 %v2660, %v2669
        %v2671 = vadd.f32 %v2661, %v2669
        %v2672 = vadd.f32 %v2662, %v2669
        %v2673 = vadd.f32 %v2663, %v2669
        %v2674 = vadd.f32 %v2664, %v2669
        %v2675 = vadd.f32 %v2665, %v2669
        %v2676 = vadd.f32 %v2666, %v2669
        %v2677 = vadd.f32 %v2667, %v2669
        %v2678 = vmax.f32 %v2670, 0.0
        %v2679 = vmax.f32 %v2671, 0.0
        %v2680 = vmax.f32 %v2672, 0.0
        %v2681 = vmax.f32 %v2673, 0.0
        %v2682 = vmax.f32 %v2674, 0.0
        %v2683 = vmax.f32 %v2675, 0.0
        %v2684 = vmax.f32 %v2676, 0.0
        %v2685 = vmax.f32 %v2677, 0.0
        %s2686 = sld [smem:[#allocation7 + $0x2d]]
        %v2687 = vstv %s2686
        %v2688 = vmul.f32 %v2687, %v2678
        %v2689 = vmul.f32 %v2687, %v2679
        %v2690 = vmul.f32 %v2687, %v2680
        %v2691 = vmul.f32 %v2687, %v2681
        %v2692 = vmul.f32 %v2687, %v2682
        %v2693 = vmul.f32 %v2687, %v2683
        %v2694 = vmul.f32 %v2687, %v2684
        %v2695 = vmul.f32 %v2687, %v2685
        %v2696 = vadd.f32 %v2650, %v2688
        %v2697 = vadd.f32 %v2651, %v2689
        %v2698 = vadd.f32 %v2652, %v2690
        %v2699 = vadd.f32 %v2653, %v2691
        %v2700 = vadd.f32 %v2654, %v2692
        %v2701 = vadd.f32 %v2655, %v2693
        %v2702 = vadd.f32 %v2656, %v2694
        %v2703 = vadd.f32 %v2657, %v2695
        %s2704 = sld [smem:[#allocation3 + $0x2e]]
        %v2705 = vstv %s2704
        %v2706 = vmul.f32 %v2705, %v580
        %v2707 = vmul.f32 %v2705, %v581
        %v2708 = vmul.f32 %v2705, %v582
        %v2709 = vmul.f32 %v2705, %v583
        %v2710 = vmul.f32 %v2705, %v584
        %v2711 = vmul.f32 %v2705, %v585
        %v2712 = vmul.f32 %v2705, %v586
        %v2713 = vmul.f32 %v2705, %v587
        %s2714 = sld [smem:[#allocation5 + $0x2e]]
        %v2715 = vstv %s2714
        %v2716 = vadd.f32 %v2706, %v2715
        %v2717 = vadd.f32 %v2707, %v2715
        %v2718 = vadd.f32 %v2708, %v2715
        %v2719 = vadd.f32 %v2709, %v2715
        %v2720 = vadd.f32 %v2710, %v2715
        %v2721 = vadd.f32 %v2711, %v2715
        %v2722 = vadd.f32 %v2712, %v2715
        %v2723 = vadd.f32 %v2713, %v2715
        %v2724 = vmax.f32 %v2716, 0.0
        %v2725 = vmax.f32 %v2717, 0.0
        %v2726 = vmax.f32 %v2718, 0.0
        %v2727 = vmax.f32 %v2719, 0.0
        %v2728 = vmax.f32 %v2720, 0.0
        %v2729 = vmax.f32 %v2721, 0.0
        %v2730 = vmax.f32 %v2722, 0.0
        %v2731 = vmax.f32 %v2723, 0.0
        %s2732 = sld [smem:[#allocation7 + $0x2e]]
        %v2733 = vstv %s2732
        %v2734 = vmul.f32 %v2733, %v2724
        %v2735 = vmul.f32 %v2733, %v2725
        %v2736 = vmul.f32 %v2733, %v2726
        %v2737 = vmul.f32 %v2733, %v2727
        %v2738 = vmul.f32 %v2733, %v2728
        %v2739 = vmul.f32 %v2733, %v2729
        %v2740 = vmul.f32 %v2733, %v2730
        %v2741 = vmul.f32 %v2733, %v2731
        %v2742 = vadd.f32 %v2696, %v2734
        %v2743 = vadd.f32 %v2697, %v2735
        %v2744 = vadd.f32 %v2698, %v2736
        %v2745 = vadd.f32 %v2699, %v2737
        %v2746 = vadd.f32 %v2700, %v2738
        %v2747 = vadd.f32 %v2701, %v2739
        %v2748 = vadd.f32 %v2702, %v2740
        %v2749 = vadd.f32 %v2703, %v2741
        %s2750 = sld [smem:[#allocation3 + $0x2f]]
        %v2751 = vstv %s2750
        %v2752 = vmul.f32 %v2751, %v580
        %v2753 = vmul.f32 %v2751, %v581
        %v2754 = vmul.f32 %v2751, %v582
        %v2755 = vmul.f32 %v2751, %v583
        %v2756 = vmul.f32 %v2751, %v584
        %v2757 = vmul.f32 %v2751, %v585
        %v2758 = vmul.f32 %v2751, %v586
        %v2759 = vmul.f32 %v2751, %v587
        %s2760 = sld [smem:[#allocation5 + $0x2f]]
        %v2761 = vstv %s2760
        %v2762 = vadd.f32 %v2752, %v2761
        %v2763 = vadd.f32 %v2753, %v2761
        %v2764 = vadd.f32 %v2754, %v2761
        %v2765 = vadd.f32 %v2755, %v2761
        %v2766 = vadd.f32 %v2756, %v2761
        %v2767 = vadd.f32 %v2757, %v2761
        %v2768 = vadd.f32 %v2758, %v2761
        %v2769 = vadd.f32 %v2759, %v2761
        %v2770 = vmax.f32 %v2762, 0.0
        %v2771 = vmax.f32 %v2763, 0.0
        %v2772 = vmax.f32 %v2764, 0.0
        %v2773 = vmax.f32 %v2765, 0.0
        %v2774 = vmax.f32 %v2766, 0.0
        %v2775 = vmax.f32 %v2767, 0.0
        %v2776 = vmax.f32 %v2768, 0.0
        %v2777 = vmax.f32 %v2769, 0.0
        %s2778 = sld [smem:[#allocation7 + $0x2f]]
        %v2779 = vstv %s2778
        %v2780 = vmul.f32 %v2779, %v2770
        %v2781 = vmul.f32 %v2779, %v2771
        %v2782 = vmul.f32 %v2779, %v2772
        %v2783 = vmul.f32 %v2779, %v2773
        %v2784 = vmul.f32 %v2779, %v2774
        %v2785 = vmul.f32 %v2779, %v2775
        %v2786 = vmul.f32 %v2779, %v2776
        %v2787 = vmul.f32 %v2779, %v2777
        %v2788 = vadd.f32 %v2742, %v2780
        %v2789 = vadd.f32 %v2743, %v2781
        %v2790 = vadd.f32 %v2744, %v2782
        %v2791 = vadd.f32 %v2745, %v2783
        %v2792 = vadd.f32 %v2746, %v2784
        %v2793 = vadd.f32 %v2747, %v2785
        %v2794 = vadd.f32 %v2748, %v2786
        %v2795 = vadd.f32 %v2749, %v2787
        %s2796 = sld [smem:[#allocation3 + $0x30]]
        %v2797 = vstv %s2796
        %v2798 = vmul.f32 %v2797, %v580
        %v2799 = vmul.f32 %v2797, %v581
        %v2800 = vmul.f32 %v2797, %v582
        %v2801 = vmul.f32 %v2797, %v583
        %v2802 = vmul.f32 %v2797, %v584
        %v2803 = vmul.f32 %v2797, %v585
        %v2804 = vmul.f32 %v2797, %v586
        %v2805 = vmul.f32 %v2797, %v587
        %s2806 = sld [smem:[#allocation5 + $0x30]]
        %v2807 = vstv %s2806
        %v2808 = vadd.f32 %v2798, %v2807
        %v2809 = vadd.f32 %v2799, %v2807
        %v2810 = vadd.f32 %v2800, %v2807
        %v2811 = vadd.f32 %v2801, %v2807
        %v2812 = vadd.f32 %v2802, %v2807
        %v2813 = vadd.f32 %v2803, %v2807
        %v2814 = vadd.f32 %v2804, %v2807
        %v2815 = vadd.f32 %v2805, %v2807
        %v2816 = vmax.f32 %v2808, 0.0
        %v2817 = vmax.f32 %v2809, 0.0
        %v2818 = vmax.f32 %v2810, 0.0
        %v2819 = vmax.f32 %v2811, 0.0
        %v2820 = vmax.f32 %v2812, 0.0
        %v2821 = vmax.f32 %v2813, 0.0
        %v2822 = vmax.f32 %v2814, 0.0
        %v2823 = vmax.f32 %v2815, 0.0
        %s2824 = sld [smem:[#allocation7 + $0x30]]
        %v2825 = vstv %s2824
        %v2826 = vmul.f32 %v2825, %v2816
        %v2827 = vmul.f32 %v2825, %v2817
        %v2828 = vmul.f32 %v2825, %v2818
        %v2829 = vmul.f32 %v2825, %v2819
        %v2830 = vmul.f32 %v2825, %v2820
        %v2831 = vmul.f32 %v2825, %v2821
        %v2832 = vmul.f32 %v2825, %v2822
        %v2833 = vmul.f32 %v2825, %v2823
        %v2834 = vadd.f32 %v2788, %v2826
        %v2835 = vadd.f32 %v2789, %v2827
        %v2836 = vadd.f32 %v2790, %v2828
        %v2837 = vadd.f32 %v2791, %v2829
        %v2838 = vadd.f32 %v2792, %v2830
        %v2839 = vadd.f32 %v2793, %v2831
        %v2840 = vadd.f32 %v2794, %v2832
        %v2841 = vadd.f32 %v2795, %v2833
        %s2842 = sld [smem:[#allocation3 + $0x31]]
        %v2843 = vstv %s2842
        %v2844 = vmul.f32 %v2843, %v580
        %v2845 = vmul.f32 %v2843, %v581
        %v2846 = vmul.f32 %v2843, %v582
        %v2847 = vmul.f32 %v2843, %v583
        %v2848 = vmul.f32 %v2843, %v584
        %v2849 = vmul.f32 %v2843, %v585
        %v2850 = vmul.f32 %v2843, %v586
        %v2851 = vmul.f32 %v2843, %v587
        %s2852 = sld [smem:[#allocation5 + $0x31]]
        %v2853 = vstv %s2852
        %v2854 = vadd.f32 %v2844, %v2853
        %v2855 = vadd.f32 %v2845, %v2853
        %v2856 = vadd.f32 %v2846, %v2853
        %v2857 = vadd.f32 %v2847, %v2853
        %v2858 = vadd.f32 %v2848, %v2853
        %v2859 = vadd.f32 %v2849, %v2853
        %v2860 = vadd.f32 %v2850, %v2853
        %v2861 = vadd.f32 %v2851, %v2853
        %v2862 = vmax.f32 %v2854, 0.0
        %v2863 = vmax.f32 %v2855, 0.0
        %v2864 = vmax.f32 %v2856, 0.0
        %v2865 = vmax.f32 %v2857, 0.0
        %v2866 = vmax.f32 %v2858, 0.0
        %v2867 = vmax.f32 %v2859, 0.0
        %v2868 = vmax.f32 %v2860, 0.0
        %v2869 = vmax.f32 %v2861, 0.0
        %s2870 = sld [smem:[#allocation7 + $0x31]]
        %v2871 = vstv %s2870
        %v2872 = vmul.f32 %v2871, %v2862
        %v2873 = vmul.f32 %v2871, %v2863
        %v2874 = vmul.f32 %v2871, %v2864
        %v2875 = vmul.f32 %v2871, %v2865
        %v2876 = vmul.f32 %v2871, %v2866
        %v2877 = vmul.f32 %v2871, %v2867
        %v2878 = vmul.f32 %v2871, %v2868
        %v2879 = vmul.f32 %v2871, %v2869
        %v2880 = vadd.f32 %v2834, %v2872
        %v2881 = vadd.f32 %v2835, %v2873
        %v2882 = vadd.f32 %v2836, %v2874
        %v2883 = vadd.f32 %v2837, %v2875
        %v2884 = vadd.f32 %v2838, %v2876
        %v2885 = vadd.f32 %v2839, %v2877
        %v2886 = vadd.f32 %v2840, %v2878
        %v2887 = vadd.f32 %v2841, %v2879
        %s2888 = sld [smem:[#allocation3 + $0x32]]
        %v2889 = vstv %s2888
        %v2890 = vmul.f32 %v2889, %v580
        %v2891 = vmul.f32 %v2889, %v581
        %v2892 = vmul.f32 %v2889, %v582
        %v2893 = vmul.f32 %v2889, %v583
        %v2894 = vmul.f32 %v2889, %v584
        %v2895 = vmul.f32 %v2889, %v585
        %v2896 = vmul.f32 %v2889, %v586
        %v2897 = vmul.f32 %v2889, %v587
        %s2898 = sld [smem:[#allocation5 + $0x32]]
        %v2899 = vstv %s2898
        %v2900 = vadd.f32 %v2890, %v2899
        %v2901 = vadd.f32 %v2891, %v2899
        %v2902 = vadd.f32 %v2892, %v2899
        %v2903 = vadd.f32 %v2893, %v2899
        %v2904 = vadd.f32 %v2894, %v2899
        %v2905 = vadd.f32 %v2895, %v2899
        %v2906 = vadd.f32 %v2896, %v2899
        %v2907 = vadd.f32 %v2897, %v2899
        %v2908 = vmax.f32 %v2900, 0.0
        %v2909 = vmax.f32 %v2901, 0.0
        %v2910 = vmax.f32 %v2902, 0.0
        %v2911 = vmax.f32 %v2903, 0.0
        %v2912 = vmax.f32 %v2904, 0.0
        %v2913 = vmax.f32 %v2905, 0.0
        %v2914 = vmax.f32 %v2906, 0.0
        %v2915 = vmax.f32 %v2907, 0.0
        %s2916 = sld [smem:[#allocation7 + $0x32]]
        %v2917 = vstv %s2916
        %v2918 = vmul.f32 %v2917, %v2908
        %v2919 = vmul.f32 %v2917, %v2909
        %v2920 = vmul.f32 %v2917, %v2910
        %v2921 = vmul.f32 %v2917, %v2911
        %v2922 = vmul.f32 %v2917, %v2912
        %v2923 = vmul.f32 %v2917, %v2913
        %v2924 = vmul.f32 %v2917, %v2914
        %v2925 = vmul.f32 %v2917, %v2915
        %v2926 = vadd.f32 %v2880, %v2918
        %v2927 = vadd.f32 %v2881, %v2919
        %v2928 = vadd.f32 %v2882, %v2920
        %v2929 = vadd.f32 %v2883, %v2921
        %v2930 = vadd.f32 %v2884, %v2922
        %v2931 = vadd.f32 %v2885, %v2923
        %v2932 = vadd.f32 %v2886, %v2924
        %v2933 = vadd.f32 %v2887, %v2925
        %s2934 = sld [smem:[#allocation3 + $0x33]]
        %v2935 = vstv %s2934
        %v2936 = vmul.f32 %v2935, %v580
        %v2937 = vmul.f32 %v2935, %v581
        %v2938 = vmul.f32 %v2935, %v582
        %v2939 = vmul.f32 %v2935, %v583
        %v2940 = vmul.f32 %v2935, %v584
        %v2941 = vmul.f32 %v2935, %v585
        %v2942 = vmul.f32 %v2935, %v586
        %v2943 = vmul.f32 %v2935, %v587
        %s2944 = sld [smem:[#allocation5 + $0x33]]
        %v2945 = vstv %s2944
        %v2946 = vadd.f32 %v2936, %v2945
        %v2947 = vadd.f32 %v2937, %v2945
        %v2948 = vadd.f32 %v2938, %v2945
        %v2949 = vadd.f32 %v2939, %v2945
        %v2950 = vadd.f32 %v2940, %v2945
        %v2951 = vadd.f32 %v2941, %v2945
        %v2952 = vadd.f32 %v2942, %v2945
        %v2953 = vadd.f32 %v2943, %v2945
        %v2954 = vmax.f32 %v2946, 0.0
        %v2955 = vmax.f32 %v2947, 0.0
        %v2956 = vmax.f32 %v2948, 0.0
        %v2957 = vmax.f32 %v2949, 0.0
        %v2958 = vmax.f32 %v2950, 0.0
        %v2959 = vmax.f32 %v2951, 0.0
        %v2960 = vmax.f32 %v2952, 0.0
        %v2961 = vmax.f32 %v2953, 0.0
        %s2962 = sld [smem:[#allocation7 + $0x33]]
        %v2963 = vstv %s2962
        %v2964 = vmul.f32 %v2963, %v2954
        %v2965 = vmul.f32 %v2963, %v2955
        %v2966 = vmul.f32 %v2963, %v2956
        %v2967 = vmul.f32 %v2963, %v2957
        %v2968 = vmul.f32 %v2963, %v2958
        %v2969 = vmul.f32 %v2963, %v2959
        %v2970 = vmul.f32 %v2963, %v2960
        %v2971 = vmul.f32 %v2963, %v2961
        %v2972 = vadd.f32 %v2926, %v2964
        %v2973 = vadd.f32 %v2927, %v2965
        %v2974 = vadd.f32 %v2928, %v2966
        %v2975 = vadd.f32 %v2929, %v2967
        %v2976 = vadd.f32 %v2930, %v2968
        %v2977 = vadd.f32 %v2931, %v2969
        %v2978 = vadd.f32 %v2932, %v2970
        %v2979 = vadd.f32 %v2933, %v2971
        %s2980 = sld [smem:[#allocation3 + $0x34]]
        %v2981 = vstv %s2980
        %v2982 = vmul.f32 %v2981, %v580
        %v2983 = vmul.f32 %v2981, %v581
        %v2984 = vmul.f32 %v2981, %v582
        %v2985 = vmul.f32 %v2981, %v583
        %v2986 = vmul.f32 %v2981, %v584
        %v2987 = vmul.f32 %v2981, %v585
        %v2988 = vmul.f32 %v2981, %v586
        %v2989 = vmul.f32 %v2981, %v587
        %s2990 = sld [smem:[#allocation5 + $0x34]]
        %v2991 = vstv %s2990
        %v2992 = vadd.f32 %v2982, %v2991
        %v2993 = vadd.f32 %v2983, %v2991
        %v2994 = vadd.f32 %v2984, %v2991
        %v2995 = vadd.f32 %v2985, %v2991
        %v2996 = vadd.f32 %v2986, %v2991
        %v2997 = vadd.f32 %v2987, %v2991
        %v2998 = vadd.f32 %v2988, %v2991
        %v2999 = vadd.f32 %v2989, %v2991
        %v3000 = vmax.f32 %v2992, 0.0
        %v3001 = vmax.f32 %v2993, 0.0
        %v3002 = vmax.f32 %v2994, 0.0
        %v3003 = vmax.f32 %v2995, 0.0
        %v3004 = vmax.f32 %v2996, 0.0
        %v3005 = vmax.f32 %v2997, 0.0
        %v3006 = vmax.f32 %v2998, 0.0
        %v3007 = vmax.f32 %v2999, 0.0
        %s3008 = sld [smem:[#allocation7 + $0x34]]
        %v3009 = vstv %s3008
        %v3010 = vmul.f32 %v3009, %v3000
        %v3011 = vmul.f32 %v3009, %v3001
        %v3012 = vmul.f32 %v3009, %v3002
        %v3013 = vmul.f32 %v3009, %v3003
        %v3014 = vmul.f32 %v3009, %v3004
        %v3015 = vmul.f32 %v3009, %v3005
        %v3016 = vmul.f32 %v3009, %v3006
        %v3017 = vmul.f32 %v3009, %v3007
        %v3018 = vadd.f32 %v2972, %v3010
        %v3019 = vadd.f32 %v2973, %v3011
        %v3020 = vadd.f32 %v2974, %v3012
        %v3021 = vadd.f32 %v2975, %v3013
        %v3022 = vadd.f32 %v2976, %v3014
        %v3023 = vadd.f32 %v2977, %v3015
        %v3024 = vadd.f32 %v2978, %v3016
        %v3025 = vadd.f32 %v2979, %v3017
        %s3026 = sld [smem:[#allocation3 + $0x35]]
        %v3027 = vstv %s3026
        %v3028 = vmul.f32 %v3027, %v580
        %v3029 = vmul.f32 %v3027, %v581
        %v3030 = vmul.f32 %v3027, %v582
        %v3031 = vmul.f32 %v3027, %v583
        %v3032 = vmul.f32 %v3027, %v584
        %v3033 = vmul.f32 %v3027, %v585
        %v3034 = vmul.f32 %v3027, %v586
        %v3035 = vmul.f32 %v3027, %v587
        %s3036 = sld [smem:[#allocation5 + $0x35]]
        %v3037 = vstv %s3036
        %v3038 = vadd.f32 %v3028, %v3037
        %v3039 = vadd.f32 %v3029, %v3037
        %v3040 = vadd.f32 %v3030, %v3037
        %v3041 = vadd.f32 %v3031, %v3037
        %v3042 = vadd.f32 %v3032, %v3037
        %v3043 = vadd.f32 %v3033, %v3037
        %v3044 = vadd.f32 %v3034, %v3037
        %v3045 = vadd.f32 %v3035, %v3037
        %v3046 = vmax.f32 %v3038, 0.0
        %v3047 = vmax.f32 %v3039, 0.0
        %v3048 = vmax.f32 %v3040, 0.0
        %v3049 = vmax.f32 %v3041, 0.0
        %v3050 = vmax.f32 %v3042, 0.0
        %v3051 = vmax.f32 %v3043, 0.0
        %v3052 = vmax.f32 %v3044, 0.0
        %v3053 = vmax.f32 %v3045, 0.0
        %s3054 = sld [smem:[#allocation7 + $0x35]]
        %v3055 = vstv %s3054
        %v3056 = vmul.f32 %v3055, %v3046
        %v3057 = vmul.f32 %v3055, %v3047
        %v3058 = vmul.f32 %v3055, %v3048
        %v3059 = vmul.f32 %v3055, %v3049
        %v3060 = vmul.f32 %v3055, %v3050
        %v3061 = vmul.f32 %v3055, %v3051
        %v3062 = vmul.f32 %v3055, %v3052
        %v3063 = vmul.f32 %v3055, %v3053
        %v3064 = vadd.f32 %v3018, %v3056
        %v3065 = vadd.f32 %v3019, %v3057
        %v3066 = vadd.f32 %v3020, %v3058
        %v3067 = vadd.f32 %v3021, %v3059
        %v3068 = vadd.f32 %v3022, %v3060
        %v3069 = vadd.f32 %v3023, %v3061
        %v3070 = vadd.f32 %v3024, %v3062
        %v3071 = vadd.f32 %v3025, %v3063
        %s3072 = sld [smem:[#allocation3 + $0x36]]
        %v3073 = vstv %s3072
        %v3074 = vmul.f32 %v3073, %v580
        %v3075 = vmul.f32 %v3073, %v581
        %v3076 = vmul.f32 %v3073, %v582
        %v3077 = vmul.f32 %v3073, %v583
        %v3078 = vmul.f32 %v3073, %v584
        %v3079 = vmul.f32 %v3073, %v585
        %v3080 = vmul.f32 %v3073, %v586
        %v3081 = vmul.f32 %v3073, %v587
        %s3082 = sld [smem:[#allocation5 + $0x36]]
        %v3083 = vstv %s3082
        %v3084 = vadd.f32 %v3074, %v3083
        %v3085 = vadd.f32 %v3075, %v3083
        %v3086 = vadd.f32 %v3076, %v3083
        %v3087 = vadd.f32 %v3077, %v3083
        %v3088 = vadd.f32 %v3078, %v3083
        %v3089 = vadd.f32 %v3079, %v3083
        %v3090 = vadd.f32 %v3080, %v3083
        %v3091 = vadd.f32 %v3081, %v3083
        %v3092 = vmax.f32 %v3084, 0.0
        %v3093 = vmax.f32 %v3085, 0.0
        %v3094 = vmax.f32 %v3086, 0.0
        %v3095 = vmax.f32 %v3087, 0.0
        %v3096 = vmax.f32 %v3088, 0.0
        %v3097 = vmax.f32 %v3089, 0.0
        %v3098 = vmax.f32 %v3090, 0.0
        %v3099 = vmax.f32 %v3091, 0.0
        %s3100 = sld [smem:[#allocation7 + $0x36]]
        %v3101 = vstv %s3100
        %v3102 = vmul.f32 %v3101, %v3092
        %v3103 = vmul.f32 %v3101, %v3093
        %v3104 = vmul.f32 %v3101, %v3094
        %v3105 = vmul.f32 %v3101, %v3095
        %v3106 = vmul.f32 %v3101, %v3096
        %v3107 = vmul.f32 %v3101, %v3097
        %v3108 = vmul.f32 %v3101, %v3098
        %v3109 = vmul.f32 %v3101, %v3099
        %v3110 = vadd.f32 %v3064, %v3102
        %v3111 = vadd.f32 %v3065, %v3103
        %v3112 = vadd.f32 %v3066, %v3104
        %v3113 = vadd.f32 %v3067, %v3105
        %v3114 = vadd.f32 %v3068, %v3106
        %v3115 = vadd.f32 %v3069, %v3107
        %v3116 = vadd.f32 %v3070, %v3108
        %v3117 = vadd.f32 %v3071, %v3109
        %s3118 = sld [smem:[#allocation3 + $0x37]]
        %v3119 = vstv %s3118
        %v3120 = vmul.f32 %v3119, %v580
        %v3121 = vmul.f32 %v3119, %v581
        %v3122 = vmul.f32 %v3119, %v582
        %v3123 = vmul.f32 %v3119, %v583
        %v3124 = vmul.f32 %v3119, %v584
        %v3125 = vmul.f32 %v3119, %v585
        %v3126 = vmul.f32 %v3119, %v586
        %v3127 = vmul.f32 %v3119, %v587
        %s3128 = sld [smem:[#allocation5 + $0x37]]
        %v3129 = vstv %s3128
        %v3130 = vadd.f32 %v3120, %v3129
        %v3131 = vadd.f32 %v3121, %v3129
        %v3132 = vadd.f32 %v3122, %v3129
        %v3133 = vadd.f32 %v3123, %v3129
        %v3134 = vadd.f32 %v3124, %v3129
        %v3135 = vadd.f32 %v3125, %v3129
        %v3136 = vadd.f32 %v3126, %v3129
        %v3137 = vadd.f32 %v3127, %v3129
        %v3138 = vmax.f32 %v3130, 0.0
        %v3139 = vmax.f32 %v3131, 0.0
        %v3140 = vmax.f32 %v3132, 0.0
        %v3141 = vmax.f32 %v3133, 0.0
        %v3142 = vmax.f32 %v3134, 0.0
        %v3143 = vmax.f32 %v3135, 0.0
        %v3144 = vmax.f32 %v3136, 0.0
        %v3145 = vmax.f32 %v3137, 0.0
        %s3146 = sld [smem:[#allocation7 + $0x37]]
        %v3147 = vstv %s3146
        %v3148 = vmul.f32 %v3147, %v3138
        %v3149 = vmul.f32 %v3147, %v3139
        %v3150 = vmul.f32 %v3147, %v3140
        %v3151 = vmul.f32 %v3147, %v3141
        %v3152 = vmul.f32 %v3147, %v3142
        %v3153 = vmul.f32 %v3147, %v3143
        %v3154 = vmul.f32 %v3147, %v3144
        %v3155 = vmul.f32 %v3147, %v3145
        %v3156 = vadd.f32 %v3110, %v3148
        %v3157 = vadd.f32 %v3111, %v3149
        %v3158 = vadd.f32 %v3112, %v3150
        %v3159 = vadd.f32 %v3113, %v3151
        %v3160 = vadd.f32 %v3114, %v3152
        %v3161 = vadd.f32 %v3115, %v3153
        %v3162 = vadd.f32 %v3116, %v3154
        %v3163 = vadd.f32 %v3117, %v3155
        %s3164 = sld [smem:[#allocation3 + $0x38]]
        %v3165 = vstv %s3164
        %v3166 = vmul.f32 %v3165, %v580
        %v3167 = vmul.f32 %v3165, %v581
        %v3168 = vmul.f32 %v3165, %v582
        %v3169 = vmul.f32 %v3165, %v583
        %v3170 = vmul.f32 %v3165, %v584
        %v3171 = vmul.f32 %v3165, %v585
        %v3172 = vmul.f32 %v3165, %v586
        %v3173 = vmul.f32 %v3165, %v587
        %s3174 = sld [smem:[#allocation5 + $0x38]]
        %v3175 = vstv %s3174
        %v3176 = vadd.f32 %v3166, %v3175
        %v3177 = vadd.f32 %v3167, %v3175
        %v3178 = vadd.f32 %v3168, %v3175
        %v3179 = vadd.f32 %v3169, %v3175
        %v3180 = vadd.f32 %v3170, %v3175
        %v3181 = vadd.f32 %v3171, %v3175
        %v3182 = vadd.f32 %v3172, %v3175
        %v3183 = vadd.f32 %v3173, %v3175
        %v3184 = vmax.f32 %v3176, 0.0
        %v3185 = vmax.f32 %v3177, 0.0
        %v3186 = vmax.f32 %v3178, 0.0
        %v3187 = vmax.f32 %v3179, 0.0
        %v3188 = vmax.f32 %v3180, 0.0
        %v3189 = vmax.f32 %v3181, 0.0
        %v3190 = vmax.f32 %v3182, 0.0
        %v3191 = vmax.f32 %v3183, 0.0
        %s3192 = sld [smem:[#allocation7 + $0x38]]
        %v3193 = vstv %s3192
        %v3194 = vmul.f32 %v3193, %v3184
        %v3195 = vmul.f32 %v3193, %v3185
        %v3196 = vmul.f32 %v3193, %v3186
        %v3197 = vmul.f32 %v3193, %v3187
        %v3198 = vmul.f32 %v3193, %v3188
        %v3199 = vmul.f32 %v3193, %v3189
        %v3200 = vmul.f32 %v3193, %v3190
        %v3201 = vmul.f32 %v3193, %v3191
        %v3202 = vadd.f32 %v3156, %v3194
        %v3203 = vadd.f32 %v3157, %v3195
        %v3204 = vadd.f32 %v3158, %v3196
        %v3205 = vadd.f32 %v3159, %v3197
        %v3206 = vadd.f32 %v3160, %v3198
        %v3207 = vadd.f32 %v3161, %v3199
        %v3208 = vadd.f32 %v3162, %v3200
        %v3209 = vadd.f32 %v3163, %v3201
        %s3210 = sld [smem:[#allocation3 + $0x39]]
        %v3211 = vstv %s3210
        %v3212 = vmul.f32 %v3211, %v580
        %v3213 = vmul.f32 %v3211, %v581
        %v3214 = vmul.f32 %v3211, %v582
        %v3215 = vmul.f32 %v3211, %v583
        %v3216 = vmul.f32 %v3211, %v584
        %v3217 = vmul.f32 %v3211, %v585
        %v3218 = vmul.f32 %v3211, %v586
        %v3219 = vmul.f32 %v3211, %v587
        %s3220 = sld [smem:[#allocation5 + $0x39]]
        %v3221 = vstv %s3220
        %v3222 = vadd.f32 %v3212, %v3221
        %v3223 = vadd.f32 %v3213, %v3221
        %v3224 = vadd.f32 %v3214, %v3221
        %v3225 = vadd.f32 %v3215, %v3221
        %v3226 = vadd.f32 %v3216, %v3221
        %v3227 = vadd.f32 %v3217, %v3221
        %v3228 = vadd.f32 %v3218, %v3221
        %v3229 = vadd.f32 %v3219, %v3221
        %v3230 = vmax.f32 %v3222, 0.0
        %v3231 = vmax.f32 %v3223, 0.0
        %v3232 = vmax.f32 %v3224, 0.0
        %v3233 = vmax.f32 %v3225, 0.0
        %v3234 = vmax.f32 %v3226, 0.0
        %v3235 = vmax.f32 %v3227, 0.0
        %v3236 = vmax.f32 %v3228, 0.0
        %v3237 = vmax.f32 %v3229, 0.0
        %s3238 = sld [smem:[#allocation7 + $0x39]]
        %v3239 = vstv %s3238
        %v3240 = vmul.f32 %v3239, %v3230
        %v3241 = vmul.f32 %v3239, %v3231
        %v3242 = vmul.f32 %v3239, %v3232
        %v3243 = vmul.f32 %v3239, %v3233
        %v3244 = vmul.f32 %v3239, %v3234
        %v3245 = vmul.f32 %v3239, %v3235
        %v3246 = vmul.f32 %v3239, %v3236
        %v3247 = vmul.f32 %v3239, %v3237
        %v3248 = vadd.f32 %v3202, %v3240
        %v3249 = vadd.f32 %v3203, %v3241
        %v3250 = vadd.f32 %v3204, %v3242
        %v3251 = vadd.f32 %v3205, %v3243
        %v3252 = vadd.f32 %v3206, %v3244
        %v3253 = vadd.f32 %v3207, %v3245
        %v3254 = vadd.f32 %v3208, %v3246
        %v3255 = vadd.f32 %v3209, %v3247
        %s3256 = sld [smem:[#allocation3 + $0x3a]]
        %v3257 = vstv %s3256
        %v3258 = vmul.f32 %v3257, %v580
        %v3259 = vmul.f32 %v3257, %v581
        %v3260 = vmul.f32 %v3257, %v582
        %v3261 = vmul.f32 %v3257, %v583
        %v3262 = vmul.f32 %v3257, %v584
        %v3263 = vmul.f32 %v3257, %v585
        %v3264 = vmul.f32 %v3257, %v586
        %v3265 = vmul.f32 %v3257, %v587
        %s3266 = sld [smem:[#allocation5 + $0x3a]]
        %v3267 = vstv %s3266
        %v3268 = vadd.f32 %v3258, %v3267
        %v3269 = vadd.f32 %v3259, %v3267
        %v3270 = vadd.f32 %v3260, %v3267
        %v3271 = vadd.f32 %v3261, %v3267
        %v3272 = vadd.f32 %v3262, %v3267
        %v3273 = vadd.f32 %v3263, %v3267
        %v3274 = vadd.f32 %v3264, %v3267
        %v3275 = vadd.f32 %v3265, %v3267
        %v3276 = vmax.f32 %v3268, 0.0
        %v3277 = vmax.f32 %v3269, 0.0
        %v3278 = vmax.f32 %v3270, 0.0
        %v3279 = vmax.f32 %v3271, 0.0
        %v3280 = vmax.f32 %v3272, 0.0
        %v3281 = vmax.f32 %v3273, 0.0
        %v3282 = vmax.f32 %v3274, 0.0
        %v3283 = vmax.f32 %v3275, 0.0
        %s3284 = sld [smem:[#allocation7 + $0x3a]]
        %v3285 = vstv %s3284
        %v3286 = vmul.f32 %v3285, %v3276
        %v3287 = vmul.f32 %v3285, %v3277
        %v3288 = vmul.f32 %v3285, %v3278
        %v3289 = vmul.f32 %v3285, %v3279
        %v3290 = vmul.f32 %v3285, %v3280
        %v3291 = vmul.f32 %v3285, %v3281
        %v3292 = vmul.f32 %v3285, %v3282
        %v3293 = vmul.f32 %v3285, %v3283
        %v3294 = vadd.f32 %v3248, %v3286
        %v3295 = vadd.f32 %v3249, %v3287
        %v3296 = vadd.f32 %v3250, %v3288
        %v3297 = vadd.f32 %v3251, %v3289
        %v3298 = vadd.f32 %v3252, %v3290
        %v3299 = vadd.f32 %v3253, %v3291
        %v3300 = vadd.f32 %v3254, %v3292
        %v3301 = vadd.f32 %v3255, %v3293
        %s3302 = sld [smem:[#allocation3 + $0x3b]]
        %v3303 = vstv %s3302
        %v3304 = vmul.f32 %v3303, %v580
        %v3305 = vmul.f32 %v3303, %v581
        %v3306 = vmul.f32 %v3303, %v582
        %v3307 = vmul.f32 %v3303, %v583
        %v3308 = vmul.f32 %v3303, %v584
        %v3309 = vmul.f32 %v3303, %v585
        %v3310 = vmul.f32 %v3303, %v586
        %v3311 = vmul.f32 %v3303, %v587
        %s3312 = sld [smem:[#allocation5 + $0x3b]]
        %v3313 = vstv %s3312
        %v3314 = vadd.f32 %v3304, %v3313
        %v3315 = vadd.f32 %v3305, %v3313
        %v3316 = vadd.f32 %v3306, %v3313
        %v3317 = vadd.f32 %v3307, %v3313
        %v3318 = vadd.f32 %v3308, %v3313
        %v3319 = vadd.f32 %v3309, %v3313
        %v3320 = vadd.f32 %v3310, %v3313
        %v3321 = vadd.f32 %v3311, %v3313
        %v3322 = vmax.f32 %v3314, 0.0
        %v3323 = vmax.f32 %v3315, 0.0
        %v3324 = vmax.f32 %v3316, 0.0
        %v3325 = vmax.f32 %v3317, 0.0
        %v3326 = vmax.f32 %v3318, 0.0
        %v3327 = vmax.f32 %v3319, 0.0
        %v3328 = vmax.f32 %v3320, 0.0
        %v3329 = vmax.f32 %v3321, 0.0
        %s3330 = sld [smem:[#allocation7 + $0x3b]]
        %v3331 = vstv %s3330
        %v3332 = vmul.f32 %v3331, %v3322
        %v3333 = vmul.f32 %v3331, %v3323
        %v3334 = vmul.f32 %v3331, %v3324
        %v3335 = vmul.f32 %v3331, %v3325
        %v3336 = vmul.f32 %v3331, %v3326
        %v3337 = vmul.f32 %v3331, %v3327
        %v3338 = vmul.f32 %v3331, %v3328
        %v3339 = vmul.f32 %v3331, %v3329
        %v3340 = vadd.f32 %v3294, %v3332
        %v3341 = vadd.f32 %v3295, %v3333
        %v3342 = vadd.f32 %v3296, %v3334
        %v3343 = vadd.f32 %v3297, %v3335
        %v3344 = vadd.f32 %v3298, %v3336
        %v3345 = vadd.f32 %v3299, %v3337
        %v3346 = vadd.f32 %v3300, %v3338
        %v3347 = vadd.f32 %v3301, %v3339
        %s3348 = sld [smem:[#allocation3 + $0x3c]]
        %v3349 = vstv %s3348
        %v3350 = vmul.f32 %v3349, %v580
        %v3351 = vmul.f32 %v3349, %v581
        %v3352 = vmul.f32 %v3349, %v582
        %v3353 = vmul.f32 %v3349, %v583
        %v3354 = vmul.f32 %v3349, %v584
        %v3355 = vmul.f32 %v3349, %v585
        %v3356 = vmul.f32 %v3349, %v586
        %v3357 = vmul.f32 %v3349, %v587
        %s3358 = sld [smem:[#allocation5 + $0x3c]]
        %v3359 = vstv %s3358
        %v3360 = vadd.f32 %v3350, %v3359
        %v3361 = vadd.f32 %v3351, %v3359
        %v3362 = vadd.f32 %v3352, %v3359
        %v3363 = vadd.f32 %v3353, %v3359
        %v3364 = vadd.f32 %v3354, %v3359
        %v3365 = vadd.f32 %v3355, %v3359
        %v3366 = vadd.f32 %v3356, %v3359
        %v3367 = vadd.f32 %v3357, %v3359
        %v3368 = vmax.f32 %v3360, 0.0
        %v3369 = vmax.f32 %v3361, 0.0
        %v3370 = vmax.f32 %v3362, 0.0
        %v3371 = vmax.f32 %v3363, 0.0
        %v3372 = vmax.f32 %v3364, 0.0
        %v3373 = vmax.f32 %v3365, 0.0
        %v3374 = vmax.f32 %v3366, 0.0
        %v3375 = vmax.f32 %v3367, 0.0
        %s3376 = sld [smem:[#allocation7 + $0x3c]]
        %v3377 = vstv %s3376
        %v3378 = vmul.f32 %v3377, %v3368
        %v3379 = vmul.f32 %v3377, %v3369
        %v3380 = vmul.f32 %v3377, %v3370
        %v3381 = vmul.f32 %v3377, %v3371
        %v3382 = vmul.f32 %v3377, %v3372
        %v3383 = vmul.f32 %v3377, %v3373
        %v3384 = vmul.f32 %v3377, %v3374
        %v3385 = vmul.f32 %v3377, %v3375
        %v3386 = vadd.f32 %v3340, %v3378
        %v3387 = vadd.f32 %v3341, %v3379
        %v3388 = vadd.f32 %v3342, %v3380
        %v3389 = vadd.f32 %v3343, %v3381
        %v3390 = vadd.f32 %v3344, %v3382
        %v3391 = vadd.f32 %v3345, %v3383
        %v3392 = vadd.f32 %v3346, %v3384
        %v3393 = vadd.f32 %v3347, %v3385
        %s3394 = sld [smem:[#allocation3 + $0x3d]]
        %v3395 = vstv %s3394
        %v3396 = vmul.f32 %v3395, %v580
        %v3397 = vmul.f32 %v3395, %v581
        %v3398 = vmul.f32 %v3395, %v582
        %v3399 = vmul.f32 %v3395, %v583
        %v3400 = vmul.f32 %v3395, %v584
        %v3401 = vmul.f32 %v3395, %v585
        %v3402 = vmul.f32 %v3395, %v586
        %v3403 = vmul.f32 %v3395, %v587
        %s3404 = sld [smem:[#allocation5 + $0x3d]]
        %v3405 = vstv %s3404
        %v3406 = vadd.f32 %v3396, %v3405
        %v3407 = vadd.f32 %v3397, %v3405
        %v3408 = vadd.f32 %v3398, %v3405
        %v3409 = vadd.f32 %v3399, %v3405
        %v3410 = vadd.f32 %v3400, %v3405
        %v3411 = vadd.f32 %v3401, %v3405
        %v3412 = vadd.f32 %v3402, %v3405
        %v3413 = vadd.f32 %v3403, %v3405
        %v3414 = vmax.f32 %v3406, 0.0
        %v3415 = vmax.f32 %v3407, 0.0
        %v3416 = vmax.f32 %v3408, 0.0
        %v3417 = vmax.f32 %v3409, 0.0
        %v3418 = vmax.f32 %v3410, 0.0
        %v3419 = vmax.f32 %v3411, 0.0
        %v3420 = vmax.f32 %v3412, 0.0
        %v3421 = vmax.f32 %v3413, 0.0
        %s3422 = sld [smem:[#allocation7 + $0x3d]]
        %v3423 = vstv %s3422
        %v3424 = vmul.f32 %v3423, %v3414
        %v3425 = vmul.f32 %v3423, %v3415
        %v3426 = vmul.f32 %v3423, %v3416
        %v3427 = vmul.f32 %v3423, %v3417
        %v3428 = vmul.f32 %v3423, %v3418
        %v3429 = vmul.f32 %v3423, %v3419
        %v3430 = vmul.f32 %v3423, %v3420
        %v3431 = vmul.f32 %v3423, %v3421
        %v3432 = vadd.f32 %v3386, %v3424
        %v3433 = vadd.f32 %v3387, %v3425
        %v3434 = vadd.f32 %v3388, %v3426
        %v3435 = vadd.f32 %v3389, %v3427
        %v3436 = vadd.f32 %v3390, %v3428
        %v3437 = vadd.f32 %v3391, %v3429
        %v3438 = vadd.f32 %v3392, %v3430
        %v3439 = vadd.f32 %v3393, %v3431
        %s3440 = sld [smem:[#allocation3 + $0x3e]]
        %v3441 = vstv %s3440
        %v3442 = vmul.f32 %v3441, %v580
        %v3443 = vmul.f32 %v3441, %v581
        %v3444 = vmul.f32 %v3441, %v582
        %v3445 = vmul.f32 %v3441, %v583
        %v3446 = vmul.f32 %v3441, %v584
        %v3447 = vmul.f32 %v3441, %v585
        %v3448 = vmul.f32 %v3441, %v586
        %v3449 = vmul.f32 %v3441, %v587
        %s3450 = sld [smem:[#allocation5 + $0x3e]]
        %v3451 = vstv %s3450
        %v3452 = vadd.f32 %v3442, %v3451
        %v3453 = vadd.f32 %v3443, %v3451
        %v3454 = vadd.f32 %v3444, %v3451
        %v3455 = vadd.f32 %v3445, %v3451
        %v3456 = vadd.f32 %v3446, %v3451
        %v3457 = vadd.f32 %v3447, %v3451
        %v3458 = vadd.f32 %v3448, %v3451
        %v3459 = vadd.f32 %v3449, %v3451
        %v3460 = vmax.f32 %v3452, 0.0
        %v3461 = vmax.f32 %v3453, 0.0
        %v3462 = vmax.f32 %v3454, 0.0
        %v3463 = vmax.f32 %v3455, 0.0
        %v3464 = vmax.f32 %v3456, 0.0
        %v3465 = vmax.f32 %v3457, 0.0
        %v3466 = vmax.f32 %v3458, 0.0
        %v3467 = vmax.f32 %v3459, 0.0
        %s3468 = sld [smem:[#allocation7 + $0x3e]]
        %v3469 = vstv %s3468
        %v3470 = vmul.f32 %v3469, %v3460
        %v3471 = vmul.f32 %v3469, %v3461
        %v3472 = vmul.f32 %v3469, %v3462
        %v3473 = vmul.f32 %v3469, %v3463
        %v3474 = vmul.f32 %v3469, %v3464
        %v3475 = vmul.f32 %v3469, %v3465
        %v3476 = vmul.f32 %v3469, %v3466
        %v3477 = vmul.f32 %v3469, %v3467
        %v3478 = vadd.f32 %v3432, %v3470
        %v3479 = vadd.f32 %v3433, %v3471
        %v3480 = vadd.f32 %v3434, %v3472
        %v3481 = vadd.f32 %v3435, %v3473
        %v3482 = vadd.f32 %v3436, %v3474
        %v3483 = vadd.f32 %v3437, %v3475
        %v3484 = vadd.f32 %v3438, %v3476
        %v3485 = vadd.f32 %v3439, %v3477
        %s3486 = sld [smem:[#allocation3 + $0x3f]]
        %v3487 = vstv %s3486
        %v3488 = vmul.f32 %v3487, %v580
        %v3489 = vmul.f32 %v3487, %v581
        %v3490 = vmul.f32 %v3487, %v582
        %v3491 = vmul.f32 %v3487, %v583
        %v3492 = vmul.f32 %v3487, %v584
        %v3493 = vmul.f32 %v3487, %v585
        %v3494 = vmul.f32 %v3487, %v586
        %v3495 = vmul.f32 %v3487, %v587
        %s3496 = sld [smem:[#allocation5 + $0x3f]]
        %v3497 = vstv %s3496
        %v3498 = vadd.f32 %v3488, %v3497
        %v3499 = vadd.f32 %v3489, %v3497
        %v3500 = vadd.f32 %v3490, %v3497
        %v3501 = vadd.f32 %v3491, %v3497
        %v3502 = vadd.f32 %v3492, %v3497
        %v3503 = vadd.f32 %v3493, %v3497
        %v3504 = vadd.f32 %v3494, %v3497
        %v3505 = vadd.f32 %v3495, %v3497
        %v3506 = vmax.f32 %v3498, 0.0
        %v3507 = vmax.f32 %v3499, 0.0
        %v3508 = vmax.f32 %v3500, 0.0
        %v3509 = vmax.f32 %v3501, 0.0
        %v3510 = vmax.f32 %v3502, 0.0
        %v3511 = vmax.f32 %v3503, 0.0
        %v3512 = vmax.f32 %v3504, 0.0
        %v3513 = vmax.f32 %v3505, 0.0
        %s3514 = sld [smem:[#allocation7 + $0x3f]]
        %v3515 = vstv %s3514
        %v3516 = vmul.f32 %v3515, %v3506
        %v3517 = vmul.f32 %v3515, %v3507
        %v3518 = vmul.f32 %v3515, %v3508
        %v3519 = vmul.f32 %v3515, %v3509
        %v3520 = vmul.f32 %v3515, %v3510
        %v3521 = vmul.f32 %v3515, %v3511
        %v3522 = vmul.f32 %v3515, %v3512
        %v3523 = vmul.f32 %v3515, %v3513
        %v3524 = vadd.f32 %v3478, %v3516
        %v3525 = vadd.f32 %v3479, %v3517
        %v3526 = vadd.f32 %v3480, %v3518
        %v3527 = vadd.f32 %v3481, %v3519
        %v3528 = vadd.f32 %v3482, %v3520
        %v3529 = vadd.f32 %v3483, %v3521
        %v3530 = vadd.f32 %v3484, %v3522
        %v3531 = vadd.f32 %v3485, %v3523
        %v3532 = vadd.f32 %v580, %v3524
        %v3533 = vadd.f32 %v581, %v3525
        %v3534 = vadd.f32 %v582, %v3526
        %v3535 = vadd.f32 %v583, %v3527
        %v3536 = vadd.f32 %v584, %v3528
        %v3537 = vadd.f32 %v585, %v3529
        %v3538 = vadd.f32 %v586, %v3530
        %v3539 = vadd.f32 %v587, %v3531
        %s3540 = sld [smem:[#allocation8]]
        %v3541 = vstv %s3540
        %v3542 = vadd.f32 %v3532, %v3541
        %v3543 = vadd.f32 %v3533, %v3541
        %v3544 = vadd.f32 %v3534, %v3541
        %v3545 = vadd.f32 %v3535, %v3541
        %v3546 = vadd.f32 %v3536, %v3541
        %v3547 = vadd.f32 %v3537, %v3541
        %v3548 = vadd.f32 %v3538, %v3541
        %v3549 = vadd.f32 %v3539, %v3541
        %s3550 = scalar_lea.vmem %s1, 64
        %v3551 = vld [vmem:[%s3550] sm:$0xff]
        %v3552 = vld [vmem:[%s3550 + $0x8] sm:$0xff]
        %v3553 = vld [vmem:[%s3550 + $0x10] sm:$0xff]
        %v3554 = vld [vmem:[%s3550 + $0x18] sm:$0xff]
        %v3555 = vld [vmem:[%s3550 + $0x20] sm:$0xff]
        %v3556 = vld [vmem:[%s3550 + $0x28] sm:$0xff]
        %v3557 = vld [vmem:[%s3550 + $0x30] sm:$0xff]
        %v3558 = vld [vmem:[%s3550 + $0x38] sm:$0xff]
        %s3559 = scalar_lea.vmem %s2, 64
        %v3560 = vld [vmem:[%s3559] sm:$0xff]
        %v3561 = vld [vmem:[%s3559 + $0x8] sm:$0xff]
        %v3562 = vld [vmem:[%s3559 + $0x10] sm:$0xff]
        %v3563 = vld [vmem:[%s3559 + $0x18] sm:$0xff]
        %v3564 = vld [vmem:[%s3559 + $0x20] sm:$0xff]
        %v3565 = vld [vmem:[%s3559 + $0x28] sm:$0xff]
        %v3566 = vld [vmem:[%s3559 + $0x30] sm:$0xff]
        %v3567 = vld [vmem:[%s3559 + $0x38] sm:$0xff]
        %3569 = vset.pattern.permute.xlu0 0
        %3570 = vperm.xlu0 %3569, %v3560
        %v3571 = vpop.permute.xlu0 %3570
        %3574 = vset.pattern.permute.xlu0 0
        %3575 = vperm.xlu0 %3574, %v3561
        %v3576 = vpop.permute.xlu0 %3575
        %3579 = vset.pattern.permute.xlu0 0
        %3580 = vperm.xlu0 %3579, %v3562
        %v3581 = vpop.permute.xlu0 %3580
        %3584 = vset.pattern.permute.xlu0 0
        %3585 = vperm.xlu0 %3584, %v3563
        %v3586 = vpop.permute.xlu0 %3585
        %3589 = vset.pattern.permute.xlu0 0
        %3590 = vperm.xlu0 %3589, %v3564
        %v3591 = vpop.permute.xlu0 %3590
        %3594 = vset.pattern.permute.xlu0 0
        %3595 = vperm.xlu0 %3594, %v3565
        %v3596 = vpop.permute.xlu0 %3595
        %3599 = vset.pattern.permute.xlu0 0
        %3600 = vperm.xlu0 %3599, %v3566
        %v3601 = vpop.permute.xlu0 %3600
        %3604 = vset.pattern.permute.xlu0 0
        %3605 = vperm.xlu0 %3604, %v3567
        %v3606 = vpop.permute.xlu0 %3605
        %v3609 = vsel %vm506, %v3551, 0
        %v3612 = vsel %vm506, %v3552, 0
        %v3615 = vsel %vm506, %v3553, 0
        %v3618 = vsel %vm506, %v3554, 0
        %v3621 = vsel %vm506, %v3555, 0
        %v3624 = vsel %vm506, %v3556, 0
        %v3627 = vsel %vm506, %v3557, 0
        %v3630 = vsel %vm506, %v3558, 0
        %3632 = vmatpush.msra.mxu0 0.0
        %3633 = vmatpush.msra.mxu0 0.0
        %3634 = vmatpush.msra.mxu0 0.0
        %3635 = vmatpush.msra.mxu0 0.0
        %3636 = vmatpush.msra.mxu0 0.0
        %3637 = vmatpush.msra.mxu0 0.0
        %3638 = vmatpush.msra.mxu0 0.0
        %3639 = vmatpush.msra.mxu0 0.0
        %3640 = vmatpush.msra.mxu0 %v3549
        %3641 = vmatpush.msra.mxu0 %v3548
        %3642 = vmatpush.msra.mxu0 %v3547
        %3643 = vmatpush.msra.mxu0 %v3546
        %3644 = vmatpush.msra.mxu0 %v3545
        %3645 = vmatpush.msra.mxu0 %v3544
        %3646 = vmatpush.msra.mxu0 %v3543
        %3647 = vmatpush.msra.mxu0 %v3542
        %3648 = vmatmul.f32.gmra.mxu0 %v3609
        %v3649 = vpop.f32.mrf.mxu0
        %v3650 = vadd.f32 %v3571, %v3649
        %3651 = vmatmul.f32.gmra.mxu0 %v3612
        %v3652 = vpop.f32.mrf.mxu0
        %v3653 = vadd.f32 %v3576, %v3652
        %3654 = vmatmul.f32.gmra.mxu0 %v3615
        %v3655 = vpop.f32.mrf.mxu0
        %v3656 = vadd.f32 %v3581, %v3655
        %3657 = vmatmul.f32.gmra.mxu0 %v3618
        %v3658 = vpop.f32.mrf.mxu0
        %v3659 = vadd.f32 %v3586, %v3658
        %3660 = vmatmul.f32.gmra.mxu0 %v3621
        %v3661 = vpop.f32.mrf.mxu0
        %v3662 = vadd.f32 %v3591, %v3661
        %3663 = vmatmul.f32.gmra.mxu0 %v3624
        %v3664 = vpop.f32.mrf.mxu0
        %v3665 = vadd.f32 %v3596, %v3664
        %3666 = vmatmul.f32.gmra.mxu0 %v3627
        %v3667 = vpop.f32.mrf.mxu0
        %v3668 = vadd.f32 %v3601, %v3667
        %3669 = vmatmul.f32.gmra.mxu0 %v3630
        %v3670 = vpop.f32.mrf.mxu0
        %v3671 = vadd.f32 %v3606, %v3670
        %3672 = vdwg.mxu0
        %v3673 = vmax.f32 %v3650, 0.0
        %v3674 = vmax.f32 %v3653, 0.0
        %v3675 = vmax.f32 %v3656, 0.0
        %v3676 = vmax.f32 %v3659, 0.0
        %v3677 = vmax.f32 %v3662, 0.0
        %v3678 = vmax.f32 %v3665, 0.0
        %v3679 = vmax.f32 %v3668, 0.0
        %v3680 = vmax.f32 %v3671, 0.0
        %v3681 = vadd.f32 %v3542, %v3673
        %v3682 = vadd.f32 %v3543, %v3674
        %v3683 = vadd.f32 %v3544, %v3675
        %v3684 = vadd.f32 %v3545, %v3676
        %v3685 = vadd.f32 %v3546, %v3677
        %v3686 = vadd.f32 %v3547, %v3678
        %v3687 = vadd.f32 %v3548, %v3679
        %v3688 = vadd.f32 %v3549, %v3680
        %s3689 = sld [smem:[#allocation3 + $0x40]]
        %v3690 = vstv %s3689
        %v3691 = vmul.f32 %v3690, %v3681
        %v3692 = vmul.f32 %v3690, %v3682
        %v3693 = vmul.f32 %v3690, %v3683
        %v3694 = vmul.f32 %v3690, %v3684
        %v3695 = vmul.f32 %v3690, %v3685
        %v3696 = vmul.f32 %v3690, %v3686
        %v3697 = vmul.f32 %v3690, %v3687
        %v3698 = vmul.f32 %v3690, %v3688
        %s3699 = sld [smem:[#allocation5 + $0x40]]
        %v3700 = vstv %s3699
        %v3701 = vadd.f32 %v3691, %v3700
        %v3702 = vadd.f32 %v3692, %v3700
        %v3703 = vadd.f32 %v3693, %v3700
        %v3704 = vadd.f32 %v3694, %v3700
        %v3705 = vadd.f32 %v3695, %v3700
        %v3706 = vadd.f32 %v3696, %v3700
        %v3707 = vadd.f32 %v3697, %v3700
        %v3708 = vadd.f32 %v3698, %v3700
        %v3709 = vmax.f32 %v3701, 0.0
        %v3710 = vmax.f32 %v3702, 0.0
        %v3711 = vmax.f32 %v3703, 0.0
        %v3712 = vmax.f32 %v3704, 0.0
        %v3713 = vmax.f32 %v3705, 0.0
        %v3714 = vmax.f32 %v3706, 0.0
        %v3715 = vmax.f32 %v3707, 0.0
        %v3716 = vmax.f32 %v3708, 0.0
        %s3717 = sld [smem:[#allocation7 + $0x40]]
        %v3718 = vstv %s3717
        %v3719 = vmul.f32 %v3718, %v3709
        %v3720 = vmul.f32 %v3718, %v3710
        %v3721 = vmul.f32 %v3718, %v3711
        %v3722 = vmul.f32 %v3718, %v3712
        %v3723 = vmul.f32 %v3718, %v3713
        %v3724 = vmul.f32 %v3718, %v3714
        %v3725 = vmul.f32 %v3718, %v3715
        %v3726 = vmul.f32 %v3718, %v3716
        %v3727 = vadd.f32 %v3719, 0.0
        %v3728 = vadd.f32 %v3720, 0.0
        %v3729 = vadd.f32 %v3721, 0.0
        %v3730 = vadd.f32 %v3722, 0.0
        %v3731 = vadd.f32 %v3723, 0.0
        %v3732 = vadd.f32 %v3724, 0.0
        %v3733 = vadd.f32 %v3725, 0.0
        %v3734 = vadd.f32 %v3726, 0.0
        %s3735 = sld [smem:[#allocation3 + $0x41]]
        %v3736 = vstv %s3735
        %v3737 = vmul.f32 %v3736, %v3681
        %v3738 = vmul.f32 %v3736, %v3682
        %v3739 = vmul.f32 %v3736, %v3683
        %v3740 = vmul.f32 %v3736, %v3684
        %v3741 = vmul.f32 %v3736, %v3685
        %v3742 = vmul.f32 %v3736, %v3686
        %v3743 = vmul.f32 %v3736, %v3687
        %v3744 = vmul.f32 %v3736, %v3688
        %s3745 = sld [smem:[#allocation5 + $0x41]]
        %v3746 = vstv %s3745
        %v3747 = vadd.f32 %v3737, %v3746
        %v3748 = vadd.f32 %v3738, %v3746
        %v3749 = vadd.f32 %v3739, %v3746
        %v3750 = vadd.f32 %v3740, %v3746
        %v3751 = vadd.f32 %v3741, %v3746
        %v3752 = vadd.f32 %v3742, %v3746
        %v3753 = vadd.f32 %v3743, %v3746
        %v3754 = vadd.f32 %v3744, %v3746
        %v3755 = vmax.f32 %v3747, 0.0
        %v3756 = vmax.f32 %v3748, 0.0
        %v3757 = vmax.f32 %v3749, 0.0
        %v3758 = vmax.f32 %v3750, 0.0
        %v3759 = vmax.f32 %v3751, 0.0
        %v3760 = vmax.f32 %v3752, 0.0
        %v3761 = vmax.f32 %v3753, 0.0
        %v3762 = vmax.f32 %v3754, 0.0
        %s3763 = sld [smem:[#allocation7 + $0x41]]
        %v3764 = vstv %s3763
        %v3765 = vmul.f32 %v3764, %v3755
        %v3766 = vmul.f32 %v3764, %v3756
        %v3767 = vmul.f32 %v3764, %v3757
        %v3768 = vmul.f32 %v3764, %v3758
        %v3769 = vmul.f32 %v3764, %v3759
        %v3770 = vmul.f32 %v3764, %v3760
        %v3771 = vmul.f32 %v3764, %v3761
        %v3772 = vmul.f32 %v3764, %v3762
        %v3773 = vadd.f32 %v3727, %v3765
        %v3774 = vadd.f32 %v3728, %v3766
        %v3775 = vadd.f32 %v3729, %v3767
        %v3776 = vadd.f32 %v3730, %v3768
        %v3777 = vadd.f32 %v3731, %v3769
        %v3778 = vadd.f32 %v3732, %v3770
        %v3779 = vadd.f32 %v3733, %v3771
        %v3780 = vadd.f32 %v3734, %v3772
        %s3781 = sld [smem:[#allocation3 + $0x42]]
        %v3782 = vstv %s3781
        %v3783 = vmul.f32 %v3782, %v3681
        %v3784 = vmul.f32 %v3782, %v3682
        %v3785 = vmul.f32 %v3782, %v3683
        %v3786 = vmul.f32 %v3782, %v3684
        %v3787 = vmul.f32 %v3782, %v3685
        %v3788 = vmul.f32 %v3782, %v3686
        %v3789 = vmul.f32 %v3782, %v3687
        %v3790 = vmul.f32 %v3782, %v3688
        %s3791 = sld [smem:[#allocation5 + $0x42]]
        %v3792 = vstv %s3791
        %v3793 = vadd.f32 %v3783, %v3792
        %v3794 = vadd.f32 %v3784, %v3792
        %v3795 = vadd.f32 %v3785, %v3792
        %v3796 = vadd.f32 %v3786, %v3792
        %v3797 = vadd.f32 %v3787, %v3792
        %v3798 = vadd.f32 %v3788, %v3792
        %v3799 = vadd.f32 %v3789, %v3792
        %v3800 = vadd.f32 %v3790, %v3792
        %v3801 = vmax.f32 %v3793, 0.0
        %v3802 = vmax.f32 %v3794, 0.0
        %v3803 = vmax.f32 %v3795, 0.0
        %v3804 = vmax.f32 %v3796, 0.0
        %v3805 = vmax.f32 %v3797, 0.0
        %v3806 = vmax.f32 %v3798, 0.0
        %v3807 = vmax.f32 %v3799, 0.0
        %v3808 = vmax.f32 %v3800, 0.0
        %s3809 = sld [smem:[#allocation7 + $0x42]]
        %v3810 = vstv %s3809
        %v3811 = vmul.f32 %v3810, %v3801
        %v3812 = vmul.f32 %v3810, %v3802
        %v3813 = vmul.f32 %v3810, %v3803
        %v3814 = vmul.f32 %v3810, %v3804
        %v3815 = vmul.f32 %v3810, %v3805
        %v3816 = vmul.f32 %v3810, %v3806
        %v3817 = vmul.f32 %v3810, %v3807
        %v3818 = vmul.f32 %v3810, %v3808
        %v3819 = vadd.f32 %v3773, %v3811
        %v3820 = vadd.f32 %v3774, %v3812
        %v3821 = vadd.f32 %v3775, %v3813
        %v3822 = vadd.f32 %v3776, %v3814
        %v3823 = vadd.f32 %v3777, %v3815
        %v3824 = vadd.f32 %v3778, %v3816
        %v3825 = vadd.f32 %v3779, %v3817
        %v3826 = vadd.f32 %v3780, %v3818
        %s3827 = sld [smem:[#allocation3 + $0x43]]
        %v3828 = vstv %s3827
        %v3829 = vmul.f32 %v3828, %v3681
        %v3830 = vmul.f32 %v3828, %v3682
        %v3831 = vmul.f32 %v3828, %v3683
        %v3832 = vmul.f32 %v3828, %v3684
        %v3833 = vmul.f32 %v3828, %v3685
        %v3834 = vmul.f32 %v3828, %v3686
        %v3835 = vmul.f32 %v3828, %v3687
        %v3836 = vmul.f32 %v3828, %v3688
        %s3837 = sld [smem:[#allocation5 + $0x43]]
        %v3838 = vstv %s3837
        %v3839 = vadd.f32 %v3829, %v3838
        %v3840 = vadd.f32 %v3830, %v3838
        %v3841 = vadd.f32 %v3831, %v3838
        %v3842 = vadd.f32 %v3832, %v3838
        %v3843 = vadd.f32 %v3833, %v3838
        %v3844 = vadd.f32 %v3834, %v3838
        %v3845 = vadd.f32 %v3835, %v3838
        %v3846 = vadd.f32 %v3836, %v3838
        %v3847 = vmax.f32 %v3839, 0.0
        %v3848 = vmax.f32 %v3840, 0.0
        %v3849 = vmax.f32 %v3841, 0.0
        %v3850 = vmax.f32 %v3842, 0.0
        %v3851 = vmax.f32 %v3843, 0.0
        %v3852 = vmax.f32 %v3844, 0.0
        %v3853 = vmax.f32 %v3845, 0.0
        %v3854 = vmax.f32 %v3846, 0.0
        %s3855 = sld [smem:[#allocation7 + $0x43]]
        %v3856 = vstv %s3855
        %v3857 = vmul.f32 %v3856, %v3847
        %v3858 = vmul.f32 %v3856, %v3848
        %v3859 = vmul.f32 %v3856, %v3849
        %v3860 = vmul.f32 %v3856, %v3850
        %v3861 = vmul.f32 %v3856, %v3851
        %v3862 = vmul.f32 %v3856, %v3852
        %v3863 = vmul.f32 %v3856, %v3853
        %v3864 = vmul.f32 %v3856, %v3854
        %v3865 = vadd.f32 %v3819, %v3857
        %v3866 = vadd.f32 %v3820, %v3858
        %v3867 = vadd.f32 %v3821, %v3859
        %v3868 = vadd.f32 %v3822, %v3860
        %v3869 = vadd.f32 %v3823, %v3861
        %v3870 = vadd.f32 %v3824, %v3862
        %v3871 = vadd.f32 %v3825, %v3863
        %v3872 = vadd.f32 %v3826, %v3864
        %s3873 = sld [smem:[#allocation3 + $0x44]]
        %v3874 = vstv %s3873
        %v3875 = vmul.f32 %v3874, %v3681
        %v3876 = vmul.f32 %v3874, %v3682
        %v3877 = vmul.f32 %v3874, %v3683
        %v3878 = vmul.f32 %v3874, %v3684
        %v3879 = vmul.f32 %v3874, %v3685
        %v3880 = vmul.f32 %v3874, %v3686
        %v3881 = vmul.f32 %v3874, %v3687
        %v3882 = vmul.f32 %v3874, %v3688
        %s3883 = sld [smem:[#allocation5 + $0x44]]
        %v3884 = vstv %s3883
        %v3885 = vadd.f32 %v3875, %v3884
        %v3886 = vadd.f32 %v3876, %v3884
        %v3887 = vadd.f32 %v3877, %v3884
        %v3888 = vadd.f32 %v3878, %v3884
        %v3889 = vadd.f32 %v3879, %v3884
        %v3890 = vadd.f32 %v3880, %v3884
        %v3891 = vadd.f32 %v3881, %v3884
        %v3892 = vadd.f32 %v3882, %v3884
        %v3893 = vmax.f32 %v3885, 0.0
        %v3894 = vmax.f32 %v3886, 0.0
        %v3895 = vmax.f32 %v3887, 0.0
        %v3896 = vmax.f32 %v3888, 0.0
        %v3897 = vmax.f32 %v3889, 0.0
        %v3898 = vmax.f32 %v3890, 0.0
        %v3899 = vmax.f32 %v3891, 0.0
        %v3900 = vmax.f32 %v3892, 0.0
        %s3901 = sld [smem:[#allocation7 + $0x44]]
        %v3902 = vstv %s3901
        %v3903 = vmul.f32 %v3902, %v3893
        %v3904 = vmul.f32 %v3902, %v3894
        %v3905 = vmul.f32 %v3902, %v3895
        %v3906 = vmul.f32 %v3902, %v3896
        %v3907 = vmul.f32 %v3902, %v3897
        %v3908 = vmul.f32 %v3902, %v3898
        %v3909 = vmul.f32 %v3902, %v3899
        %v3910 = vmul.f32 %v3902, %v3900
        %v3911 = vadd.f32 %v3865, %v3903
        %v3912 = vadd.f32 %v3866, %v3904
        %v3913 = vadd.f32 %v3867, %v3905
        %v3914 = vadd.f32 %v3868, %v3906
        %v3915 = vadd.f32 %v3869, %v3907
        %v3916 = vadd.f32 %v3870, %v3908
        %v3917 = vadd.f32 %v3871, %v3909
        %v3918 = vadd.f32 %v3872, %v3910
        %s3919 = sld [smem:[#allocation3 + $0x45]]
        %v3920 = vstv %s3919
        %v3921 = vmul.f32 %v3920, %v3681
        %v3922 = vmul.f32 %v3920, %v3682
        %v3923 = vmul.f32 %v3920, %v3683
        %v3924 = vmul.f32 %v3920, %v3684
        %v3925 = vmul.f32 %v3920, %v3685
        %v3926 = vmul.f32 %v3920, %v3686
        %v3927 = vmul.f32 %v3920, %v3687
        %v3928 = vmul.f32 %v3920, %v3688
        %s3929 = sld [smem:[#allocation5 + $0x45]]
        %v3930 = vstv %s3929
        %v3931 = vadd.f32 %v3921, %v3930
        %v3932 = vadd.f32 %v3922, %v3930
        %v3933 = vadd.f32 %v3923, %v3930
        %v3934 = vadd.f32 %v3924, %v3930
        %v3935 = vadd.f32 %v3925, %v3930
        %v3936 = vadd.f32 %v3926, %v3930
        %v3937 = vadd.f32 %v3927, %v3930
        %v3938 = vadd.f32 %v3928, %v3930
        %v3939 = vmax.f32 %v3931, 0.0
        %v3940 = vmax.f32 %v3932, 0.0
        %v3941 = vmax.f32 %v3933, 0.0
        %v3942 = vmax.f32 %v3934, 0.0
        %v3943 = vmax.f32 %v3935, 0.0
        %v3944 = vmax.f32 %v3936, 0.0
        %v3945 = vmax.f32 %v3937, 0.0
        %v3946 = vmax.f32 %v3938, 0.0
        %s3947 = sld [smem:[#allocation7 + $0x45]]
        %v3948 = vstv %s3947
        %v3949 = vmul.f32 %v3948, %v3939
        %v3950 = vmul.f32 %v3948, %v3940
        %v3951 = vmul.f32 %v3948, %v3941
        %v3952 = vmul.f32 %v3948, %v3942
        %v3953 = vmul.f32 %v3948, %v3943
        %v3954 = vmul.f32 %v3948, %v3944
        %v3955 = vmul.f32 %v3948, %v3945
        %v3956 = vmul.f32 %v3948, %v3946
        %v3957 = vadd.f32 %v3911, %v3949
        %v3958 = vadd.f32 %v3912, %v3950
        %v3959 = vadd.f32 %v3913, %v3951
        %v3960 = vadd.f32 %v3914, %v3952
        %v3961 = vadd.f32 %v3915, %v3953
        %v3962 = vadd.f32 %v3916, %v3954
        %v3963 = vadd.f32 %v3917, %v3955
        %v3964 = vadd.f32 %v3918, %v3956
        %s3965 = sld [smem:[#allocation3 + $0x46]]
        %v3966 = vstv %s3965
        %v3967 = vmul.f32 %v3966, %v3681
        %v3968 = vmul.f32 %v3966, %v3682
        %v3969 = vmul.f32 %v3966, %v3683
        %v3970 = vmul.f32 %v3966, %v3684
        %v3971 = vmul.f32 %v3966, %v3685
        %v3972 = vmul.f32 %v3966, %v3686
        %v3973 = vmul.f32 %v3966, %v3687
        %v3974 = vmul.f32 %v3966, %v3688
        %s3975 = sld [smem:[#allocation5 + $0x46]]
        %v3976 = vstv %s3975
        %v3977 = vadd.f32 %v3967, %v3976
        %v3978 = vadd.f32 %v3968, %v3976
        %v3979 = vadd.f32 %v3969, %v3976
        %v3980 = vadd.f32 %v3970, %v3976
        %v3981 = vadd.f32 %v3971, %v3976
        %v3982 = vadd.f32 %v3972, %v3976
        %v3983 = vadd.f32 %v3973, %v3976
        %v3984 = vadd.f32 %v3974, %v3976
        %v3985 = vmax.f32 %v3977, 0.0
        %v3986 = vmax.f32 %v3978, 0.0
        %v3987 = vmax.f32 %v3979, 0.0
        %v3988 = vmax.f32 %v3980, 0.0
        %v3989 = vmax.f32 %v3981, 0.0
        %v3990 = vmax.f32 %v3982, 0.0
        %v3991 = vmax.f32 %v3983, 0.0
        %v3992 = vmax.f32 %v3984, 0.0
        %s3993 = sld [smem:[#allocation7 + $0x46]]
        %v3994 = vstv %s3993
        %v3995 = vmul.f32 %v3994, %v3985
        %v3996 = vmul.f32 %v3994, %v3986
        %v3997 = vmul.f32 %v3994, %v3987
        %v3998 = vmul.f32 %v3994, %v3988
        %v3999 = vmul.f32 %v3994, %v3989
        %v4000 = vmul.f32 %v3994, %v3990
        %v4001 = vmul.f32 %v3994, %v3991
        %v4002 = vmul.f32 %v3994, %v3992
        %v4003 = vadd.f32 %v3957, %v3995
        %v4004 = vadd.f32 %v3958, %v3996
        %v4005 = vadd.f32 %v3959, %v3997
        %v4006 = vadd.f32 %v3960, %v3998
        %v4007 = vadd.f32 %v3961, %v3999
        %v4008 = vadd.f32 %v3962, %v4000
        %v4009 = vadd.f32 %v3963, %v4001
        %v4010 = vadd.f32 %v3964, %v4002
        %s4011 = sld [smem:[#allocation3 + $0x47]]
        %v4012 = vstv %s4011
        %v4013 = vmul.f32 %v4012, %v3681
        %v4014 = vmul.f32 %v4012, %v3682
        %v4015 = vmul.f32 %v4012, %v3683
        %v4016 = vmul.f32 %v4012, %v3684
        %v4017 = vmul.f32 %v4012, %v3685
        %v4018 = vmul.f32 %v4012, %v3686
        %v4019 = vmul.f32 %v4012, %v3687
        %v4020 = vmul.f32 %v4012, %v3688
        %s4021 = sld [smem:[#allocation5 + $0x47]]
        %v4022 = vstv %s4021
        %v4023 = vadd.f32 %v4013, %v4022
        %v4024 = vadd.f32 %v4014, %v4022
        %v4025 = vadd.f32 %v4015, %v4022
        %v4026 = vadd.f32 %v4016, %v4022
        %v4027 = vadd.f32 %v4017, %v4022
        %v4028 = vadd.f32 %v4018, %v4022
        %v4029 = vadd.f32 %v4019, %v4022
        %v4030 = vadd.f32 %v4020, %v4022
        %v4031 = vmax.f32 %v4023, 0.0
        %v4032 = vmax.f32 %v4024, 0.0
        %v4033 = vmax.f32 %v4025, 0.0
        %v4034 = vmax.f32 %v4026, 0.0
        %v4035 = vmax.f32 %v4027, 0.0
        %v4036 = vmax.f32 %v4028, 0.0
        %v4037 = vmax.f32 %v4029, 0.0
        %v4038 = vmax.f32 %v4030, 0.0
        %s4039 = sld [smem:[#allocation7 + $0x47]]
        %v4040 = vstv %s4039
        %v4041 = vmul.f32 %v4040, %v4031
        %v4042 = vmul.f32 %v4040, %v4032
        %v4043 = vmul.f32 %v4040, %v4033
        %v4044 = vmul.f32 %v4040, %v4034
        %v4045 = vmul.f32 %v4040, %v4035
        %v4046 = vmul.f32 %v4040, %v4036
        %v4047 = vmul.f32 %v4040, %v4037
        %v4048 = vmul.f32 %v4040, %v4038
        %v4049 = vadd.f32 %v4003, %v4041
        %v4050 = vadd.f32 %v4004, %v4042
        %v4051 = vadd.f32 %v4005, %v4043
        %v4052 = vadd.f32 %v4006, %v4044
        %v4053 = vadd.f32 %v4007, %v4045
        %v4054 = vadd.f32 %v4008, %v4046
        %v4055 = vadd.f32 %v4009, %v4047
        %v4056 = vadd.f32 %v4010, %v4048
        %s4057 = sld [smem:[#allocation3 + $0x48]]
        %v4058 = vstv %s4057
        %v4059 = vmul.f32 %v4058, %v3681
        %v4060 = vmul.f32 %v4058, %v3682
        %v4061 = vmul.f32 %v4058, %v3683
        %v4062 = vmul.f32 %v4058, %v3684
        %v4063 = vmul.f32 %v4058, %v3685
        %v4064 = vmul.f32 %v4058, %v3686
        %v4065 = vmul.f32 %v4058, %v3687
        %v4066 = vmul.f32 %v4058, %v3688
        %s4067 = sld [smem:[#allocation5 + $0x48]]
        %v4068 = vstv %s4067
        %v4069 = vadd.f32 %v4059, %v4068
        %v4070 = vadd.f32 %v4060, %v4068
        %v4071 = vadd.f32 %v4061, %v4068
        %v4072 = vadd.f32 %v4062, %v4068
        %v4073 = vadd.f32 %v4063, %v4068
        %v4074 = vadd.f32 %v4064, %v4068
        %v4075 = vadd.f32 %v4065, %v4068
        %v4076 = vadd.f32 %v4066, %v4068
        %v4077 = vmax.f32 %v4069, 0.0
        %v4078 = vmax.f32 %v4070, 0.0
        %v4079 = vmax.f32 %v4071, 0.0
        %v4080 = vmax.f32 %v4072, 0.0
        %v4081 = vmax.f32 %v4073, 0.0
        %v4082 = vmax.f32 %v4074, 0.0
        %v4083 = vmax.f32 %v4075, 0.0
        %v4084 = vmax.f32 %v4076, 0.0
        %s4085 = sld [smem:[#allocation7 + $0x48]]
        %v4086 = vstv %s4085
        %v4087 = vmul.f32 %v4086, %v4077
        %v4088 = vmul.f32 %v4086, %v4078
        %v4089 = vmul.f32 %v4086, %v4079
        %v4090 = vmul.f32 %v4086, %v4080
        %v4091 = vmul.f32 %v4086, %v4081
        %v4092 = vmul.f32 %v4086, %v4082
        %v4093 = vmul.f32 %v4086, %v4083
        %v4094 = vmul.f32 %v4086, %v4084
        %v4095 = vadd.f32 %v4049, %v4087
        %v4096 = vadd.f32 %v4050, %v4088
        %v4097 = vadd.f32 %v4051, %v4089
        %v4098 = vadd.f32 %v4052, %v4090
        %v4099 = vadd.f32 %v4053, %v4091
        %v4100 = vadd.f32 %v4054, %v4092
        %v4101 = vadd.f32 %v4055, %v4093
        %v4102 = vadd.f32 %v4056, %v4094
        %s4103 = sld [smem:[#allocation3 + $0x49]]
        %v4104 = vstv %s4103
        %v4105 = vmul.f32 %v4104, %v3681
        %v4106 = vmul.f32 %v4104, %v3682
        %v4107 = vmul.f32 %v4104, %v3683
        %v4108 = vmul.f32 %v4104, %v3684
        %v4109 = vmul.f32 %v4104, %v3685
        %v4110 = vmul.f32 %v4104, %v3686
        %v4111 = vmul.f32 %v4104, %v3687
        %v4112 = vmul.f32 %v4104, %v3688
        %s4113 = sld [smem:[#allocation5 + $0x49]]
        %v4114 = vstv %s4113
        %v4115 = vadd.f32 %v4105, %v4114
        %v4116 = vadd.f32 %v4106, %v4114
        %v4117 = vadd.f32 %v4107, %v4114
        %v4118 = vadd.f32 %v4108, %v4114
        %v4119 = vadd.f32 %v4109, %v4114
        %v4120 = vadd.f32 %v4110, %v4114
        %v4121 = vadd.f32 %v4111, %v4114
        %v4122 = vadd.f32 %v4112, %v4114
        %v4123 = vmax.f32 %v4115, 0.0
        %v4124 = vmax.f32 %v4116, 0.0
        %v4125 = vmax.f32 %v4117, 0.0
        %v4126 = vmax.f32 %v4118, 0.0
        %v4127 = vmax.f32 %v4119, 0.0
        %v4128 = vmax.f32 %v4120, 0.0
        %v4129 = vmax.f32 %v4121, 0.0
        %v4130 = vmax.f32 %v4122, 0.0
        %s4131 = sld [smem:[#allocation7 + $0x49]]
        %v4132 = vstv %s4131
        %v4133 = vmul.f32 %v4132, %v4123
        %v4134 = vmul.f32 %v4132, %v4124
        %v4135 = vmul.f32 %v4132, %v4125
        %v4136 = vmul.f32 %v4132, %v4126
        %v4137 = vmul.f32 %v4132, %v4127
        %v4138 = vmul.f32 %v4132, %v4128
        %v4139 = vmul.f32 %v4132, %v4129
        %v4140 = vmul.f32 %v4132, %v4130
        %v4141 = vadd.f32 %v4095, %v4133
        %v4142 = vadd.f32 %v4096, %v4134
        %v4143 = vadd.f32 %v4097, %v4135
        %v4144 = vadd.f32 %v4098, %v4136
        %v4145 = vadd.f32 %v4099, %v4137
        %v4146 = vadd.f32 %v4100, %v4138
        %v4147 = vadd.f32 %v4101, %v4139
        %v4148 = vadd.f32 %v4102, %v4140
        %s4149 = sld [smem:[#allocation3 + $0x4a]]
        %v4150 = vstv %s4149
        %v4151 = vmul.f32 %v4150, %v3681
        %v4152 = vmul.f32 %v4150, %v3682
        %v4153 = vmul.f32 %v4150, %v3683
        %v4154 = vmul.f32 %v4150, %v3684
        %v4155 = vmul.f32 %v4150, %v3685
        %v4156 = vmul.f32 %v4150, %v3686
        %v4157 = vmul.f32 %v4150, %v3687
        %v4158 = vmul.f32 %v4150, %v3688
        %s4159 = sld [smem:[#allocation5 + $0x4a]]
        %v4160 = vstv %s4159
        %v4161 = vadd.f32 %v4151, %v4160
        %v4162 = vadd.f32 %v4152, %v4160
        %v4163 = vadd.f32 %v4153, %v4160
        %v4164 = vadd.f32 %v4154, %v4160
        %v4165 = vadd.f32 %v4155, %v4160
        %v4166 = vadd.f32 %v4156, %v4160
        %v4167 = vadd.f32 %v4157, %v4160
        %v4168 = vadd.f32 %v4158, %v4160
        %v4169 = vmax.f32 %v4161, 0.0
        %v4170 = vmax.f32 %v4162, 0.0
        %v4171 = vmax.f32 %v4163, 0.0
        %v4172 = vmax.f32 %v4164, 0.0
        %v4173 = vmax.f32 %v4165, 0.0
        %v4174 = vmax.f32 %v4166, 0.0
        %v4175 = vmax.f32 %v4167, 0.0
        %v4176 = vmax.f32 %v4168, 0.0
        %s4177 = sld [smem:[#allocation7 + $0x4a]]
        %v4178 = vstv %s4177
        %v4179 = vmul.f32 %v4178, %v4169
        %v4180 = vmul.f32 %v4178, %v4170
        %v4181 = vmul.f32 %v4178, %v4171
        %v4182 = vmul.f32 %v4178, %v4172
        %v4183 = vmul.f32 %v4178, %v4173
        %v4184 = vmul.f32 %v4178, %v4174
        %v4185 = vmul.f32 %v4178, %v4175
        %v4186 = vmul.f32 %v4178, %v4176
        %v4187 = vadd.f32 %v4141, %v4179
        %v4188 = vadd.f32 %v4142, %v4180
        %v4189 = vadd.f32 %v4143, %v4181
        %v4190 = vadd.f32 %v4144, %v4182
        %v4191 = vadd.f32 %v4145, %v4183
        %v4192 = vadd.f32 %v4146, %v4184
        %v4193 = vadd.f32 %v4147, %v4185
        %v4194 = vadd.f32 %v4148, %v4186
        %s4195 = sld [smem:[#allocation3 + $0x4b]]
        %v4196 = vstv %s4195
        %v4197 = vmul.f32 %v4196, %v3681
        %v4198 = vmul.f32 %v4196, %v3682
        %v4199 = vmul.f32 %v4196, %v3683
        %v4200 = vmul.f32 %v4196, %v3684
        %v4201 = vmul.f32 %v4196, %v3685
        %v4202 = vmul.f32 %v4196, %v3686
        %v4203 = vmul.f32 %v4196, %v3687
        %v4204 = vmul.f32 %v4196, %v3688
        %s4205 = sld [smem:[#allocation5 + $0x4b]]
        %v4206 = vstv %s4205
        %v4207 = vadd.f32 %v4197, %v4206
        %v4208 = vadd.f32 %v4198, %v4206
        %v4209 = vadd.f32 %v4199, %v4206
        %v4210 = vadd.f32 %v4200, %v4206
        %v4211 = vadd.f32 %v4201, %v4206
        %v4212 = vadd.f32 %v4202, %v4206
        %v4213 = vadd.f32 %v4203, %v4206
        %v4214 = vadd.f32 %v4204, %v4206
        %v4215 = vmax.f32 %v4207, 0.0
        %v4216 = vmax.f32 %v4208, 0.0
        %v4217 = vmax.f32 %v4209, 0.0
        %v4218 = vmax.f32 %v4210, 0.0
        %v4219 = vmax.f32 %v4211, 0.0
        %v4220 = vmax.f32 %v4212, 0.0
        %v4221 = vmax.f32 %v4213, 0.0
        %v4222 = vmax.f32 %v4214, 0.0
        %s4223 = sld [smem:[#allocation7 + $0x4b]]
        %v4224 = vstv %s4223
        %v4225 = vmul.f32 %v4224, %v4215
        %v4226 = vmul.f32 %v4224, %v4216
        %v4227 = vmul.f32 %v4224, %v4217
        %v4228 = vmul.f32 %v4224, %v4218
        %v4229 = vmul.f32 %v4224, %v4219
        %v4230 = vmul.f32 %v4224, %v4220
        %v4231 = vmul.f32 %v4224, %v4221
        %v4232 = vmul.f32 %v4224, %v4222
        %v4233 = vadd.f32 %v4187, %v4225
        %v4234 = vadd.f32 %v4188, %v4226
        %v4235 = vadd.f32 %v4189, %v4227
        %v4236 = vadd.f32 %v4190, %v4228
        %v4237 = vadd.f32 %v4191, %v4229
        %v4238 = vadd.f32 %v4192, %v4230
        %v4239 = vadd.f32 %v4193, %v4231
        %v4240 = vadd.f32 %v4194, %v4232
        %s4241 = sld [smem:[#allocation3 + $0x4c]]
        %v4242 = vstv %s4241
        %v4243 = vmul.f32 %v4242, %v3681
        %v4244 = vmul.f32 %v4242, %v3682
        %v4245 = vmul.f32 %v4242, %v3683
        %v4246 = vmul.f32 %v4242, %v3684
        %v4247 = vmul.f32 %v4242, %v3685
        %v4248 = vmul.f32 %v4242, %v3686
        %v4249 = vmul.f32 %v4242, %v3687
        %v4250 = vmul.f32 %v4242, %v3688
        %s4251 = sld [smem:[#allocation5 + $0x4c]]
        %v4252 = vstv %s4251
        %v4253 = vadd.f32 %v4243, %v4252
        %v4254 = vadd.f32 %v4244, %v4252
        %v4255 = vadd.f32 %v4245, %v4252
        %v4256 = vadd.f32 %v4246, %v4252
        %v4257 = vadd.f32 %v4247, %v4252
        %v4258 = vadd.f32 %v4248, %v4252
        %v4259 = vadd.f32 %v4249, %v4252
        %v4260 = vadd.f32 %v4250, %v4252
        %v4261 = vmax.f32 %v4253, 0.0
        %v4262 = vmax.f32 %v4254, 0.0
        %v4263 = vmax.f32 %v4255, 0.0
        %v4264 = vmax.f32 %v4256, 0.0
        %v4265 = vmax.f32 %v4257, 0.0
        %v4266 = vmax.f32 %v4258, 0.0
        %v4267 = vmax.f32 %v4259, 0.0
        %v4268 = vmax.f32 %v4260, 0.0
        %s4269 = sld [smem:[#allocation7 + $0x4c]]
        %v4270 = vstv %s4269
        %v4271 = vmul.f32 %v4270, %v4261
        %v4272 = vmul.f32 %v4270, %v4262
        %v4273 = vmul.f32 %v4270, %v4263
        %v4274 = vmul.f32 %v4270, %v4264
        %v4275 = vmul.f32 %v4270, %v4265
        %v4276 = vmul.f32 %v4270, %v4266
        %v4277 = vmul.f32 %v4270, %v4267
        %v4278 = vmul.f32 %v4270, %v4268
        %v4279 = vadd.f32 %v4233, %v4271
        %v4280 = vadd.f32 %v4234, %v4272
        %v4281 = vadd.f32 %v4235, %v4273
        %v4282 = vadd.f32 %v4236, %v4274
        %v4283 = vadd.f32 %v4237, %v4275
        %v4284 = vadd.f32 %v4238, %v4276
        %v4285 = vadd.f32 %v4239, %v4277
        %v4286 = vadd.f32 %v4240, %v4278
        %s4287 = sld [smem:[#allocation3 + $0x4d]]
        %v4288 = vstv %s4287
        %v4289 = vmul.f32 %v4288, %v3681
        %v4290 = vmul.f32 %v4288, %v3682
        %v4291 = vmul.f32 %v4288, %v3683
        %v4292 = vmul.f32 %v4288, %v3684
        %v4293 = vmul.f32 %v4288, %v3685
        %v4294 = vmul.f32 %v4288, %v3686
        %v4295 = vmul.f32 %v4288, %v3687
        %v4296 = vmul.f32 %v4288, %v3688
        %s4297 = sld [smem:[#allocation5 + $0x4d]]
        %v4298 = vstv %s4297
        %v4299 = vadd.f32 %v4289, %v4298
        %v4300 = vadd.f32 %v4290, %v4298
        %v4301 = vadd.f32 %v4291, %v4298
        %v4302 = vadd.f32 %v4292, %v4298
        %v4303 = vadd.f32 %v4293, %v4298
        %v4304 = vadd.f32 %v4294, %v4298
        %v4305 = vadd.f32 %v4295, %v4298
        %v4306 = vadd.f32 %v4296, %v4298
        %v4307 = vmax.f32 %v4299, 0.0
        %v4308 = vmax.f32 %v4300, 0.0
        %v4309 = vmax.f32 %v4301, 0.0
        %v4310 = vmax.f32 %v4302, 0.0
        %v4311 = vmax.f32 %v4303, 0.0
        %v4312 = vmax.f32 %v4304, 0.0
        %v4313 = vmax.f32 %v4305, 0.0
        %v4314 = vmax.f32 %v4306, 0.0
        %s4315 = sld [smem:[#allocation7 + $0x4d]]
        %v4316 = vstv %s4315
        %v4317 = vmul.f32 %v4316, %v4307
        %v4318 = vmul.f32 %v4316, %v4308
        %v4319 = vmul.f32 %v4316, %v4309
        %v4320 = vmul.f32 %v4316, %v4310
        %v4321 = vmul.f32 %v4316, %v4311
        %v4322 = vmul.f32 %v4316, %v4312
        %v4323 = vmul.f32 %v4316, %v4313
        %v4324 = vmul.f32 %v4316, %v4314
        %v4325 = vadd.f32 %v4279, %v4317
        %v4326 = vadd.f32 %v4280, %v4318
        %v4327 = vadd.f32 %v4281, %v4319
        %v4328 = vadd.f32 %v4282, %v4320
        %v4329 = vadd.f32 %v4283, %v4321
        %v4330 = vadd.f32 %v4284, %v4322
        %v4331 = vadd.f32 %v4285, %v4323
        %v4332 = vadd.f32 %v4286, %v4324
        %s4333 = sld [smem:[#allocation3 + $0x4e]]
        %v4334 = vstv %s4333
        %v4335 = vmul.f32 %v4334, %v3681
        %v4336 = vmul.f32 %v4334, %v3682
        %v4337 = vmul.f32 %v4334, %v3683
        %v4338 = vmul.f32 %v4334, %v3684
        %v4339 = vmul.f32 %v4334, %v3685
        %v4340 = vmul.f32 %v4334, %v3686
        %v4341 = vmul.f32 %v4334, %v3687
        %v4342 = vmul.f32 %v4334, %v3688
        %s4343 = sld [smem:[#allocation5 + $0x4e]]
        %v4344 = vstv %s4343
        %v4345 = vadd.f32 %v4335, %v4344
        %v4346 = vadd.f32 %v4336, %v4344
        %v4347 = vadd.f32 %v4337, %v4344
        %v4348 = vadd.f32 %v4338, %v4344
        %v4349 = vadd.f32 %v4339, %v4344
        %v4350 = vadd.f32 %v4340, %v4344
        %v4351 = vadd.f32 %v4341, %v4344
        %v4352 = vadd.f32 %v4342, %v4344
        %v4353 = vmax.f32 %v4345, 0.0
        %v4354 = vmax.f32 %v4346, 0.0
        %v4355 = vmax.f32 %v4347, 0.0
        %v4356 = vmax.f32 %v4348, 0.0
        %v4357 = vmax.f32 %v4349, 0.0
        %v4358 = vmax.f32 %v4350, 0.0
        %v4359 = vmax.f32 %v4351, 0.0
        %v4360 = vmax.f32 %v4352, 0.0
        %s4361 = sld [smem:[#allocation7 + $0x4e]]
        %v4362 = vstv %s4361
        %v4363 = vmul.f32 %v4362, %v4353
        %v4364 = vmul.f32 %v4362, %v4354
        %v4365 = vmul.f32 %v4362, %v4355
        %v4366 = vmul.f32 %v4362, %v4356
        %v4367 = vmul.f32 %v4362, %v4357
        %v4368 = vmul.f32 %v4362, %v4358
        %v4369 = vmul.f32 %v4362, %v4359
        %v4370 = vmul.f32 %v4362, %v4360
        %v4371 = vadd.f32 %v4325, %v4363
        %v4372 = vadd.f32 %v4326, %v4364
        %v4373 = vadd.f32 %v4327, %v4365
        %v4374 = vadd.f32 %v4328, %v4366
        %v4375 = vadd.f32 %v4329, %v4367
        %v4376 = vadd.f32 %v4330, %v4368
        %v4377 = vadd.f32 %v4331, %v4369
        %v4378 = vadd.f32 %v4332, %v4370
        %s4379 = sld [smem:[#allocation3 + $0x4f]]
        %v4380 = vstv %s4379
        %v4381 = vmul.f32 %v4380, %v3681
        %v4382 = vmul.f32 %v4380, %v3682
        %v4383 = vmul.f32 %v4380, %v3683
        %v4384 = vmul.f32 %v4380, %v3684
        %v4385 = vmul.f32 %v4380, %v3685
        %v4386 = vmul.f32 %v4380, %v3686
        %v4387 = vmul.f32 %v4380, %v3687
        %v4388 = vmul.f32 %v4380, %v3688
        %s4389 = sld [smem:[#allocation5 + $0x4f]]
        %v4390 = vstv %s4389
        %v4391 = vadd.f32 %v4381, %v4390
        %v4392 = vadd.f32 %v4382, %v4390
        %v4393 = vadd.f32 %v4383, %v4390
        %v4394 = vadd.f32 %v4384, %v4390
        %v4395 = vadd.f32 %v4385, %v4390
        %v4396 = vadd.f32 %v4386, %v4390
        %v4397 = vadd.f32 %v4387, %v4390
        %v4398 = vadd.f32 %v4388, %v4390
        %v4399 = vmax.f32 %v4391, 0.0
        %v4400 = vmax.f32 %v4392, 0.0
        %v4401 = vmax.f32 %v4393, 0.0
        %v4402 = vmax.f32 %v4394, 0.0
        %v4403 = vmax.f32 %v4395, 0.0
        %v4404 = vmax.f32 %v4396, 0.0
        %v4405 = vmax.f32 %v4397, 0.0
        %v4406 = vmax.f32 %v4398, 0.0
        %s4407 = sld [smem:[#allocation7 + $0x4f]]
        %v4408 = vstv %s4407
        %v4409 = vmul.f32 %v4408, %v4399
        %v4410 = vmul.f32 %v4408, %v4400
        %v4411 = vmul.f32 %v4408, %v4401
        %v4412 = vmul.f32 %v4408, %v4402
        %v4413 = vmul.f32 %v4408, %v4403
        %v4414 = vmul.f32 %v4408, %v4404
        %v4415 = vmul.f32 %v4408, %v4405
        %v4416 = vmul.f32 %v4408, %v4406
        %v4417 = vadd.f32 %v4371, %v4409
        %v4418 = vadd.f32 %v4372, %v4410
        %v4419 = vadd.f32 %v4373, %v4411
        %v4420 = vadd.f32 %v4374, %v4412
        %v4421 = vadd.f32 %v4375, %v4413
        %v4422 = vadd.f32 %v4376, %v4414
        %v4423 = vadd.f32 %v4377, %v4415
        %v4424 = vadd.f32 %v4378, %v4416
        %s4425 = sld [smem:[#allocation3 + $0x50]]
        %v4426 = vstv %s4425
        %v4427 = vmul.f32 %v4426, %v3681
        %v4428 = vmul.f32 %v4426, %v3682
        %v4429 = vmul.f32 %v4426, %v3683
        %v4430 = vmul.f32 %v4426, %v3684
        %v4431 = vmul.f32 %v4426, %v3685
        %v4432 = vmul.f32 %v4426, %v3686
        %v4433 = vmul.f32 %v4426, %v3687
        %v4434 = vmul.f32 %v4426, %v3688
        %s4435 = sld [smem:[#allocation5 + $0x50]]
        %v4436 = vstv %s4435
        %v4437 = vadd.f32 %v4427, %v4436
        %v4438 = vadd.f32 %v4428, %v4436
        %v4439 = vadd.f32 %v4429, %v4436
        %v4440 = vadd.f32 %v4430, %v4436
        %v4441 = vadd.f32 %v4431, %v4436
        %v4442 = vadd.f32 %v4432, %v4436
        %v4443 = vadd.f32 %v4433, %v4436
        %v4444 = vadd.f32 %v4434, %v4436
        %v4445 = vmax.f32 %v4437, 0.0
        %v4446 = vmax.f32 %v4438, 0.0
        %v4447 = vmax.f32 %v4439, 0.0
        %v4448 = vmax.f32 %v4440, 0.0
        %v4449 = vmax.f32 %v4441, 0.0
        %v4450 = vmax.f32 %v4442, 0.0
        %v4451 = vmax.f32 %v4443, 0.0
        %v4452 = vmax.f32 %v4444, 0.0
        %s4453 = sld [smem:[#allocation7 + $0x50]]
        %v4454 = vstv %s4453
        %v4455 = vmul.f32 %v4454, %v4445
        %v4456 = vmul.f32 %v4454, %v4446
        %v4457 = vmul.f32 %v4454, %v4447
        %v4458 = vmul.f32 %v4454, %v4448
        %v4459 = vmul.f32 %v4454, %v4449
        %v4460 = vmul.f32 %v4454, %v4450
        %v4461 = vmul.f32 %v4454, %v4451
        %v4462 = vmul.f32 %v4454, %v4452
        %v4463 = vadd.f32 %v4417, %v4455
        %v4464 = vadd.f32 %v4418, %v4456
        %v4465 = vadd.f32 %v4419, %v4457
        %v4466 = vadd.f32 %v4420, %v4458
        %v4467 = vadd.f32 %v4421, %v4459
        %v4468 = vadd.f32 %v4422, %v4460
        %v4469 = vadd.f32 %v4423, %v4461
        %v4470 = vadd.f32 %v4424, %v4462
        %s4471 = sld [smem:[#allocation3 + $0x51]]
        %v4472 = vstv %s4471
        %v4473 = vmul.f32 %v4472, %v3681
        %v4474 = vmul.f32 %v4472, %v3682
        %v4475 = vmul.f32 %v4472, %v3683
        %v4476 = vmul.f32 %v4472, %v3684
        %v4477 = vmul.f32 %v4472, %v3685
        %v4478 = vmul.f32 %v4472, %v3686
        %v4479 = vmul.f32 %v4472, %v3687
        %v4480 = vmul.f32 %v4472, %v3688
        %s4481 = sld [smem:[#allocation5 + $0x51]]
        %v4482 = vstv %s4481
        %v4483 = vadd.f32 %v4473, %v4482
        %v4484 = vadd.f32 %v4474, %v4482
        %v4485 = vadd.f32 %v4475, %v4482
        %v4486 = vadd.f32 %v4476, %v4482
        %v4487 = vadd.f32 %v4477, %v4482
        %v4488 = vadd.f32 %v4478, %v4482
        %v4489 = vadd.f32 %v4479, %v4482
        %v4490 = vadd.f32 %v4480, %v4482
        %v4491 = vmax.f32 %v4483, 0.0
        %v4492 = vmax.f32 %v4484, 0.0
        %v4493 = vmax.f32 %v4485, 0.0
        %v4494 = vmax.f32 %v4486, 0.0
        %v4495 = vmax.f32 %v4487, 0.0
        %v4496 = vmax.f32 %v4488, 0.0
        %v4497 = vmax.f32 %v4489, 0.0
        %v4498 = vmax.f32 %v4490, 0.0
        %s4499 = sld [smem:[#allocation7 + $0x51]]
        %v4500 = vstv %s4499
        %v4501 = vmul.f32 %v4500, %v4491
        %v4502 = vmul.f32 %v4500, %v4492
        %v4503 = vmul.f32 %v4500, %v4493
        %v4504 = vmul.f32 %v4500, %v4494
        %v4505 = vmul.f32 %v4500, %v4495
        %v4506 = vmul.f32 %v4500, %v4496
        %v4507 = vmul.f32 %v4500, %v4497
        %v4508 = vmul.f32 %v4500, %v4498
        %v4509 = vadd.f32 %v4463, %v4501
        %v4510 = vadd.f32 %v4464, %v4502
        %v4511 = vadd.f32 %v4465, %v4503
        %v4512 = vadd.f32 %v4466, %v4504
        %v4513 = vadd.f32 %v4467, %v4505
        %v4514 = vadd.f32 %v4468, %v4506
        %v4515 = vadd.f32 %v4469, %v4507
        %v4516 = vadd.f32 %v4470, %v4508
        %s4517 = sld [smem:[#allocation3 + $0x52]]
        %v4518 = vstv %s4517
        %v4519 = vmul.f32 %v4518, %v3681
        %v4520 = vmul.f32 %v4518, %v3682
        %v4521 = vmul.f32 %v4518, %v3683
        %v4522 = vmul.f32 %v4518, %v3684
        %v4523 = vmul.f32 %v4518, %v3685
        %v4524 = vmul.f32 %v4518, %v3686
        %v4525 = vmul.f32 %v4518, %v3687
        %v4526 = vmul.f32 %v4518, %v3688
        %s4527 = sld [smem:[#allocation5 + $0x52]]
        %v4528 = vstv %s4527
        %v4529 = vadd.f32 %v4519, %v4528
        %v4530 = vadd.f32 %v4520, %v4528
        %v4531 = vadd.f32 %v4521, %v4528
        %v4532 = vadd.f32 %v4522, %v4528
        %v4533 = vadd.f32 %v4523, %v4528
        %v4534 = vadd.f32 %v4524, %v4528
        %v4535 = vadd.f32 %v4525, %v4528
        %v4536 = vadd.f32 %v4526, %v4528
        %v4537 = vmax.f32 %v4529, 0.0
        %v4538 = vmax.f32 %v4530, 0.0
        %v4539 = vmax.f32 %v4531, 0.0
        %v4540 = vmax.f32 %v4532, 0.0
        %v4541 = vmax.f32 %v4533, 0.0
        %v4542 = vmax.f32 %v4534, 0.0
        %v4543 = vmax.f32 %v4535, 0.0
        %v4544 = vmax.f32 %v4536, 0.0
        %s4545 = sld [smem:[#allocation7 + $0x52]]
        %v4546 = vstv %s4545
        %v4547 = vmul.f32 %v4546, %v4537
        %v4548 = vmul.f32 %v4546, %v4538
        %v4549 = vmul.f32 %v4546, %v4539
        %v4550 = vmul.f32 %v4546, %v4540
        %v4551 = vmul.f32 %v4546, %v4541
        %v4552 = vmul.f32 %v4546, %v4542
        %v4553 = vmul.f32 %v4546, %v4543
        %v4554 = vmul.f32 %v4546, %v4544
        %v4555 = vadd.f32 %v4509, %v4547
        %v4556 = vadd.f32 %v4510, %v4548
        %v4557 = vadd.f32 %v4511, %v4549
        %v4558 = vadd.f32 %v4512, %v4550
        %v4559 = vadd.f32 %v4513, %v4551
        %v4560 = vadd.f32 %v4514, %v4552
        %v4561 = vadd.f32 %v4515, %v4553
        %v4562 = vadd.f32 %v4516, %v4554
        %s4563 = sld [smem:[#allocation3 + $0x53]]
        %v4564 = vstv %s4563
        %v4565 = vmul.f32 %v4564, %v3681
        %v4566 = vmul.f32 %v4564, %v3682
        %v4567 = vmul.f32 %v4564, %v3683
        %v4568 = vmul.f32 %v4564, %v3684
        %v4569 = vmul.f32 %v4564, %v3685
        %v4570 = vmul.f32 %v4564, %v3686
        %v4571 = vmul.f32 %v4564, %v3687
        %v4572 = vmul.f32 %v4564, %v3688
        %s4573 = sld [smem:[#allocation5 + $0x53]]
        %v4574 = vstv %s4573
        %v4575 = vadd.f32 %v4565, %v4574
        %v4576 = vadd.f32 %v4566, %v4574
        %v4577 = vadd.f32 %v4567, %v4574
        %v4578 = vadd.f32 %v4568, %v4574
        %v4579 = vadd.f32 %v4569, %v4574
        %v4580 = vadd.f32 %v4570, %v4574
        %v4581 = vadd.f32 %v4571, %v4574
        %v4582 = vadd.f32 %v4572, %v4574
        %v4583 = vmax.f32 %v4575, 0.0
        %v4584 = vmax.f32 %v4576, 0.0
        %v4585 = vmax.f32 %v4577, 0.0
        %v4586 = vmax.f32 %v4578, 0.0
        %v4587 = vmax.f32 %v4579, 0.0
        %v4588 = vmax.f32 %v4580, 0.0
        %v4589 = vmax.f32 %v4581, 0.0
        %v4590 = vmax.f32 %v4582, 0.0
        %s4591 = sld [smem:[#allocation7 + $0x53]]
        %v4592 = vstv %s4591
        %v4593 = vmul.f32 %v4592, %v4583
        %v4594 = vmul.f32 %v4592, %v4584
        %v4595 = vmul.f32 %v4592, %v4585
        %v4596 = vmul.f32 %v4592, %v4586
        %v4597 = vmul.f32 %v4592, %v4587
        %v4598 = vmul.f32 %v4592, %v4588
        %v4599 = vmul.f32 %v4592, %v4589
        %v4600 = vmul.f32 %v4592, %v4590
        %v4601 = vadd.f32 %v4555, %v4593
        %v4602 = vadd.f32 %v4556, %v4594
        %v4603 = vadd.f32 %v4557, %v4595
        %v4604 = vadd.f32 %v4558, %v4596
        %v4605 = vadd.f32 %v4559, %v4597
        %v4606 = vadd.f32 %v4560, %v4598
        %v4607 = vadd.f32 %v4561, %v4599
        %v4608 = vadd.f32 %v4562, %v4600
        %s4609 = sld [smem:[#allocation3 + $0x54]]
        %v4610 = vstv %s4609
        %v4611 = vmul.f32 %v4610, %v3681
        %v4612 = vmul.f32 %v4610, %v3682
        %v4613 = vmul.f32 %v4610, %v3683
        %v4614 = vmul.f32 %v4610, %v3684
        %v4615 = vmul.f32 %v4610, %v3685
        %v4616 = vmul.f32 %v4610, %v3686
        %v4617 = vmul.f32 %v4610, %v3687
        %v4618 = vmul.f32 %v4610, %v3688
        %s4619 = sld [smem:[#allocation5 + $0x54]]
        %v4620 = vstv %s4619
        %v4621 = vadd.f32 %v4611, %v4620
        %v4622 = vadd.f32 %v4612, %v4620
        %v4623 = vadd.f32 %v4613, %v4620
        %v4624 = vadd.f32 %v4614, %v4620
        %v4625 = vadd.f32 %v4615, %v4620
        %v4626 = vadd.f32 %v4616, %v4620
        %v4627 = vadd.f32 %v4617, %v4620
        %v4628 = vadd.f32 %v4618, %v4620
        %v4629 = vmax.f32 %v4621, 0.0
        %v4630 = vmax.f32 %v4622, 0.0
        %v4631 = vmax.f32 %v4623, 0.0
        %v4632 = vmax.f32 %v4624, 0.0
        %v4633 = vmax.f32 %v4625, 0.0
        %v4634 = vmax.f32 %v4626, 0.0
        %v4635 = vmax.f32 %v4627, 0.0
        %v4636 = vmax.f32 %v4628, 0.0
        %s4637 = sld [smem:[#allocation7 + $0x54]]
        %v4638 = vstv %s4637
        %v4639 = vmul.f32 %v4638, %v4629
        %v4640 = vmul.f32 %v4638, %v4630
        %v4641 = vmul.f32 %v4638, %v4631
        %v4642 = vmul.f32 %v4638, %v4632
        %v4643 = vmul.f32 %v4638, %v4633
        %v4644 = vmul.f32 %v4638, %v4634
        %v4645 = vmul.f32 %v4638, %v4635
        %v4646 = vmul.f32 %v4638, %v4636
        %v4647 = vadd.f32 %v4601, %v4639
        %v4648 = vadd.f32 %v4602, %v4640
        %v4649 = vadd.f32 %v4603, %v4641
        %v4650 = vadd.f32 %v4604, %v4642
        %v4651 = vadd.f32 %v4605, %v4643
        %v4652 = vadd.f32 %v4606, %v4644
        %v4653 = vadd.f32 %v4607, %v4645
        %v4654 = vadd.f32 %v4608, %v4646
        %s4655 = sld [smem:[#allocation3 + $0x55]]
        %v4656 = vstv %s4655
        %v4657 = vmul.f32 %v4656, %v3681
        %v4658 = vmul.f32 %v4656, %v3682
        %v4659 = vmul.f32 %v4656, %v3683
        %v4660 = vmul.f32 %v4656, %v3684
        %v4661 = vmul.f32 %v4656, %v3685
        %v4662 = vmul.f32 %v4656, %v3686
        %v4663 = vmul.f32 %v4656, %v3687
        %v4664 = vmul.f32 %v4656, %v3688
        %s4665 = sld [smem:[#allocation5 + $0x55]]
        %v4666 = vstv %s4665
        %v4667 = vadd.f32 %v4657, %v4666
        %v4668 = vadd.f32 %v4658, %v4666
        %v4669 = vadd.f32 %v4659, %v4666
        %v4670 = vadd.f32 %v4660, %v4666
        %v4671 = vadd.f32 %v4661, %v4666
        %v4672 = vadd.f32 %v4662, %v4666
        %v4673 = vadd.f32 %v4663, %v4666
        %v4674 = vadd.f32 %v4664, %v4666
        %v4675 = vmax.f32 %v4667, 0.0
        %v4676 = vmax.f32 %v4668, 0.0
        %v4677 = vmax.f32 %v4669, 0.0
        %v4678 = vmax.f32 %v4670, 0.0
        %v4679 = vmax.f32 %v4671, 0.0
        %v4680 = vmax.f32 %v4672, 0.0
        %v4681 = vmax.f32 %v4673, 0.0
        %v4682 = vmax.f32 %v4674, 0.0
        %s4683 = sld [smem:[#allocation7 + $0x55]]
        %v4684 = vstv %s4683
        %v4685 = vmul.f32 %v4684, %v4675
        %v4686 = vmul.f32 %v4684, %v4676
        %v4687 = vmul.f32 %v4684, %v4677
        %v4688 = vmul.f32 %v4684, %v4678
        %v4689 = vmul.f32 %v4684, %v4679
        %v4690 = vmul.f32 %v4684, %v4680
        %v4691 = vmul.f32 %v4684, %v4681
        %v4692 = vmul.f32 %v4684, %v4682
        %v4693 = vadd.f32 %v4647, %v4685
        %v4694 = vadd.f32 %v4648, %v4686
        %v4695 = vadd.f32 %v4649, %v4687
        %v4696 = vadd.f32 %v4650, %v4688
        %v4697 = vadd.f32 %v4651, %v4689
        %v4698 = vadd.f32 %v4652, %v4690
        %v4699 = vadd.f32 %v4653, %v4691
        %v4700 = vadd.f32 %v4654, %v4692
        %s4701 = sld [smem:[#allocation3 + $0x56]]
        %v4702 = vstv %s4701
        %v4703 = vmul.f32 %v4702, %v3681
        %v4704 = vmul.f32 %v4702, %v3682
        %v4705 = vmul.f32 %v4702, %v3683
        %v4706 = vmul.f32 %v4702, %v3684
        %v4707 = vmul.f32 %v4702, %v3685
        %v4708 = vmul.f32 %v4702, %v3686
        %v4709 = vmul.f32 %v4702, %v3687
        %v4710 = vmul.f32 %v4702, %v3688
        %s4711 = sld [smem:[#allocation5 + $0x56]]
        %v4712 = vstv %s4711
        %v4713 = vadd.f32 %v4703, %v4712
        %v4714 = vadd.f32 %v4704, %v4712
        %v4715 = vadd.f32 %v4705, %v4712
        %v4716 = vadd.f32 %v4706, %v4712
        %v4717 = vadd.f32 %v4707, %v4712
        %v4718 = vadd.f32 %v4708, %v4712
        %v4719 = vadd.f32 %v4709, %v4712
        %v4720 = vadd.f32 %v4710, %v4712
        %v4721 = vmax.f32 %v4713, 0.0
        %v4722 = vmax.f32 %v4714, 0.0
        %v4723 = vmax.f32 %v4715, 0.0
        %v4724 = vmax.f32 %v4716, 0.0
        %v4725 = vmax.f32 %v4717, 0.0
        %v4726 = vmax.f32 %v4718, 0.0
        %v4727 = vmax.f32 %v4719, 0.0
        %v4728 = vmax.f32 %v4720, 0.0
        %s4729 = sld [smem:[#allocation7 + $0x56]]
        %v4730 = vstv %s4729
        %v4731 = vmul.f32 %v4730, %v4721
        %v4732 = vmul.f32 %v4730, %v4722
        %v4733 = vmul.f32 %v4730, %v4723
        %v4734 = vmul.f32 %v4730, %v4724
        %v4735 = vmul.f32 %v4730, %v4725
        %v4736 = vmul.f32 %v4730, %v4726
        %v4737 = vmul.f32 %v4730, %v4727
        %v4738 = vmul.f32 %v4730, %v4728
        %v4739 = vadd.f32 %v4693, %v4731
        %v4740 = vadd.f32 %v4694, %v4732
        %v4741 = vadd.f32 %v4695, %v4733
        %v4742 = vadd.f32 %v4696, %v4734
        %v4743 = vadd.f32 %v4697, %v4735
        %v4744 = vadd.f32 %v4698, %v4736
        %v4745 = vadd.f32 %v4699, %v4737
        %v4746 = vadd.f32 %v4700, %v4738
        %s4747 = sld [smem:[#allocation3 + $0x57]]
        %v4748 = vstv %s4747
        %v4749 = vmul.f32 %v4748, %v3681
        %v4750 = vmul.f32 %v4748, %v3682
        %v4751 = vmul.f32 %v4748, %v3683
        %v4752 = vmul.f32 %v4748, %v3684
        %v4753 = vmul.f32 %v4748, %v3685
        %v4754 = vmul.f32 %v4748, %v3686
        %v4755 = vmul.f32 %v4748, %v3687
        %v4756 = vmul.f32 %v4748, %v3688
        %s4757 = sld [smem:[#allocation5 + $0x57]]
        %v4758 = vstv %s4757
        %v4759 = vadd.f32 %v4749, %v4758
        %v4760 = vadd.f32 %v4750, %v4758
        %v4761 = vadd.f32 %v4751, %v4758
        %v4762 = vadd.f32 %v4752, %v4758
        %v4763 = vadd.f32 %v4753, %v4758
        %v4764 = vadd.f32 %v4754, %v4758
        %v4765 = vadd.f32 %v4755, %v4758
        %v4766 = vadd.f32 %v4756, %v4758
        %v4767 = vmax.f32 %v4759, 0.0
        %v4768 = vmax.f32 %v4760, 0.0
        %v4769 = vmax.f32 %v4761, 0.0
        %v4770 = vmax.f32 %v4762, 0.0
        %v4771 = vmax.f32 %v4763, 0.0
        %v4772 = vmax.f32 %v4764, 0.0
        %v4773 = vmax.f32 %v4765, 0.0
        %v4774 = vmax.f32 %v4766, 0.0
        %s4775 = sld [smem:[#allocation7 + $0x57]]
        %v4776 = vstv %s4775
        %v4777 = vmul.f32 %v4776, %v4767
        %v4778 = vmul.f32 %v4776, %v4768
        %v4779 = vmul.f32 %v4776, %v4769
        %v4780 = vmul.f32 %v4776, %v4770
        %v4781 = vmul.f32 %v4776, %v4771
        %v4782 = vmul.f32 %v4776, %v4772
        %v4783 = vmul.f32 %v4776, %v4773
        %v4784 = vmul.f32 %v4776, %v4774
        %v4785 = vadd.f32 %v4739, %v4777
        %v4786 = vadd.f32 %v4740, %v4778
        %v4787 = vadd.f32 %v4741, %v4779
        %v4788 = vadd.f32 %v4742, %v4780
        %v4789 = vadd.f32 %v4743, %v4781
        %v4790 = vadd.f32 %v4744, %v4782
        %v4791 = vadd.f32 %v4745, %v4783
        %v4792 = vadd.f32 %v4746, %v4784
        %s4793 = sld [smem:[#allocation3 + $0x58]]
        %v4794 = vstv %s4793
        %v4795 = vmul.f32 %v4794, %v3681
        %v4796 = vmul.f32 %v4794, %v3682
        %v4797 = vmul.f32 %v4794, %v3683
        %v4798 = vmul.f32 %v4794, %v3684
        %v4799 = vmul.f32 %v4794, %v3685
        %v4800 = vmul.f32 %v4794, %v3686
        %v4801 = vmul.f32 %v4794, %v3687
        %v4802 = vmul.f32 %v4794, %v3688
        %s4803 = sld [smem:[#allocation5 + $0x58]]
        %v4804 = vstv %s4803
        %v4805 = vadd.f32 %v4795, %v4804
        %v4806 = vadd.f32 %v4796, %v4804
        %v4807 = vadd.f32 %v4797, %v4804
        %v4808 = vadd.f32 %v4798, %v4804
        %v4809 = vadd.f32 %v4799, %v4804
        %v4810 = vadd.f32 %v4800, %v4804
        %v4811 = vadd.f32 %v4801, %v4804
        %v4812 = vadd.f32 %v4802, %v4804
        %v4813 = vmax.f32 %v4805, 0.0
        %v4814 = vmax.f32 %v4806, 0.0
        %v4815 = vmax.f32 %v4807, 0.0
        %v4816 = vmax.f32 %v4808, 0.0
        %v4817 = vmax.f32 %v4809, 0.0
        %v4818 = vmax.f32 %v4810, 0.0
        %v4819 = vmax.f32 %v4811, 0.0
        %v4820 = vmax.f32 %v4812, 0.0
        %s4821 = sld [smem:[#allocation7 + $0x58]]
        %v4822 = vstv %s4821
        %v4823 = vmul.f32 %v4822, %v4813
        %v4824 = vmul.f32 %v4822, %v4814
        %v4825 = vmul.f32 %v4822, %v4815
        %v4826 = vmul.f32 %v4822, %v4816
        %v4827 = vmul.f32 %v4822, %v4817
        %v4828 = vmul.f32 %v4822, %v4818
        %v4829 = vmul.f32 %v4822, %v4819
        %v4830 = vmul.f32 %v4822, %v4820
        %v4831 = vadd.f32 %v4785, %v4823
        %v4832 = vadd.f32 %v4786, %v4824
        %v4833 = vadd.f32 %v4787, %v4825
        %v4834 = vadd.f32 %v4788, %v4826
        %v4835 = vadd.f32 %v4789, %v4827
        %v4836 = vadd.f32 %v4790, %v4828
        %v4837 = vadd.f32 %v4791, %v4829
        %v4838 = vadd.f32 %v4792, %v4830
        %s4839 = sld [smem:[#allocation3 + $0x59]]
        %v4840 = vstv %s4839
        %v4841 = vmul.f32 %v4840, %v3681
        %v4842 = vmul.f32 %v4840, %v3682
        %v4843 = vmul.f32 %v4840, %v3683
        %v4844 = vmul.f32 %v4840, %v3684
        %v4845 = vmul.f32 %v4840, %v3685
        %v4846 = vmul.f32 %v4840, %v3686
        %v4847 = vmul.f32 %v4840, %v3687
        %v4848 = vmul.f32 %v4840, %v3688
        %s4849 = sld [smem:[#allocation5 + $0x59]]
        %v4850 = vstv %s4849
        %v4851 = vadd.f32 %v4841, %v4850
        %v4852 = vadd.f32 %v4842, %v4850
        %v4853 = vadd.f32 %v4843, %v4850
        %v4854 = vadd.f32 %v4844, %v4850
        %v4855 = vadd.f32 %v4845, %v4850
        %v4856 = vadd.f32 %v4846, %v4850
        %v4857 = vadd.f32 %v4847, %v4850
        %v4858 = vadd.f32 %v4848, %v4850
        %v4859 = vmax.f32 %v4851, 0.0
        %v4860 = vmax.f32 %v4852, 0.0
        %v4861 = vmax.f32 %v4853, 0.0
        %v4862 = vmax.f32 %v4854, 0.0
        %v4863 = vmax.f32 %v4855, 0.0
        %v4864 = vmax.f32 %v4856, 0.0
        %v4865 = vmax.f32 %v4857, 0.0
        %v4866 = vmax.f32 %v4858, 0.0
        %s4867 = sld [smem:[#allocation7 + $0x59]]
        %v4868 = vstv %s4867
        %v4869 = vmul.f32 %v4868, %v4859
        %v4870 = vmul.f32 %v4868, %v4860
        %v4871 = vmul.f32 %v4868, %v4861
        %v4872 = vmul.f32 %v4868, %v4862
        %v4873 = vmul.f32 %v4868, %v4863
        %v4874 = vmul.f32 %v4868, %v4864
        %v4875 = vmul.f32 %v4868, %v4865
        %v4876 = vmul.f32 %v4868, %v4866
        %v4877 = vadd.f32 %v4831, %v4869
        %v4878 = vadd.f32 %v4832, %v4870
        %v4879 = vadd.f32 %v4833, %v4871
        %v4880 = vadd.f32 %v4834, %v4872
        %v4881 = vadd.f32 %v4835, %v4873
        %v4882 = vadd.f32 %v4836, %v4874
        %v4883 = vadd.f32 %v4837, %v4875
        %v4884 = vadd.f32 %v4838, %v4876
        %s4885 = sld [smem:[#allocation3 + $0x5a]]
        %v4886 = vstv %s4885
        %v4887 = vmul.f32 %v4886, %v3681
        %v4888 = vmul.f32 %v4886, %v3682
        %v4889 = vmul.f32 %v4886, %v3683
        %v4890 = vmul.f32 %v4886, %v3684
        %v4891 = vmul.f32 %v4886, %v3685
        %v4892 = vmul.f32 %v4886, %v3686
        %v4893 = vmul.f32 %v4886, %v3687
        %v4894 = vmul.f32 %v4886, %v3688
        %s4895 = sld [smem:[#allocation5 + $0x5a]]
        %v4896 = vstv %s4895
        %v4897 = vadd.f32 %v4887, %v4896
        %v4898 = vadd.f32 %v4888, %v4896
        %v4899 = vadd.f32 %v4889, %v4896
        %v4900 = vadd.f32 %v4890, %v4896
        %v4901 = vadd.f32 %v4891, %v4896
        %v4902 = vadd.f32 %v4892, %v4896
        %v4903 = vadd.f32 %v4893, %v4896
        %v4904 = vadd.f32 %v4894, %v4896
        %v4905 = vmax.f32 %v4897, 0.0
        %v4906 = vmax.f32 %v4898, 0.0
        %v4907 = vmax.f32 %v4899, 0.0
        %v4908 = vmax.f32 %v4900, 0.0
        %v4909 = vmax.f32 %v4901, 0.0
        %v4910 = vmax.f32 %v4902, 0.0
        %v4911 = vmax.f32 %v4903, 0.0
        %v4912 = vmax.f32 %v4904, 0.0
        %s4913 = sld [smem:[#allocation7 + $0x5a]]
        %v4914 = vstv %s4913
        %v4915 = vmul.f32 %v4914, %v4905
        %v4916 = vmul.f32 %v4914, %v4906
        %v4917 = vmul.f32 %v4914, %v4907
        %v4918 = vmul.f32 %v4914, %v4908
        %v4919 = vmul.f32 %v4914, %v4909
        %v4920 = vmul.f32 %v4914, %v4910
        %v4921 = vmul.f32 %v4914, %v4911
        %v4922 = vmul.f32 %v4914, %v4912
        %v4923 = vadd.f32 %v4877, %v4915
        %v4924 = vadd.f32 %v4878, %v4916
        %v4925 = vadd.f32 %v4879, %v4917
        %v4926 = vadd.f32 %v4880, %v4918
        %v4927 = vadd.f32 %v4881, %v4919
        %v4928 = vadd.f32 %v4882, %v4920
        %v4929 = vadd.f32 %v4883, %v4921
        %v4930 = vadd.f32 %v4884, %v4922
        %s4931 = sld [smem:[#allocation3 + $0x5b]]
        %v4932 = vstv %s4931
        %v4933 = vmul.f32 %v4932, %v3681
        %v4934 = vmul.f32 %v4932, %v3682
        %v4935 = vmul.f32 %v4932, %v3683
        %v4936 = vmul.f32 %v4932, %v3684
        %v4937 = vmul.f32 %v4932, %v3685
        %v4938 = vmul.f32 %v4932, %v3686
        %v4939 = vmul.f32 %v4932, %v3687
        %v4940 = vmul.f32 %v4932, %v3688
        %s4941 = sld [smem:[#allocation5 + $0x5b]]
        %v4942 = vstv %s4941
        %v4943 = vadd.f32 %v4933, %v4942
        %v4944 = vadd.f32 %v4934, %v4942
        %v4945 = vadd.f32 %v4935, %v4942
        %v4946 = vadd.f32 %v4936, %v4942
        %v4947 = vadd.f32 %v4937, %v4942
        %v4948 = vadd.f32 %v4938, %v4942
        %v4949 = vadd.f32 %v4939, %v4942
        %v4950 = vadd.f32 %v4940, %v4942
        %v4951 = vmax.f32 %v4943, 0.0
        %v4952 = vmax.f32 %v4944, 0.0
        %v4953 = vmax.f32 %v4945, 0.0
        %v4954 = vmax.f32 %v4946, 0.0
        %v4955 = vmax.f32 %v4947, 0.0
        %v4956 = vmax.f32 %v4948, 0.0
        %v4957 = vmax.f32 %v4949, 0.0
        %v4958 = vmax.f32 %v4950, 0.0
        %s4959 = sld [smem:[#allocation7 + $0x5b]]
        %v4960 = vstv %s4959
        %v4961 = vmul.f32 %v4960, %v4951
        %v4962 = vmul.f32 %v4960, %v4952
        %v4963 = vmul.f32 %v4960, %v4953
        %v4964 = vmul.f32 %v4960, %v4954
        %v4965 = vmul.f32 %v4960, %v4955
        %v4966 = vmul.f32 %v4960, %v4956
        %v4967 = vmul.f32 %v4960, %v4957
        %v4968 = vmul.f32 %v4960, %v4958
        %v4969 = vadd.f32 %v4923, %v4961
        %v4970 = vadd.f32 %v4924, %v4962
        %v4971 = vadd.f32 %v4925, %v4963
        %v4972 = vadd.f32 %v4926, %v4964
        %v4973 = vadd.f32 %v4927, %v4965
        %v4974 = vadd.f32 %v4928, %v4966
        %v4975 = vadd.f32 %v4929, %v4967
        %v4976 = vadd.f32 %v4930, %v4968
        %s4977 = sld [smem:[#allocation3 + $0x5c]]
        %v4978 = vstv %s4977
        %v4979 = vmul.f32 %v4978, %v3681
        %v4980 = vmul.f32 %v4978, %v3682
        %v4981 = vmul.f32 %v4978, %v3683
        %v4982 = vmul.f32 %v4978, %v3684
        %v4983 = vmul.f32 %v4978, %v3685
        %v4984 = vmul.f32 %v4978, %v3686
        %v4985 = vmul.f32 %v4978, %v3687
        %v4986 = vmul.f32 %v4978, %v3688
        %s4987 = sld [smem:[#allocation5 + $0x5c]]
        %v4988 = vstv %s4987
        %v4989 = vadd.f32 %v4979, %v4988
        %v4990 = vadd.f32 %v4980, %v4988
        %v4991 = vadd.f32 %v4981, %v4988
        %v4992 = vadd.f32 %v4982, %v4988
        %v4993 = vadd.f32 %v4983, %v4988
        %v4994 = vadd.f32 %v4984, %v4988
        %v4995 = vadd.f32 %v4985, %v4988
        %v4996 = vadd.f32 %v4986, %v4988
        %v4997 = vmax.f32 %v4989, 0.0
        %v4998 = vmax.f32 %v4990, 0.0
        %v4999 = vmax.f32 %v4991, 0.0
        %v5000 = vmax.f32 %v4992, 0.0
        %v5001 = vmax.f32 %v4993, 0.0
        %v5002 = vmax.f32 %v4994, 0.0
        %v5003 = vmax.f32 %v4995, 0.0
        %v5004 = vmax.f32 %v4996, 0.0
        %s5005 = sld [smem:[#allocation7 + $0x5c]]
        %v5006 = vstv %s5005
        %v5007 = vmul.f32 %v5006, %v4997
        %v5008 = vmul.f32 %v5006, %v4998
        %v5009 = vmul.f32 %v5006, %v4999
        %v5010 = vmul.f32 %v5006, %v5000
        %v5011 = vmul.f32 %v5006, %v5001
        %v5012 = vmul.f32 %v5006, %v5002
        %v5013 = vmul.f32 %v5006, %v5003
        %v5014 = vmul.f32 %v5006, %v5004
        %v5015 = vadd.f32 %v4969, %v5007
        %v5016 = vadd.f32 %v4970, %v5008
        %v5017 = vadd.f32 %v4971, %v5009
        %v5018 = vadd.f32 %v4972, %v5010
        %v5019 = vadd.f32 %v4973, %v5011
        %v5020 = vadd.f32 %v4974, %v5012
        %v5021 = vadd.f32 %v4975, %v5013
        %v5022 = vadd.f32 %v4976, %v5014
        %s5023 = sld [smem:[#allocation3 + $0x5d]]
        %v5024 = vstv %s5023
        %v5025 = vmul.f32 %v5024, %v3681
        %v5026 = vmul.f32 %v5024, %v3682
        %v5027 = vmul.f32 %v5024, %v3683
        %v5028 = vmul.f32 %v5024, %v3684
        %v5029 = vmul.f32 %v5024, %v3685
        %v5030 = vmul.f32 %v5024, %v3686
        %v5031 = vmul.f32 %v5024, %v3687
        %v5032 = vmul.f32 %v5024, %v3688
        %s5033 = sld [smem:[#allocation5 + $0x5d]]
        %v5034 = vstv %s5033
        %v5035 = vadd.f32 %v5025, %v5034
        %v5036 = vadd.f32 %v5026, %v5034
        %v5037 = vadd.f32 %v5027, %v5034
        %v5038 = vadd.f32 %v5028, %v5034
        %v5039 = vadd.f32 %v5029, %v5034
        %v5040 = vadd.f32 %v5030, %v5034
        %v5041 = vadd.f32 %v5031, %v5034
        %v5042 = vadd.f32 %v5032, %v5034
        %v5043 = vmax.f32 %v5035, 0.0
        %v5044 = vmax.f32 %v5036, 0.0
        %v5045 = vmax.f32 %v5037, 0.0
        %v5046 = vmax.f32 %v5038, 0.0
        %v5047 = vmax.f32 %v5039, 0.0
        %v5048 = vmax.f32 %v5040, 0.0
        %v5049 = vmax.f32 %v5041, 0.0
        %v5050 = vmax.f32 %v5042, 0.0
        %s5051 = sld [smem:[#allocation7 + $0x5d]]
        %v5052 = vstv %s5051
        %v5053 = vmul.f32 %v5052, %v5043
        %v5054 = vmul.f32 %v5052, %v5044
        %v5055 = vmul.f32 %v5052, %v5045
        %v5056 = vmul.f32 %v5052, %v5046
        %v5057 = vmul.f32 %v5052, %v5047
        %v5058 = vmul.f32 %v5052, %v5048
        %v5059 = vmul.f32 %v5052, %v5049
        %v5060 = vmul.f32 %v5052, %v5050
        %v5061 = vadd.f32 %v5015, %v5053
        %v5062 = vadd.f32 %v5016, %v5054
        %v5063 = vadd.f32 %v5017, %v5055
        %v5064 = vadd.f32 %v5018, %v5056
        %v5065 = vadd.f32 %v5019, %v5057
        %v5066 = vadd.f32 %v5020, %v5058
        %v5067 = vadd.f32 %v5021, %v5059
        %v5068 = vadd.f32 %v5022, %v5060
        %s5069 = sld [smem:[#allocation3 + $0x5e]]
        %v5070 = vstv %s5069
        %v5071 = vmul.f32 %v5070, %v3681
        %v5072 = vmul.f32 %v5070, %v3682
        %v5073 = vmul.f32 %v5070, %v3683
        %v5074 = vmul.f32 %v5070, %v3684
        %v5075 = vmul.f32 %v5070, %v3685
        %v5076 = vmul.f32 %v5070, %v3686
        %v5077 = vmul.f32 %v5070, %v3687
        %v5078 = vmul.f32 %v5070, %v3688
        %s5079 = sld [smem:[#allocation5 + $0x5e]]
        %v5080 = vstv %s5079
        %v5081 = vadd.f32 %v5071, %v5080
        %v5082 = vadd.f32 %v5072, %v5080
        %v5083 = vadd.f32 %v5073, %v5080
        %v5084 = vadd.f32 %v5074, %v5080
        %v5085 = vadd.f32 %v5075, %v5080
        %v5086 = vadd.f32 %v5076, %v5080
        %v5087 = vadd.f32 %v5077, %v5080
        %v5088 = vadd.f32 %v5078, %v5080
        %v5089 = vmax.f32 %v5081, 0.0
        %v5090 = vmax.f32 %v5082, 0.0
        %v5091 = vmax.f32 %v5083, 0.0
        %v5092 = vmax.f32 %v5084, 0.0
        %v5093 = vmax.f32 %v5085, 0.0
        %v5094 = vmax.f32 %v5086, 0.0
        %v5095 = vmax.f32 %v5087, 0.0
        %v5096 = vmax.f32 %v5088, 0.0
        %s5097 = sld [smem:[#allocation7 + $0x5e]]
        %v5098 = vstv %s5097
        %v5099 = vmul.f32 %v5098, %v5089
        %v5100 = vmul.f32 %v5098, %v5090
        %v5101 = vmul.f32 %v5098, %v5091
        %v5102 = vmul.f32 %v5098, %v5092
        %v5103 = vmul.f32 %v5098, %v5093
        %v5104 = vmul.f32 %v5098, %v5094
        %v5105 = vmul.f32 %v5098, %v5095
        %v5106 = vmul.f32 %v5098, %v5096
        %v5107 = vadd.f32 %v5061, %v5099
        %v5108 = vadd.f32 %v5062, %v5100
        %v5109 = vadd.f32 %v5063, %v5101
        %v5110 = vadd.f32 %v5064, %v5102
        %v5111 = vadd.f32 %v5065, %v5103
        %v5112 = vadd.f32 %v5066, %v5104
        %v5113 = vadd.f32 %v5067, %v5105
        %v5114 = vadd.f32 %v5068, %v5106
        %s5115 = sld [smem:[#allocation3 + $0x5f]]
        %v5116 = vstv %s5115
        %v5117 = vmul.f32 %v5116, %v3681
        %v5118 = vmul.f32 %v5116, %v3682
        %v5119 = vmul.f32 %v5116, %v3683
        %v5120 = vmul.f32 %v5116, %v3684
        %v5121 = vmul.f32 %v5116, %v3685
        %v5122 = vmul.f32 %v5116, %v3686
        %v5123 = vmul.f32 %v5116, %v3687
        %v5124 = vmul.f32 %v5116, %v3688
        %s5125 = sld [smem:[#allocation5 + $0x5f]]
        %v5126 = vstv %s5125
        %v5127 = vadd.f32 %v5117, %v5126
        %v5128 = vadd.f32 %v5118, %v5126
        %v5129 = vadd.f32 %v5119, %v5126
        %v5130 = vadd.f32 %v5120, %v5126
        %v5131 = vadd.f32 %v5121, %v5126
        %v5132 = vadd.f32 %v5122, %v5126
        %v5133 = vadd.f32 %v5123, %v5126
        %v5134 = vadd.f32 %v5124, %v5126
        %v5135 = vmax.f32 %v5127, 0.0
        %v5136 = vmax.f32 %v5128, 0.0
        %v5137 = vmax.f32 %v5129, 0.0
        %v5138 = vmax.f32 %v5130, 0.0
        %v5139 = vmax.f32 %v5131, 0.0
        %v5140 = vmax.f32 %v5132, 0.0
        %v5141 = vmax.f32 %v5133, 0.0
        %v5142 = vmax.f32 %v5134, 0.0
        %s5143 = sld [smem:[#allocation7 + $0x5f]]
        %v5144 = vstv %s5143
        %v5145 = vmul.f32 %v5144, %v5135
        %v5146 = vmul.f32 %v5144, %v5136
        %v5147 = vmul.f32 %v5144, %v5137
        %v5148 = vmul.f32 %v5144, %v5138
        %v5149 = vmul.f32 %v5144, %v5139
        %v5150 = vmul.f32 %v5144, %v5140
        %v5151 = vmul.f32 %v5144, %v5141
        %v5152 = vmul.f32 %v5144, %v5142
        %v5153 = vadd.f32 %v5107, %v5145
        %v5154 = vadd.f32 %v5108, %v5146
        %v5155 = vadd.f32 %v5109, %v5147
        %v5156 = vadd.f32 %v5110, %v5148
        %v5157 = vadd.f32 %v5111, %v5149
        %v5158 = vadd.f32 %v5112, %v5150
        %v5159 = vadd.f32 %v5113, %v5151
        %v5160 = vadd.f32 %v5114, %v5152
        %s5161 = sld [smem:[#allocation3 + $0x60]]
        %v5162 = vstv %s5161
        %v5163 = vmul.f32 %v5162, %v3681
        %v5164 = vmul.f32 %v5162, %v3682
        %v5165 = vmul.f32 %v5162, %v3683
        %v5166 = vmul.f32 %v5162, %v3684
        %v5167 = vmul.f32 %v5162, %v3685
        %v5168 = vmul.f32 %v5162, %v3686
        %v5169 = vmul.f32 %v5162, %v3687
        %v5170 = vmul.f32 %v5162, %v3688
        %s5171 = sld [smem:[#allocation5 + $0x60]]
        %v5172 = vstv %s5171
        %v5173 = vadd.f32 %v5163, %v5172
        %v5174 = vadd.f32 %v5164, %v5172
        %v5175 = vadd.f32 %v5165, %v5172
        %v5176 = vadd.f32 %v5166, %v5172
        %v5177 = vadd.f32 %v5167, %v5172
        %v5178 = vadd.f32 %v5168, %v5172
        %v5179 = vadd.f32 %v5169, %v5172
        %v5180 = vadd.f32 %v5170, %v5172
        %v5181 = vmax.f32 %v5173, 0.0
        %v5182 = vmax.f32 %v5174, 0.0
        %v5183 = vmax.f32 %v5175, 0.0
        %v5184 = vmax.f32 %v5176, 0.0
        %v5185 = vmax.f32 %v5177, 0.0
        %v5186 = vmax.f32 %v5178, 0.0
        %v5187 = vmax.f32 %v5179, 0.0
        %v5188 = vmax.f32 %v5180, 0.0
        %s5189 = sld [smem:[#allocation7 + $0x60]]
        %v5190 = vstv %s5189
        %v5191 = vmul.f32 %v5190, %v5181
        %v5192 = vmul.f32 %v5190, %v5182
        %v5193 = vmul.f32 %v5190, %v5183
        %v5194 = vmul.f32 %v5190, %v5184
        %v5195 = vmul.f32 %v5190, %v5185
        %v5196 = vmul.f32 %v5190, %v5186
        %v5197 = vmul.f32 %v5190, %v5187
        %v5198 = vmul.f32 %v5190, %v5188
        %v5199 = vadd.f32 %v5153, %v5191
        %v5200 = vadd.f32 %v5154, %v5192
        %v5201 = vadd.f32 %v5155, %v5193
        %v5202 = vadd.f32 %v5156, %v5194
        %v5203 = vadd.f32 %v5157, %v5195
        %v5204 = vadd.f32 %v5158, %v5196
        %v5205 = vadd.f32 %v5159, %v5197
        %v5206 = vadd.f32 %v5160, %v5198
        %s5207 = sld [smem:[#allocation3 + $0x61]]
        %v5208 = vstv %s5207
        %v5209 = vmul.f32 %v5208, %v3681
        %v5210 = vmul.f32 %v5208, %v3682
        %v5211 = vmul.f32 %v5208, %v3683
        %v5212 = vmul.f32 %v5208, %v3684
        %v5213 = vmul.f32 %v5208, %v3685
        %v5214 = vmul.f32 %v5208, %v3686
        %v5215 = vmul.f32 %v5208, %v3687
        %v5216 = vmul.f32 %v5208, %v3688
        %s5217 = sld [smem:[#allocation5 + $0x61]]
        %v5218 = vstv %s5217
        %v5219 = vadd.f32 %v5209, %v5218
        %v5220 = vadd.f32 %v5210, %v5218
        %v5221 = vadd.f32 %v5211, %v5218
        %v5222 = vadd.f32 %v5212, %v5218
        %v5223 = vadd.f32 %v5213, %v5218
        %v5224 = vadd.f32 %v5214, %v5218
        %v5225 = vadd.f32 %v5215, %v5218
        %v5226 = vadd.f32 %v5216, %v5218
        %v5227 = vmax.f32 %v5219, 0.0
        %v5228 = vmax.f32 %v5220, 0.0
        %v5229 = vmax.f32 %v5221, 0.0
        %v5230 = vmax.f32 %v5222, 0.0
        %v5231 = vmax.f32 %v5223, 0.0
        %v5232 = vmax.f32 %v5224, 0.0
        %v5233 = vmax.f32 %v5225, 0.0
        %v5234 = vmax.f32 %v5226, 0.0
        %s5235 = sld [smem:[#allocation7 + $0x61]]
        %v5236 = vstv %s5235
        %v5237 = vmul.f32 %v5236, %v5227
        %v5238 = vmul.f32 %v5236, %v5228
        %v5239 = vmul.f32 %v5236, %v5229
        %v5240 = vmul.f32 %v5236, %v5230
        %v5241 = vmul.f32 %v5236, %v5231
        %v5242 = vmul.f32 %v5236, %v5232
        %v5243 = vmul.f32 %v5236, %v5233
        %v5244 = vmul.f32 %v5236, %v5234
        %v5245 = vadd.f32 %v5199, %v5237
        %v5246 = vadd.f32 %v5200, %v5238
        %v5247 = vadd.f32 %v5201, %v5239
        %v5248 = vadd.f32 %v5202, %v5240
        %v5249 = vadd.f32 %v5203, %v5241
        %v5250 = vadd.f32 %v5204, %v5242
        %v5251 = vadd.f32 %v5205, %v5243
        %v5252 = vadd.f32 %v5206, %v5244
        %s5253 = sld [smem:[#allocation3 + $0x62]]
        %v5254 = vstv %s5253
        %v5255 = vmul.f32 %v5254, %v3681
        %v5256 = vmul.f32 %v5254, %v3682
        %v5257 = vmul.f32 %v5254, %v3683
        %v5258 = vmul.f32 %v5254, %v3684
        %v5259 = vmul.f32 %v5254, %v3685
        %v5260 = vmul.f32 %v5254, %v3686
        %v5261 = vmul.f32 %v5254, %v3687
        %v5262 = vmul.f32 %v5254, %v3688
        %s5263 = sld [smem:[#allocation5 + $0x62]]
        %v5264 = vstv %s5263
        %v5265 = vadd.f32 %v5255, %v5264
        %v5266 = vadd.f32 %v5256, %v5264
        %v5267 = vadd.f32 %v5257, %v5264
        %v5268 = vadd.f32 %v5258, %v5264
        %v5269 = vadd.f32 %v5259, %v5264
        %v5270 = vadd.f32 %v5260, %v5264
        %v5271 = vadd.f32 %v5261, %v5264
        %v5272 = vadd.f32 %v5262, %v5264
        %v5273 = vmax.f32 %v5265, 0.0
        %v5274 = vmax.f32 %v5266, 0.0
        %v5275 = vmax.f32 %v5267, 0.0
        %v5276 = vmax.f32 %v5268, 0.0
        %v5277 = vmax.f32 %v5269, 0.0
        %v5278 = vmax.f32 %v5270, 0.0
        %v5279 = vmax.f32 %v5271, 0.0
        %v5280 = vmax.f32 %v5272, 0.0
        %s5281 = sld [smem:[#allocation7 + $0x62]]
        %v5282 = vstv %s5281
        %v5283 = vmul.f32 %v5282, %v5273
        %v5284 = vmul.f32 %v5282, %v5274
        %v5285 = vmul.f32 %v5282, %v5275
        %v5286 = vmul.f32 %v5282, %v5276
        %v5287 = vmul.f32 %v5282, %v5277
        %v5288 = vmul.f32 %v5282, %v5278
        %v5289 = vmul.f32 %v5282, %v5279
        %v5290 = vmul.f32 %v5282, %v5280
        %v5291 = vadd.f32 %v5245, %v5283
        %v5292 = vadd.f32 %v5246, %v5284
        %v5293 = vadd.f32 %v5247, %v5285
        %v5294 = vadd.f32 %v5248, %v5286
        %v5295 = vadd.f32 %v5249, %v5287
        %v5296 = vadd.f32 %v5250, %v5288
        %v5297 = vadd.f32 %v5251, %v5289
        %v5298 = vadd.f32 %v5252, %v5290
        %s5299 = sld [smem:[#allocation3 + $0x63]]
        %v5300 = vstv %s5299
        %v5301 = vmul.f32 %v5300, %v3681
        %v5302 = vmul.f32 %v5300, %v3682
        %v5303 = vmul.f32 %v5300, %v3683
        %v5304 = vmul.f32 %v5300, %v3684
        %v5305 = vmul.f32 %v5300, %v3685
        %v5306 = vmul.f32 %v5300, %v3686
        %v5307 = vmul.f32 %v5300, %v3687
        %v5308 = vmul.f32 %v5300, %v3688
        %s5309 = sld [smem:[#allocation5 + $0x63]]
        %v5310 = vstv %s5309
        %v5311 = vadd.f32 %v5301, %v5310
        %v5312 = vadd.f32 %v5302, %v5310
        %v5313 = vadd.f32 %v5303, %v5310
        %v5314 = vadd.f32 %v5304, %v5310
        %v5315 = vadd.f32 %v5305, %v5310
        %v5316 = vadd.f32 %v5306, %v5310
        %v5317 = vadd.f32 %v5307, %v5310
        %v5318 = vadd.f32 %v5308, %v5310
        %v5319 = vmax.f32 %v5311, 0.0
        %v5320 = vmax.f32 %v5312, 0.0
        %v5321 = vmax.f32 %v5313, 0.0
        %v5322 = vmax.f32 %v5314, 0.0
        %v5323 = vmax.f32 %v5315, 0.0
        %v5324 = vmax.f32 %v5316, 0.0
        %v5325 = vmax.f32 %v5317, 0.0
        %v5326 = vmax.f32 %v5318, 0.0
        %s5327 = sld [smem:[#allocation7 + $0x63]]
        %v5328 = vstv %s5327
        %v5329 = vmul.f32 %v5328, %v5319
        %v5330 = vmul.f32 %v5328, %v5320
        %v5331 = vmul.f32 %v5328, %v5321
        %v5332 = vmul.f32 %v5328, %v5322
        %v5333 = vmul.f32 %v5328, %v5323
        %v5334 = vmul.f32 %v5328, %v5324
        %v5335 = vmul.f32 %v5328, %v5325
        %v5336 = vmul.f32 %v5328, %v5326
        %v5337 = vadd.f32 %v5291, %v5329
        %v5338 = vadd.f32 %v5292, %v5330
        %v5339 = vadd.f32 %v5293, %v5331
        %v5340 = vadd.f32 %v5294, %v5332
        %v5341 = vadd.f32 %v5295, %v5333
        %v5342 = vadd.f32 %v5296, %v5334
        %v5343 = vadd.f32 %v5297, %v5335
        %v5344 = vadd.f32 %v5298, %v5336
        %s5345 = sld [smem:[#allocation3 + $0x64]]
        %v5346 = vstv %s5345
        %v5347 = vmul.f32 %v5346, %v3681
        %v5348 = vmul.f32 %v5346, %v3682
        %v5349 = vmul.f32 %v5346, %v3683
        %v5350 = vmul.f32 %v5346, %v3684
        %v5351 = vmul.f32 %v5346, %v3685
        %v5352 = vmul.f32 %v5346, %v3686
        %v5353 = vmul.f32 %v5346, %v3687
        %v5354 = vmul.f32 %v5346, %v3688
        %s5355 = sld [smem:[#allocation5 + $0x64]]
        %v5356 = vstv %s5355
        %v5357 = vadd.f32 %v5347, %v5356
        %v5358 = vadd.f32 %v5348, %v5356
        %v5359 = vadd.f32 %v5349, %v5356
        %v5360 = vadd.f32 %v5350, %v5356
        %v5361 = vadd.f32 %v5351, %v5356
        %v5362 = vadd.f32 %v5352, %v5356
        %v5363 = vadd.f32 %v5353, %v5356
        %v5364 = vadd.f32 %v5354, %v5356
        %v5365 = vmax.f32 %v5357, 0.0
        %v5366 = vmax.f32 %v5358, 0.0
        %v5367 = vmax.f32 %v5359, 0.0
        %v5368 = vmax.f32 %v5360, 0.0
        %v5369 = vmax.f32 %v5361, 0.0
        %v5370 = vmax.f32 %v5362, 0.0
        %v5371 = vmax.f32 %v5363, 0.0
        %v5372 = vmax.f32 %v5364, 0.0
        %s5373 = sld [smem:[#allocation7 + $0x64]]
        %v5374 = vstv %s5373
        %v5375 = vmul.f32 %v5374, %v5365
        %v5376 = vmul.f32 %v5374, %v5366
        %v5377 = vmul.f32 %v5374, %v5367
        %v5378 = vmul.f32 %v5374, %v5368
        %v5379 = vmul.f32 %v5374, %v5369
        %v5380 = vmul.f32 %v5374, %v5370
        %v5381 = vmul.f32 %v5374, %v5371
        %v5382 = vmul.f32 %v5374, %v5372
        %v5383 = vadd.f32 %v5337, %v5375
        %v5384 = vadd.f32 %v5338, %v5376
        %v5385 = vadd.f32 %v5339, %v5377
        %v5386 = vadd.f32 %v5340, %v5378
        %v5387 = vadd.f32 %v5341, %v5379
        %v5388 = vadd.f32 %v5342, %v5380
        %v5389 = vadd.f32 %v5343, %v5381
        %v5390 = vadd.f32 %v5344, %v5382
        %s5391 = sld [smem:[#allocation3 + $0x65]]
        %v5392 = vstv %s5391
        %v5393 = vmul.f32 %v5392, %v3681
        %v5394 = vmul.f32 %v5392, %v3682
        %v5395 = vmul.f32 %v5392, %v3683
        %v5396 = vmul.f32 %v5392, %v3684
        %v5397 = vmul.f32 %v5392, %v3685
        %v5398 = vmul.f32 %v5392, %v3686
        %v5399 = vmul.f32 %v5392, %v3687
        %v5400 = vmul.f32 %v5392, %v3688
        %s5401 = sld [smem:[#allocation5 + $0x65]]
        %v5402 = vstv %s5401
        %v5403 = vadd.f32 %v5393, %v5402
        %v5404 = vadd.f32 %v5394, %v5402
        %v5405 = vadd.f32 %v5395, %v5402
        %v5406 = vadd.f32 %v5396, %v5402
        %v5407 = vadd.f32 %v5397, %v5402
        %v5408 = vadd.f32 %v5398, %v5402
        %v5409 = vadd.f32 %v5399, %v5402
        %v5410 = vadd.f32 %v5400, %v5402
        %v5411 = vmax.f32 %v5403, 0.0
        %v5412 = vmax.f32 %v5404, 0.0
        %v5413 = vmax.f32 %v5405, 0.0
        %v5414 = vmax.f32 %v5406, 0.0
        %v5415 = vmax.f32 %v5407, 0.0
        %v5416 = vmax.f32 %v5408, 0.0
        %v5417 = vmax.f32 %v5409, 0.0
        %v5418 = vmax.f32 %v5410, 0.0
        %s5419 = sld [smem:[#allocation7 + $0x65]]
        %v5420 = vstv %s5419
        %v5421 = vmul.f32 %v5420, %v5411
        %v5422 = vmul.f32 %v5420, %v5412
        %v5423 = vmul.f32 %v5420, %v5413
        %v5424 = vmul.f32 %v5420, %v5414
        %v5425 = vmul.f32 %v5420, %v5415
        %v5426 = vmul.f32 %v5420, %v5416
        %v5427 = vmul.f32 %v5420, %v5417
        %v5428 = vmul.f32 %v5420, %v5418
        %v5429 = vadd.f32 %v5383, %v5421
        %v5430 = vadd.f32 %v5384, %v5422
        %v5431 = vadd.f32 %v5385, %v5423
        %v5432 = vadd.f32 %v5386, %v5424
        %v5433 = vadd.f32 %v5387, %v5425
        %v5434 = vadd.f32 %v5388, %v5426
        %v5435 = vadd.f32 %v5389, %v5427
        %v5436 = vadd.f32 %v5390, %v5428
        %s5437 = sld [smem:[#allocation3 + $0x66]]
        %v5438 = vstv %s5437
        %v5439 = vmul.f32 %v5438, %v3681
        %v5440 = vmul.f32 %v5438, %v3682
        %v5441 = vmul.f32 %v5438, %v3683
        %v5442 = vmul.f32 %v5438, %v3684
        %v5443 = vmul.f32 %v5438, %v3685
        %v5444 = vmul.f32 %v5438, %v3686
        %v5445 = vmul.f32 %v5438, %v3687
        %v5446 = vmul.f32 %v5438, %v3688
        %s5447 = sld [smem:[#allocation5 + $0x66]]
        %v5448 = vstv %s5447
        %v5449 = vadd.f32 %v5439, %v5448
        %v5450 = vadd.f32 %v5440, %v5448
        %v5451 = vadd.f32 %v5441, %v5448
        %v5452 = vadd.f32 %v5442, %v5448
        %v5453 = vadd.f32 %v5443, %v5448
        %v5454 = vadd.f32 %v5444, %v5448
        %v5455 = vadd.f32 %v5445, %v5448
        %v5456 = vadd.f32 %v5446, %v5448
        %v5457 = vmax.f32 %v5449, 0.0
        %v5458 = vmax.f32 %v5450, 0.0
        %v5459 = vmax.f32 %v5451, 0.0
        %v5460 = vmax.f32 %v5452, 0.0
        %v5461 = vmax.f32 %v5453, 0.0
        %v5462 = vmax.f32 %v5454, 0.0
        %v5463 = vmax.f32 %v5455, 0.0
        %v5464 = vmax.f32 %v5456, 0.0
        %s5465 = sld [smem:[#allocation7 + $0x66]]
        %v5466 = vstv %s5465
        %v5467 = vmul.f32 %v5466, %v5457
        %v5468 = vmul.f32 %v5466, %v5458
        %v5469 = vmul.f32 %v5466, %v5459
        %v5470 = vmul.f32 %v5466, %v5460
        %v5471 = vmul.f32 %v5466, %v5461
        %v5472 = vmul.f32 %v5466, %v5462
        %v5473 = vmul.f32 %v5466, %v5463
        %v5474 = vmul.f32 %v5466, %v5464
        %v5475 = vadd.f32 %v5429, %v5467
        %v5476 = vadd.f32 %v5430, %v5468
        %v5477 = vadd.f32 %v5431, %v5469
        %v5478 = vadd.f32 %v5432, %v5470
        %v5479 = vadd.f32 %v5433, %v5471
        %v5480 = vadd.f32 %v5434, %v5472
        %v5481 = vadd.f32 %v5435, %v5473
        %v5482 = vadd.f32 %v5436, %v5474
        %s5483 = sld [smem:[#allocation3 + $0x67]]
        %v5484 = vstv %s5483
        %v5485 = vmul.f32 %v5484, %v3681
        %v5486 = vmul.f32 %v5484, %v3682
        %v5487 = vmul.f32 %v5484, %v3683
        %v5488 = vmul.f32 %v5484, %v3684
        %v5489 = vmul.f32 %v5484, %v3685
        %v5490 = vmul.f32 %v5484, %v3686
        %v5491 = vmul.f32 %v5484, %v3687
        %v5492 = vmul.f32 %v5484, %v3688
        %s5493 = sld [smem:[#allocation5 + $0x67]]
        %v5494 = vstv %s5493
        %v5495 = vadd.f32 %v5485, %v5494
        %v5496 = vadd.f32 %v5486, %v5494
        %v5497 = vadd.f32 %v5487, %v5494
        %v5498 = vadd.f32 %v5488, %v5494
        %v5499 = vadd.f32 %v5489, %v5494
        %v5500 = vadd.f32 %v5490, %v5494
        %v5501 = vadd.f32 %v5491, %v5494
        %v5502 = vadd.f32 %v5492, %v5494
        %v5503 = vmax.f32 %v5495, 0.0
        %v5504 = vmax.f32 %v5496, 0.0
        %v5505 = vmax.f32 %v5497, 0.0
        %v5506 = vmax.f32 %v5498, 0.0
        %v5507 = vmax.f32 %v5499, 0.0
        %v5508 = vmax.f32 %v5500, 0.0
        %v5509 = vmax.f32 %v5501, 0.0
        %v5510 = vmax.f32 %v5502, 0.0
        %s5511 = sld [smem:[#allocation7 + $0x67]]
        %v5512 = vstv %s5511
        %v5513 = vmul.f32 %v5512, %v5503
        %v5514 = vmul.f32 %v5512, %v5504
        %v5515 = vmul.f32 %v5512, %v5505
        %v5516 = vmul.f32 %v5512, %v5506
        %v5517 = vmul.f32 %v5512, %v5507
        %v5518 = vmul.f32 %v5512, %v5508
        %v5519 = vmul.f32 %v5512, %v5509
        %v5520 = vmul.f32 %v5512, %v5510
        %v5521 = vadd.f32 %v5475, %v5513
        %v5522 = vadd.f32 %v5476, %v5514
        %v5523 = vadd.f32 %v5477, %v5515
        %v5524 = vadd.f32 %v5478, %v5516
        %v5525 = vadd.f32 %v5479, %v5517
        %v5526 = vadd.f32 %v5480, %v5518
        %v5527 = vadd.f32 %v5481, %v5519
        %v5528 = vadd.f32 %v5482, %v5520
        %s5529 = sld [smem:[#allocation3 + $0x68]]
        %v5530 = vstv %s5529
        %v5531 = vmul.f32 %v5530, %v3681
        %v5532 = vmul.f32 %v5530, %v3682
        %v5533 = vmul.f32 %v5530, %v3683
        %v5534 = vmul.f32 %v5530, %v3684
        %v5535 = vmul.f32 %v5530, %v3685
        %v5536 = vmul.f32 %v5530, %v3686
        %v5537 = vmul.f32 %v5530, %v3687
        %v5538 = vmul.f32 %v5530, %v3688
        %s5539 = sld [smem:[#allocation5 + $0x68]]
        %v5540 = vstv %s5539
        %v5541 = vadd.f32 %v5531, %v5540
        %v5542 = vadd.f32 %v5532, %v5540
        %v5543 = vadd.f32 %v5533, %v5540
        %v5544 = vadd.f32 %v5534, %v5540
        %v5545 = vadd.f32 %v5535, %v5540
        %v5546 = vadd.f32 %v5536, %v5540
        %v5547 = vadd.f32 %v5537, %v5540
        %v5548 = vadd.f32 %v5538, %v5540
        %v5549 = vmax.f32 %v5541, 0.0
        %v5550 = vmax.f32 %v5542, 0.0
        %v5551 = vmax.f32 %v5543, 0.0
        %v5552 = vmax.f32 %v5544, 0.0
        %v5553 = vmax.f32 %v5545, 0.0
        %v5554 = vmax.f32 %v5546, 0.0
        %v5555 = vmax.f32 %v5547, 0.0
        %v5556 = vmax.f32 %v5548, 0.0
        %s5557 = sld [smem:[#allocation7 + $0x68]]
        %v5558 = vstv %s5557
        %v5559 = vmul.f32 %v5558, %v5549
        %v5560 = vmul.f32 %v5558, %v5550
        %v5561 = vmul.f32 %v5558, %v5551
        %v5562 = vmul.f32 %v5558, %v5552
        %v5563 = vmul.f32 %v5558, %v5553
        %v5564 = vmul.f32 %v5558, %v5554
        %v5565 = vmul.f32 %v5558, %v5555
        %v5566 = vmul.f32 %v5558, %v5556
        %v5567 = vadd.f32 %v5521, %v5559
        %v5568 = vadd.f32 %v5522, %v5560
        %v5569 = vadd.f32 %v5523, %v5561
        %v5570 = vadd.f32 %v5524, %v5562
        %v5571 = vadd.f32 %v5525, %v5563
        %v5572 = vadd.f32 %v5526, %v5564
        %v5573 = vadd.f32 %v5527, %v5565
        %v5574 = vadd.f32 %v5528, %v5566
        %s5575 = sld [smem:[#allocation3 + $0x69]]
        %v5576 = vstv %s5575
        %v5577 = vmul.f32 %v5576, %v3681
        %v5578 = vmul.f32 %v5576, %v3682
        %v5579 = vmul.f32 %v5576, %v3683
        %v5580 = vmul.f32 %v5576, %v3684
        %v5581 = vmul.f32 %v5576, %v3685
        %v5582 = vmul.f32 %v5576, %v3686
        %v5583 = vmul.f32 %v5576, %v3687
        %v5584 = vmul.f32 %v5576, %v3688
        %s5585 = sld [smem:[#allocation5 + $0x69]]
        %v5586 = vstv %s5585
        %v5587 = vadd.f32 %v5577, %v5586
        %v5588 = vadd.f32 %v5578, %v5586
        %v5589 = vadd.f32 %v5579, %v5586
        %v5590 = vadd.f32 %v5580, %v5586
        %v5591 = vadd.f32 %v5581, %v5586
        %v5592 = vadd.f32 %v5582, %v5586
        %v5593 = vadd.f32 %v5583, %v5586
        %v5594 = vadd.f32 %v5584, %v5586
        %v5595 = vmax.f32 %v5587, 0.0
        %v5596 = vmax.f32 %v5588, 0.0
        %v5597 = vmax.f32 %v5589, 0.0
        %v5598 = vmax.f32 %v5590, 0.0
        %v5599 = vmax.f32 %v5591, 0.0
        %v5600 = vmax.f32 %v5592, 0.0
        %v5601 = vmax.f32 %v5593, 0.0
        %v5602 = vmax.f32 %v5594, 0.0
        %s5603 = sld [smem:[#allocation7 + $0x69]]
        %v5604 = vstv %s5603
        %v5605 = vmul.f32 %v5604, %v5595
        %v5606 = vmul.f32 %v5604, %v5596
        %v5607 = vmul.f32 %v5604, %v5597
        %v5608 = vmul.f32 %v5604, %v5598
        %v5609 = vmul.f32 %v5604, %v5599
        %v5610 = vmul.f32 %v5604, %v5600
        %v5611 = vmul.f32 %v5604, %v5601
        %v5612 = vmul.f32 %v5604, %v5602
        %v5613 = vadd.f32 %v5567, %v5605
        %v5614 = vadd.f32 %v5568, %v5606
        %v5615 = vadd.f32 %v5569, %v5607
        %v5616 = vadd.f32 %v5570, %v5608
        %v5617 = vadd.f32 %v5571, %v5609
        %v5618 = vadd.f32 %v5572, %v5610
        %v5619 = vadd.f32 %v5573, %v5611
        %v5620 = vadd.f32 %v5574, %v5612
        %s5621 = sld [smem:[#allocation3 + $0x6a]]
        %v5622 = vstv %s5621
        %v5623 = vmul.f32 %v5622, %v3681
        %v5624 = vmul.f32 %v5622, %v3682
        %v5625 = vmul.f32 %v5622, %v3683
        %v5626 = vmul.f32 %v5622, %v3684
        %v5627 = vmul.f32 %v5622, %v3685
        %v5628 = vmul.f32 %v5622, %v3686
        %v5629 = vmul.f32 %v5622, %v3687
        %v5630 = vmul.f32 %v5622, %v3688
        %s5631 = sld [smem:[#allocation5 + $0x6a]]
        %v5632 = vstv %s5631
        %v5633 = vadd.f32 %v5623, %v5632
        %v5634 = vadd.f32 %v5624, %v5632
        %v5635 = vadd.f32 %v5625, %v5632
        %v5636 = vadd.f32 %v5626, %v5632
        %v5637 = vadd.f32 %v5627, %v5632
        %v5638 = vadd.f32 %v5628, %v5632
        %v5639 = vadd.f32 %v5629, %v5632
        %v5640 = vadd.f32 %v5630, %v5632
        %v5641 = vmax.f32 %v5633, 0.0
        %v5642 = vmax.f32 %v5634, 0.0
        %v5643 = vmax.f32 %v5635, 0.0
        %v5644 = vmax.f32 %v5636, 0.0
        %v5645 = vmax.f32 %v5637, 0.0
        %v5646 = vmax.f32 %v5638, 0.0
        %v5647 = vmax.f32 %v5639, 0.0
        %v5648 = vmax.f32 %v5640, 0.0
        %s5649 = sld [smem:[#allocation7 + $0x6a]]
        %v5650 = vstv %s5649
        %v5651 = vmul.f32 %v5650, %v5641
        %v5652 = vmul.f32 %v5650, %v5642
        %v5653 = vmul.f32 %v5650, %v5643
        %v5654 = vmul.f32 %v5650, %v5644
        %v5655 = vmul.f32 %v5650, %v5645
        %v5656 = vmul.f32 %v5650, %v5646
        %v5657 = vmul.f32 %v5650, %v5647
        %v5658 = vmul.f32 %v5650, %v5648
        %v5659 = vadd.f32 %v5613, %v5651
        %v5660 = vadd.f32 %v5614, %v5652
        %v5661 = vadd.f32 %v5615, %v5653
        %v5662 = vadd.f32 %v5616, %v5654
        %v5663 = vadd.f32 %v5617, %v5655
        %v5664 = vadd.f32 %v5618, %v5656
        %v5665 = vadd.f32 %v5619, %v5657
        %v5666 = vadd.f32 %v5620, %v5658
        %s5667 = sld [smem:[#allocation3 + $0x6b]]
        %v5668 = vstv %s5667
        %v5669 = vmul.f32 %v5668, %v3681
        %v5670 = vmul.f32 %v5668, %v3682
        %v5671 = vmul.f32 %v5668, %v3683
        %v5672 = vmul.f32 %v5668, %v3684
        %v5673 = vmul.f32 %v5668, %v3685
        %v5674 = vmul.f32 %v5668, %v3686
        %v5675 = vmul.f32 %v5668, %v3687
        %v5676 = vmul.f32 %v5668, %v3688
        %s5677 = sld [smem:[#allocation5 + $0x6b]]
        %v5678 = vstv %s5677
        %v5679 = vadd.f32 %v5669, %v5678
        %v5680 = vadd.f32 %v5670, %v5678
        %v5681 = vadd.f32 %v5671, %v5678
        %v5682 = vadd.f32 %v5672, %v5678
        %v5683 = vadd.f32 %v5673, %v5678
        %v5684 = vadd.f32 %v5674, %v5678
        %v5685 = vadd.f32 %v5675, %v5678
        %v5686 = vadd.f32 %v5676, %v5678
        %v5687 = vmax.f32 %v5679, 0.0
        %v5688 = vmax.f32 %v5680, 0.0
        %v5689 = vmax.f32 %v5681, 0.0
        %v5690 = vmax.f32 %v5682, 0.0
        %v5691 = vmax.f32 %v5683, 0.0
        %v5692 = vmax.f32 %v5684, 0.0
        %v5693 = vmax.f32 %v5685, 0.0
        %v5694 = vmax.f32 %v5686, 0.0
        %s5695 = sld [smem:[#allocation7 + $0x6b]]
        %v5696 = vstv %s5695
        %v5697 = vmul.f32 %v5696, %v5687
        %v5698 = vmul.f32 %v5696, %v5688
        %v5699 = vmul.f32 %v5696, %v5689
        %v5700 = vmul.f32 %v5696, %v5690
        %v5701 = vmul.f32 %v5696, %v5691
        %v5702 = vmul.f32 %v5696, %v5692
        %v5703 = vmul.f32 %v5696, %v5693
        %v5704 = vmul.f32 %v5696, %v5694
        %v5705 = vadd.f32 %v5659, %v5697
        %v5706 = vadd.f32 %v5660, %v5698
        %v5707 = vadd.f32 %v5661, %v5699
        %v5708 = vadd.f32 %v5662, %v5700
        %v5709 = vadd.f32 %v5663, %v5701
        %v5710 = vadd.f32 %v5664, %v5702
        %v5711 = vadd.f32 %v5665, %v5703
        %v5712 = vadd.f32 %v5666, %v5704
        %s5713 = sld [smem:[#allocation3 + $0x6c]]
        %v5714 = vstv %s5713
        %v5715 = vmul.f32 %v5714, %v3681
        %v5716 = vmul.f32 %v5714, %v3682
        %v5717 = vmul.f32 %v5714, %v3683
        %v5718 = vmul.f32 %v5714, %v3684
        %v5719 = vmul.f32 %v5714, %v3685
        %v5720 = vmul.f32 %v5714, %v3686
        %v5721 = vmul.f32 %v5714, %v3687
        %v5722 = vmul.f32 %v5714, %v3688
        %s5723 = sld [smem:[#allocation5 + $0x6c]]
        %v5724 = vstv %s5723
        %v5725 = vadd.f32 %v5715, %v5724
        %v5726 = vadd.f32 %v5716, %v5724
        %v5727 = vadd.f32 %v5717, %v5724
        %v5728 = vadd.f32 %v5718, %v5724
        %v5729 = vadd.f32 %v5719, %v5724
        %v5730 = vadd.f32 %v5720, %v5724
        %v5731 = vadd.f32 %v5721, %v5724
        %v5732 = vadd.f32 %v5722, %v5724
        %v5733 = vmax.f32 %v5725, 0.0
        %v5734 = vmax.f32 %v5726, 0.0
        %v5735 = vmax.f32 %v5727, 0.0
        %v5736 = vmax.f32 %v5728, 0.0
        %v5737 = vmax.f32 %v5729, 0.0
        %v5738 = vmax.f32 %v5730, 0.0
        %v5739 = vmax.f32 %v5731, 0.0
        %v5740 = vmax.f32 %v5732, 0.0
        %s5741 = sld [smem:[#allocation7 + $0x6c]]
        %v5742 = vstv %s5741
        %v5743 = vmul.f32 %v5742, %v5733
        %v5744 = vmul.f32 %v5742, %v5734
        %v5745 = vmul.f32 %v5742, %v5735
        %v5746 = vmul.f32 %v5742, %v5736
        %v5747 = vmul.f32 %v5742, %v5737
        %v5748 = vmul.f32 %v5742, %v5738
        %v5749 = vmul.f32 %v5742, %v5739
        %v5750 = vmul.f32 %v5742, %v5740
        %v5751 = vadd.f32 %v5705, %v5743
        %v5752 = vadd.f32 %v5706, %v5744
        %v5753 = vadd.f32 %v5707, %v5745
        %v5754 = vadd.f32 %v5708, %v5746
        %v5755 = vadd.f32 %v5709, %v5747
        %v5756 = vadd.f32 %v5710, %v5748
        %v5757 = vadd.f32 %v5711, %v5749
        %v5758 = vadd.f32 %v5712, %v5750
        %s5759 = sld [smem:[#allocation3 + $0x6d]]
        %v5760 = vstv %s5759
        %v5761 = vmul.f32 %v5760, %v3681
        %v5762 = vmul.f32 %v5760, %v3682
        %v5763 = vmul.f32 %v5760, %v3683
        %v5764 = vmul.f32 %v5760, %v3684
        %v5765 = vmul.f32 %v5760, %v3685
        %v5766 = vmul.f32 %v5760, %v3686
        %v5767 = vmul.f32 %v5760, %v3687
        %v5768 = vmul.f32 %v5760, %v3688
        %s5769 = sld [smem:[#allocation5 + $0x6d]]
        %v5770 = vstv %s5769
        %v5771 = vadd.f32 %v5761, %v5770
        %v5772 = vadd.f32 %v5762, %v5770
        %v5773 = vadd.f32 %v5763, %v5770
        %v5774 = vadd.f32 %v5764, %v5770
        %v5775 = vadd.f32 %v5765, %v5770
        %v5776 = vadd.f32 %v5766, %v5770
        %v5777 = vadd.f32 %v5767, %v5770
        %v5778 = vadd.f32 %v5768, %v5770
        %v5779 = vmax.f32 %v5771, 0.0
        %v5780 = vmax.f32 %v5772, 0.0
        %v5781 = vmax.f32 %v5773, 0.0
        %v5782 = vmax.f32 %v5774, 0.0
        %v5783 = vmax.f32 %v5775, 0.0
        %v5784 = vmax.f32 %v5776, 0.0
        %v5785 = vmax.f32 %v5777, 0.0
        %v5786 = vmax.f32 %v5778, 0.0
        %s5787 = sld [smem:[#allocation7 + $0x6d]]
        %v5788 = vstv %s5787
        %v5789 = vmul.f32 %v5788, %v5779
        %v5790 = vmul.f32 %v5788, %v5780
        %v5791 = vmul.f32 %v5788, %v5781
        %v5792 = vmul.f32 %v5788, %v5782
        %v5793 = vmul.f32 %v5788, %v5783
        %v5794 = vmul.f32 %v5788, %v5784
        %v5795 = vmul.f32 %v5788, %v5785
        %v5796 = vmul.f32 %v5788, %v5786
        %v5797 = vadd.f32 %v5751, %v5789
        %v5798 = vadd.f32 %v5752, %v5790
        %v5799 = vadd.f32 %v5753, %v5791
        %v5800 = vadd.f32 %v5754, %v5792
        %v5801 = vadd.f32 %v5755, %v5793
        %v5802 = vadd.f32 %v5756, %v5794
        %v5803 = vadd.f32 %v5757, %v5795
        %v5804 = vadd.f32 %v5758, %v5796
        %s5805 = sld [smem:[#allocation3 + $0x6e]]
        %v5806 = vstv %s5805
        %v5807 = vmul.f32 %v5806, %v3681
        %v5808 = vmul.f32 %v5806, %v3682
        %v5809 = vmul.f32 %v5806, %v3683
        %v5810 = vmul.f32 %v5806, %v3684
        %v5811 = vmul.f32 %v5806, %v3685
        %v5812 = vmul.f32 %v5806, %v3686
        %v5813 = vmul.f32 %v5806, %v3687
        %v5814 = vmul.f32 %v5806, %v3688
        %s5815 = sld [smem:[#allocation5 + $0x6e]]
        %v5816 = vstv %s5815
        %v5817 = vadd.f32 %v5807, %v5816
        %v5818 = vadd.f32 %v5808, %v5816
        %v5819 = vadd.f32 %v5809, %v5816
        %v5820 = vadd.f32 %v5810, %v5816
        %v5821 = vadd.f32 %v5811, %v5816
        %v5822 = vadd.f32 %v5812, %v5816
        %v5823 = vadd.f32 %v5813, %v5816
        %v5824 = vadd.f32 %v5814, %v5816
        %v5825 = vmax.f32 %v5817, 0.0
        %v5826 = vmax.f32 %v5818, 0.0
        %v5827 = vmax.f32 %v5819, 0.0
        %v5828 = vmax.f32 %v5820, 0.0
        %v5829 = vmax.f32 %v5821, 0.0
        %v5830 = vmax.f32 %v5822, 0.0
        %v5831 = vmax.f32 %v5823, 0.0
        %v5832 = vmax.f32 %v5824, 0.0
        %s5833 = sld [smem:[#allocation7 + $0x6e]]
        %v5834 = vstv %s5833
        %v5835 = vmul.f32 %v5834, %v5825
        %v5836 = vmul.f32 %v5834, %v5826
        %v5837 = vmul.f32 %v5834, %v5827
        %v5838 = vmul.f32 %v5834, %v5828
        %v5839 = vmul.f32 %v5834, %v5829
        %v5840 = vmul.f32 %v5834, %v5830
        %v5841 = vmul.f32 %v5834, %v5831
        %v5842 = vmul.f32 %v5834, %v5832
        %v5843 = vadd.f32 %v5797, %v5835
        %v5844 = vadd.f32 %v5798, %v5836
        %v5845 = vadd.f32 %v5799, %v5837
        %v5846 = vadd.f32 %v5800, %v5838
        %v5847 = vadd.f32 %v5801, %v5839
        %v5848 = vadd.f32 %v5802, %v5840
        %v5849 = vadd.f32 %v5803, %v5841
        %v5850 = vadd.f32 %v5804, %v5842
        %s5851 = sld [smem:[#allocation3 + $0x6f]]
        %v5852 = vstv %s5851
        %v5853 = vmul.f32 %v5852, %v3681
        %v5854 = vmul.f32 %v5852, %v3682
        %v5855 = vmul.f32 %v5852, %v3683
        %v5856 = vmul.f32 %v5852, %v3684
        %v5857 = vmul.f32 %v5852, %v3685
        %v5858 = vmul.f32 %v5852, %v3686
        %v5859 = vmul.f32 %v5852, %v3687
        %v5860 = vmul.f32 %v5852, %v3688
        %s5861 = sld [smem:[#allocation5 + $0x6f]]
        %v5862 = vstv %s5861
        %v5863 = vadd.f32 %v5853, %v5862
        %v5864 = vadd.f32 %v5854, %v5862
        %v5865 = vadd.f32 %v5855, %v5862
        %v5866 = vadd.f32 %v5856, %v5862
        %v5867 = vadd.f32 %v5857, %v5862
        %v5868 = vadd.f32 %v5858, %v5862
        %v5869 = vadd.f32 %v5859, %v5862
        %v5870 = vadd.f32 %v5860, %v5862
        %v5871 = vmax.f32 %v5863, 0.0
        %v5872 = vmax.f32 %v5864, 0.0
        %v5873 = vmax.f32 %v5865, 0.0
        %v5874 = vmax.f32 %v5866, 0.0
        %v5875 = vmax.f32 %v5867, 0.0
        %v5876 = vmax.f32 %v5868, 0.0
        %v5877 = vmax.f32 %v5869, 0.0
        %v5878 = vmax.f32 %v5870, 0.0
        %s5879 = sld [smem:[#allocation7 + $0x6f]]
        %v5880 = vstv %s5879
        %v5881 = vmul.f32 %v5880, %v5871
        %v5882 = vmul.f32 %v5880, %v5872
        %v5883 = vmul.f32 %v5880, %v5873
        %v5884 = vmul.f32 %v5880, %v5874
        %v5885 = vmul.f32 %v5880, %v5875
        %v5886 = vmul.f32 %v5880, %v5876
        %v5887 = vmul.f32 %v5880, %v5877
        %v5888 = vmul.f32 %v5880, %v5878
        %v5889 = vadd.f32 %v5843, %v5881
        %v5890 = vadd.f32 %v5844, %v5882
        %v5891 = vadd.f32 %v5845, %v5883
        %v5892 = vadd.f32 %v5846, %v5884
        %v5893 = vadd.f32 %v5847, %v5885
        %v5894 = vadd.f32 %v5848, %v5886
        %v5895 = vadd.f32 %v5849, %v5887
        %v5896 = vadd.f32 %v5850, %v5888
        %s5897 = sld [smem:[#allocation3 + $0x70]]
        %v5898 = vstv %s5897
        %v5899 = vmul.f32 %v5898, %v3681
        %v5900 = vmul.f32 %v5898, %v3682
        %v5901 = vmul.f32 %v5898, %v3683
        %v5902 = vmul.f32 %v5898, %v3684
        %v5903 = vmul.f32 %v5898, %v3685
        %v5904 = vmul.f32 %v5898, %v3686
        %v5905 = vmul.f32 %v5898, %v3687
        %v5906 = vmul.f32 %v5898, %v3688
        %s5907 = sld [smem:[#allocation5 + $0x70]]
        %v5908 = vstv %s5907
        %v5909 = vadd.f32 %v5899, %v5908
        %v5910 = vadd.f32 %v5900, %v5908
        %v5911 = vadd.f32 %v5901, %v5908
        %v5912 = vadd.f32 %v5902, %v5908
        %v5913 = vadd.f32 %v5903, %v5908
        %v5914 = vadd.f32 %v5904, %v5908
        %v5915 = vadd.f32 %v5905, %v5908
        %v5916 = vadd.f32 %v5906, %v5908
        %v5917 = vmax.f32 %v5909, 0.0
        %v5918 = vmax.f32 %v5910, 0.0
        %v5919 = vmax.f32 %v5911, 0.0
        %v5920 = vmax.f32 %v5912, 0.0
        %v5921 = vmax.f32 %v5913, 0.0
        %v5922 = vmax.f32 %v5914, 0.0
        %v5923 = vmax.f32 %v5915, 0.0
        %v5924 = vmax.f32 %v5916, 0.0
        %s5925 = sld [smem:[#allocation7 + $0x70]]
        %v5926 = vstv %s5925
        %v5927 = vmul.f32 %v5926, %v5917
        %v5928 = vmul.f32 %v5926, %v5918
        %v5929 = vmul.f32 %v5926, %v5919
        %v5930 = vmul.f32 %v5926, %v5920
        %v5931 = vmul.f32 %v5926, %v5921
        %v5932 = vmul.f32 %v5926, %v5922
        %v5933 = vmul.f32 %v5926, %v5923
        %v5934 = vmul.f32 %v5926, %v5924
        %v5935 = vadd.f32 %v5889, %v5927
        %v5936 = vadd.f32 %v5890, %v5928
        %v5937 = vadd.f32 %v5891, %v5929
        %v5938 = vadd.f32 %v5892, %v5930
        %v5939 = vadd.f32 %v5893, %v5931
        %v5940 = vadd.f32 %v5894, %v5932
        %v5941 = vadd.f32 %v5895, %v5933
        %v5942 = vadd.f32 %v5896, %v5934
        %s5943 = sld [smem:[#allocation3 + $0x71]]
        %v5944 = vstv %s5943
        %v5945 = vmul.f32 %v5944, %v3681
        %v5946 = vmul.f32 %v5944, %v3682
        %v5947 = vmul.f32 %v5944, %v3683
        %v5948 = vmul.f32 %v5944, %v3684
        %v5949 = vmul.f32 %v5944, %v3685
        %v5950 = vmul.f32 %v5944, %v3686
        %v5951 = vmul.f32 %v5944, %v3687
        %v5952 = vmul.f32 %v5944, %v3688
        %s5953 = sld [smem:[#allocation5 + $0x71]]
        %v5954 = vstv %s5953
        %v5955 = vadd.f32 %v5945, %v5954
        %v5956 = vadd.f32 %v5946, %v5954
        %v5957 = vadd.f32 %v5947, %v5954
        %v5958 = vadd.f32 %v5948, %v5954
        %v5959 = vadd.f32 %v5949, %v5954
        %v5960 = vadd.f32 %v5950, %v5954
        %v5961 = vadd.f32 %v5951, %v5954
        %v5962 = vadd.f32 %v5952, %v5954
        %v5963 = vmax.f32 %v5955, 0.0
        %v5964 = vmax.f32 %v5956, 0.0
        %v5965 = vmax.f32 %v5957, 0.0
        %v5966 = vmax.f32 %v5958, 0.0
        %v5967 = vmax.f32 %v5959, 0.0
        %v5968 = vmax.f32 %v5960, 0.0
        %v5969 = vmax.f32 %v5961, 0.0
        %v5970 = vmax.f32 %v5962, 0.0
        %s5971 = sld [smem:[#allocation7 + $0x71]]
        %v5972 = vstv %s5971
        %v5973 = vmul.f32 %v5972, %v5963
        %v5974 = vmul.f32 %v5972, %v5964
        %v5975 = vmul.f32 %v5972, %v5965
        %v5976 = vmul.f32 %v5972, %v5966
        %v5977 = vmul.f32 %v5972, %v5967
        %v5978 = vmul.f32 %v5972, %v5968
        %v5979 = vmul.f32 %v5972, %v5969
        %v5980 = vmul.f32 %v5972, %v5970
        %v5981 = vadd.f32 %v5935, %v5973
        %v5982 = vadd.f32 %v5936, %v5974
        %v5983 = vadd.f32 %v5937, %v5975
        %v5984 = vadd.f32 %v5938, %v5976
        %v5985 = vadd.f32 %v5939, %v5977
        %v5986 = vadd.f32 %v5940, %v5978
        %v5987 = vadd.f32 %v5941, %v5979
        %v5988 = vadd.f32 %v5942, %v5980
        %s5989 = sld [smem:[#allocation3 + $0x72]]
        %v5990 = vstv %s5989
        %v5991 = vmul.f32 %v5990, %v3681
        %v5992 = vmul.f32 %v5990, %v3682
        %v5993 = vmul.f32 %v5990, %v3683
        %v5994 = vmul.f32 %v5990, %v3684
        %v5995 = vmul.f32 %v5990, %v3685
        %v5996 = vmul.f32 %v5990, %v3686
        %v5997 = vmul.f32 %v5990, %v3687
        %v5998 = vmul.f32 %v5990, %v3688
        %s5999 = sld [smem:[#allocation5 + $0x72]]
        %v6000 = vstv %s5999
        %v6001 = vadd.f32 %v5991, %v6000
        %v6002 = vadd.f32 %v5992, %v6000
        %v6003 = vadd.f32 %v5993, %v6000
        %v6004 = vadd.f32 %v5994, %v6000
        %v6005 = vadd.f32 %v5995, %v6000
        %v6006 = vadd.f32 %v5996, %v6000
        %v6007 = vadd.f32 %v5997, %v6000
        %v6008 = vadd.f32 %v5998, %v6000
        %v6009 = vmax.f32 %v6001, 0.0
        %v6010 = vmax.f32 %v6002, 0.0
        %v6011 = vmax.f32 %v6003, 0.0
        %v6012 = vmax.f32 %v6004, 0.0
        %v6013 = vmax.f32 %v6005, 0.0
        %v6014 = vmax.f32 %v6006, 0.0
        %v6015 = vmax.f32 %v6007, 0.0
        %v6016 = vmax.f32 %v6008, 0.0
        %s6017 = sld [smem:[#allocation7 + $0x72]]
        %v6018 = vstv %s6017
        %v6019 = vmul.f32 %v6018, %v6009
        %v6020 = vmul.f32 %v6018, %v6010
        %v6021 = vmul.f32 %v6018, %v6011
        %v6022 = vmul.f32 %v6018, %v6012
        %v6023 = vmul.f32 %v6018, %v6013
        %v6024 = vmul.f32 %v6018, %v6014
        %v6025 = vmul.f32 %v6018, %v6015
        %v6026 = vmul.f32 %v6018, %v6016
        %v6027 = vadd.f32 %v5981, %v6019
        %v6028 = vadd.f32 %v5982, %v6020
        %v6029 = vadd.f32 %v5983, %v6021
        %v6030 = vadd.f32 %v5984, %v6022
        %v6031 = vadd.f32 %v5985, %v6023
        %v6032 = vadd.f32 %v5986, %v6024
        %v6033 = vadd.f32 %v5987, %v6025
        %v6034 = vadd.f32 %v5988, %v6026
        %s6035 = sld [smem:[#allocation3 + $0x73]]
        %v6036 = vstv %s6035
        %v6037 = vmul.f32 %v6036, %v3681
        %v6038 = vmul.f32 %v6036, %v3682
        %v6039 = vmul.f32 %v6036, %v3683
        %v6040 = vmul.f32 %v6036, %v3684
        %v6041 = vmul.f32 %v6036, %v3685
        %v6042 = vmul.f32 %v6036, %v3686
        %v6043 = vmul.f32 %v6036, %v3687
        %v6044 = vmul.f32 %v6036, %v3688
        %s6045 = sld [smem:[#allocation5 + $0x73]]
        %v6046 = vstv %s6045
        %v6047 = vadd.f32 %v6037, %v6046
        %v6048 = vadd.f32 %v6038, %v6046
        %v6049 = vadd.f32 %v6039, %v6046
        %v6050 = vadd.f32 %v6040, %v6046
        %v6051 = vadd.f32 %v6041, %v6046
        %v6052 = vadd.f32 %v6042, %v6046
        %v6053 = vadd.f32 %v6043, %v6046
        %v6054 = vadd.f32 %v6044, %v6046
        %v6055 = vmax.f32 %v6047, 0.0
        %v6056 = vmax.f32 %v6048, 0.0
        %v6057 = vmax.f32 %v6049, 0.0
        %v6058 = vmax.f32 %v6050, 0.0
        %v6059 = vmax.f32 %v6051, 0.0
        %v6060 = vmax.f32 %v6052, 0.0
        %v6061 = vmax.f32 %v6053, 0.0
        %v6062 = vmax.f32 %v6054, 0.0
        %s6063 = sld [smem:[#allocation7 + $0x73]]
        %v6064 = vstv %s6063
        %v6065 = vmul.f32 %v6064, %v6055
        %v6066 = vmul.f32 %v6064, %v6056
        %v6067 = vmul.f32 %v6064, %v6057
        %v6068 = vmul.f32 %v6064, %v6058
        %v6069 = vmul.f32 %v6064, %v6059
        %v6070 = vmul.f32 %v6064, %v6060
        %v6071 = vmul.f32 %v6064, %v6061
        %v6072 = vmul.f32 %v6064, %v6062
        %v6073 = vadd.f32 %v6027, %v6065
        %v6074 = vadd.f32 %v6028, %v6066
        %v6075 = vadd.f32 %v6029, %v6067
        %v6076 = vadd.f32 %v6030, %v6068
        %v6077 = vadd.f32 %v6031, %v6069
        %v6078 = vadd.f32 %v6032, %v6070
        %v6079 = vadd.f32 %v6033, %v6071
        %v6080 = vadd.f32 %v6034, %v6072
        %s6081 = sld [smem:[#allocation3 + $0x74]]
        %v6082 = vstv %s6081
        %v6083 = vmul.f32 %v6082, %v3681
        %v6084 = vmul.f32 %v6082, %v3682
        %v6085 = vmul.f32 %v6082, %v3683
        %v6086 = vmul.f32 %v6082, %v3684
        %v6087 = vmul.f32 %v6082, %v3685
        %v6088 = vmul.f32 %v6082, %v3686
        %v6089 = vmul.f32 %v6082, %v3687
        %v6090 = vmul.f32 %v6082, %v3688
        %s6091 = sld [smem:[#allocation5 + $0x74]]
        %v6092 = vstv %s6091
        %v6093 = vadd.f32 %v6083, %v6092
        %v6094 = vadd.f32 %v6084, %v6092
        %v6095 = vadd.f32 %v6085, %v6092
        %v6096 = vadd.f32 %v6086, %v6092
        %v6097 = vadd.f32 %v6087, %v6092
        %v6098 = vadd.f32 %v6088, %v6092
        %v6099 = vadd.f32 %v6089, %v6092
        %v6100 = vadd.f32 %v6090, %v6092
        %v6101 = vmax.f32 %v6093, 0.0
        %v6102 = vmax.f32 %v6094, 0.0
        %v6103 = vmax.f32 %v6095, 0.0
        %v6104 = vmax.f32 %v6096, 0.0
        %v6105 = vmax.f32 %v6097, 0.0
        %v6106 = vmax.f32 %v6098, 0.0
        %v6107 = vmax.f32 %v6099, 0.0
        %v6108 = vmax.f32 %v6100, 0.0
        %s6109 = sld [smem:[#allocation7 + $0x74]]
        %v6110 = vstv %s6109
        %v6111 = vmul.f32 %v6110, %v6101
        %v6112 = vmul.f32 %v6110, %v6102
        %v6113 = vmul.f32 %v6110, %v6103
        %v6114 = vmul.f32 %v6110, %v6104
        %v6115 = vmul.f32 %v6110, %v6105
        %v6116 = vmul.f32 %v6110, %v6106
        %v6117 = vmul.f32 %v6110, %v6107
        %v6118 = vmul.f32 %v6110, %v6108
        %v6119 = vadd.f32 %v6073, %v6111
        %v6120 = vadd.f32 %v6074, %v6112
        %v6121 = vadd.f32 %v6075, %v6113
        %v6122 = vadd.f32 %v6076, %v6114
        %v6123 = vadd.f32 %v6077, %v6115
        %v6124 = vadd.f32 %v6078, %v6116
        %v6125 = vadd.f32 %v6079, %v6117
        %v6126 = vadd.f32 %v6080, %v6118
        %s6127 = sld [smem:[#allocation3 + $0x75]]
        %v6128 = vstv %s6127
        %v6129 = vmul.f32 %v6128, %v3681
        %v6130 = vmul.f32 %v6128, %v3682
        %v6131 = vmul.f32 %v6128, %v3683
        %v6132 = vmul.f32 %v6128, %v3684
        %v6133 = vmul.f32 %v6128, %v3685
        %v6134 = vmul.f32 %v6128, %v3686
        %v6135 = vmul.f32 %v6128, %v3687
        %v6136 = vmul.f32 %v6128, %v3688
        %s6137 = sld [smem:[#allocation5 + $0x75]]
        %v6138 = vstv %s6137
        %v6139 = vadd.f32 %v6129, %v6138
        %v6140 = vadd.f32 %v6130, %v6138
        %v6141 = vadd.f32 %v6131, %v6138
        %v6142 = vadd.f32 %v6132, %v6138
        %v6143 = vadd.f32 %v6133, %v6138
        %v6144 = vadd.f32 %v6134, %v6138
        %v6145 = vadd.f32 %v6135, %v6138
        %v6146 = vadd.f32 %v6136, %v6138
        %v6147 = vmax.f32 %v6139, 0.0
        %v6148 = vmax.f32 %v6140, 0.0
        %v6149 = vmax.f32 %v6141, 0.0
        %v6150 = vmax.f32 %v6142, 0.0
        %v6151 = vmax.f32 %v6143, 0.0
        %v6152 = vmax.f32 %v6144, 0.0
        %v6153 = vmax.f32 %v6145, 0.0
        %v6154 = vmax.f32 %v6146, 0.0
        %s6155 = sld [smem:[#allocation7 + $0x75]]
        %v6156 = vstv %s6155
        %v6157 = vmul.f32 %v6156, %v6147
        %v6158 = vmul.f32 %v6156, %v6148
        %v6159 = vmul.f32 %v6156, %v6149
        %v6160 = vmul.f32 %v6156, %v6150
        %v6161 = vmul.f32 %v6156, %v6151
        %v6162 = vmul.f32 %v6156, %v6152
        %v6163 = vmul.f32 %v6156, %v6153
        %v6164 = vmul.f32 %v6156, %v6154
        %v6165 = vadd.f32 %v6119, %v6157
        %v6166 = vadd.f32 %v6120, %v6158
        %v6167 = vadd.f32 %v6121, %v6159
        %v6168 = vadd.f32 %v6122, %v6160
        %v6169 = vadd.f32 %v6123, %v6161
        %v6170 = vadd.f32 %v6124, %v6162
        %v6171 = vadd.f32 %v6125, %v6163
        %v6172 = vadd.f32 %v6126, %v6164
        %s6173 = sld [smem:[#allocation3 + $0x76]]
        %v6174 = vstv %s6173
        %v6175 = vmul.f32 %v6174, %v3681
        %v6176 = vmul.f32 %v6174, %v3682
        %v6177 = vmul.f32 %v6174, %v3683
        %v6178 = vmul.f32 %v6174, %v3684
        %v6179 = vmul.f32 %v6174, %v3685
        %v6180 = vmul.f32 %v6174, %v3686
        %v6181 = vmul.f32 %v6174, %v3687
        %v6182 = vmul.f32 %v6174, %v3688
        %s6183 = sld [smem:[#allocation5 + $0x76]]
        %v6184 = vstv %s6183
        %v6185 = vadd.f32 %v6175, %v6184
        %v6186 = vadd.f32 %v6176, %v6184
        %v6187 = vadd.f32 %v6177, %v6184
        %v6188 = vadd.f32 %v6178, %v6184
        %v6189 = vadd.f32 %v6179, %v6184
        %v6190 = vadd.f32 %v6180, %v6184
        %v6191 = vadd.f32 %v6181, %v6184
        %v6192 = vadd.f32 %v6182, %v6184
        %v6193 = vmax.f32 %v6185, 0.0
        %v6194 = vmax.f32 %v6186, 0.0
        %v6195 = vmax.f32 %v6187, 0.0
        %v6196 = vmax.f32 %v6188, 0.0
        %v6197 = vmax.f32 %v6189, 0.0
        %v6198 = vmax.f32 %v6190, 0.0
        %v6199 = vmax.f32 %v6191, 0.0
        %v6200 = vmax.f32 %v6192, 0.0
        %s6201 = sld [smem:[#allocation7 + $0x76]]
        %v6202 = vstv %s6201
        %v6203 = vmul.f32 %v6202, %v6193
        %v6204 = vmul.f32 %v6202, %v6194
        %v6205 = vmul.f32 %v6202, %v6195
        %v6206 = vmul.f32 %v6202, %v6196
        %v6207 = vmul.f32 %v6202, %v6197
        %v6208 = vmul.f32 %v6202, %v6198
        %v6209 = vmul.f32 %v6202, %v6199
        %v6210 = vmul.f32 %v6202, %v6200
        %v6211 = vadd.f32 %v6165, %v6203
        %v6212 = vadd.f32 %v6166, %v6204
        %v6213 = vadd.f32 %v6167, %v6205
        %v6214 = vadd.f32 %v6168, %v6206
        %v6215 = vadd.f32 %v6169, %v6207
        %v6216 = vadd.f32 %v6170, %v6208
        %v6217 = vadd.f32 %v6171, %v6209
        %v6218 = vadd.f32 %v6172, %v6210
        %s6219 = sld [smem:[#allocation3 + $0x77]]
        %v6220 = vstv %s6219
        %v6221 = vmul.f32 %v6220, %v3681
        %v6222 = vmul.f32 %v6220, %v3682
        %v6223 = vmul.f32 %v6220, %v3683
        %v6224 = vmul.f32 %v6220, %v3684
        %v6225 = vmul.f32 %v6220, %v3685
        %v6226 = vmul.f32 %v6220, %v3686
        %v6227 = vmul.f32 %v6220, %v3687
        %v6228 = vmul.f32 %v6220, %v3688
        %s6229 = sld [smem:[#allocation5 + $0x77]]
        %v6230 = vstv %s6229
        %v6231 = vadd.f32 %v6221, %v6230
        %v6232 = vadd.f32 %v6222, %v6230
        %v6233 = vadd.f32 %v6223, %v6230
        %v6234 = vadd.f32 %v6224, %v6230
        %v6235 = vadd.f32 %v6225, %v6230
        %v6236 = vadd.f32 %v6226, %v6230
        %v6237 = vadd.f32 %v6227, %v6230
        %v6238 = vadd.f32 %v6228, %v6230
        %v6239 = vmax.f32 %v6231, 0.0
        %v6240 = vmax.f32 %v6232, 0.0
        %v6241 = vmax.f32 %v6233, 0.0
        %v6242 = vmax.f32 %v6234, 0.0
        %v6243 = vmax.f32 %v6235, 0.0
        %v6244 = vmax.f32 %v6236, 0.0
        %v6245 = vmax.f32 %v6237, 0.0
        %v6246 = vmax.f32 %v6238, 0.0
        %s6247 = sld [smem:[#allocation7 + $0x77]]
        %v6248 = vstv %s6247
        %v6249 = vmul.f32 %v6248, %v6239
        %v6250 = vmul.f32 %v6248, %v6240
        %v6251 = vmul.f32 %v6248, %v6241
        %v6252 = vmul.f32 %v6248, %v6242
        %v6253 = vmul.f32 %v6248, %v6243
        %v6254 = vmul.f32 %v6248, %v6244
        %v6255 = vmul.f32 %v6248, %v6245
        %v6256 = vmul.f32 %v6248, %v6246
        %v6257 = vadd.f32 %v6211, %v6249
        %v6258 = vadd.f32 %v6212, %v6250
        %v6259 = vadd.f32 %v6213, %v6251
        %v6260 = vadd.f32 %v6214, %v6252
        %v6261 = vadd.f32 %v6215, %v6253
        %v6262 = vadd.f32 %v6216, %v6254
        %v6263 = vadd.f32 %v6217, %v6255
        %v6264 = vadd.f32 %v6218, %v6256
        %s6265 = sld [smem:[#allocation3 + $0x78]]
        %v6266 = vstv %s6265
        %v6267 = vmul.f32 %v6266, %v3681
        %v6268 = vmul.f32 %v6266, %v3682
        %v6269 = vmul.f32 %v6266, %v3683
        %v6270 = vmul.f32 %v6266, %v3684
        %v6271 = vmul.f32 %v6266, %v3685
        %v6272 = vmul.f32 %v6266, %v3686
        %v6273 = vmul.f32 %v6266, %v3687
        %v6274 = vmul.f32 %v6266, %v3688
        %s6275 = sld [smem:[#allocation5 + $0x78]]
        %v6276 = vstv %s6275
        %v6277 = vadd.f32 %v6267, %v6276
        %v6278 = vadd.f32 %v6268, %v6276
        %v6279 = vadd.f32 %v6269, %v6276
        %v6280 = vadd.f32 %v6270, %v6276
        %v6281 = vadd.f32 %v6271, %v6276
        %v6282 = vadd.f32 %v6272, %v6276
        %v6283 = vadd.f32 %v6273, %v6276
        %v6284 = vadd.f32 %v6274, %v6276
        %v6285 = vmax.f32 %v6277, 0.0
        %v6286 = vmax.f32 %v6278, 0.0
        %v6287 = vmax.f32 %v6279, 0.0
        %v6288 = vmax.f32 %v6280, 0.0
        %v6289 = vmax.f32 %v6281, 0.0
        %v6290 = vmax.f32 %v6282, 0.0
        %v6291 = vmax.f32 %v6283, 0.0
        %v6292 = vmax.f32 %v6284, 0.0
        %s6293 = sld [smem:[#allocation7 + $0x78]]
        %v6294 = vstv %s6293
        %v6295 = vmul.f32 %v6294, %v6285
        %v6296 = vmul.f32 %v6294, %v6286
        %v6297 = vmul.f32 %v6294, %v6287
        %v6298 = vmul.f32 %v6294, %v6288
        %v6299 = vmul.f32 %v6294, %v6289
        %v6300 = vmul.f32 %v6294, %v6290
        %v6301 = vmul.f32 %v6294, %v6291
        %v6302 = vmul.f32 %v6294, %v6292
        %v6303 = vadd.f32 %v6257, %v6295
        %v6304 = vadd.f32 %v6258, %v6296
        %v6305 = vadd.f32 %v6259, %v6297
        %v6306 = vadd.f32 %v6260, %v6298
        %v6307 = vadd.f32 %v6261, %v6299
        %v6308 = vadd.f32 %v6262, %v6300
        %v6309 = vadd.f32 %v6263, %v6301
        %v6310 = vadd.f32 %v6264, %v6302
        %s6311 = sld [smem:[#allocation3 + $0x79]]
        %v6312 = vstv %s6311
        %v6313 = vmul.f32 %v6312, %v3681
        %v6314 = vmul.f32 %v6312, %v3682
        %v6315 = vmul.f32 %v6312, %v3683
        %v6316 = vmul.f32 %v6312, %v3684
        %v6317 = vmul.f32 %v6312, %v3685
        %v6318 = vmul.f32 %v6312, %v3686
        %v6319 = vmul.f32 %v6312, %v3687
        %v6320 = vmul.f32 %v6312, %v3688
        %s6321 = sld [smem:[#allocation5 + $0x79]]
        %v6322 = vstv %s6321
        %v6323 = vadd.f32 %v6313, %v6322
        %v6324 = vadd.f32 %v6314, %v6322
        %v6325 = vadd.f32 %v6315, %v6322
        %v6326 = vadd.f32 %v6316, %v6322
        %v6327 = vadd.f32 %v6317, %v6322
        %v6328 = vadd.f32 %v6318, %v6322
        %v6329 = vadd.f32 %v6319, %v6322
        %v6330 = vadd.f32 %v6320, %v6322
        %v6331 = vmax.f32 %v6323, 0.0
        %v6332 = vmax.f32 %v6324, 0.0
        %v6333 = vmax.f32 %v6325, 0.0
        %v6334 = vmax.f32 %v6326, 0.0
        %v6335 = vmax.f32 %v6327, 0.0
        %v6336 = vmax.f32 %v6328, 0.0
        %v6337 = vmax.f32 %v6329, 0.0
        %v6338 = vmax.f32 %v6330, 0.0
        %s6339 = sld [smem:[#allocation7 + $0x79]]
        %v6340 = vstv %s6339
        %v6341 = vmul.f32 %v6340, %v6331
        %v6342 = vmul.f32 %v6340, %v6332
        %v6343 = vmul.f32 %v6340, %v6333
        %v6344 = vmul.f32 %v6340, %v6334
        %v6345 = vmul.f32 %v6340, %v6335
        %v6346 = vmul.f32 %v6340, %v6336
        %v6347 = vmul.f32 %v6340, %v6337
        %v6348 = vmul.f32 %v6340, %v6338
        %v6349 = vadd.f32 %v6303, %v6341
        %v6350 = vadd.f32 %v6304, %v6342
        %v6351 = vadd.f32 %v6305, %v6343
        %v6352 = vadd.f32 %v6306, %v6344
        %v6353 = vadd.f32 %v6307, %v6345
        %v6354 = vadd.f32 %v6308, %v6346
        %v6355 = vadd.f32 %v6309, %v6347
        %v6356 = vadd.f32 %v6310, %v6348
        %s6357 = sld [smem:[#allocation3 + $0x7a]]
        %v6358 = vstv %s6357
        %v6359 = vmul.f32 %v6358, %v3681
        %v6360 = vmul.f32 %v6358, %v3682
        %v6361 = vmul.f32 %v6358, %v3683
        %v6362 = vmul.f32 %v6358, %v3684
        %v6363 = vmul.f32 %v6358, %v3685
        %v6364 = vmul.f32 %v6358, %v3686
        %v6365 = vmul.f32 %v6358, %v3687
        %v6366 = vmul.f32 %v6358, %v3688
        %s6367 = sld [smem:[#allocation5 + $0x7a]]
        %v6368 = vstv %s6367
        %v6369 = vadd.f32 %v6359, %v6368
        %v6370 = vadd.f32 %v6360, %v6368
        %v6371 = vadd.f32 %v6361, %v6368
        %v6372 = vadd.f32 %v6362, %v6368
        %v6373 = vadd.f32 %v6363, %v6368
        %v6374 = vadd.f32 %v6364, %v6368
        %v6375 = vadd.f32 %v6365, %v6368
        %v6376 = vadd.f32 %v6366, %v6368
        %v6377 = vmax.f32 %v6369, 0.0
        %v6378 = vmax.f32 %v6370, 0.0
        %v6379 = vmax.f32 %v6371, 0.0
        %v6380 = vmax.f32 %v6372, 0.0
        %v6381 = vmax.f32 %v6373, 0.0
        %v6382 = vmax.f32 %v6374, 0.0
        %v6383 = vmax.f32 %v6375, 0.0
        %v6384 = vmax.f32 %v6376, 0.0
        %s6385 = sld [smem:[#allocation7 + $0x7a]]
        %v6386 = vstv %s6385
        %v6387 = vmul.f32 %v6386, %v6377
        %v6388 = vmul.f32 %v6386, %v6378
        %v6389 = vmul.f32 %v6386, %v6379
        %v6390 = vmul.f32 %v6386, %v6380
        %v6391 = vmul.f32 %v6386, %v6381
        %v6392 = vmul.f32 %v6386, %v6382
        %v6393 = vmul.f32 %v6386, %v6383
        %v6394 = vmul.f32 %v6386, %v6384
        %v6395 = vadd.f32 %v6349, %v6387
        %v6396 = vadd.f32 %v6350, %v6388
        %v6397 = vadd.f32 %v6351, %v6389
        %v6398 = vadd.f32 %v6352, %v6390
        %v6399 = vadd.f32 %v6353, %v6391
        %v6400 = vadd.f32 %v6354, %v6392
        %v6401 = vadd.f32 %v6355, %v6393
        %v6402 = vadd.f32 %v6356, %v6394
        %s6403 = sld [smem:[#allocation3 + $0x7b]]
        %v6404 = vstv %s6403
        %v6405 = vmul.f32 %v6404, %v3681
        %v6406 = vmul.f32 %v6404, %v3682
        %v6407 = vmul.f32 %v6404, %v3683
        %v6408 = vmul.f32 %v6404, %v3684
        %v6409 = vmul.f32 %v6404, %v3685
        %v6410 = vmul.f32 %v6404, %v3686
        %v6411 = vmul.f32 %v6404, %v3687
        %v6412 = vmul.f32 %v6404, %v3688
        %s6413 = sld [smem:[#allocation5 + $0x7b]]
        %v6414 = vstv %s6413
        %v6415 = vadd.f32 %v6405, %v6414
        %v6416 = vadd.f32 %v6406, %v6414
        %v6417 = vadd.f32 %v6407, %v6414
        %v6418 = vadd.f32 %v6408, %v6414
        %v6419 = vadd.f32 %v6409, %v6414
        %v6420 = vadd.f32 %v6410, %v6414
        %v6421 = vadd.f32 %v6411, %v6414
        %v6422 = vadd.f32 %v6412, %v6414
        %v6423 = vmax.f32 %v6415, 0.0
        %v6424 = vmax.f32 %v6416, 0.0
        %v6425 = vmax.f32 %v6417, 0.0
        %v6426 = vmax.f32 %v6418, 0.0
        %v6427 = vmax.f32 %v6419, 0.0
        %v6428 = vmax.f32 %v6420, 0.0
        %v6429 = vmax.f32 %v6421, 0.0
        %v6430 = vmax.f32 %v6422, 0.0
        %s6431 = sld [smem:[#allocation7 + $0x7b]]
        %v6432 = vstv %s6431
        %v6433 = vmul.f32 %v6432, %v6423
        %v6434 = vmul.f32 %v6432, %v6424
        %v6435 = vmul.f32 %v6432, %v6425
        %v6436 = vmul.f32 %v6432, %v6426
        %v6437 = vmul.f32 %v6432, %v6427
        %v6438 = vmul.f32 %v6432, %v6428
        %v6439 = vmul.f32 %v6432, %v6429
        %v6440 = vmul.f32 %v6432, %v6430
        %v6441 = vadd.f32 %v6395, %v6433
        %v6442 = vadd.f32 %v6396, %v6434
        %v6443 = vadd.f32 %v6397, %v6435
        %v6444 = vadd.f32 %v6398, %v6436
        %v6445 = vadd.f32 %v6399, %v6437
        %v6446 = vadd.f32 %v6400, %v6438
        %v6447 = vadd.f32 %v6401, %v6439
        %v6448 = vadd.f32 %v6402, %v6440
        %s6449 = sld [smem:[#allocation3 + $0x7c]]
        %v6450 = vstv %s6449
        %v6451 = vmul.f32 %v6450, %v3681
        %v6452 = vmul.f32 %v6450, %v3682
        %v6453 = vmul.f32 %v6450, %v3683
        %v6454 = vmul.f32 %v6450, %v3684
        %v6455 = vmul.f32 %v6450, %v3685
        %v6456 = vmul.f32 %v6450, %v3686
        %v6457 = vmul.f32 %v6450, %v3687
        %v6458 = vmul.f32 %v6450, %v3688
        %s6459 = sld [smem:[#allocation5 + $0x7c]]
        %v6460 = vstv %s6459
        %v6461 = vadd.f32 %v6451, %v6460
        %v6462 = vadd.f32 %v6452, %v6460
        %v6463 = vadd.f32 %v6453, %v6460
        %v6464 = vadd.f32 %v6454, %v6460
        %v6465 = vadd.f32 %v6455, %v6460
        %v6466 = vadd.f32 %v6456, %v6460
        %v6467 = vadd.f32 %v6457, %v6460
        %v6468 = vadd.f32 %v6458, %v6460
        %v6469 = vmax.f32 %v6461, 0.0
        %v6470 = vmax.f32 %v6462, 0.0
        %v6471 = vmax.f32 %v6463, 0.0
        %v6472 = vmax.f32 %v6464, 0.0
        %v6473 = vmax.f32 %v6465, 0.0
        %v6474 = vmax.f32 %v6466, 0.0
        %v6475 = vmax.f32 %v6467, 0.0
        %v6476 = vmax.f32 %v6468, 0.0
        %s6477 = sld [smem:[#allocation7 + $0x7c]]
        %v6478 = vstv %s6477
        %v6479 = vmul.f32 %v6478, %v6469
        %v6480 = vmul.f32 %v6478, %v6470
        %v6481 = vmul.f32 %v6478, %v6471
        %v6482 = vmul.f32 %v6478, %v6472
        %v6483 = vmul.f32 %v6478, %v6473
        %v6484 = vmul.f32 %v6478, %v6474
        %v6485 = vmul.f32 %v6478, %v6475
        %v6486 = vmul.f32 %v6478, %v6476
        %v6487 = vadd.f32 %v6441, %v6479
        %v6488 = vadd.f32 %v6442, %v6480
        %v6489 = vadd.f32 %v6443, %v6481
        %v6490 = vadd.f32 %v6444, %v6482
        %v6491 = vadd.f32 %v6445, %v6483
        %v6492 = vadd.f32 %v6446, %v6484
        %v6493 = vadd.f32 %v6447, %v6485
        %v6494 = vadd.f32 %v6448, %v6486
        %s6495 = sld [smem:[#allocation3 + $0x7d]]
        %v6496 = vstv %s6495
        %v6497 = vmul.f32 %v6496, %v3681
        %v6498 = vmul.f32 %v6496, %v3682
        %v6499 = vmul.f32 %v6496, %v3683
        %v6500 = vmul.f32 %v6496, %v3684
        %v6501 = vmul.f32 %v6496, %v3685
        %v6502 = vmul.f32 %v6496, %v3686
        %v6503 = vmul.f32 %v6496, %v3687
        %v6504 = vmul.f32 %v6496, %v3688
        %s6505 = sld [smem:[#allocation5 + $0x7d]]
        %v6506 = vstv %s6505
        %v6507 = vadd.f32 %v6497, %v6506
        %v6508 = vadd.f32 %v6498, %v6506
        %v6509 = vadd.f32 %v6499, %v6506
        %v6510 = vadd.f32 %v6500, %v6506
        %v6511 = vadd.f32 %v6501, %v6506
        %v6512 = vadd.f32 %v6502, %v6506
        %v6513 = vadd.f32 %v6503, %v6506
        %v6514 = vadd.f32 %v6504, %v6506
        %v6515 = vmax.f32 %v6507, 0.0
        %v6516 = vmax.f32 %v6508, 0.0
        %v6517 = vmax.f32 %v6509, 0.0
        %v6518 = vmax.f32 %v6510, 0.0
        %v6519 = vmax.f32 %v6511, 0.0
        %v6520 = vmax.f32 %v6512, 0.0
        %v6521 = vmax.f32 %v6513, 0.0
        %v6522 = vmax.f32 %v6514, 0.0
        %s6523 = sld [smem:[#allocation7 + $0x7d]]
        %v6524 = vstv %s6523
        %v6525 = vmul.f32 %v6524, %v6515
        %v6526 = vmul.f32 %v6524, %v6516
        %v6527 = vmul.f32 %v6524, %v6517
        %v6528 = vmul.f32 %v6524, %v6518
        %v6529 = vmul.f32 %v6524, %v6519
        %v6530 = vmul.f32 %v6524, %v6520
        %v6531 = vmul.f32 %v6524, %v6521
        %v6532 = vmul.f32 %v6524, %v6522
        %v6533 = vadd.f32 %v6487, %v6525
        %v6534 = vadd.f32 %v6488, %v6526
        %v6535 = vadd.f32 %v6489, %v6527
        %v6536 = vadd.f32 %v6490, %v6528
        %v6537 = vadd.f32 %v6491, %v6529
        %v6538 = vadd.f32 %v6492, %v6530
        %v6539 = vadd.f32 %v6493, %v6531
        %v6540 = vadd.f32 %v6494, %v6532
        %s6541 = sld [smem:[#allocation3 + $0x7e]]
        %v6542 = vstv %s6541
        %v6543 = vmul.f32 %v6542, %v3681
        %v6544 = vmul.f32 %v6542, %v3682
        %v6545 = vmul.f32 %v6542, %v3683
        %v6546 = vmul.f32 %v6542, %v3684
        %v6547 = vmul.f32 %v6542, %v3685
        %v6548 = vmul.f32 %v6542, %v3686
        %v6549 = vmul.f32 %v6542, %v3687
        %v6550 = vmul.f32 %v6542, %v3688
        %s6551 = sld [smem:[#allocation5 + $0x7e]]
        %v6552 = vstv %s6551
        %v6553 = vadd.f32 %v6543, %v6552
        %v6554 = vadd.f32 %v6544, %v6552
        %v6555 = vadd.f32 %v6545, %v6552
        %v6556 = vadd.f32 %v6546, %v6552
        %v6557 = vadd.f32 %v6547, %v6552
        %v6558 = vadd.f32 %v6548, %v6552
        %v6559 = vadd.f32 %v6549, %v6552
        %v6560 = vadd.f32 %v6550, %v6552
        %v6561 = vmax.f32 %v6553, 0.0
        %v6562 = vmax.f32 %v6554, 0.0
        %v6563 = vmax.f32 %v6555, 0.0
        %v6564 = vmax.f32 %v6556, 0.0
        %v6565 = vmax.f32 %v6557, 0.0
        %v6566 = vmax.f32 %v6558, 0.0
        %v6567 = vmax.f32 %v6559, 0.0
        %v6568 = vmax.f32 %v6560, 0.0
        %s6569 = sld [smem:[#allocation7 + $0x7e]]
        %v6570 = vstv %s6569
        %v6571 = vmul.f32 %v6570, %v6561
        %v6572 = vmul.f32 %v6570, %v6562
        %v6573 = vmul.f32 %v6570, %v6563
        %v6574 = vmul.f32 %v6570, %v6564
        %v6575 = vmul.f32 %v6570, %v6565
        %v6576 = vmul.f32 %v6570, %v6566
        %v6577 = vmul.f32 %v6570, %v6567
        %v6578 = vmul.f32 %v6570, %v6568
        %v6579 = vadd.f32 %v6533, %v6571
        %v6580 = vadd.f32 %v6534, %v6572
        %v6581 = vadd.f32 %v6535, %v6573
        %v6582 = vadd.f32 %v6536, %v6574
        %v6583 = vadd.f32 %v6537, %v6575
        %v6584 = vadd.f32 %v6538, %v6576
        %v6585 = vadd.f32 %v6539, %v6577
        %v6586 = vadd.f32 %v6540, %v6578
        %s6587 = sld [smem:[#allocation3 + $0x7f]]
        %v6588 = vstv %s6587
        %v6589 = vmul.f32 %v6588, %v3681
        %v6590 = vmul.f32 %v6588, %v3682
        %v6591 = vmul.f32 %v6588, %v3683
        %v6592 = vmul.f32 %v6588, %v3684
        %v6593 = vmul.f32 %v6588, %v3685
        %v6594 = vmul.f32 %v6588, %v3686
        %v6595 = vmul.f32 %v6588, %v3687
        %v6596 = vmul.f32 %v6588, %v3688
        %s6597 = sld [smem:[#allocation5 + $0x7f]]
        %v6598 = vstv %s6597
        %v6599 = vadd.f32 %v6589, %v6598
        %v6600 = vadd.f32 %v6590, %v6598
        %v6601 = vadd.f32 %v6591, %v6598
        %v6602 = vadd.f32 %v6592, %v6598
        %v6603 = vadd.f32 %v6593, %v6598
        %v6604 = vadd.f32 %v6594, %v6598
        %v6605 = vadd.f32 %v6595, %v6598
        %v6606 = vadd.f32 %v6596, %v6598
        %v6607 = vmax.f32 %v6599, 0.0
        %v6608 = vmax.f32 %v6600, 0.0
        %v6609 = vmax.f32 %v6601, 0.0
        %v6610 = vmax.f32 %v6602, 0.0
        %v6611 = vmax.f32 %v6603, 0.0
        %v6612 = vmax.f32 %v6604, 0.0
        %v6613 = vmax.f32 %v6605, 0.0
        %v6614 = vmax.f32 %v6606, 0.0
        %s6615 = sld [smem:[#allocation7 + $0x7f]]
        %v6616 = vstv %s6615
        %v6617 = vmul.f32 %v6616, %v6607
        %v6618 = vmul.f32 %v6616, %v6608
        %v6619 = vmul.f32 %v6616, %v6609
        %v6620 = vmul.f32 %v6616, %v6610
        %v6621 = vmul.f32 %v6616, %v6611
        %v6622 = vmul.f32 %v6616, %v6612
        %v6623 = vmul.f32 %v6616, %v6613
        %v6624 = vmul.f32 %v6616, %v6614
        %v6625 = vadd.f32 %v6579, %v6617
        %v6626 = vadd.f32 %v6580, %v6618
        %v6627 = vadd.f32 %v6581, %v6619
        %v6628 = vadd.f32 %v6582, %v6620
        %v6629 = vadd.f32 %v6583, %v6621
        %v6630 = vadd.f32 %v6584, %v6622
        %v6631 = vadd.f32 %v6585, %v6623
        %v6632 = vadd.f32 %v6586, %v6624
        %v6633 = vadd.f32 %v3681, %v6625
        %v6634 = vadd.f32 %v3682, %v6626
        %v6635 = vadd.f32 %v3683, %v6627
        %v6636 = vadd.f32 %v3684, %v6628
        %v6637 = vadd.f32 %v3685, %v6629
        %v6638 = vadd.f32 %v3686, %v6630
        %v6639 = vadd.f32 %v3687, %v6631
        %v6640 = vadd.f32 %v3688, %v6632
        %s6641 = sld [smem:[#allocation8 + $0x1]]
        %v6642 = vstv %s6641
        %v6643 = vadd.f32 %v6633, %v6642
        %v6644 = vadd.f32 %v6634, %v6642
        %v6645 = vadd.f32 %v6635, %v6642
        %v6646 = vadd.f32 %v6636, %v6642
        %v6647 = vadd.f32 %v6637, %v6642
        %v6648 = vadd.f32 %v6638, %v6642
        %v6649 = vadd.f32 %v6639, %v6642
        %v6650 = vadd.f32 %v6640, %v6642
        %v6651 = vld [vmem:[%s7] sm:$0xff]
        %v6652 = vld [vmem:[%s7 + $0x8] sm:$0xff]
        %v6653 = vld [vmem:[%s7 + $0x10] sm:$0xff]
        %v6654 = vld [vmem:[%s7 + $0x18] sm:$0xff]
        %v6655 = vld [vmem:[%s8] sm:$0xff]
        %v6656 = vld [vmem:[%s8 + $0x8] sm:$0xff]
        %v6657 = vld [vmem:[%s8 + $0x10] sm:$0xff]
        %v6658 = vld [vmem:[%s8 + $0x18] sm:$0xff]
        %6660 = vset.pattern.permute.xlu0 0
        %6661 = vperm.xlu0 %6660, %v6655
        %v6662 = vpop.permute.xlu0 %6661
        %6665 = vset.pattern.permute.xlu0 0
        %6666 = vperm.xlu0 %6665, %v6656
        %v6667 = vpop.permute.xlu0 %6666
        %6670 = vset.pattern.permute.xlu0 0
        %6671 = vperm.xlu0 %6670, %v6657
        %v6672 = vpop.permute.xlu0 %6671
        %6675 = vset.pattern.permute.xlu0 0
        %6676 = vperm.xlu0 %6675, %v6658
        %v6677 = vpop.permute.xlu0 %6676
        %v6680 = vsel %vm506, %v6651, 0
        %v6683 = vsel %vm506, %v6652, 0
        %v6686 = vsel %vm506, %v6653, 0
        %v6689 = vsel %vm506, %v6654, 0
        %6691 = vmatpush.msra.mxu0 0.0
        %6692 = vmatpush.msra.mxu0 0.0
        %6693 = vmatpush.msra.mxu0 0.0
        %6694 = vmatpush.msra.mxu0 0.0
        %6695 = vmatpush.msra.mxu0 0.0
        %6696 = vmatpush.msra.mxu0 0.0
        %6697 = vmatpush.msra.mxu0 0.0
        %6698 = vmatpush.msra.mxu0 0.0
        %6699 = vmatpush.msra.mxu0 %v6650
        %6700 = vmatpush.msra.mxu0 %v6649
        %6701 = vmatpush.msra.mxu0 %v6648
        %6702 = vmatpush.msra.mxu0 %v6647
        %6703 = vmatpush.msra.mxu0 %v6646
        %6704 = vmatpush.msra.mxu0 %v6645
        %6705 = vmatpush.msra.mxu0 %v6644
        %6706 = vmatpush.msra.mxu0 %v6643
        %6707 = vmatmul.f32.gmra.mxu0 %v6680
        %v6708 = vpop.f32.mrf.mxu0
        %v6709 = vadd.f32 %v6662, %v6708
        %6710 = vmatmul.f32.gmra.mxu0 %v6683
        %v6711 = vpop.f32.mrf.mxu0
        %v6712 = vadd.f32 %v6667, %v6711
        %6713 = vmatmul.f32.gmra.mxu0 %v6686
        %v6714 = vpop.f32.mrf.mxu0
        %v6715 = vadd.f32 %v6672, %v6714
        %6716 = vmatmul.f32.gmra.mxu0 %v6689
        %v6717 = vpop.f32.mrf.mxu0
        %v6718 = vadd.f32 %v6677, %v6717
        %6719 = vdwg.mxu0
        %6720 = vst [vmem:[%s441] sm:$0xff] %v6709
        %6721 = vst [vmem:[%s441 + $0x8] sm:$0xff] %v6712
        %6722 = vst [vmem:[%s441 + $0x10] sm:$0xff] %v6715
        %6723 = vst [vmem:[%s441 + $0x18] sm:$0xff] %v6718
        %s6724 = sand.u32 %s225, 1
        %s6725 = sand.u32 %s225, 1
        %s6726 = smul.addr %s6725, 32
        %s6727 = scalar_lea.vmem [#allocation10], %s6726
        // Predicated region
        $region111: #{_tsmixer_forward_impl.1} parent=89 // pred_check
          %p6728 = pneg %p235
        $region112: #{_tsmixer_forward_impl.1} parent=89 // pred_check_branch
          %6730 = sbr.rel (%p6728) target = $region114
        $region113: #{_tsmixer_forward_impl.1} parent=89 // pred_region
          %s6731 = smul.addr %s23, 8
          %s6732 = scalar_lea.vmem %s9, %s6731
          // Predicated region
          $region115: #{_tsmixer_forward_impl.1} parent=113 // pred_check
            _
          $region116: #{_tsmixer_forward_impl.1} parent=113 // pred_check_branch
            %6734 = sbr.rel (0) target = $region118
          $region117: #{_tsmixer_forward_impl.1} parent=113 // pred_region
            // Predicated region
            $region119: #{_tsmixer_forward_impl.1} parent=117 // pred_check
              _
            $region120: #{_tsmixer_forward_impl.1} parent=117 // pred_check_branch
              %6736 = sbr.rel (0) target = $region122
            $region121: #{_tsmixer_forward_impl.1} parent=117 // pred_region
              // Predicated region
              $region134: #{_tsmixer_forward_impl.1} parent=121 // pred_check
                _
              $region135: #{_tsmixer_forward_impl.1} parent=121 // pred_check_branch
                %6758 = sbr.rel (0) target = $region137
              $region136: #{_tsmixer_forward_impl.1} parent=121 // pred_region
                loop: start=0, step=1, limit=1
                $region138: #{_tsmixer_forward_impl.1} parent=136 // loop_pre_header
                  _
                $region139: #{_tsmixer_forward_impl.1} parent=136 // loop_header
                  %s6760 = sphi 0, %s6764
                  %p6761 = scmp.ge.s32.totalorder %s6760, 1
                  %s6765 = sphi %s6727, %s6727
                  %s6766 = sphi %s6732, %s6732
                $region140: #{_tsmixer_forward_impl.1} parent=136 // loop_header_branch
                  %6763 = sbr.rel (%p6761) target = $region144
                $region141: #{_tsmixer_forward_impl.1} parent=136 // loop_body
                  %v6767 = vld [vmem:[%s6765] sm:$0xff]
                  %6768 = vst [vmem:[%s6766] sm:$0xff] %v6767
                  %v6769 = vld [vmem:[%s6765 + $0x8] sm:$0xff]
                  %6770 = vst [vmem:[%s6766 + $0x10] sm:$0xff] %v6769
                  %v6771 = vld [vmem:[%s6765 + $0x10] sm:$0xff]
                  %6772 = vst [vmem:[%s6766 + $0x20] sm:$0xff] %v6771
                  %v6773 = vld [vmem:[%s6765 + $0x18] sm:$0xff]
                  %6774 = vst [vmem:[%s6766 + $0x30] sm:$0xff] %v6773
                $region142: #{_tsmixer_forward_impl.1} parent=136 // loop_footer
                  %s6764 = sadd.s32 1, %s6760
                $region143: #{_tsmixer_forward_impl.1} parent=136 // loop_footer_branch
                  %6759 = sbr.rel target = $region139
                $region144: #{_tsmixer_forward_impl.1} parent=136 // loop_exit
                  _
              $region137: #{_tsmixer_forward_impl.1} parent=121 // pred_fallthru
                _
              // Predicated region
              $region145: #{_tsmixer_forward_impl.1} parent=121 // pred_check
                _
              $region146: #{_tsmixer_forward_impl.1} parent=121 // pred_check_branch
                %6776 = sbr.rel target = $region148
              $region147: #{_tsmixer_forward_impl.1} parent=121 // pred_region
                _
              $region148: #{_tsmixer_forward_impl.1} parent=121 // pred_fallthru
                _
            $region122: #{_tsmixer_forward_impl.1} parent=117 // pred_fallthru
              _
            // Predicated region
            $region123: #{_tsmixer_forward_impl.1} parent=117 // pred_check
              _
            $region124: #{_tsmixer_forward_impl.1} parent=117 // pred_check_branch
              %6738 = sbr.rel target = $region126
            $region125: #{_tsmixer_forward_impl.1} parent=117 // pred_region
              %s6740 = ssub.s32 256, 1
              loop: start=0, step=1, limit=1
              $region127: #{_tsmixer_forward_impl.1} parent=125 // loop_pre_header
                _
              $region128: #{_tsmixer_forward_impl.1} parent=125 // loop_header
                %s6742 = sphi 0, %s6746
                %p6743 = scmp.ge.s32.totalorder %s6742, 1
                %s6747 = sphi %s6727, %s6727
                %s6748 = sphi %s6732, %s6732
              $region129: #{_tsmixer_forward_impl.1} parent=125 // loop_header_branch
                %6745 = sbr.rel (%p6743) target = $region133
              $region130: #{_tsmixer_forward_impl.1} parent=125 // loop_body
                %v6749 = vld [vmem:[%s6747] sm:%s6740]
                %6750 = vst [vmem:[%s6748] sm:%s6740] %v6749
                %v6751 = vld [vmem:[%s6747 + $0x8] sm:%s6740]
                %6752 = vst [vmem:[%s6748 + $0x10] sm:%s6740] %v6751
                %v6753 = vld [vmem:[%s6747 + $0x10] sm:%s6740]
                %6754 = vst [vmem:[%s6748 + $0x20] sm:%s6740] %v6753
                %v6755 = vld [vmem:[%s6747 + $0x18] sm:%s6740]
                %6756 = vst [vmem:[%s6748 + $0x30] sm:%s6740] %v6755
              $region131: #{_tsmixer_forward_impl.1} parent=125 // loop_footer
                %s6746 = sadd.s32 1, %s6742
              $region132: #{_tsmixer_forward_impl.1} parent=125 // loop_footer_branch
                %6741 = sbr.rel target = $region128
              $region133: #{_tsmixer_forward_impl.1} parent=125 // loop_exit
                _
            $region126: #{_tsmixer_forward_impl.1} parent=117 // pred_fallthru
              _
          $region118: #{_tsmixer_forward_impl.1} parent=113 // pred_fallthru
            _
          %6777 = vnop
        $region114: #{_tsmixer_forward_impl.1} parent=89 // pred_fallthru
          _
      $region90: #{_tsmixer_forward_impl.1} parent=5 // pred_fallthru
        _
      %p6778 = scmp.le.s32.totalorder 2, %s18
      // Predicated region
      $region149: #{_tsmixer_forward_impl.1} parent=5 // pred_check
        %p6779 = pneg %p6778
      $region150: #{_tsmixer_forward_impl.1} parent=5 // pred_check_branch
        %6781 = sbr.rel (%p6779) target = $region152
      $region151: #{_tsmixer_forward_impl.1} parent=5 // pred_region
        %s6782 = ssub.s32 %s18, 2
        // Predicated region
        $region153: #{_tsmixer_forward_impl.1} parent=151 // pred_check
          %p6783 = pneg %p241
        $region154: #{_tsmixer_forward_impl.1} parent=151 // pred_check_branch
          %6785 = sbr.rel (%p6783) target = $region156
        $region155: #{_tsmixer_forward_impl.1} parent=151 // pred_region
          %s6786 = sand.u32 %s226, 1
          %s6787 = sand.u32 %s226, 1
          %s6788 = smul.addr %s6787, 32
          %s6789 = scalar_lea.vmem [#allocation10], %s6788
        $region156: #{_tsmixer_forward_impl.1} parent=151 // pred_fallthru
          _
      $region152: #{_tsmixer_forward_impl.1} parent=5 // pred_fallthru
        _
    $region6: #{_tsmixer_forward_impl.1} parent=1 // loop_footer
      %s22 = sadd.s32 1, %s18
    $region7: #{_tsmixer_forward_impl.1} parent=1 // loop_footer_branch
      %17 = sbr.rel target = $region3
    $region8: #{_tsmixer_forward_impl.1} parent=1 // loop_exit
      _
    %6790 = vsyncpa [#allocation4], 1
    %s6791 = scalar_lea.sflag [#allocation4], 1
    %6792 = vsyncpa %s6791, 1
    %6793 = vsyncpa [#allocation6], 1
    %6794 = vsyncpa [#allocation9], 1

</llo_original>
